<compile_context>
chip_gen: v7x
topology: tpu7x:2x2x1
jax: 0.10.0
libtpu: 0.0.40
codegen_flags: <defaults>
</compile_context>

<pallas_src>
import functools

import jax
import jax.numpy as jnp
from jax.experimental import pallas as pl
from jax.experimental.pallas import tpu as pltpu

BN_EPS = 1e-5


# ---------------------------------------------------------------------------
# Pallas kernels
# ---------------------------------------------------------------------------
def conv_tap_kernel(x_ref, w_ref, s_ref, b_ref, *rest,
                    taps, mfake, relu, has_res):
    """Implicit-GEMM conv for one (batch sample, cout tile).

    x_ref : (P, 1, R, C)   phase-decomposed, row-flattened padded activation
    w_ref : (T, C, tn)     pre-packed weights (T = kh*kw taps)
    s_ref : (1, tn)        folded-BN scale
    b_ref : (1, tn)        folded-BN bias
    r_ref : (1, mfake, tn) optional residual (same fake-row layout as output)
    o_ref : (1, mfake, tn)

    For tap t the activation slab is the contiguous row range
    [off_t, off_t + mfake) of phase p_t.  Halo ("fake") output columns are
    over-computed here and sliced away by the caller.
    """
    if has_res:
        r_ref, o_ref = rest
    else:
        (o_ref,) = rest

    p0, off0 = taps[0]
    acc = jnp.dot(x_ref[p0, 0, off0:off0 + mfake, :], w_ref[0],
                  preferred_element_type=jnp.float32)
    for t in range(1, len(taps)):
        p, off = taps[t]
        acc = acc + jnp.dot(x_ref[p, 0, off:off + mfake, :], w_ref[t],
                            preferred_element_type=jnp.float32)

    y = acc * s_ref[...] + b_ref[...]
    if has_res:
        y = y + r_ref[0].astype(jnp.float32)
    if relu:
        y = jnp.maximum(y, 0.0)
    o_ref[0] = y.astype(o_ref.dtype)


def head_kernel(x_ref, w_ref, b_ref, o_ref):
    """Fused global average pool + FC (output padded to 128 lanes)."""
    pooled = jnp.mean(x_ref[...].astype(jnp.float32), axis=1)        # (N, C)
    y = jnp.dot(pooled.astype(jnp.bfloat16), w_ref[...],
                preferred_element_type=jnp.float32)
    o_ref[...] = y + b_ref[...]


# ---------------------------------------------------------------------------
# Conv glue (plain-JAX layout prep) + Pallas wrapper
# ---------------------------------------------------------------------------
def _conv_geometry(H, W, kh, kw, stride, pad):
    Ho = (H + 2 * pad - kh) // stride + 1
    Wo = (W + 2 * pad - kw) // stride + 1
    Hp, Wp = H + 2 * pad, W + 2 * pad
    Hps = -(-Hp // stride) * stride          # round padded dims up to stride
    Wps = -(-Wp // stride) * stride
    Hq, Wq = Hps // stride, Wps // stride    # per-phase spatial dims
    taps = []
    for ki in range(kh):
        for kj in range(kw):
            phase = (ki % stride) * stride + (kj % stride)
            off = (ki // stride) * Wq + (kj // stride)
            taps.append((phase, off))
    mfake = Ho * Wq                          # fake-M rows (includes W halo)
    rows = max(Hq * Wq, max(off for _, off in taps) + mfake)
    rows = ((rows + 7) // 8) * 8             # sublane-aligned tail padding
    return Ho, Wo, Hps, Wps, Hq, Wq, taps, mfake, rows


def _phase_flatten(x, stride, pad, Hps, Wps, Hq, Wq, rows):
    """Pad NHWC x, split into stride*stride phases, flatten spatial rows."""
    N, H, W, C = x.shape
    xp = jnp.pad(x, ((0, 0),
                     (pad, Hps - H - pad),
                     (pad, Wps - W - pad),
                     (0, 0)))
    if stride == 1:
        phases = xp[None]                                    # (1,N,Hq,Wq,C)
    else:
        xr = xp.reshape(N, Hq, stride, Wq, stride, C)
        phases = xr.transpose(2, 4, 0, 1, 3, 5).reshape(
            stride * stride, N, Hq, Wq, C)
    flat = phases.reshape(stride * stride, N, Hq * Wq, C)
    return jnp.pad(flat, ((0, 0), (0, 0), (0, rows - Hq * Wq), (0, 0)))


def conv_bn(x, w_packed, scale, bias, kh, kw, stride, pad, relu,
            residual=None):
    """Conv (no bias) + folded BN (+ residual) (+ ReLU) as implicit GEMM."""
    N, H, W, C = x.shape
    T, C2, cout = w_packed.shape
    assert C == C2 and T == kh * kw
    Ho, Wo, Hps, Wps, Hq, Wq, taps, mfake, rows = _conv_geometry(
        H, W, kh, kw, stride, pad)

    xflat = _phase_flatten(x, stride, pad, Hps, Wps, Hq, Wq, rows)
    P = xflat.shape[0]

    res_fake = None
    if residual is not None:
        res_fake = jnp.pad(residual, ((0, 0), (0, 0), (0, Wq - Wo), (0, 0)))
        res_fake = res_fake.reshape(N, mfake, cout).astype(jnp.bfloat16)
    has_res = res_fake is not None

    tn = cout if cout <= 256 else 256        # 256-aligned cout tiles
    nj = cout // tn

    in_specs = [
        pl.BlockSpec((P, 1, rows, C), lambda j, n: (0, n, 0, 0)),
        pl.BlockSpec((T, C, tn), lambda j, n: (0, 0, j)),
        pl.BlockSpec((1, tn), lambda j, n: (0, j)),
        pl.BlockSpec((1, tn), lambda j, n: (0, j)),
    ]
    operands = [xflat, w_packed, scale, bias]
    if has_res:
        in_specs.append(pl.BlockSpec((1, mfake, tn), lambda j, n: (n, 0, j)))
        operands.append(res_fake)

    kernel = functools.partial(conv_tap_kernel, taps=tuple(taps),
                               mfake=mfake, relu=relu, has_res=has_res)
    out = pl.pallas_call(
        kernel,
        out_shape=jax.ShapeDtypeStruct((N, mfake, cout), jnp.bfloat16),
        grid_spec=pltpu.PrefetchScalarGridSpec(
            num_scalar_prefetch=0,
            grid=(nj, N),                    # batch innermost -> weight reuse
            in_specs=in_specs,
            out_specs=pl.BlockSpec((1, mfake, tn), lambda j, n: (n, 0, j)),
        ),
        compiler_params=pltpu.CompilerParams(
            dimension_semantics=("parallel", "parallel")),
    )(*operands)

    # Drop the over-computed horizontal halo columns.
    return out.reshape(N, Ho, Wq, cout)[:, :, :Wo, :]


def maxpool_3x3_s2(x):
    """3x3 / stride 2 / pad 1 max pool (NHWC) as a fused jnp.maximum tree."""
    N, H, W, C = x.shape
    k, s, pad = 3, 2, 1
    Ho = (H + 2 * pad - k) // s + 1
    Wo = (W + 2 * pad - k) // s + 1
    xp = jnp.pad(x, ((0, 0), (pad, pad), (pad, pad), (0, 0)),
                 constant_values=-jnp.inf)
    out = None
    for i in range(k):
        for j in range(k):
            tap = xp[:, i:i + s * Ho:s, j:j + s * Wo:s, :]
            out = tap if out is None else jnp.maximum(out, tap)
    return out


def avgpool_fc(x, fc_wp, fc_bp, num_classes):
    """Fused adaptive-avgpool(1x1) + Linear; padded 128-lane dense output."""
    N, H, W, C = x.shape
    n_pad = fc_wp.shape[1]
    xf = x.reshape(N, H * W, C).astype(jnp.bfloat16)
    out = pl.pallas_call(
        head_kernel,
        out_shape=jax.ShapeDtypeStruct((N, n_pad), jnp.float32),
        grid=(1,),
        in_specs=[
            pl.BlockSpec((N, H * W, C), lambda i: (0, 0, 0)),
            pl.BlockSpec((C, n_pad), lambda i: (0, 0)),
            pl.BlockSpec((1, n_pad), lambda i: (0, 0)),
        ],
        out_specs=pl.BlockSpec((N, n_pad), lambda i: (0, 0)),
    )(xf, fc_wp, fc_bp)
    return out[:, :num_classes]


# ---------------------------------------------------------------------------
# Parameters (synthetic, deterministic; pre-packed / BN pre-folded)
# ---------------------------------------------------------------------------
def make_conv_packed(key, cin, cout, k):
    fan_in = cin * k * k
    w = (jax.random.normal(key, (k, k, cin, cout))
         * jnp.sqrt(2.0 / fan_in)).astype(jnp.float32)
    return w.reshape(k * k, cin, cout).astype(jnp.bfloat16)


def make_bn(key, c):
    k1, k2, k3 = jax.random.split(key, 3)
    gamma = 1.0 + 0.1 * jax.random.normal(k1, (c,))
    beta = 0.1 * jax.random.normal(k2, (c,))
    mean = 0.05 * jax.random.normal(k3, (c,))
    var = jnp.ones((c,))
    scale = gamma / jnp.sqrt(var + BN_EPS)
    bias = beta - mean * scale
    return (scale.reshape(1, c).astype(jnp.float32),
            bias.reshape(1, c).astype(jnp.float32))


def init_params(key, in_channels, num_classes):
    keys = iter(jax.random.split(key, 64))
    params = {}
    params["conv1_w"] = make_conv_packed(next(keys), in_channels, 64, 7)
    params["bn1_s"], params["bn1_b"] = make_bn(next(keys), 64)

    layer_cfg = [(64, 64, 1), (64, 128, 2), (128, 256, 2), (256, 512, 2)]
    for li, (cin, cout, stride) in enumerate(layer_cfg):
        blocks = []
        for b in range(2):
            bin_c = cin if b == 0 else cout
            bstride = stride if b == 0 else 1
            p = {"stride": bstride}
            p["w1"] = make_conv_packed(next(keys), bin_c, cout, 3)
            p["s1"], p["b1"] = make_bn(next(keys), cout)
            p["w2"] = make_conv_packed(next(keys), cout, cout, 3)
            p["s2"], p["b2"] = make_bn(next(keys), cout)
            if b == 0 and (bstride != 1 or bin_c != cout):
                p["down_w"] = make_conv_packed(next(keys), bin_c, cout, 1)
                p["down_s"], p["down_b"] = make_bn(next(keys), cout)
            blocks.append(p)
        params[f"layer{li + 1}"] = blocks

    n_pad = max(128, ((num_classes + 127) // 128) * 128)
    fc_w = jax.random.normal(next(keys), (512, num_classes)) * 0.02
    params["fc_wp"] = jnp.zeros((512, n_pad), jnp.bfloat16).at[
        :, :num_classes].set(fc_w.astype(jnp.bfloat16))
    params["fc_bp"] = jnp.zeros((1, n_pad), jnp.float32)
    return params


# ---------------------------------------------------------------------------
# ResNet18 forward
# ---------------------------------------------------------------------------
def basic_block(x, p):
    stride = p["stride"]
    if "down_w" in p:
        identity = conv_bn(x, p["down_w"], p["down_s"], p["down_b"],
                           1, 1, stride, 0, relu=False)
    else:
        identity = x
    out = conv_bn(x, p["w1"], p["s1"], p["b1"], 3, 3, stride, 1, relu=True)
    out = conv_bn(out, p["w2"], p["s2"], p["b2"], 3, 3, 1, 1, relu=True,
                  residual=identity)
    return out


def resnet18_forward(x_nchw, params, num_classes):
    # Convert PyTorch-style NCHW input to NHWC bf16 for TPU kernels.
    x = jnp.transpose(x_nchw, (0, 2, 3, 1)).astype(jnp.bfloat16)
    x = conv_bn(x, params["conv1_w"], params["bn1_s"], params["bn1_b"],
                7, 7, 2, 3, relu=True)
    x = maxpool_3x3_s2(x)
    for li in range(1, 5):
        for p in params[f"layer{li}"]:
            x = basic_block(x, p)
    return avgpool_fc(x, params["fc_wp"], params["fc_bp"], num_classes)


# ---------------------------------------------------------------------------
if __name__ == "__main__":
    key = jax.random.PRNGKey(0)
    k_par, k_in = jax.random.split(key)

    in_channels = 4      # exercises the replaced conv1 (in_channels != 3)
    num_classes = 10
    batch, spatial = 2, 16

    params = init_params(k_par, in_channels, num_classes)
    x = jax.random.normal(k_in, (batch, in_channels, spatial, spatial),
                          jnp.float32)

    logits = resnet18_forward(x, params, num_classes)
    logits = jax.block_until_ready(logits)
    assert logits.shape == (batch, num_classes)
    assert bool(jnp.all(jnp.isfinite(logits)))
    print("KERNEL_OK")
</pallas_src>

<mosaic_0001>
module attributes {stable_mosaic.version = 11 : i64} {
  func.func @conv_tap_kernel(%arg0: i32, %arg1: i32, %arg2: memref<4x1x128x4xbf16, #tpu.memory_space<vmem>>, %arg3: memref<49x4x64xbf16, #tpu.memory_space<vmem>>, %arg4: memref<1x64xf32, #tpu.memory_space<vmem>>, %arg5: memref<1x64xf32, #tpu.memory_space<vmem>>, %arg6: memref<1x88x64xbf16, #tpu.memory_space<vmem>>) attributes {dimension_semantics = [#tpu.dimension_semantics<parallel>, #tpu.dimension_semantics<parallel>], iteration_bounds = array<i64: 1, 2>, scalar_prefetch = 0 : i64, scratch_operands = 0 : i64, tpu.core_type = #tpu.core_type<tc>, window_params = [{transform_indices = @transform_0, window_bounds = array<i64: 4, 1, 128, 4>}, {transform_indices = @transform_1, window_bounds = array<i64: 49, 4, 64>}, {transform_indices = @transform_2, window_bounds = array<i64: 1, 64>}, {transform_indices = @transform_3, window_bounds = array<i64: 1, 64>}, {transform_indices = @transform_4, window_bounds = array<i64: 1, 88, 64>}]} {
    %c0 = arith.constant 0 : index
    %c0_0 = arith.constant 0 : index
    %c0_1 = arith.constant 0 : index
    %c0_2 = arith.constant 0 : index
    %0 = vector.load %arg2[%c0, %c0_0, %c0_1, %c0_2] : memref<4x1x128x4xbf16, #tpu.memory_space<vmem>>, vector<1x1x88x4xbf16>
    %1 = vector.shape_cast %0 : vector<1x1x88x4xbf16> to vector<88x4xbf16>
    %c0_3 = arith.constant 0 : index
    %c0_4 = arith.constant 0 : index
    %c0_5 = arith.constant 0 : index
    %2 = vector.load %arg3[%c0_3, %c0_4, %c0_5] : memref<49x4x64xbf16, #tpu.memory_space<vmem>>, vector<1x4x64xbf16>
    %3 = vector.shape_cast %2 : vector<1x4x64xbf16> to vector<4x64xbf16>
    %cst = arith.constant dense<0.000000e+00> : vector<88x64xf32>
    %4 = tpu.matmul %1, %3, %cst {dimension_numbers = #tpu.dot_dimension_numbers<[1], [0], [0], [1], [0, 0, 1, 1], [], []>} : vector<88x4xbf16>, vector<4x64xbf16>, vector<88x64xf32> -> vector<88x64xf32>
    %c1 = arith.constant 1 : index
    %c0_6 = arith.constant 0 : index
    %c0_7 = arith.constant 0 : index
    %c0_8 = arith.constant 0 : index
    %5 = vector.load %arg2[%c1, %c0_6, %c0_7, %c0_8] : memref<4x1x128x4xbf16, #tpu.memory_space<vmem>>, vector<1x1x88x4xbf16>
    %6 = vector.shape_cast %5 : vector<1x1x88x4xbf16> to vector<88x4xbf16>
    %c1_9 = arith.constant 1 : index
    %c0_10 = arith.constant 0 : index
    %c0_11 = arith.constant 0 : index
    %7 = vector.load %arg3[%c1_9, %c0_10, %c0_11] : memref<49x4x64xbf16, #tpu.memory_space<vmem>>, vector<1x4x64xbf16>
    %8 = vector.shape_cast %7 : vector<1x4x64xbf16> to vector<4x64xbf16>
    %cst_12 = arith.constant dense<0.000000e+00> : vector<88x64xf32>
    %9 = tpu.matmul %6, %8, %cst_12 {dimension_numbers = #tpu.dot_dimension_numbers<[1], [0], [0], [1], [0, 0, 1, 1], [], []>} : vector<88x4xbf16>, vector<4x64xbf16>, vector<88x64xf32> -> vector<88x64xf32>
    %10 = arith.addf %4, %9 : vector<88x64xf32>
    %c0_13 = arith.constant 0 : index
    %c0_14 = arith.constant 0 : index
    %c1_15 = arith.constant 1 : index
    %c0_16 = arith.constant 0 : index
    %11 = vector.load %arg2[%c0_13, %c0_14, %c1_15, %c0_16] : memref<4x1x128x4xbf16, #tpu.memory_space<vmem>>, vector<1x1x88x4xbf16>
    %12 = vector.shape_cast %11 : vector<1x1x88x4xbf16> to vector<88x4xbf16>
    %c2 = arith.constant 2 : index
    %c0_17 = arith.constant 0 : index
    %c0_18 = arith.constant 0 : index
    %13 = vector.load %arg3[%c2, %c0_17, %c0_18] : memref<49x4x64xbf16, #tpu.memory_space<vmem>>, vector<1x4x64xbf16>
    %14 = vector.shape_cast %13 : vector<1x4x64xbf16> to vector<4x64xbf16>
    %cst_19 = arith.constant dense<0.000000e+00> : vector<88x64xf32>
    %15 = tpu.matmul %12, %14, %cst_19 {dimension_numbers = #tpu.dot_dimension_numbers<[1], [0], [0], [1], [0, 0, 1, 1], [], []>} : vector<88x4xbf16>, vector<4x64xbf16>, vector<88x64xf32> -> vector<88x64xf32>
    %16 = arith.addf %10, %15 : vector<88x64xf32>
    %c1_20 = arith.constant 1 : index
    %c0_21 = arith.constant 0 : index
    %c1_22 = arith.constant 1 : index
    %c0_23 = arith.constant 0 : index
    %17 = vector.load %arg2[%c1_20, %c0_21, %c1_22, %c0_23] : memref<4x1x128x4xbf16, #tpu.memory_space<vmem>>, vector<1x1x88x4xbf16>
    %18 = vector.shape_cast %17 : vector<1x1x88x4xbf16> to vector<88x4xbf16>
    %c3 = arith.constant 3 : index
    %c0_24 = arith.constant 0 : index
    %c0_25 = arith.constant 0 : index
    %19 = vector.load %arg3[%c3, %c0_24, %c0_25] : memref<49x4x64xbf16, #tpu.memory_space<vmem>>, vector<1x4x64xbf16>
    %20 = vector.shape_cast %19 : vector<1x4x64xbf16> to vector<4x64xbf16>
    %cst_26 = arith.constant dense<0.000000e+00> : vector<88x64xf32>
    %21 = tpu.matmul %18, %20, %cst_26 {dimension_numbers = #tpu.dot_dimension_numbers<[1], [0], [0], [1], [0, 0, 1, 1], [], []>} : vector<88x4xbf16>, vector<4x64xbf16>, vector<88x64xf32> -> vector<88x64xf32>
    %22 = arith.addf %16, %21 : vector<88x64xf32>
    %c0_27 = arith.constant 0 : index
    %c0_28 = arith.constant 0 : index
    %c2_29 = arith.constant 2 : index
    %c0_30 = arith.constant 0 : index
    %23 = vector.load %arg2[%c0_27, %c0_28, %c2_29, %c0_30] : memref<4x1x128x4xbf16, #tpu.memory_space<vmem>>, vector<1x1x88x4xbf16>
    %24 = vector.shape_cast %23 : vector<1x1x88x4xbf16> to vector<88x4xbf16>
    %c4 = arith.constant 4 : index
    %c0_31 = arith.constant 0 : index
    %c0_32 = arith.constant 0 : index
    %25 = vector.load %arg3[%c4, %c0_31, %c0_32] : memref<49x4x64xbf16, #tpu.memory_space<vmem>>, vector<1x4x64xbf16>
    %26 = vector.shape_cast %25 : vector<1x4x64xbf16> to vector<4x64xbf16>
    %cst_33 = arith.constant dense<0.000000e+00> : vector<88x64xf32>
    %27 = tpu.matmul %24, %26, %cst_33 {dimension_numbers = #tpu.dot_dimension_numbers<[1], [0], [0], [1], [0, 0, 1, 1], [], []>} : vector<88x4xbf16>, vector<4x64xbf16>, vector<88x64xf32> -> vector<88x64xf32>
    %28 = arith.addf %22, %27 : vector<88x64xf32>
    %c1_34 = arith.constant 1 : index
    %c0_35 = arith.constant 0 : index
    %c2_36 = arith.constant 2 : index
    %c0_37 = arith.constant 0 : index
    %29 = vector.load %arg2[%c1_34, %c0_35, %c2_36, %c0_37] : memref<4x1x128x4xbf16, #tpu.memory_space<vmem>>, vector<1x1x88x4xbf16>
    %30 = vector.shape_cast %29 : vector<1x1x88x4xbf16> to vector<88x4xbf16>
    %c5 = arith.constant 5 : index
    %c0_38 = arith.constant 0 : index
    %c0_39 = arith.constant 0 : index
    %31 = vector.load %arg3[%c5, %c0_38, %c0_39] : memref<49x4x64xbf16, #tpu.memory_space<vmem>>, vector<1x4x64xbf16>
    %32 = vector.shape_cast %31 : vector<1x4x64xbf16> to vector<4x64xbf16>
    %cst_40 = arith.constant dense<0.000000e+00> : vector<88x64xf32>
    %33 = tpu.matmul %30, %32, %cst_40 {dimension_numbers = #tpu.dot_dimension_numbers<[1], [0], [0], [1], [0, 0, 1, 1], [], []>} : vector<88x4xbf16>, vector<4x64xbf16>, vector<88x64xf32> -> vector<88x64xf32>
    %34 = arith.addf %28, %33 : vector<88x64xf32>
    %c0_41 = arith.constant 0 : index
    %c0_42 = arith.constant 0 : index
    %c3_43 = arith.constant 3 : index
    %c0_44 = arith.constant 0 : index
    %35 = vector.load %arg2[%c0_41, %c0_42, %c3_43, %c0_44] : memref<4x1x128x4xbf16, #tpu.memory_space<vmem>>, vector<1x1x88x4xbf16>
    %36 = vector.shape_cast %35 : vector<1x1x88x4xbf16> to vector<88x4xbf16>
    %c6 = arith.constant 6 : index
    %c0_45 = arith.constant 0 : index
    %c0_46 = arith.constant 0 : index
    %37 = vector.load %arg3[%c6, %c0_45, %c0_46] : memref<49x4x64xbf16, #tpu.memory_space<vmem>>, vector<1x4x64xbf16>
    %38 = vector.shape_cast %37 : vector<1x4x64xbf16> to vector<4x64xbf16>
    %cst_47 = arith.constant dense<0.000000e+00> : vector<88x64xf32>
    %39 = tpu.matmul %36, %38, %cst_47 {dimension_numbers = #tpu.dot_dimension_numbers<[1], [0], [0], [1], [0, 0, 1, 1], [], []>} : vector<88x4xbf16>, vector<4x64xbf16>, vector<88x64xf32> -> vector<88x64xf32>
    %40 = arith.addf %34, %39 : vector<88x64xf32>
    %c2_48 = arith.constant 2 : index
    %c0_49 = arith.constant 0 : index
    %c0_50 = arith.constant 0 : index
    %c0_51 = arith.constant 0 : index
    %41 = vector.load %arg2[%c2_48, %c0_49, %c0_50, %c0_51] : memref<4x1x128x4xbf16, #tpu.memory_space<vmem>>, vector<1x1x88x4xbf16>
    %42 = vector.shape_cast %41 : vector<1x1x88x4xbf16> to vector<88x4xbf16>
    %c7 = arith.constant 7 : index
    %c0_52 = arith.constant 0 : index
    %c0_53 = arith.constant 0 : index
    %43 = vector.load %arg3[%c7, %c0_52, %c0_53] : memref<49x4x64xbf16, #tpu.memory_space<vmem>>, vector<1x4x64xbf16>
    %44 = vector.shape_cast %43 : vector<1x4x64xbf16> to vector<4x64xbf16>
    %cst_54 = arith.constant dense<0.000000e+00> : vector<88x64xf32>
    %45 = tpu.matmul %42, %44, %cst_54 {dimension_numbers = #tpu.dot_dimension_numbers<[1], [0], [0], [1], [0, 0, 1, 1], [], []>} : vector<88x4xbf16>, vector<4x64xbf16>, vector<88x64xf32> -> vector<88x64xf32>
    %46 = arith.addf %40, %45 : vector<88x64xf32>
    %c3_55 = arith.constant 3 : index
    %c0_56 = arith.constant 0 : index
    %c0_57 = arith.constant 0 : index
    %c0_58 = arith.constant 0 : index
    %47 = vector.load %arg2[%c3_55, %c0_56, %c0_57, %c0_58] : memref<4x1x128x4xbf16, #tpu.memory_space<vmem>>, vector<1x1x88x4xbf16>
    %48 = vector.shape_cast %47 : vector<1x1x88x4xbf16> to vector<88x4xbf16>
    %c8 = arith.constant 8 : index
    %c0_59 = arith.constant 0 : index
    %c0_60 = arith.constant 0 : index
    %49 = vector.load %arg3[%c8, %c0_59, %c0_60] : memref<49x4x64xbf16, #tpu.memory_space<vmem>>, vector<1x4x64xbf16>
    %50 = vector.shape_cast %49 : vector<1x4x64xbf16> to vector<4x64xbf16>
    %cst_61 = arith.constant dense<0.000000e+00> : vector<88x64xf32>
    %51 = tpu.matmul %48, %50, %cst_61 {dimension_numbers = #tpu.dot_dimension_numbers<[1], [0], [0], [1], [0, 0, 1, 1], [], []>} : vector<88x4xbf16>, vector<4x64xbf16>, vector<88x64xf32> -> vector<88x64xf32>
    %52 = arith.addf %46, %51 : vector<88x64xf32>
    %c2_62 = arith.constant 2 : index
    %c0_63 = arith.constant 0 : index
    %c1_64 = arith.constant 1 : index
    %c0_65 = arith.constant 0 : index
    %53 = vector.load %arg2[%c2_62, %c0_63, %c1_64, %c0_65] : memref<4x1x128x4xbf16, #tpu.memory_space<vmem>>, vector<1x1x88x4xbf16>
    %54 = vector.shape_cast %53 : vector<1x1x88x4xbf16> to vector<88x4xbf16>
    %c9 = arith.constant 9 : index
    %c0_66 = arith.constant 0 : index
    %c0_67 = arith.constant 0 : index
    %55 = vector.load %arg3[%c9, %c0_66, %c0_67] : memref<49x4x64xbf16, #tpu.memory_space<vmem>>, vector<1x4x64xbf16>
    %56 = vector.shape_cast %55 : vector<1x4x64xbf16> to vector<4x64xbf16>
    %cst_68 = arith.constant dense<0.000000e+00> : vector<88x64xf32>
    %57 = tpu.matmul %54, %56, %cst_68 {dimension_numbers = #tpu.dot_dimension_numbers<[1], [0], [0], [1], [0, 0, 1, 1], [], []>} : vector<88x4xbf16>, vector<4x64xbf16>, vector<88x64xf32> -> vector<88x64xf32>
    %58 = arith.addf %52, %57 : vector<88x64xf32>
    %c3_69 = arith.constant 3 : index
    %c0_70 = arith.constant 0 : index
    %c1_71 = arith.constant 1 : index
    %c0_72 = arith.constant 0 : index
    %59 = vector.load %arg2[%c3_69, %c0_70, %c1_71, %c0_72] : memref<4x1x128x4xbf16, #tpu.memory_space<vmem>>, vector<1x1x88x4xbf16>
    %60 = vector.shape_cast %59 : vector<1x1x88x4xbf16> to vector<88x4xbf16>
    %c10 = arith.constant 10 : index
    %c0_73 = arith.constant 0 : index
    %c0_74 = arith.constant 0 : index
    %61 = vector.load %arg3[%c10, %c0_73, %c0_74] : memref<49x4x64xbf16, #tpu.memory_space<vmem>>, vector<1x4x64xbf16>
    %62 = vector.shape_cast %61 : vector<1x4x64xbf16> to vector<4x64xbf16>
    %cst_75 = arith.constant dense<0.000000e+00> : vector<88x64xf32>
    %63 = tpu.matmul %60, %62, %cst_75 {dimension_numbers = #tpu.dot_dimension_numbers<[1], [0], [0], [1], [0, 0, 1, 1], [], []>} : vector<88x4xbf16>, vector<4x64xbf16>, vector<88x64xf32> -> vector<88x64xf32>
    %64 = arith.addf %58, %63 : vector<88x64xf32>
    %c2_76 = arith.constant 2 : index
    %c0_77 = arith.constant 0 : index
    %c2_78 = arith.constant 2 : index
    %c0_79 = arith.constant 0 : index
    %65 = vector.load %arg2[%c2_76, %c0_77, %c2_78, %c0_79] : memref<4x1x128x4xbf16, #tpu.memory_space<vmem>>, vector<1x1x88x4xbf16>
    %66 = vector.shape_cast %65 : vector<1x1x88x4xbf16> to vector<88x4xbf16>
    %c11 = arith.constant 11 : index
    %c0_80 = arith.constant 0 : index
    %c0_81 = arith.constant 0 : index
    %67 = vector.load %arg3[%c11, %c0_80, %c0_81] : memref<49x4x64xbf16, #tpu.memory_space<vmem>>, vector<1x4x64xbf16>
    %68 = vector.shape_cast %67 : vector<1x4x64xbf16> to vector<4x64xbf16>
    %cst_82 = arith.constant dense<0.000000e+00> : vector<88x64xf32>
    %69 = tpu.matmul %66, %68, %cst_82 {dimension_numbers = #tpu.dot_dimension_numbers<[1], [0], [0], [1], [0, 0, 1, 1], [], []>} : vector<88x4xbf16>, vector<4x64xbf16>, vector<88x64xf32> -> vector<88x64xf32>
    %70 = arith.addf %64, %69 : vector<88x64xf32>
    %c3_83 = arith.constant 3 : index
    %c0_84 = arith.constant 0 : index
    %c2_85 = arith.constant 2 : index
    %c0_86 = arith.constant 0 : index
    %71 = vector.load %arg2[%c3_83, %c0_84, %c2_85, %c0_86] : memref<4x1x128x4xbf16, #tpu.memory_space<vmem>>, vector<1x1x88x4xbf16>
    %72 = vector.shape_cast %71 : vector<1x1x88x4xbf16> to vector<88x4xbf16>
    %c12 = arith.constant 12 : index
    %c0_87 = arith.constant 0 : index
    %c0_88 = arith.constant 0 : index
    %73 = vector.load %arg3[%c12, %c0_87, %c0_88] : memref<49x4x64xbf16, #tpu.memory_space<vmem>>, vector<1x4x64xbf16>
    %74 = vector.shape_cast %73 : vector<1x4x64xbf16> to vector<4x64xbf16>
    %cst_89 = arith.constant dense<0.000000e+00> : vector<88x64xf32>
    %75 = tpu.matmul %72, %74, %cst_89 {dimension_numbers = #tpu.dot_dimension_numbers<[1], [0], [0], [1], [0, 0, 1, 1], [], []>} : vector<88x4xbf16>, vector<4x64xbf16>, vector<88x64xf32> -> vector<88x64xf32>
    %76 = arith.addf %70, %75 : vector<88x64xf32>
    %c2_90 = arith.constant 2 : index
    %c0_91 = arith.constant 0 : index
    %c3_92 = arith.constant 3 : index
    %c0_93 = arith.constant 0 : index
    %77 = vector.load %arg2[%c2_90, %c0_91, %c3_92, %c0_93] : memref<4x1x128x4xbf16, #tpu.memory_space<vmem>>, vector<1x1x88x4xbf16>
    %78 = vector.shape_cast %77 : vector<1x1x88x4xbf16> to vector<88x4xbf16>
    %c13 = arith.constant 13 : index
    %c0_94 = arith.constant 0 : index
    %c0_95 = arith.constant 0 : index
    %79 = vector.load %arg3[%c13, %c0_94, %c0_95] : memref<49x4x64xbf16, #tpu.memory_space<vmem>>, vector<1x4x64xbf16>
    %80 = vector.shape_cast %79 : vector<1x4x64xbf16> to vector<4x64xbf16>
    %cst_96 = arith.constant dense<0.000000e+00> : vector<88x64xf32>
    %81 = tpu.matmul %78, %80, %cst_96 {dimension_numbers = #tpu.dot_dimension_numbers<[1], [0], [0], [1], [0, 0, 1, 1], [], []>} : vector<88x4xbf16>, vector<4x64xbf16>, vector<88x64xf32> -> vector<88x64xf32>
    %82 = arith.addf %76, %81 : vector<88x64xf32>
    %c0_97 = arith.constant 0 : index
    %c0_98 = arith.constant 0 : index
    %c11_99 = arith.constant 11 : index
    %c0_100 = arith.constant 0 : index
    %83 = vector.load %arg2[%c0_97, %c0_98, %c11_99, %c0_100] : memref<4x1x128x4xbf16, #tpu.memory_space<vmem>>, vector<1x1x88x4xbf16>
    %84 = vector.shape_cast %83 : vector<1x1x88x4xbf16> to vector<88x4xbf16>
    %c14 = arith.constant 14 : index
    %c0_101 = arith.constant 0 : index
    %c0_102 = arith.constant 0 : index
    %85 = vector.load %arg3[%c14, %c0_101, %c0_102] : memref<49x4x64xbf16, #tpu.memory_space<vmem>>, vector<1x4x64xbf16>
    %86 = vector.shape_cast %85 : vector<1x4x64xbf16> to vector<4x64xbf16>
    %cst_103 = arith.constant dense<0.000000e+00> : vector<88x64xf32>
    %87 = tpu.matmul %84, %86, %cst_103 {dimension_numbers = #tpu.dot_dimension_numbers<[1], [0], [0], [1], [0, 0, 1, 1], [], []>} : vector<88x4xbf16>, vector<4x64xbf16>, vector<88x64xf32> -> vector<88x64xf32>
    %88 = arith.addf %82, %87 : vector<88x64xf32>
    %c1_104 = arith.constant 1 : index
    %c0_105 = arith.constant 0 : index
    %c11_106 = arith.constant 11 : index
    %c0_107 = arith.constant 0 : index
    %89 = vector.load %arg2[%c1_104, %c0_105, %c11_106, %c0_107] : memref<4x1x128x4xbf16, #tpu.memory_space<vmem>>, vector<1x1x88x4xbf16>
    %90 = vector.shape_cast %89 : vector<1x1x88x4xbf16> to vector<88x4xbf16>
    %c15 = arith.constant 15 : index
    %c0_108 = arith.constant 0 : index
    %c0_109 = arith.constant 0 : index
    %91 = vector.load %arg3[%c15, %c0_108, %c0_109] : memref<49x4x64xbf16, #tpu.memory_space<vmem>>, vector<1x4x64xbf16>
    %92 = vector.shape_cast %91 : vector<1x4x64xbf16> to vector<4x64xbf16>
    %cst_110 = arith.constant dense<0.000000e+00> : vector<88x64xf32>
    %93 = tpu.matmul %90, %92, %cst_110 {dimension_numbers = #tpu.dot_dimension_numbers<[1], [0], [0], [1], [0, 0, 1, 1], [], []>} : vector<88x4xbf16>, vector<4x64xbf16>, vector<88x64xf32> -> vector<88x64xf32>
    %94 = arith.addf %88, %93 : vector<88x64xf32>
    %c0_111 = arith.constant 0 : index
    %c0_112 = arith.constant 0 : index
    %c12_113 = arith.constant 12 : index
    %c0_114 = arith.constant 0 : index
    %95 = vector.load %arg2[%c0_111, %c0_112, %c12_113, %c0_114] : memref<4x1x128x4xbf16, #tpu.memory_space<vmem>>, vector<1x1x88x4xbf16>
    %96 = vector.shape_cast %95 : vector<1x1x88x4xbf16> to vector<88x4xbf16>
    %c16 = arith.constant 16 : index
    %c0_115 = arith.constant 0 : index
    %c0_116 = arith.constant 0 : index
    %97 = vector.load %arg3[%c16, %c0_115, %c0_116] : memref<49x4x64xbf16, #tpu.memory_space<vmem>>, vector<1x4x64xbf16>
    %98 = vector.shape_cast %97 : vector<1x4x64xbf16> to vector<4x64xbf16>
    %cst_117 = arith.constant dense<0.000000e+00> : vector<88x64xf32>
    %99 = tpu.matmul %96, %98, %cst_117 {dimension_numbers = #tpu.dot_dimension_numbers<[1], [0], [0], [1], [0, 0, 1, 1], [], []>} : vector<88x4xbf16>, vector<4x64xbf16>, vector<88x64xf32> -> vector<88x64xf32>
    %100 = arith.addf %94, %99 : vector<88x64xf32>
    %c1_118 = arith.constant 1 : index
    %c0_119 = arith.constant 0 : index
    %c12_120 = arith.constant 12 : index
    %c0_121 = arith.constant 0 : index
    %101 = vector.load %arg2[%c1_118, %c0_119, %c12_120, %c0_121] : memref<4x1x128x4xbf16, #tpu.memory_space<vmem>>, vector<1x1x88x4xbf16>
    %102 = vector.shape_cast %101 : vector<1x1x88x4xbf16> to vector<88x4xbf16>
    %c17 = arith.constant 17 : index
    %c0_122 = arith.constant 0 : index
    %c0_123 = arith.constant 0 : index
    %103 = vector.load %arg3[%c17, %c0_122, %c0_123] : memref<49x4x64xbf16, #tpu.memory_space<vmem>>, vector<1x4x64xbf16>
    %104 = vector.shape_cast %103 : vector<1x4x64xbf16> to vector<4x64xbf16>
    %cst_124 = arith.constant dense<0.000000e+00> : vector<88x64xf32>
    %105 = tpu.matmul %102, %104, %cst_124 {dimension_numbers = #tpu.dot_dimension_numbers<[1], [0], [0], [1], [0, 0, 1, 1], [], []>} : vector<88x4xbf16>, vector<4x64xbf16>, vector<88x64xf32> -> vector<88x64xf32>
    %106 = arith.addf %100, %105 : vector<88x64xf32>
    %c0_125 = arith.constant 0 : index
    %c0_126 = arith.constant 0 : index
    %c13_127 = arith.constant 13 : index
    %c0_128 = arith.constant 0 : index
    %107 = vector.load %arg2[%c0_125, %c0_126, %c13_127, %c0_128] : memref<4x1x128x4xbf16, #tpu.memory_space<vmem>>, vector<1x1x88x4xbf16>
    %108 = vector.shape_cast %107 : vector<1x1x88x4xbf16> to vector<88x4xbf16>
    %c18 = arith.constant 18 : index
    %c0_129 = arith.constant 0 : index
    %c0_130 = arith.constant 0 : index
    %109 = vector.load %arg3[%c18, %c0_129, %c0_130] : memref<49x4x64xbf16, #tpu.memory_space<vmem>>, vector<1x4x64xbf16>
    %110 = vector.shape_cast %109 : vector<1x4x64xbf16> to vector<4x64xbf16>
    %cst_131 = arith.constant dense<0.000000e+00> : vector<88x64xf32>
    %111 = tpu.matmul %108, %110, %cst_131 {dimension_numbers = #tpu.dot_dimension_numbers<[1], [0], [0], [1], [0, 0, 1, 1], [], []>} : vector<88x4xbf16>, vector<4x64xbf16>, vector<88x64xf32> -> vector<88x64xf32>
    %112 = arith.addf %106, %111 : vector<88x64xf32>
    %c1_132 = arith.constant 1 : index
    %c0_133 = arith.constant 0 : index
    %c13_134 = arith.constant 13 : index
    %c0_135 = arith.constant 0 : index
    %113 = vector.load %arg2[%c1_132, %c0_133, %c13_134, %c0_135] : memref<4x1x128x4xbf16, #tpu.memory_space<vmem>>, vector<1x1x88x4xbf16>
    %114 = vector.shape_cast %113 : vector<1x1x88x4xbf16> to vector<88x4xbf16>
    %c19 = arith.constant 19 : index
    %c0_136 = arith.constant 0 : index
    %c0_137 = arith.constant 0 : index
    %115 = vector.load %arg3[%c19, %c0_136, %c0_137] : memref<49x4x64xbf16, #tpu.memory_space<vmem>>, vector<1x4x64xbf16>
    %116 = vector.shape_cast %115 : vector<1x4x64xbf16> to vector<4x64xbf16>
    %cst_138 = arith.constant dense<0.000000e+00> : vector<88x64xf32>
    %117 = tpu.matmul %114, %116, %cst_138 {dimension_numbers = #tpu.dot_dimension_numbers<[1], [0], [0], [1], [0, 0, 1, 1], [], []>} : vector<88x4xbf16>, vector<4x64xbf16>, vector<88x64xf32> -> vector<88x64xf32>
    %118 = arith.addf %112, %117 : vector<88x64xf32>
    %c0_139 = arith.constant 0 : index
    %c0_140 = arith.constant 0 : index
    %c14_141 = arith.constant 14 : index
    %c0_142 = arith.constant 0 : index
    %119 = vector.load %arg2[%c0_139, %c0_140, %c14_141, %c0_142] : memref<4x1x128x4xbf16, #tpu.memory_space<vmem>>, vector<1x1x88x4xbf16>
    %120 = vector.shape_cast %119 : vector<1x1x88x4xbf16> to vector<88x4xbf16>
    %c20 = arith.constant 20 : index
    %c0_143 = arith.constant 0 : index
    %c0_144 = arith.constant 0 : index
    %121 = vector.load %arg3[%c20, %c0_143, %c0_144] : memref<49x4x64xbf16, #tpu.memory_space<vmem>>, vector<1x4x64xbf16>
    %122 = vector.shape_cast %121 : vector<1x4x64xbf16> to vector<4x64xbf16>
    %cst_145 = arith.constant dense<0.000000e+00> : vector<88x64xf32>
    %123 = tpu.matmul %120, %122, %cst_145 {dimension_numbers = #tpu.dot_dimension_numbers<[1], [0], [0], [1], [0, 0, 1, 1], [], []>} : vector<88x4xbf16>, vector<4x64xbf16>, vector<88x64xf32> -> vector<88x64xf32>
    %124 = arith.addf %118, %123 : vector<88x64xf32>
    %c2_146 = arith.constant 2 : index
    %c0_147 = arith.constant 0 : index
    %c11_148 = arith.constant 11 : index
    %c0_149 = arith.constant 0 : index
    %125 = vector.load %arg2[%c2_146, %c0_147, %c11_148, %c0_149] : memref<4x1x128x4xbf16, #tpu.memory_space<vmem>>, vector<1x1x88x4xbf16>
    %126 = vector.shape_cast %125 : vector<1x1x88x4xbf16> to vector<88x4xbf16>
    %c21 = arith.constant 21 : index
    %c0_150 = arith.constant 0 : index
    %c0_151 = arith.constant 0 : index
    %127 = vector.load %arg3[%c21, %c0_150, %c0_151] : memref<49x4x64xbf16, #tpu.memory_space<vmem>>, vector<1x4x64xbf16>
    %128 = vector.shape_cast %127 : vector<1x4x64xbf16> to vector<4x64xbf16>
    %cst_152 = arith.constant dense<0.000000e+00> : vector<88x64xf32>
    %129 = tpu.matmul %126, %128, %cst_152 {dimension_numbers = #tpu.dot_dimension_numbers<[1], [0], [0], [1], [0, 0, 1, 1], [], []>} : vector<88x4xbf16>, vector<4x64xbf16>, vector<88x64xf32> -> vector<88x64xf32>
    %130 = arith.addf %124, %129 : vector<88x64xf32>
    %c3_153 = arith.constant 3 : index
    %c0_154 = arith.constant 0 : index
    %c11_155 = arith.constant 11 : index
    %c0_156 = arith.constant 0 : index
    %131 = vector.load %arg2[%c3_153, %c0_154, %c11_155, %c0_156] : memref<4x1x128x4xbf16, #tpu.memory_space<vmem>>, vector<1x1x88x4xbf16>
    %132 = vector.shape_cast %131 : vector<1x1x88x4xbf16> to vector<88x4xbf16>
    %c22 = arith.constant 22 : index
    %c0_157 = arith.constant 0 : index
    %c0_158 = arith.constant 0 : index
    %133 = vector.load %arg3[%c22, %c0_157, %c0_158] : memref<49x4x64xbf16, #tpu.memory_space<vmem>>, vector<1x4x64xbf16>
    %134 = vector.shape_cast %133 : vector<1x4x64xbf16> to vector<4x64xbf16>
    %cst_159 = arith.constant dense<0.000000e+00> : vector<88x64xf32>
    %135 = tpu.matmul %132, %134, %cst_159 {dimension_numbers = #tpu.dot_dimension_numbers<[1], [0], [0], [1], [0, 0, 1, 1], [], []>} : vector<88x4xbf16>, vector<4x64xbf16>, vector<88x64xf32> -> vector<88x64xf32>
    %136 = arith.addf %130, %135 : vector<88x64xf32>
    %c2_160 = arith.constant 2 : index
    %c0_161 = arith.constant 0 : index
    %c12_162 = arith.constant 12 : index
    %c0_163 = arith.constant 0 : index
    %137 = vector.load %arg2[%c2_160, %c0_161, %c12_162, %c0_163] : memref<4x1x128x4xbf16, #tpu.memory_space<vmem>>, vector<1x1x88x4xbf16>
    %138 = vector.shape_cast %137 : vector<1x1x88x4xbf16> to vector<88x4xbf16>
    %c23 = arith.constant 23 : index
    %c0_164 = arith.constant 0 : index
    %c0_165 = arith.constant 0 : index
    %139 = vector.load %arg3[%c23, %c0_164, %c0_165] : memref<49x4x64xbf16, #tpu.memory_space<vmem>>, vector<1x4x64xbf16>
    %140 = vector.shape_cast %139 : vector<1x4x64xbf16> to vector<4x64xbf16>
    %cst_166 = arith.constant dense<0.000000e+00> : vector<88x64xf32>
    %141 = tpu.matmul %138, %140, %cst_166 {dimension_numbers = #tpu.dot_dimension_numbers<[1], [0], [0], [1], [0, 0, 1, 1], [], []>} : vector<88x4xbf16>, vector<4x64xbf16>, vector<88x64xf32> -> vector<88x64xf32>
    %142 = arith.addf %136, %141 : vector<88x64xf32>
    %c3_167 = arith.constant 3 : index
    %c0_168 = arith.constant 0 : index
    %c12_169 = arith.constant 12 : index
    %c0_170 = arith.constant 0 : index
    %143 = vector.load %arg2[%c3_167, %c0_168, %c12_169, %c0_170] : memref<4x1x128x4xbf16, #tpu.memory_space<vmem>>, vector<1x1x88x4xbf16>
    %144 = vector.shape_cast %143 : vector<1x1x88x4xbf16> to vector<88x4xbf16>
    %c24 = arith.constant 24 : index
    %c0_171 = arith.constant 0 : index
    %c0_172 = arith.constant 0 : index
    %145 = vector.load %arg3[%c24, %c0_171, %c0_172] : memref<49x4x64xbf16, #tpu.memory_space<vmem>>, vector<1x4x64xbf16>
    %146 = vector.shape_cast %145 : vector<1x4x64xbf16> to vector<4x64xbf16>
    %cst_173 = arith.constant dense<0.000000e+00> : vector<88x64xf32>
    %147 = tpu.matmul %144, %146, %cst_173 {dimension_numbers = #tpu.dot_dimension_numbers<[1], [0], [0], [1], [0, 0, 1, 1], [], []>} : vector<88x4xbf16>, vector<4x64xbf16>, vector<88x64xf32> -> vector<88x64xf32>
    %148 = arith.addf %142, %147 : vector<88x64xf32>
    %c2_174 = arith.constant 2 : index
    %c0_175 = arith.constant 0 : index
    %c13_176 = arith.constant 13 : index
    %c0_177 = arith.constant 0 : index
    %149 = vector.load %arg2[%c2_174, %c0_175, %c13_176, %c0_177] : memref<4x1x128x4xbf16, #tpu.memory_space<vmem>>, vector<1x1x88x4xbf16>
    %150 = vector.shape_cast %149 : vector<1x1x88x4xbf16> to vector<88x4xbf16>
    %c25 = arith.constant 25 : index
    %c0_178 = arith.constant 0 : index
    %c0_179 = arith.constant 0 : index
    %151 = vector.load %arg3[%c25, %c0_178, %c0_179] : memref<49x4x64xbf16, #tpu.memory_space<vmem>>, vector<1x4x64xbf16>
    %152 = vector.shape_cast %151 : vector<1x4x64xbf16> to vector<4x64xbf16>
    %cst_180 = arith.constant dense<0.000000e+00> : vector<88x64xf32>
    %153 = tpu.matmul %150, %152, %cst_180 {dimension_numbers = #tpu.dot_dimension_numbers<[1], [0], [0], [1], [0, 0, 1, 1], [], []>} : vector<88x4xbf16>, vector<4x64xbf16>, vector<88x64xf32> -> vector<88x64xf32>
    %154 = arith.addf %148, %153 : vector<88x64xf32>
    %c3_181 = arith.constant 3 : index
    %c0_182 = arith.constant 0 : index
    %c13_183 = arith.constant 13 : index
    %c0_184 = arith.constant 0 : index
    %155 = vector.load %arg2[%c3_181, %c0_182, %c13_183, %c0_184] : memref<4x1x128x4xbf16, #tpu.memory_space<vmem>>, vector<1x1x88x4xbf16>
    %156 = vector.shape_cast %155 : vector<1x1x88x4xbf16> to vector<88x4xbf16>
    %c26 = arith.constant 26 : index
    %c0_185 = arith.constant 0 : index
    %c0_186 = arith.constant 0 : index
    %157 = vector.load %arg3[%c26, %c0_185, %c0_186] : memref<49x4x64xbf16, #tpu.memory_space<vmem>>, vector<1x4x64xbf16>
    %158 = vector.shape_cast %157 : vector<1x4x64xbf16> to vector<4x64xbf16>
    %cst_187 = arith.constant dense<0.000000e+00> : vector<88x64xf32>
    %159 = tpu.matmul %156, %158, %cst_187 {dimension_numbers = #tpu.dot_dimension_numbers<[1], [0], [0], [1], [0, 0, 1, 1], [], []>} : vector<88x4xbf16>, vector<4x64xbf16>, vector<88x64xf32> -> vector<88x64xf32>
    %160 = arith.addf %154, %159 : vector<88x64xf32>
    %c2_188 = arith.constant 2 : index
    %c0_189 = arith.constant 0 : index
    %c14_190 = arith.constant 14 : index
    %c0_191 = arith.constant 0 : index
    %161 = vector.load %arg2[%c2_188, %c0_189, %c14_190, %c0_191] : memref<4x1x128x4xbf16, #tpu.memory_space<vmem>>, vector<1x1x88x4xbf16>
    %162 = vector.shape_cast %161 : vector<1x1x88x4xbf16> to vector<88x4xbf16>
    %c27 = arith.constant 27 : index
    %c0_192 = arith.constant 0 : index
    %c0_193 = arith.constant 0 : index
    %163 = vector.load %arg3[%c27, %c0_192, %c0_193] : memref<49x4x64xbf16, #tpu.memory_space<vmem>>, vector<1x4x64xbf16>
    %164 = vector.shape_cast %163 : vector<1x4x64xbf16> to vector<4x64xbf16>
    %cst_194 = arith.constant dense<0.000000e+00> : vector<88x64xf32>
    %165 = tpu.matmul %162, %164, %cst_194 {dimension_numbers = #tpu.dot_dimension_numbers<[1], [0], [0], [1], [0, 0, 1, 1], [], []>} : vector<88x4xbf16>, vector<4x64xbf16>, vector<88x64xf32> -> vector<88x64xf32>
    %166 = arith.addf %160, %165 : vector<88x64xf32>
    %c0_195 = arith.constant 0 : index
    %c0_196 = arith.constant 0 : index
    %c22_197 = arith.constant 22 : index
    %c0_198 = arith.constant 0 : index
    %167 = vector.load %arg2[%c0_195, %c0_196, %c22_197, %c0_198] : memref<4x1x128x4xbf16, #tpu.memory_space<vmem>>, vector<1x1x88x4xbf16>
    %168 = vector.shape_cast %167 : vector<1x1x88x4xbf16> to vector<88x4xbf16>
    %c28 = arith.constant 28 : index
    %c0_199 = arith.constant 0 : index
    %c0_200 = arith.constant 0 : index
    %169 = vector.load %arg3[%c28, %c0_199, %c0_200] : memref<49x4x64xbf16, #tpu.memory_space<vmem>>, vector<1x4x64xbf16>
    %170 = vector.shape_cast %169 : vector<1x4x64xbf16> to vector<4x64xbf16>
    %cst_201 = arith.constant dense<0.000000e+00> : vector<88x64xf32>
    %171 = tpu.matmul %168, %170, %cst_201 {dimension_numbers = #tpu.dot_dimension_numbers<[1], [0], [0], [1], [0, 0, 1, 1], [], []>} : vector<88x4xbf16>, vector<4x64xbf16>, vector<88x64xf32> -> vector<88x64xf32>
    %172 = arith.addf %166, %171 : vector<88x64xf32>
    %c1_202 = arith.constant 1 : index
    %c0_203 = arith.constant 0 : index
    %c22_204 = arith.constant 22 : index
    %c0_205 = arith.constant 0 : index
    %173 = vector.load %arg2[%c1_202, %c0_203, %c22_204, %c0_205] : memref<4x1x128x4xbf16, #tpu.memory_space<vmem>>, vector<1x1x88x4xbf16>
    %174 = vector.shape_cast %173 : vector<1x1x88x4xbf16> to vector<88x4xbf16>
    %c29 = arith.constant 29 : index
    %c0_206 = arith.constant 0 : index
    %c0_207 = arith.constant 0 : index
    %175 = vector.load %arg3[%c29, %c0_206, %c0_207] : memref<49x4x64xbf16, #tpu.memory_space<vmem>>, vector<1x4x64xbf16>
    %176 = vector.shape_cast %175 : vector<1x4x64xbf16> to vector<4x64xbf16>
    %cst_208 = arith.constant dense<0.000000e+00> : vector<88x64xf32>
    %177 = tpu.matmul %174, %176, %cst_208 {dimension_numbers = #tpu.dot_dimension_numbers<[1], [0], [0], [1], [0, 0, 1, 1], [], []>} : vector<88x4xbf16>, vector<4x64xbf16>, vector<88x64xf32> -> vector<88x64xf32>
    %178 = arith.addf %172, %177 : vector<88x64xf32>
    %c0_209 = arith.constant 0 : index
    %c0_210 = arith.constant 0 : index
    %c23_211 = arith.constant 23 : index
    %c0_212 = arith.constant 0 : index
    %179 = vector.load %arg2[%c0_209, %c0_210, %c23_211, %c0_212] : memref<4x1x128x4xbf16, #tpu.memory_space<vmem>>, vector<1x1x88x4xbf16>
    %180 = vector.shape_cast %179 : vector<1x1x88x4xbf16> to vector<88x4xbf16>
    %c30 = arith.constant 30 : index
    %c0_213 = arith.constant 0 : index
    %c0_214 = arith.constant 0 : index
    %181 = vector.load %arg3[%c30, %c0_213, %c0_214] : memref<49x4x64xbf16, #tpu.memory_space<vmem>>, vector<1x4x64xbf16>
    %182 = vector.shape_cast %181 : vector<1x4x64xbf16> to vector<4x64xbf16>
    %cst_215 = arith.constant dense<0.000000e+00> : vector<88x64xf32>
    %183 = tpu.matmul %180, %182, %cst_215 {dimension_numbers = #tpu.dot_dimension_numbers<[1], [0], [0], [1], [0, 0, 1, 1], [], []>} : vector<88x4xbf16>, vector<4x64xbf16>, vector<88x64xf32> -> vector<88x64xf32>
    %184 = arith.addf %178, %183 : vector<88x64xf32>
    %c1_216 = arith.constant 1 : index
    %c0_217 = arith.constant 0 : index
    %c23_218 = arith.constant 23 : index
    %c0_219 = arith.constant 0 : index
    %185 = vector.load %arg2[%c1_216, %c0_217, %c23_218, %c0_219] : memref<4x1x128x4xbf16, #tpu.memory_space<vmem>>, vector<1x1x88x4xbf16>
    %186 = vector.shape_cast %185 : vector<1x1x88x4xbf16> to vector<88x4xbf16>
    %c31 = arith.constant 31 : index
    %c0_220 = arith.constant 0 : index
    %c0_221 = arith.constant 0 : index
    %187 = vector.load %arg3[%c31, %c0_220, %c0_221] : memref<49x4x64xbf16, #tpu.memory_space<vmem>>, vector<1x4x64xbf16>
    %188 = vector.shape_cast %187 : vector<1x4x64xbf16> to vector<4x64xbf16>
    %cst_222 = arith.constant dense<0.000000e+00> : vector<88x64xf32>
    %189 = tpu.matmul %186, %188, %cst_222 {dimension_numbers = #tpu.dot_dimension_numbers<[1], [0], [0], [1], [0, 0, 1, 1], [], []>} : vector<88x4xbf16>, vector<4x64xbf16>, vector<88x64xf32> -> vector<88x64xf32>
    %190 = arith.addf %184, %189 : vector<88x64xf32>
    %c0_223 = arith.constant 0 : index
    %c0_224 = arith.constant 0 : index
    %c24_225 = arith.constant 24 : index
    %c0_226 = arith.constant 0 : index
    %191 = vector.load %arg2[%c0_223, %c0_224, %c24_225, %c0_226] : memref<4x1x128x4xbf16, #tpu.memory_space<vmem>>, vector<1x1x88x4xbf16>
    %192 = vector.shape_cast %191 : vector<1x1x88x4xbf16> to vector<88x4xbf16>
    %c32 = arith.constant 32 : index
    %c0_227 = arith.constant 0 : index
    %c0_228 = arith.constant 0 : index
    %193 = vector.load %arg3[%c32, %c0_227, %c0_228] : memref<49x4x64xbf16, #tpu.memory_space<vmem>>, vector<1x4x64xbf16>
    %194 = vector.shape_cast %193 : vector<1x4x64xbf16> to vector<4x64xbf16>
    %cst_229 = arith.constant dense<0.000000e+00> : vector<88x64xf32>
    %195 = tpu.matmul %192, %194, %cst_229 {dimension_numbers = #tpu.dot_dimension_numbers<[1], [0], [0], [1], [0, 0, 1, 1], [], []>} : vector<88x4xbf16>, vector<4x64xbf16>, vector<88x64xf32> -> vector<88x64xf32>
    %196 = arith.addf %190, %195 : vector<88x64xf32>
    %c1_230 = arith.constant 1 : index
    %c0_231 = arith.constant 0 : index
    %c24_232 = arith.constant 24 : index
    %c0_233 = arith.constant 0 : index
    %197 = vector.load %arg2[%c1_230, %c0_231, %c24_232, %c0_233] : memref<4x1x128x4xbf16, #tpu.memory_space<vmem>>, vector<1x1x88x4xbf16>
    %198 = vector.shape_cast %197 : vector<1x1x88x4xbf16> to vector<88x4xbf16>
    %c33 = arith.constant 33 : index
    %c0_234 = arith.constant 0 : index
    %c0_235 = arith.constant 0 : index
    %199 = vector.load %arg3[%c33, %c0_234, %c0_235] : memref<49x4x64xbf16, #tpu.memory_space<vmem>>, vector<1x4x64xbf16>
    %200 = vector.shape_cast %199 : vector<1x4x64xbf16> to vector<4x64xbf16>
    %cst_236 = arith.constant dense<0.000000e+00> : vector<88x64xf32>
    %201 = tpu.matmul %198, %200, %cst_236 {dimension_numbers = #tpu.dot_dimension_numbers<[1], [0], [0], [1], [0, 0, 1, 1], [], []>} : vector<88x4xbf16>, vector<4x64xbf16>, vector<88x64xf32> -> vector<88x64xf32>
    %202 = arith.addf %196, %201 : vector<88x64xf32>
    %c0_237 = arith.constant 0 : index
    %c0_238 = arith.constant 0 : index
    %c25_239 = arith.constant 25 : index
    %c0_240 = arith.constant 0 : index
    %203 = vector.load %arg2[%c0_237, %c0_238, %c25_239, %c0_240] : memref<4x1x128x4xbf16, #tpu.memory_space<vmem>>, vector<1x1x88x4xbf16>
    %204 = vector.shape_cast %203 : vector<1x1x88x4xbf16> to vector<88x4xbf16>
    %c34 = arith.constant 34 : index
    %c0_241 = arith.constant 0 : index
    %c0_242 = arith.constant 0 : index
    %205 = vector.load %arg3[%c34, %c0_241, %c0_242] : memref<49x4x64xbf16, #tpu.memory_space<vmem>>, vector<1x4x64xbf16>
    %206 = vector.shape_cast %205 : vector<1x4x64xbf16> to vector<4x64xbf16>
    %cst_243 = arith.constant dense<0.000000e+00> : vector<88x64xf32>
    %207 = tpu.matmul %204, %206, %cst_243 {dimension_numbers = #tpu.dot_dimension_numbers<[1], [0], [0], [1], [0, 0, 1, 1], [], []>} : vector<88x4xbf16>, vector<4x64xbf16>, vector<88x64xf32> -> vector<88x64xf32>
    %208 = arith.addf %202, %207 : vector<88x64xf32>
    %c2_244 = arith.constant 2 : index
    %c0_245 = arith.constant 0 : index
    %c22_246 = arith.constant 22 : index
    %c0_247 = arith.constant 0 : index
    %209 = vector.load %arg2[%c2_244, %c0_245, %c22_246, %c0_247] : memref<4x1x128x4xbf16, #tpu.memory_space<vmem>>, vector<1x1x88x4xbf16>
    %210 = vector.shape_cast %209 : vector<1x1x88x4xbf16> to vector<88x4xbf16>
    %c35 = arith.constant 35 : index
    %c0_248 = arith.constant 0 : index
    %c0_249 = arith.constant 0 : index
    %211 = vector.load %arg3[%c35, %c0_248, %c0_249] : memref<49x4x64xbf16, #tpu.memory_space<vmem>>, vector<1x4x64xbf16>
    %212 = vector.shape_cast %211 : vector<1x4x64xbf16> to vector<4x64xbf16>
    %cst_250 = arith.constant dense<0.000000e+00> : vector<88x64xf32>
    %213 = tpu.matmul %210, %212, %cst_250 {dimension_numbers = #tpu.dot_dimension_numbers<[1], [0], [0], [1], [0, 0, 1, 1], [], []>} : vector<88x4xbf16>, vector<4x64xbf16>, vector<88x64xf32> -> vector<88x64xf32>
    %214 = arith.addf %208, %213 : vector<88x64xf32>
    %c3_251 = arith.constant 3 : index
    %c0_252 = arith.constant 0 : index
    %c22_253 = arith.constant 22 : index
    %c0_254 = arith.constant 0 : index
    %215 = vector.load %arg2[%c3_251, %c0_252, %c22_253, %c0_254] : memref<4x1x128x4xbf16, #tpu.memory_space<vmem>>, vector<1x1x88x4xbf16>
    %216 = vector.shape_cast %215 : vector<1x1x88x4xbf16> to vector<88x4xbf16>
    %c36 = arith.constant 36 : index
    %c0_255 = arith.constant 0 : index
    %c0_256 = arith.constant 0 : index
    %217 = vector.load %arg3[%c36, %c0_255, %c0_256] : memref<49x4x64xbf16, #tpu.memory_space<vmem>>, vector<1x4x64xbf16>
    %218 = vector.shape_cast %217 : vector<1x4x64xbf16> to vector<4x64xbf16>
    %cst_257 = arith.constant dense<0.000000e+00> : vector<88x64xf32>
    %219 = tpu.matmul %216, %218, %cst_257 {dimension_numbers = #tpu.dot_dimension_numbers<[1], [0], [0], [1], [0, 0, 1, 1], [], []>} : vector<88x4xbf16>, vector<4x64xbf16>, vector<88x64xf32> -> vector<88x64xf32>
    %220 = arith.addf %214, %219 : vector<88x64xf32>
    %c2_258 = arith.constant 2 : index
    %c0_259 = arith.constant 0 : index
    %c23_260 = arith.constant 23 : index
    %c0_261 = arith.constant 0 : index
    %221 = vector.load %arg2[%c2_258, %c0_259, %c23_260, %c0_261] : memref<4x1x128x4xbf16, #tpu.memory_space<vmem>>, vector<1x1x88x4xbf16>
    %222 = vector.shape_cast %221 : vector<1x1x88x4xbf16> to vector<88x4xbf16>
    %c37 = arith.constant 37 : index
    %c0_262 = arith.constant 0 : index
    %c0_263 = arith.constant 0 : index
    %223 = vector.load %arg3[%c37, %c0_262, %c0_263] : memref<49x4x64xbf16, #tpu.memory_space<vmem>>, vector<1x4x64xbf16>
    %224 = vector.shape_cast %223 : vector<1x4x64xbf16> to vector<4x64xbf16>
    %cst_264 = arith.constant dense<0.000000e+00> : vector<88x64xf32>
    %225 = tpu.matmul %222, %224, %cst_264 {dimension_numbers = #tpu.dot_dimension_numbers<[1], [0], [0], [1], [0, 0, 1, 1], [], []>} : vector<88x4xbf16>, vector<4x64xbf16>, vector<88x64xf32> -> vector<88x64xf32>
    %226 = arith.addf %220, %225 : vector<88x64xf32>
    %c3_265 = arith.constant 3 : index
    %c0_266 = arith.constant 0 : index
    %c23_267 = arith.constant 23 : index
    %c0_268 = arith.constant 0 : index
    %227 = vector.load %arg2[%c3_265, %c0_266, %c23_267, %c0_268] : memref<4x1x128x4xbf16, #tpu.memory_space<vmem>>, vector<1x1x88x4xbf16>
    %228 = vector.shape_cast %227 : vector<1x1x88x4xbf16> to vector<88x4xbf16>
    %c38 = arith.constant 38 : index
    %c0_269 = arith.constant 0 : index
    %c0_270 = arith.constant 0 : index
    %229 = vector.load %arg3[%c38, %c0_269, %c0_270] : memref<49x4x64xbf16, #tpu.memory_space<vmem>>, vector<1x4x64xbf16>
    %230 = vector.shape_cast %229 : vector<1x4x64xbf16> to vector<4x64xbf16>
    %cst_271 = arith.constant dense<0.000000e+00> : vector<88x64xf32>
    %231 = tpu.matmul %228, %230, %cst_271 {dimension_numbers = #tpu.dot_dimension_numbers<[1], [0], [0], [1], [0, 0, 1, 1], [], []>} : vector<88x4xbf16>, vector<4x64xbf16>, vector<88x64xf32> -> vector<88x64xf32>
    %232 = arith.addf %226, %231 : vector<88x64xf32>
    %c2_272 = arith.constant 2 : index
    %c0_273 = arith.constant 0 : index
    %c24_274 = arith.constant 24 : index
    %c0_275 = arith.constant 0 : index
    %233 = vector.load %arg2[%c2_272, %c0_273, %c24_274, %c0_275] : memref<4x1x128x4xbf16, #tpu.memory_space<vmem>>, vector<1x1x88x4xbf16>
    %234 = vector.shape_cast %233 : vector<1x1x88x4xbf16> to vector<88x4xbf16>
    %c39 = arith.constant 39 : index
    %c0_276 = arith.constant 0 : index
    %c0_277 = arith.constant 0 : index
    %235 = vector.load %arg3[%c39, %c0_276, %c0_277] : memref<49x4x64xbf16, #tpu.memory_space<vmem>>, vector<1x4x64xbf16>
    %236 = vector.shape_cast %235 : vector<1x4x64xbf16> to vector<4x64xbf16>
    %cst_278 = arith.constant dense<0.000000e+00> : vector<88x64xf32>
    %237 = tpu.matmul %234, %236, %cst_278 {dimension_numbers = #tpu.dot_dimension_numbers<[1], [0], [0], [1], [0, 0, 1, 1], [], []>} : vector<88x4xbf16>, vector<4x64xbf16>, vector<88x64xf32> -> vector<88x64xf32>
    %238 = arith.addf %232, %237 : vector<88x64xf32>
    %c3_279 = arith.constant 3 : index
    %c0_280 = arith.constant 0 : index
    %c24_281 = arith.constant 24 : index
    %c0_282 = arith.constant 0 : index
    %239 = vector.load %arg2[%c3_279, %c0_280, %c24_281, %c0_282] : memref<4x1x128x4xbf16, #tpu.memory_space<vmem>>, vector<1x1x88x4xbf16>
    %240 = vector.shape_cast %239 : vector<1x1x88x4xbf16> to vector<88x4xbf16>
    %c40 = arith.constant 40 : index
    %c0_283 = arith.constant 0 : index
    %c0_284 = arith.constant 0 : index
    %241 = vector.load %arg3[%c40, %c0_283, %c0_284] : memref<49x4x64xbf16, #tpu.memory_space<vmem>>, vector<1x4x64xbf16>
    %242 = vector.shape_cast %241 : vector<1x4x64xbf16> to vector<4x64xbf16>
    %cst_285 = arith.constant dense<0.000000e+00> : vector<88x64xf32>
    %243 = tpu.matmul %240, %242, %cst_285 {dimension_numbers = #tpu.dot_dimension_numbers<[1], [0], [0], [1], [0, 0, 1, 1], [], []>} : vector<88x4xbf16>, vector<4x64xbf16>, vector<88x64xf32> -> vector<88x64xf32>
    %244 = arith.addf %238, %243 : vector<88x64xf32>
    %c2_286 = arith.constant 2 : index
    %c0_287 = arith.constant 0 : index
    %c25_288 = arith.constant 25 : index
    %c0_289 = arith.constant 0 : index
    %245 = vector.load %arg2[%c2_286, %c0_287, %c25_288, %c0_289] : memref<4x1x128x4xbf16, #tpu.memory_space<vmem>>, vector<1x1x88x4xbf16>
    %246 = vector.shape_cast %245 : vector<1x1x88x4xbf16> to vector<88x4xbf16>
    %c41 = arith.constant 41 : index
    %c0_290 = arith.constant 0 : index
    %c0_291 = arith.constant 0 : index
    %247 = vector.load %arg3[%c41, %c0_290, %c0_291] : memref<49x4x64xbf16, #tpu.memory_space<vmem>>, vector<1x4x64xbf16>
    %248 = vector.shape_cast %247 : vector<1x4x64xbf16> to vector<4x64xbf16>
    %cst_292 = arith.constant dense<0.000000e+00> : vector<88x64xf32>
    %249 = tpu.matmul %246, %248, %cst_292 {dimension_numbers = #tpu.dot_dimension_numbers<[1], [0], [0], [1], [0, 0, 1, 1], [], []>} : vector<88x4xbf16>, vector<4x64xbf16>, vector<88x64xf32> -> vector<88x64xf32>
    %250 = arith.addf %244, %249 : vector<88x64xf32>
    %c0_293 = arith.constant 0 : index
    %c0_294 = arith.constant 0 : index
    %c33_295 = arith.constant 33 : index
    %c0_296 = arith.constant 0 : index
    %251 = vector.load %arg2[%c0_293, %c0_294, %c33_295, %c0_296] : memref<4x1x128x4xbf16, #tpu.memory_space<vmem>>, vector<1x1x88x4xbf16>
    %252 = vector.shape_cast %251 : vector<1x1x88x4xbf16> to vector<88x4xbf16>
    %c42 = arith.constant 42 : index
    %c0_297 = arith.constant 0 : index
    %c0_298 = arith.constant 0 : index
    %253 = vector.load %arg3[%c42, %c0_297, %c0_298] : memref<49x4x64xbf16, #tpu.memory_space<vmem>>, vector<1x4x64xbf16>
    %254 = vector.shape_cast %253 : vector<1x4x64xbf16> to vector<4x64xbf16>
    %cst_299 = arith.constant dense<0.000000e+00> : vector<88x64xf32>
    %255 = tpu.matmul %252, %254, %cst_299 {dimension_numbers = #tpu.dot_dimension_numbers<[1], [0], [0], [1], [0, 0, 1, 1], [], []>} : vector<88x4xbf16>, vector<4x64xbf16>, vector<88x64xf32> -> vector<88x64xf32>
    %256 = arith.addf %250, %255 : vector<88x64xf32>
    %c1_300 = arith.constant 1 : index
    %c0_301 = arith.constant 0 : index
    %c33_302 = arith.constant 33 : index
    %c0_303 = arith.constant 0 : index
    %257 = vector.load %arg2[%c1_300, %c0_301, %c33_302, %c0_303] : memref<4x1x128x4xbf16, #tpu.memory_space<vmem>>, vector<1x1x88x4xbf16>
    %258 = vector.shape_cast %257 : vector<1x1x88x4xbf16> to vector<88x4xbf16>
    %c43 = arith.constant 43 : index
    %c0_304 = arith.constant 0 : index
    %c0_305 = arith.constant 0 : index
    %259 = vector.load %arg3[%c43, %c0_304, %c0_305] : memref<49x4x64xbf16, #tpu.memory_space<vmem>>, vector<1x4x64xbf16>
    %260 = vector.shape_cast %259 : vector<1x4x64xbf16> to vector<4x64xbf16>
    %cst_306 = arith.constant dense<0.000000e+00> : vector<88x64xf32>
    %261 = tpu.matmul %258, %260, %cst_306 {dimension_numbers = #tpu.dot_dimension_numbers<[1], [0], [0], [1], [0, 0, 1, 1], [], []>} : vector<88x4xbf16>, vector<4x64xbf16>, vector<88x64xf32> -> vector<88x64xf32>
    %262 = arith.addf %256, %261 : vector<88x64xf32>
    %c0_307 = arith.constant 0 : index
    %c0_308 = arith.constant 0 : index
    %c34_309 = arith.constant 34 : index
    %c0_310 = arith.constant 0 : index
    %263 = vector.load %arg2[%c0_307, %c0_308, %c34_309, %c0_310] : memref<4x1x128x4xbf16, #tpu.memory_space<vmem>>, vector<1x1x88x4xbf16>
    %264 = vector.shape_cast %263 : vector<1x1x88x4xbf16> to vector<88x4xbf16>
    %c44 = arith.constant 44 : index
    %c0_311 = arith.constant 0 : index
    %c0_312 = arith.constant 0 : index
    %265 = vector.load %arg3[%c44, %c0_311, %c0_312] : memref<49x4x64xbf16, #tpu.memory_space<vmem>>, vector<1x4x64xbf16>
    %266 = vector.shape_cast %265 : vector<1x4x64xbf16> to vector<4x64xbf16>
    %cst_313 = arith.constant dense<0.000000e+00> : vector<88x64xf32>
    %267 = tpu.matmul %264, %266, %cst_313 {dimension_numbers = #tpu.dot_dimension_numbers<[1], [0], [0], [1], [0, 0, 1, 1], [], []>} : vector<88x4xbf16>, vector<4x64xbf16>, vector<88x64xf32> -> vector<88x64xf32>
    %268 = arith.addf %262, %267 : vector<88x64xf32>
    %c1_314 = arith.constant 1 : index
    %c0_315 = arith.constant 0 : index
    %c34_316 = arith.constant 34 : index
    %c0_317 = arith.constant 0 : index
    %269 = vector.load %arg2[%c1_314, %c0_315, %c34_316, %c0_317] : memref<4x1x128x4xbf16, #tpu.memory_space<vmem>>, vector<1x1x88x4xbf16>
    %270 = vector.shape_cast %269 : vector<1x1x88x4xbf16> to vector<88x4xbf16>
    %c45 = arith.constant 45 : index
    %c0_318 = arith.constant 0 : index
    %c0_319 = arith.constant 0 : index
    %271 = vector.load %arg3[%c45, %c0_318, %c0_319] : memref<49x4x64xbf16, #tpu.memory_space<vmem>>, vector<1x4x64xbf16>
    %272 = vector.shape_cast %271 : vector<1x4x64xbf16> to vector<4x64xbf16>
    %cst_320 = arith.constant dense<0.000000e+00> : vector<88x64xf32>
    %273 = tpu.matmul %270, %272, %cst_320 {dimension_numbers = #tpu.dot_dimension_numbers<[1], [0], [0], [1], [0, 0, 1, 1], [], []>} : vector<88x4xbf16>, vector<4x64xbf16>, vector<88x64xf32> -> vector<88x64xf32>
    %274 = arith.addf %268, %273 : vector<88x64xf32>
    %c0_321 = arith.constant 0 : index
    %c0_322 = arith.constant 0 : index
    %c35_323 = arith.constant 35 : index
    %c0_324 = arith.constant 0 : index
    %275 = vector.load %arg2[%c0_321, %c0_322, %c35_323, %c0_324] : memref<4x1x128x4xbf16, #tpu.memory_space<vmem>>, vector<1x1x88x4xbf16>
    %276 = vector.shape_cast %275 : vector<1x1x88x4xbf16> to vector<88x4xbf16>
    %c46 = arith.constant 46 : index
    %c0_325 = arith.constant 0 : index
    %c0_326 = arith.constant 0 : index
    %277 = vector.load %arg3[%c46, %c0_325, %c0_326] : memref<49x4x64xbf16, #tpu.memory_space<vmem>>, vector<1x4x64xbf16>
    %278 = vector.shape_cast %277 : vector<1x4x64xbf16> to vector<4x64xbf16>
    %cst_327 = arith.constant dense<0.000000e+00> : vector<88x64xf32>
    %279 = tpu.matmul %276, %278, %cst_327 {dimension_numbers = #tpu.dot_dimension_numbers<[1], [0], [0], [1], [0, 0, 1, 1], [], []>} : vector<88x4xbf16>, vector<4x64xbf16>, vector<88x64xf32> -> vector<88x64xf32>
    %280 = arith.addf %274, %279 : vector<88x64xf32>
    %c1_328 = arith.constant 1 : index
    %c0_329 = arith.constant 0 : index
    %c35_330 = arith.constant 35 : index
    %c0_331 = arith.constant 0 : index
    %281 = vector.load %arg2[%c1_328, %c0_329, %c35_330, %c0_331] : memref<4x1x128x4xbf16, #tpu.memory_space<vmem>>, vector<1x1x88x4xbf16>
    %282 = vector.shape_cast %281 : vector<1x1x88x4xbf16> to vector<88x4xbf16>
    %c47 = arith.constant 47 : index
    %c0_332 = arith.constant 0 : index
    %c0_333 = arith.constant 0 : index
    %283 = vector.load %arg3[%c47, %c0_332, %c0_333] : memref<49x4x64xbf16, #tpu.memory_space<vmem>>, vector<1x4x64xbf16>
    %284 = vector.shape_cast %283 : vector<1x4x64xbf16> to vector<4x64xbf16>
    %cst_334 = arith.constant dense<0.000000e+00> : vector<88x64xf32>
    %285 = tpu.matmul %282, %284, %cst_334 {dimension_numbers = #tpu.dot_dimension_numbers<[1], [0], [0], [1], [0, 0, 1, 1], [], []>} : vector<88x4xbf16>, vector<4x64xbf16>, vector<88x64xf32> -> vector<88x64xf32>
    %286 = arith.addf %280, %285 : vector<88x64xf32>
    %c0_335 = arith.constant 0 : index
    %c0_336 = arith.constant 0 : index
    %c36_337 = arith.constant 36 : index
    %c0_338 = arith.constant 0 : index
    %287 = vector.load %arg2[%c0_335, %c0_336, %c36_337, %c0_338] : memref<4x1x128x4xbf16, #tpu.memory_space<vmem>>, vector<1x1x88x4xbf16>
    %288 = vector.shape_cast %287 : vector<1x1x88x4xbf16> to vector<88x4xbf16>
    %c48 = arith.constant 48 : index
    %c0_339 = arith.constant 0 : index
    %c0_340 = arith.constant 0 : index
    %289 = vector.load %arg3[%c48, %c0_339, %c0_340] : memref<49x4x64xbf16, #tpu.memory_space<vmem>>, vector<1x4x64xbf16>
    %290 = vector.shape_cast %289 : vector<1x4x64xbf16> to vector<4x64xbf16>
    %cst_341 = arith.constant dense<0.000000e+00> : vector<88x64xf32>
    %291 = tpu.matmul %288, %290, %cst_341 {dimension_numbers = #tpu.dot_dimension_numbers<[1], [0], [0], [1], [0, 0, 1, 1], [], []>} : vector<88x4xbf16>, vector<4x64xbf16>, vector<88x64xf32> -> vector<88x64xf32>
    %292 = arith.addf %286, %291 : vector<88x64xf32>
    %c0_342 = arith.constant 0 : index
    %c0_343 = arith.constant 0 : index
    %293 = vector.load %arg4[%c0_342, %c0_343] : memref<1x64xf32, #tpu.memory_space<vmem>>, vector<1x64xf32>
    %294 = vector.broadcast %293 : vector<1x64xf32> to vector<88x64xf32>
    %295 = arith.mulf %292, %294 : vector<88x64xf32>
    %c0_344 = arith.constant 0 : index
    %c0_345 = arith.constant 0 : index
    %296 = vector.load %arg5[%c0_344, %c0_345] : memref<1x64xf32, #tpu.memory_space<vmem>>, vector<1x64xf32>
    %297 = vector.broadcast %296 : vector<1x64xf32> to vector<88x64xf32>
    %298 = arith.addf %295, %297 : vector<88x64xf32>
    %cst_346 = arith.constant 0.000000e+00 : f32
    %299 = vector.broadcast %cst_346 : f32 to vector<88x64xf32>
    %300 = arith.maximumf %298, %299 : vector<88x64xf32>
    %301 = arith.truncf %300 : vector<88x64xf32> to vector<88x64xbf16>
    %c0_347 = arith.constant 0 : index
    %c0_348 = arith.constant 0 : index
    %c0_349 = arith.constant 0 : index
    %302 = vector.load %arg6[%c0_347, %c0_348, %c0_349] : memref<1x88x64xbf16, #tpu.memory_space<vmem>>, vector<1x88x64xbf16>
    %303 = vector.shape_cast %302 : vector<1x88x64xbf16> to vector<88x64xbf16>
    %304 = vector.shape_cast %301 : vector<88x64xbf16> to vector<1x88x64xbf16>
    tpu.vector_store %arg6[%c0_347, %c0_348, %c0_349], %304 {strides = array<i32>} : memref<1x88x64xbf16, #tpu.memory_space<vmem>>, vector<1x88x64xbf16>,
    return
  }
  func.func @transform_0(%arg0: i32, %arg1: i32) -> (i32, i32, i32, i32) {
    %c0_i32 = arith.constant 0 : i32
    %c0_i32_0 = arith.constant 0 : i32
    %c0_i32_1 = arith.constant 0 : i32
    %c0_i32_2 = arith.constant 0 : i32
    return %c0_i32, %arg1, %c0_i32_0, %c0_i32_1 : i32, i32, i32, i32
  }
  func.func @transform_1(%arg0: i32, %arg1: i32) -> (i32, i32, i32) {
    %c0_i32 = arith.constant 0 : i32
    %c0_i32_0 = arith.constant 0 : i32
    %c0_i32_1 = arith.constant 0 : i32
    return %c0_i32, %c0_i32_0, %arg0 : i32, i32, i32
  }
  func.func @transform_2(%arg0: i32, %arg1: i32) -> (i32, i32) {
    %c0_i32 = arith.constant 0 : i32
    %c0_i32_0 = arith.constant 0 : i32
    return %c0_i32, %arg0 : i32, i32
  }
  func.func @transform_3(%arg0: i32, %arg1: i32) -> (i32, i32) {
    %c0_i32 = arith.constant 0 : i32
    %c0_i32_0 = arith.constant 0 : i32
    return %c0_i32, %arg0 : i32, i32
  }
  func.func @transform_4(%arg0: i32, %arg1: i32) -> (i32, i32, i32) {
    %c0_i32 = arith.constant 0 : i32
    %c0_i32_0 = arith.constant 0 : i32
    return %arg1, %c0_i32, %arg0 : i32, i32, i32
  }
}

</mosaic_0001>

<llo_original>
// kernel: tpu_custom_call.1
$region0: #{tpu_custom_call.1}
  #allocation0 [shape = 'u32[]', space=smem, size = 0x4, offset = 0x4, fixed_abs, tag = 'smem constant byte address 0x4 - core index']
  #allocation1 [shape = 'u32[144,128]{1,0:T(1,128)}', space=vmem, size = 0x12000, scoped, tag = 'internal scratch']
  %s0 = inlined_call_operand.vmem [shape: bf16[4,2,128,4], index: 0, kind: input, shape index: {}]
  %s1 = inlined_call_operand.vmem [shape: bf16[49,4,64], index: 1, kind: input, shape index: {}]
  %s2 = inlined_call_operand.vmem [shape: f32[1,64], index: 2, kind: input, shape index: {}]
  %s3 = inlined_call_operand.vmem [shape: f32[1,64], index: 3, kind: input, shape index: {}]
  %s4 = inlined_call_operand.vmem [shape: bf16[2,88,64], index: 4, kind: output, shape index: {}]
  %s5 = sld [smem:[#allocation0]]
  $region90: #{tpu_custom_call.1} parent=0
    _
  %s7 = ssub.s32 1, %s5
  %s8 = scalar_select 0, %s7, %s5
  $region1: #{tpu_custom_call.1} parent=0
    #allocation2 [shape = 'u8[262144]{0}', space=vmem, size = 0x40000, scoped, tag = 'input window, operand 0']
    loop: start=0, step=1, limit=4
    $region2: #{tpu_custom_call.1} parent=1 // loop_pre_header
      _
    $region3: #{tpu_custom_call.1} parent=1 // loop_header
      %s10 = sphi 0, %s14
      %p11 = scmp.ge.s32.totalorder %s10, 4
      %s17 = sphi 0, %s29
      %s18 = sphi 0, %s25
      %s19 = sphi 0, %s17
      %s20 = sphi 0, %s18
      %s21 = sphi 0, %s19
      %s22 = sphi 0, %s20
      %s32 = sphi 0, %s34
      %s35 = sphi 0, %s32
      %s36 = sphi 0, %s35
      %s52 = sphi 0, %s36
      %s58 = sphi 0, %s60
      %s61 = sphi 0, %s58
      %s62 = sphi 0, %s61
      %s78 = sphi 0, %s62
      %s84 = sphi 0, %s86
      %s87 = sphi 0, %s84
      %s88 = sphi 0, %s87
      %s104 = sphi 0, %s88
      %s110 = sphi 0, %s112
      %s113 = sphi 0, %s110
      %s114 = sphi 0, %s113
      %s130 = sphi 0, %s114
      %s138 = sphi 0, %s140
      %s141 = sphi 0, %s138
      %s142 = sphi 0, %s141
      %s158 = sphi 0, %s142
    $region4: #{tpu_custom_call.1} parent=1 // loop_header_branch
      %13 = sbr.rel (%p11) target = $region8
    $region5: #{tpu_custom_call.1} parent=1 // loop_body
      %s15 = ssub.s32 %s10, 1
      %s16 = ssub.s32 %s10, 2
      %s23 = sadd.s32 1, %s18
      %p24 = scmp.ge.s32.totalorder %s23, 2
      %s25 = scalar_select %p24, 0, %s23
      %s26 = sadd.s32 1, %s17
      %s27 = scalar_select %p24, %s26, %s17
      %p28 = scmp.ge.s32.totalorder %s27, 1
      %s29 = scalar_select %p28, 0, %s27
      %s30 = ssub.s32 %s18, %s25
      %p31 = scmp.eq.s32.totalorder %s30, 0
      %s33 = sadd.s32 %s32, 1
      %s34 = scalar_select %p31, %s32, %s33
      %p37 = pneg %p31
      %p38 = scmp.eq.s32.totalorder %s10, 1
      %p39 = por %p37, %p38
      %p40 = scmp.ne.s32.totalorder %s32, %s35
      %p41 = scmp.eq.s32.totalorder %s10, 0
      %p42 = por %p40, %p41
      %p43 = scmp.ne.s32.totalorder %s32, %s35
      %p44 = scmp.eq.s32.totalorder %s15, 1
      %p45 = por %p43, %p44
      %p46 = scmp.ne.s32.totalorder %s35, %s36
      %p47 = scmp.eq.s32.totalorder %s15, 0
      %p48 = por %p46, %p47
      %p49 = scmp.ne.s32.totalorder %s35, %s36
      %p50 = scmp.eq.s32.totalorder %s16, 1
      %p51 = por %p49, %p50
      %p53 = scmp.ne.s32.totalorder %s36, %s52
      %p54 = scmp.eq.s32.totalorder %s16, 0
      %p55 = por %p53, %p54
      %s56 = ssub.s32 %s17, %s29
      %p57 = scmp.eq.s32.totalorder %s56, 0
      %s59 = sadd.s32 %s58, 1
      %s60 = scalar_select %p57, %s58, %s59
      %p63 = pneg %p57
      %p64 = scmp.eq.s32.totalorder %s10, 1
      %p65 = por %p63, %p64
      %p66 = scmp.ne.s32.totalorder %s58, %s61
      %p67 = scmp.eq.s32.totalorder %s10, 0
      %p68 = por %p66, %p67
      %p69 = scmp.ne.s32.totalorder %s58, %s61
      %p70 = scmp.eq.s32.totalorder %s15, 1
      %p71 = por %p69, %p70
      %p72 = scmp.ne.s32.totalorder %s61, %s62
      %p73 = scmp.eq.s32.totalorder %s15, 0
      %p74 = por %p72, %p73
      %p75 = scmp.ne.s32.totalorder %s61, %s62
      %p76 = scmp.eq.s32.totalorder %s16, 1
      %p77 = por %p75, %p76
      %p79 = scmp.ne.s32.totalorder %s62, %s78
      %p80 = scmp.eq.s32.totalorder %s16, 0
      %p81 = por %p79, %p80
      %s82 = ssub.s32 %s17, %s29
      %p83 = scmp.eq.s32.totalorder %s82, 0
      %s85 = sadd.s32 %s84, 1
      %s86 = scalar_select %p83, %s84, %s85
      %p89 = pneg %p83
      %p90 = scmp.eq.s32.totalorder %s10, 1
      %p91 = por %p89, %p90
      %p92 = scmp.ne.s32.totalorder %s84, %s87
      %p93 = scmp.eq.s32.totalorder %s10, 0
      %p94 = por %p92, %p93
      %p95 = scmp.ne.s32.totalorder %s84, %s87
      %p96 = scmp.eq.s32.totalorder %s15, 1
      %p97 = por %p95, %p96
      %p98 = scmp.ne.s32.totalorder %s87, %s88
      %p99 = scmp.eq.s32.totalorder %s15, 0
      %p100 = por %p98, %p99
      %p101 = scmp.ne.s32.totalorder %s87, %s88
      %p102 = scmp.eq.s32.totalorder %s16, 1
      %p103 = por %p101, %p102
      %p105 = scmp.ne.s32.totalorder %s88, %s104
      %p106 = scmp.eq.s32.totalorder %s16, 0
      %p107 = por %p105, %p106
      %s108 = ssub.s32 %s17, %s29
      %p109 = scmp.eq.s32.totalorder %s108, 0
      %s111 = sadd.s32 %s110, 1
      %s112 = scalar_select %p109, %s110, %s111
      %p115 = pneg %p109
      %p116 = scmp.eq.s32.totalorder %s10, 1
      %p117 = por %p115, %p116
      %p118 = scmp.ne.s32.totalorder %s110, %s113
      %p119 = scmp.eq.s32.totalorder %s10, 0
      %p120 = por %p118, %p119
      %p121 = scmp.ne.s32.totalorder %s110, %s113
      %p122 = scmp.eq.s32.totalorder %s15, 1
      %p123 = por %p121, %p122
      %p124 = scmp.ne.s32.totalorder %s113, %s114
      %p125 = scmp.eq.s32.totalorder %s15, 0
      %p126 = por %p124, %p125
      %p127 = scmp.ne.s32.totalorder %s113, %s114
      %p128 = scmp.eq.s32.totalorder %s16, 1
      %p129 = por %p127, %p128
      %p131 = scmp.ne.s32.totalorder %s114, %s130
      %p132 = scmp.eq.s32.totalorder %s16, 0
      %p133 = por %p131, %p132
      %s134 = ssub.s32 %s18, %s25
      %s135 = ssub.s32 %s17, %s29
      %s136 = sor.u32 %s134, %s135
      %p137 = scmp.eq.s32.totalorder %s136, 0
      %s139 = sadd.s32 %s138, 1
      %s140 = scalar_select %p137, %s138, %s139
      %p143 = pneg %p137
      %p144 = scmp.eq.s32.totalorder %s10, 1
      %p145 = por %p143, %p144
      %p146 = scmp.ne.s32.totalorder %s138, %s141
      %p147 = scmp.eq.s32.totalorder %s10, 0
      %p148 = por %p146, %p147
      %p149 = scmp.ne.s32.totalorder %s138, %s141
      %p150 = scmp.eq.s32.totalorder %s15, 1
      %p151 = por %p149, %p150
      %p152 = scmp.ne.s32.totalorder %s141, %s142
      %p153 = scmp.eq.s32.totalorder %s15, 0
      %p154 = por %p152, %p153
      %p155 = scmp.ne.s32.totalorder %s141, %s142
      %p156 = scmp.eq.s32.totalorder %s16, 1
      %p157 = por %p155, %p156
      %p159 = scmp.ne.s32.totalorder %s142, %s158
      %p160 = scmp.eq.s32.totalorder %s16, 0
      %p161 = por %p159, %p160
      %p162 = scmp.le.s32.totalorder 1, %s10
      %p163 = scmp.lt.s32.totalorder %s10, 3
      %p164 = pnand %p162, %p163
      %p165 = pneg %p164
      // Predicated region
      $region9: #{tpu_custom_call.1} parent=5 // pred_check
        _
      $region10: #{tpu_custom_call.1} parent=5 // pred_check_branch
        %167 = sbr.rel (%p164) target = $region12
      $region11: #{tpu_custom_call.1} parent=5 // pred_region
        %s168 = ssub.s32 %s10, 1
        // Predicated region
        $region13: #{tpu_custom_call.1} parent=11 // pred_check
          %p169 = pneg %p74
        $region14: #{tpu_custom_call.1} parent=11 // pred_check_branch
          %171 = sbr.rel (%p169) target = $region16
        $region15: #{tpu_custom_call.1} parent=11 // pred_region
          %p172 = scmp.lt.s32.totalorder %s19, 0
          %s173 = scalar_select %p172, %s19, 0
          %s174 = smul.addr %s173, 2
          %s175 = scalar_lea.vmem %s1, %s174
        $region16: #{tpu_custom_call.1} parent=11 // pred_fallthru
          _
        // Predicated region
        $region17: #{tpu_custom_call.1} parent=11 // pred_check
          %p176 = pneg %p100
        $region18: #{tpu_custom_call.1} parent=11 // pred_check_branch
          %178 = sbr.rel (%p176) target = $region20
        $region19: #{tpu_custom_call.1} parent=11 // pred_region
          %p179 = scmp.lt.s32.totalorder %s19, 0
          %s180 = scalar_select %p179, %s19, 0
          %s181 = scalar_lea.vmem %s2, %s180
        $region20: #{tpu_custom_call.1} parent=11 // pred_fallthru
          _
        // Predicated region
        $region21: #{tpu_custom_call.1} parent=11 // pred_check
          %p182 = pneg %p126
        $region22: #{tpu_custom_call.1} parent=11 // pred_check_branch
          %184 = sbr.rel (%p182) target = $region24
        $region23: #{tpu_custom_call.1} parent=11 // pred_region
          %p185 = scmp.lt.s32.totalorder %s19, 0
          %s186 = scalar_select %p185, %s19, 0
          %s187 = scalar_lea.vmem %s3, %s186
        $region24: #{tpu_custom_call.1} parent=11 // pred_fallthru
          _
      $region12: #{tpu_custom_call.1} parent=5 // pred_fallthru
        _
      %p188 = scmp.lt.s32.totalorder %s10, 2
      // Predicated region
      $region25: #{tpu_custom_call.1} parent=5 // pred_check
        %p189 = pneg %p188
      $region26: #{tpu_custom_call.1} parent=5 // pred_check_branch
        %191 = sbr.rel (%p189) target = $region28
      $region27: #{tpu_custom_call.1} parent=5 // pred_region
        // Predicated region
        $region29: #{tpu_custom_call.1} parent=27 // pred_check
          %p192 = pneg %p42
        $region30: #{tpu_custom_call.1} parent=27 // pred_check_branch
          %194 = sbr.rel (%p192) target = $region32
        $region31: #{tpu_custom_call.1} parent=27 // pred_region
          %s195 = sand.u32 %s32, 1
          %s196 = sand.u32 %s32, 1
          %s197 = smul.addr %s196, 256
          %s198 = scalar_lea.vmem [#allocation2], %s197
          %s199 = smul.addr %s18, 16
          %s200 = smul.addr %s199, 4
          %s201 = scalar_lea.vmem %s0, %s200
          // Predicated region
          $region33: #{tpu_custom_call.1} parent=31 // pred_check
            _
          $region34: #{tpu_custom_call.1} parent=31 // pred_check_branch
            %203 = sbr.rel (0) target = $region36
          $region35: #{tpu_custom_call.1} parent=31 // pred_region
            // Predicated region
            $region37: #{tpu_custom_call.1} parent=35 // pred_check
              _
            $region38: #{tpu_custom_call.1} parent=35 // pred_check_branch
              %205 = sbr.rel target = $region40
            $region39: #{tpu_custom_call.1} parent=35 // pred_region
              // Predicated region
              $region52: #{tpu_custom_call.1} parent=39 // pred_check
                _
              $region53: #{tpu_custom_call.1} parent=39 // pred_check_branch
                %346 = sbr.rel (0) target = $region55
              $region54: #{tpu_custom_call.1} parent=39 // pred_region
                loop: start=0, step=1, limit=1
                $region56: #{tpu_custom_call.1} parent=54 // loop_pre_header
                  _
                $region57: #{tpu_custom_call.1} parent=54 // loop_header
                  %s348 = sphi 0, %s352
                  %p349 = scmp.ge.s32.totalorder %s348, 1
                  %s353 = sphi %s201, %s201
                  %s354 = sphi %s198, %s198
                $region58: #{tpu_custom_call.1} parent=54 // loop_header_branch
                  %351 = sbr.rel (%p349) target = $region62
                $region59: #{tpu_custom_call.1} parent=54 // loop_body
                  _
                $region60: #{tpu_custom_call.1} parent=54 // loop_footer
                  %s352 = sadd.s32 1, %s348
                $region61: #{tpu_custom_call.1} parent=54 // loop_footer_branch
                  %347 = sbr.rel target = $region57
                $region62: #{tpu_custom_call.1} parent=54 // loop_exit
                  _
                loop: start=0, step=1, limit=1
                $region63: #{tpu_custom_call.1} parent=54 // loop_pre_header
                  _
                $region64: #{tpu_custom_call.1} parent=54 // loop_header
                  %s357 = sphi 0, %s361
                  %p358 = scmp.ge.s32.totalorder %s357, 1
                  %s362 = sphi %s201, %s201
                  %s363 = sphi %s198, %s198
                $region65: #{tpu_custom_call.1} parent=54 // loop_header_branch
                  %360 = sbr.rel (%p358) target = $region69
                $region66: #{tpu_custom_call.1} parent=54 // loop_body
                  %v364 = vld [vmem:[%s362] sm:$0xf]
                  %365 = vst [vmem:[%s363] sm:$0xf] %v364
                  %v366 = vld [vmem:[%s362 + $0x4] sm:$0xf]
                  %367 = vst [vmem:[%s363 + $0x4] sm:$0xf] %v366
                  %v368 = vld [vmem:[%s362 + $0x8] sm:$0xf]
                  %369 = vst [vmem:[%s363 + $0x8] sm:$0xf] %v368
                  %v370 = vld [vmem:[%s362 + $0xc] sm:$0xf]
                  %371 = vst [vmem:[%s363 + $0xc] sm:$0xf] %v370
                  %v372 = vld [vmem:[%s362 + $0x10] sm:$0xf]
                  %373 = vst [vmem:[%s363 + $0x10] sm:$0xf] %v372
                  %v374 = vld [vmem:[%s362 + $0x14] sm:$0xf]
                  %375 = vst [vmem:[%s363 + $0x14] sm:$0xf] %v374
                  %v376 = vld [vmem:[%s362 + $0x18] sm:$0xf]
                  %377 = vst [vmem:[%s363 + $0x18] sm:$0xf] %v376
                  %v378 = vld [vmem:[%s362 + $0x1c] sm:$0xf]
                  %379 = vst [vmem:[%s363 + $0x1c] sm:$0xf] %v378
                  %v380 = vld [vmem:[%s362 + $0x20] sm:$0xf]
                  %381 = vst [vmem:[%s363 + $0x20] sm:$0xf] %v380
                  %v382 = vld [vmem:[%s362 + $0x24] sm:$0xf]
                  %383 = vst [vmem:[%s363 + $0x24] sm:$0xf] %v382
                  %v384 = vld [vmem:[%s362 + $0x28] sm:$0xf]
                  %385 = vst [vmem:[%s363 + $0x28] sm:$0xf] %v384
                  %v386 = vld [vmem:[%s362 + $0x2c] sm:$0xf]
                  %387 = vst [vmem:[%s363 + $0x2c] sm:$0xf] %v386
                  %v388 = vld [vmem:[%s362 + $0x30] sm:$0xf]
                  %389 = vst [vmem:[%s363 + $0x30] sm:$0xf] %v388
                  %v390 = vld [vmem:[%s362 + $0x34] sm:$0xf]
                  %391 = vst [vmem:[%s363 + $0x34] sm:$0xf] %v390
                  %v392 = vld [vmem:[%s362 + $0x38] sm:$0xf]
                  %393 = vst [vmem:[%s363 + $0x38] sm:$0xf] %v392
                  %v394 = vld [vmem:[%s362 + $0x3c] sm:$0xf]
                  %395 = vst [vmem:[%s363 + $0x3c] sm:$0xf] %v394
                  %v396 = vld [vmem:[%s362 + $0x80] sm:$0xf]
                  %397 = vst [vmem:[%s363 + $0x40] sm:$0xf] %v396
                  %v398 = vld [vmem:[%s362 + $0x84] sm:$0xf]
                  %399 = vst [vmem:[%s363 + $0x44] sm:$0xf] %v398
                  %v400 = vld [vmem:[%s362 + $0x88] sm:$0xf]
                  %401 = vst [vmem:[%s363 + $0x48] sm:$0xf] %v400
                  %v402 = vld [vmem:[%s362 + $0x8c] sm:$0xf]
                  %403 = vst [vmem:[%s363 + $0x4c] sm:$0xf] %v402
                  %v404 = vld [vmem:[%s362 + $0x90] sm:$0xf]
                  %405 = vst [vmem:[%s363 + $0x50] sm:$0xf] %v404
                  %v406 = vld [vmem:[%s362 + $0x94] sm:$0xf]
                  %407 = vst [vmem:[%s363 + $0x54] sm:$0xf] %v406
                  %v408 = vld [vmem:[%s362 + $0x98] sm:$0xf]
                  %409 = vst [vmem:[%s363 + $0x58] sm:$0xf] %v408
                  %v410 = vld [vmem:[%s362 + $0x9c] sm:$0xf]
                  %411 = vst [vmem:[%s363 + $0x5c] sm:$0xf] %v410
                  %v412 = vld [vmem:[%s362 + $0xa0] sm:$0xf]
                  %413 = vst [vmem:[%s363 + $0x60] sm:$0xf] %v412
                  %v414 = vld [vmem:[%s362 + $0xa4] sm:$0xf]
                  %415 = vst [vmem:[%s363 + $0x64] sm:$0xf] %v414
                  %v416 = vld [vmem:[%s362 + $0xa8] sm:$0xf]
                  %417 = vst [vmem:[%s363 + $0x68] sm:$0xf] %v416
                  %v418 = vld [vmem:[%s362 + $0xac] sm:$0xf]
                  %419 = vst [vmem:[%s363 + $0x6c] sm:$0xf] %v418
                  %v420 = vld [vmem:[%s362 + $0xb0] sm:$0xf]
                  %421 = vst [vmem:[%s363 + $0x70] sm:$0xf] %v420
                  %v422 = vld [vmem:[%s362 + $0xb4] sm:$0xf]
                  %423 = vst [vmem:[%s363 + $0x74] sm:$0xf] %v422
                  %v424 = vld [vmem:[%s362 + $0xb8] sm:$0xf]
                  %425 = vst [vmem:[%s363 + $0x78] sm:$0xf] %v424
                  %v426 = vld [vmem:[%s362 + $0xbc] sm:$0xf]
                  %427 = vst [vmem:[%s363 + $0x7c] sm:$0xf] %v426
                  %v428 = vld [vmem:[%s362 + $0x100] sm:$0xf]
                  %429 = vst [vmem:[%s363 + $0x80] sm:$0xf] %v428
                  %v430 = vld [vmem:[%s362 + $0x104] sm:$0xf]
                  %431 = vst [vmem:[%s363 + $0x84] sm:$0xf] %v430
                  %v432 = vld [vmem:[%s362 + $0x108] sm:$0xf]
                  %433 = vst [vmem:[%s363 + $0x88] sm:$0xf] %v432
                  %v434 = vld [vmem:[%s362 + $0x10c] sm:$0xf]
                  %435 = vst [vmem:[%s363 + $0x8c] sm:$0xf] %v434
                  %v436 = vld [vmem:[%s362 + $0x110] sm:$0xf]
                  %437 = vst [vmem:[%s363 + $0x90] sm:$0xf] %v436
                  %v438 = vld [vmem:[%s362 + $0x114] sm:$0xf]
                  %439 = vst [vmem:[%s363 + $0x94] sm:$0xf] %v438
                  %v440 = vld [vmem:[%s362 + $0x118] sm:$0xf]
                  %441 = vst [vmem:[%s363 + $0x98] sm:$0xf] %v440
                  %v442 = vld [vmem:[%s362 + $0x11c] sm:$0xf]
                  %443 = vst [vmem:[%s363 + $0x9c] sm:$0xf] %v442
                  %v444 = vld [vmem:[%s362 + $0x120] sm:$0xf]
                  %445 = vst [vmem:[%s363 + $0xa0] sm:$0xf] %v444
                  %v446 = vld [vmem:[%s362 + $0x124] sm:$0xf]
                  %447 = vst [vmem:[%s363 + $0xa4] sm:$0xf] %v446
                  %v448 = vld [vmem:[%s362 + $0x128] sm:$0xf]
                  %449 = vst [vmem:[%s363 + $0xa8] sm:$0xf] %v448
                  %v450 = vld [vmem:[%s362 + $0x12c] sm:$0xf]
                  %451 = vst [vmem:[%s363 + $0xac] sm:$0xf] %v450
                  %v452 = vld [vmem:[%s362 + $0x130] sm:$0xf]
                  %453 = vst [vmem:[%s363 + $0xb0] sm:$0xf] %v452
                  %v454 = vld [vmem:[%s362 + $0x134] sm:$0xf]
                  %455 = vst [vmem:[%s363 + $0xb4] sm:$0xf] %v454
                  %v456 = vld [vmem:[%s362 + $0x138] sm:$0xf]
                  %457 = vst [vmem:[%s363 + $0xb8] sm:$0xf] %v456
                  %v458 = vld [vmem:[%s362 + $0x13c] sm:$0xf]
                  %459 = vst [vmem:[%s363 + $0xbc] sm:$0xf] %v458
                  %v460 = vld [vmem:[%s362 + $0x180] sm:$0xf]
                  %461 = vst [vmem:[%s363 + $0xc0] sm:$0xf] %v460
                  %v462 = vld [vmem:[%s362 + $0x184] sm:$0xf]
                  %463 = vst [vmem:[%s363 + $0xc4] sm:$0xf] %v462
                  %v464 = vld [vmem:[%s362 + $0x188] sm:$0xf]
                  %465 = vst [vmem:[%s363 + $0xc8] sm:$0xf] %v464
                  %v466 = vld [vmem:[%s362 + $0x18c] sm:$0xf]
                  %467 = vst [vmem:[%s363 + $0xcc] sm:$0xf] %v466
                  %v468 = vld [vmem:[%s362 + $0x190] sm:$0xf]
                  %469 = vst [vmem:[%s363 + $0xd0] sm:$0xf] %v468
                  %v470 = vld [vmem:[%s362 + $0x194] sm:$0xf]
                  %471 = vst [vmem:[%s363 + $0xd4] sm:$0xf] %v470
                  %v472 = vld [vmem:[%s362 + $0x198] sm:$0xf]
                  %473 = vst [vmem:[%s363 + $0xd8] sm:$0xf] %v472
                  %v474 = vld [vmem:[%s362 + $0x19c] sm:$0xf]
                  %475 = vst [vmem:[%s363 + $0xdc] sm:$0xf] %v474
                  %v476 = vld [vmem:[%s362 + $0x1a0] sm:$0xf]
                  %477 = vst [vmem:[%s363 + $0xe0] sm:$0xf] %v476
                  %v478 = vld [vmem:[%s362 + $0x1a4] sm:$0xf]
                  %479 = vst [vmem:[%s363 + $0xe4] sm:$0xf] %v478
                  %v480 = vld [vmem:[%s362 + $0x1a8] sm:$0xf]
                  %481 = vst [vmem:[%s363 + $0xe8] sm:$0xf] %v480
                  %v482 = vld [vmem:[%s362 + $0x1ac] sm:$0xf]
                  %483 = vst [vmem:[%s363 + $0xec] sm:$0xf] %v482
                  %v484 = vld [vmem:[%s362 + $0x1b0] sm:$0xf]
                  %485 = vst [vmem:[%s363 + $0xf0] sm:$0xf] %v484
                  %v486 = vld [vmem:[%s362 + $0x1b4] sm:$0xf]
                  %487 = vst [vmem:[%s363 + $0xf4] sm:$0xf] %v486
                  %v488 = vld [vmem:[%s362 + $0x1b8] sm:$0xf]
                  %489 = vst [vmem:[%s363 + $0xf8] sm:$0xf] %v488
                  %v490 = vld [vmem:[%s362 + $0x1bc] sm:$0xf]
                  %491 = vst [vmem:[%s363 + $0xfc] sm:$0xf] %v490
                $region67: #{tpu_custom_call.1} parent=54 // loop_footer
                  %s361 = sadd.s32 1, %s357
                $region68: #{tpu_custom_call.1} parent=54 // loop_footer_branch
                  %356 = sbr.rel target = $region64
                $region69: #{tpu_custom_call.1} parent=54 // loop_exit
                  _
              $region55: #{tpu_custom_call.1} parent=39 // pred_fallthru
                _
            $region40: #{tpu_custom_call.1} parent=35 // pred_fallthru
              _
            // Predicated region
            $region41: #{tpu_custom_call.1} parent=35 // pred_check
              _
            $region42: #{tpu_custom_call.1} parent=35 // pred_check_branch
              %207 = sbr.rel (0) target = $region44
            $region43: #{tpu_custom_call.1} parent=35 // pred_region
              loop: start=0, step=1, limit=1
              $region45: #{tpu_custom_call.1} parent=43 // loop_pre_header
                _
              $region46: #{tpu_custom_call.1} parent=43 // loop_header
                %s210 = sphi 0, %s214
                %p211 = scmp.ge.s32.totalorder %s210, 1
                %s215 = sphi %s201, %s201
                %s216 = sphi %s198, %s198
              $region47: #{tpu_custom_call.1} parent=43 // loop_header_branch
                %213 = sbr.rel (%p211) target = $region51
              $region48: #{tpu_custom_call.1} parent=43 // loop_body
                %v217 = vld [vmem:[%s215] sm:$0xf]
                %218 = vst [vmem:[%s216] sm:$0xf] %v217
                %v219 = vld [vmem:[%s215 + $0x4] sm:$0xf]
                %220 = vst [vmem:[%s216 + $0x4] sm:$0xf] %v219
                %v221 = vld [vmem:[%s215 + $0x8] sm:$0xf]
                %222 = vst [vmem:[%s216 + $0x8] sm:$0xf] %v221
                %v223 = vld [vmem:[%s215 + $0xc] sm:$0xf]
                %224 = vst [vmem:[%s216 + $0xc] sm:$0xf] %v223
                %v225 = vld [vmem:[%s215 + $0x10] sm:$0xf]
                %226 = vst [vmem:[%s216 + $0x10] sm:$0xf] %v225
                %v227 = vld [vmem:[%s215 + $0x14] sm:$0xf]
                %228 = vst [vmem:[%s216 + $0x14] sm:$0xf] %v227
                %v229 = vld [vmem:[%s215 + $0x18] sm:$0xf]
                %230 = vst [vmem:[%s216 + $0x18] sm:$0xf] %v229
                %v231 = vld [vmem:[%s215 + $0x1c] sm:$0xf]
                %232 = vst [vmem:[%s216 + $0x1c] sm:$0xf] %v231
                %v233 = vld [vmem:[%s215 + $0x20] sm:$0xf]
                %234 = vst [vmem:[%s216 + $0x20] sm:$0xf] %v233
                %v235 = vld [vmem:[%s215 + $0x24] sm:$0xf]
                %236 = vst [vmem:[%s216 + $0x24] sm:$0xf] %v235
                %v237 = vld [vmem:[%s215 + $0x28] sm:$0xf]
                %238 = vst [vmem:[%s216 + $0x28] sm:$0xf] %v237
                %v239 = vld [vmem:[%s215 + $0x2c] sm:$0xf]
                %240 = vst [vmem:[%s216 + $0x2c] sm:$0xf] %v239
                %v241 = vld [vmem:[%s215 + $0x30] sm:$0xf]
                %242 = vst [vmem:[%s216 + $0x30] sm:$0xf] %v241
                %v243 = vld [vmem:[%s215 + $0x34] sm:$0xf]
                %244 = vst [vmem:[%s216 + $0x34] sm:$0xf] %v243
                %v245 = vld [vmem:[%s215 + $0x38] sm:$0xf]
                %246 = vst [vmem:[%s216 + $0x38] sm:$0xf] %v245
                %v247 = vld [vmem:[%s215 + $0x3c] sm:$0xf]
                %248 = vst [vmem:[%s216 + $0x3c] sm:$0xf] %v247
                %v249 = vld [vmem:[%s215 + $0x80] sm:$0xf]
                %250 = vst [vmem:[%s216 + $0x40] sm:$0xf] %v249
                %v251 = vld [vmem:[%s215 + $0x84] sm:$0xf]
                %252 = vst [vmem:[%s216 + $0x44] sm:$0xf] %v251
                %v253 = vld [vmem:[%s215 + $0x88] sm:$0xf]
                %254 = vst [vmem:[%s216 + $0x48] sm:$0xf] %v253
                %v255 = vld [vmem:[%s215 + $0x8c] sm:$0xf]
                %256 = vst [vmem:[%s216 + $0x4c] sm:$0xf] %v255
                %v257 = vld [vmem:[%s215 + $0x90] sm:$0xf]
                %258 = vst [vmem:[%s216 + $0x50] sm:$0xf] %v257
                %v259 = vld [vmem:[%s215 + $0x94] sm:$0xf]
                %260 = vst [vmem:[%s216 + $0x54] sm:$0xf] %v259
                %v261 = vld [vmem:[%s215 + $0x98] sm:$0xf]
                %262 = vst [vmem:[%s216 + $0x58] sm:$0xf] %v261
                %v263 = vld [vmem:[%s215 + $0x9c] sm:$0xf]
                %264 = vst [vmem:[%s216 + $0x5c] sm:$0xf] %v263
                %v265 = vld [vmem:[%s215 + $0xa0] sm:$0xf]
                %266 = vst [vmem:[%s216 + $0x60] sm:$0xf] %v265
                %v267 = vld [vmem:[%s215 + $0xa4] sm:$0xf]
                %268 = vst [vmem:[%s216 + $0x64] sm:$0xf] %v267
                %v269 = vld [vmem:[%s215 + $0xa8] sm:$0xf]
                %270 = vst [vmem:[%s216 + $0x68] sm:$0xf] %v269
                %v271 = vld [vmem:[%s215 + $0xac] sm:$0xf]
                %272 = vst [vmem:[%s216 + $0x6c] sm:$0xf] %v271
                %v273 = vld [vmem:[%s215 + $0xb0] sm:$0xf]
                %274 = vst [vmem:[%s216 + $0x70] sm:$0xf] %v273
                %v275 = vld [vmem:[%s215 + $0xb4] sm:$0xf]
                %276 = vst [vmem:[%s216 + $0x74] sm:$0xf] %v275
                %v277 = vld [vmem:[%s215 + $0xb8] sm:$0xf]
                %278 = vst [vmem:[%s216 + $0x78] sm:$0xf] %v277
                %v279 = vld [vmem:[%s215 + $0xbc] sm:$0xf]
                %280 = vst [vmem:[%s216 + $0x7c] sm:$0xf] %v279
                %v281 = vld [vmem:[%s215 + $0x100] sm:$0xf]
                %282 = vst [vmem:[%s216 + $0x80] sm:$0xf] %v281
                %v283 = vld [vmem:[%s215 + $0x104] sm:$0xf]
                %284 = vst [vmem:[%s216 + $0x84] sm:$0xf] %v283
                %v285 = vld [vmem:[%s215 + $0x108] sm:$0xf]
                %286 = vst [vmem:[%s216 + $0x88] sm:$0xf] %v285
                %v287 = vld [vmem:[%s215 + $0x10c] sm:$0xf]
                %288 = vst [vmem:[%s216 + $0x8c] sm:$0xf] %v287
                %v289 = vld [vmem:[%s215 + $0x110] sm:$0xf]
                %290 = vst [vmem:[%s216 + $0x90] sm:$0xf] %v289
                %v291 = vld [vmem:[%s215 + $0x114] sm:$0xf]
                %292 = vst [vmem:[%s216 + $0x94] sm:$0xf] %v291
                %v293 = vld [vmem:[%s215 + $0x118] sm:$0xf]
                %294 = vst [vmem:[%s216 + $0x98] sm:$0xf] %v293
                %v295 = vld [vmem:[%s215 + $0x11c] sm:$0xf]
                %296 = vst [vmem:[%s216 + $0x9c] sm:$0xf] %v295
                %v297 = vld [vmem:[%s215 + $0x120] sm:$0xf]
                %298 = vst [vmem:[%s216 + $0xa0] sm:$0xf] %v297
                %v299 = vld [vmem:[%s215 + $0x124] sm:$0xf]
                %300 = vst [vmem:[%s216 + $0xa4] sm:$0xf] %v299
                %v301 = vld [vmem:[%s215 + $0x128] sm:$0xf]
                %302 = vst [vmem:[%s216 + $0xa8] sm:$0xf] %v301
                %v303 = vld [vmem:[%s215 + $0x12c] sm:$0xf]
                %304 = vst [vmem:[%s216 + $0xac] sm:$0xf] %v303
                %v305 = vld [vmem:[%s215 + $0x130] sm:$0xf]
                %306 = vst [vmem:[%s216 + $0xb0] sm:$0xf] %v305
                %v307 = vld [vmem:[%s215 + $0x134] sm:$0xf]
                %308 = vst [vmem:[%s216 + $0xb4] sm:$0xf] %v307
                %v309 = vld [vmem:[%s215 + $0x138] sm:$0xf]
                %310 = vst [vmem:[%s216 + $0xb8] sm:$0xf] %v309
                %v311 = vld [vmem:[%s215 + $0x13c] sm:$0xf]
                %312 = vst [vmem:[%s216 + $0xbc] sm:$0xf] %v311
                %v313 = vld [vmem:[%s215 + $0x180] sm:$0xf]
                %314 = vst [vmem:[%s216 + $0xc0] sm:$0xf] %v313
                %v315 = vld [vmem:[%s215 + $0x184] sm:$0xf]
                %316 = vst [vmem:[%s216 + $0xc4] sm:$0xf] %v315
                %v317 = vld [vmem:[%s215 + $0x188] sm:$0xf]
                %318 = vst [vmem:[%s216 + $0xc8] sm:$0xf] %v317
                %v319 = vld [vmem:[%s215 + $0x18c] sm:$0xf]
                %320 = vst [vmem:[%s216 + $0xcc] sm:$0xf] %v319
                %v321 = vld [vmem:[%s215 + $0x190] sm:$0xf]
                %322 = vst [vmem:[%s216 + $0xd0] sm:$0xf] %v321
                %v323 = vld [vmem:[%s215 + $0x194] sm:$0xf]
                %324 = vst [vmem:[%s216 + $0xd4] sm:$0xf] %v323
                %v325 = vld [vmem:[%s215 + $0x198] sm:$0xf]
                %326 = vst [vmem:[%s216 + $0xd8] sm:$0xf] %v325
                %v327 = vld [vmem:[%s215 + $0x19c] sm:$0xf]
                %328 = vst [vmem:[%s216 + $0xdc] sm:$0xf] %v327
                %v329 = vld [vmem:[%s215 + $0x1a0] sm:$0xf]
                %330 = vst [vmem:[%s216 + $0xe0] sm:$0xf] %v329
                %v331 = vld [vmem:[%s215 + $0x1a4] sm:$0xf]
                %332 = vst [vmem:[%s216 + $0xe4] sm:$0xf] %v331
                %v333 = vld [vmem:[%s215 + $0x1a8] sm:$0xf]
                %334 = vst [vmem:[%s216 + $0xe8] sm:$0xf] %v333
                %v335 = vld [vmem:[%s215 + $0x1ac] sm:$0xf]
                %336 = vst [vmem:[%s216 + $0xec] sm:$0xf] %v335
                %v337 = vld [vmem:[%s215 + $0x1b0] sm:$0xf]
                %338 = vst [vmem:[%s216 + $0xf0] sm:$0xf] %v337
                %v339 = vld [vmem:[%s215 + $0x1b4] sm:$0xf]
                %340 = vst [vmem:[%s216 + $0xf4] sm:$0xf] %v339
                %v341 = vld [vmem:[%s215 + $0x1b8] sm:$0xf]
                %342 = vst [vmem:[%s216 + $0xf8] sm:$0xf] %v341
                %v343 = vld [vmem:[%s215 + $0x1bc] sm:$0xf]
                %344 = vst [vmem:[%s216 + $0xfc] sm:$0xf] %v343
              $region49: #{tpu_custom_call.1} parent=43 // loop_footer
                %s214 = sadd.s32 1, %s210
              $region50: #{tpu_custom_call.1} parent=43 // loop_footer_branch
                %209 = sbr.rel target = $region46
              $region51: #{tpu_custom_call.1} parent=43 // loop_exit
                _
            $region44: #{tpu_custom_call.1} parent=35 // pred_fallthru
              _
          $region36: #{tpu_custom_call.1} parent=31 // pred_fallthru
            _
          %492 = vnop
        $region32: #{tpu_custom_call.1} parent=27 // pred_fallthru
          _
      $region28: #{tpu_custom_call.1} parent=5 // pred_fallthru
        _
      %p493 = scmp.le.s32.totalorder 1, %s10
      %p494 = scmp.lt.s32.totalorder %s10, 3
      %p495 = pnand %p493, %p494
      %p496 = pneg %p495
      // Predicated region
      $region70: #{tpu_custom_call.1} parent=5 // pred_check
        _
      $region71: #{tpu_custom_call.1} parent=5 // pred_check_branch
        %498 = sbr.rel (%p495) target = $region73
      $region72: #{tpu_custom_call.1} parent=5 // pred_region
        %s499 = ssub.s32 %s10, 1
        %s500 = sand.u32 %s35, 1
        %s501 = sand.u32 %s35, 1
        %s502 = smul.addr %s501, 256
        %s503 = scalar_lea.vmem [#allocation2], %s502
        // Predicated region
        $region74: #{tpu_custom_call.1} parent=72 // pred_check
          %p504 = pneg %p48
        $region75: #{tpu_custom_call.1} parent=72 // pred_check_branch
          %506 = sbr.rel (%p504) target = $region77
        $region76: #{tpu_custom_call.1} parent=72 // pred_region
          _
        $region77: #{tpu_custom_call.1} parent=72 // pred_fallthru
          _
        %s507 = sand.u32 %s35, 1
        %s508 = sand.u32 %s35, 1
        %s509 = smul.addr %s508, 256
        %s510 = scalar_lea.vmem [#allocation2], %s509
        %p511 = pneg %p48
        %p512 = pneg %p45
        %p513 = scmp.lt.s32.totalorder %s19, 0
        %s514 = scalar_select %p513, %s19, 0
        %s515 = smul.addr %s514, 2
        %s516 = scalar_lea.vmem %s1, %s515
        %p517 = pneg %p74
        %p518 = pneg %p71
        %p519 = scmp.lt.s32.totalorder %s19, 0
        %s520 = scalar_select %p519, %s19, 0
        %s521 = scalar_lea.vmem %s2, %s520
        %p522 = pneg %p100
        %p523 = pneg %p97
        %p524 = scmp.lt.s32.totalorder %s19, 0
        %s525 = scalar_select %p524, %s19, 0
        %s526 = scalar_lea.vmem %s3, %s525
        %p527 = pneg %p126
        %p528 = pneg %p123
        %p529 = pneg %p154
        %p530 = pneg %p151
        %p531 = scmp.lt.s32.totalorder %s20, 1
        %s532 = scalar_select %p531, %s20, 1
        %p533 = scmp.lt.s32.totalorder %s19, 0
        %s534 = scalar_select %p533, %s19, 0
        %s535 = smul.addr %s532, 11
        %s536 = sadd.s32 %s534, %s535
        %s537 = smul.addr %s536, 4
        %s538 = scalar_lea.vmem %s4, %s537
        %p539 = scmp.lt.s32.totalorder %s19, 0
        %s540 = scalar_select %p539, %s19, 0
        %s541 = smul.addr %s540, 2
        %s542 = scalar_lea.vmem %s1, %s541
        %p543 = scmp.lt.s32.totalorder %s19, 0
        %s544 = scalar_select %p543, %s19, 0
        %s545 = scalar_lea.vmem %s2, %s544
        %p546 = scmp.lt.s32.totalorder %s19, 0
        %s547 = scalar_select %p546, %s19, 0
        %s548 = scalar_lea.vmem %s3, %s547
        %p549 = scmp.lt.s32.totalorder %s20, 1
        %s550 = scalar_select %p549, %s20, 1
        %p551 = scmp.lt.s32.totalorder %s19, 0
        %s552 = scalar_select %p551, %s19, 0
        %s553 = smul.addr %s550, 11
        %s554 = sadd.s32 %s552, %s553
        %s555 = smul.addr %s554, 4
        %s556 = scalar_lea.vmem %s4, %s555
        %v558 = vld [vmem:[%s503] sm:$0xf]
        %v559 = vld [vmem:[%s503 + $0x4] sm:$0xf]
        %v560 = vld [vmem:[%s503 + $0x8] sm:$0xf]
        %v561 = vld [vmem:[%s503 + $0xc] sm:$0xf]
        %v562 = vld [vmem:[%s503 + $0x10] sm:$0xf]
        %v563 = vld [vmem:[%s503 + $0x14] sm:$0xf]
        %v564 = vld [vmem:[%s503 + $0x18] sm:$0xf]
        %v565 = vld [vmem:[%s503 + $0x1c] sm:$0xf]
        %v566 = vld [vmem:[%s503 + $0x20] sm:$0xf]
        %v567 = vld [vmem:[%s503 + $0x24] sm:$0xf]
        %v568 = vld [vmem:[%s503 + $0x28] sm:$0xf]
        %v569 = vld [vmem:[%s542] sm:$0x3]
        %s570 = scalar_lea.vmem %s503, 64 [#allocation2]
        %v571 = vld [vmem:[%s570] sm:$0xf]
        %v572 = vld [vmem:[%s570 + $0x4] sm:$0xf]
        %v573 = vld [vmem:[%s570 + $0x8] sm:$0xf]
        %v574 = vld [vmem:[%s570 + $0xc] sm:$0xf]
        %v575 = vld [vmem:[%s570 + $0x10] sm:$0xf]
        %v576 = vld [vmem:[%s570 + $0x14] sm:$0xf]
        %v577 = vld [vmem:[%s570 + $0x18] sm:$0xf]
        %v578 = vld [vmem:[%s570 + $0x1c] sm:$0xf]
        %v579 = vld [vmem:[%s570 + $0x20] sm:$0xf]
        %v580 = vld [vmem:[%s570 + $0x24] sm:$0xf]
        %v581 = vld [vmem:[%s570 + $0x28] sm:$0xf]
        %s582 = scalar_lea.vmem %s542, 2
        %v583 = vld [vmem:[%s582] sm:$0x3]
        %v595 = vunpack.c.l.b16 %v571
        %v596 = vunpack.c.l.b16 %v572
        %v597 = vunpack.c.l.b16 %v573
        %v598 = vunpack.c.l.b16 %v574
        %v599 = vunpack.c.l.b16 %v575
        %v600 = vunpack.c.l.b16 %v576
        %v601 = vunpack.c.l.b16 %v577
        %v602 = vunpack.c.l.b16 %v578
        %v603 = vunpack.c.l.b16 %v579
        %v604 = vunpack.c.l.b16 %v580
        %v605 = vunpack.c.l.b16 %v581
        %v606 = vpack.c.b16 %v596, %v595
        %v607 = vpack.c.b16 %v598, %v597
        %v608 = vpack.c.b16 %v600, %v599
        %v609 = vpack.c.b16 %v602, %v601
        %v610 = vpack.c.b16 %v604, %v603
        %v611 = vpack.c.b16 %v605, %v605
        %vm612 = vcmask 31744
        %v614 = vsel %vm612, %v606, 0
        %v617 = vsel %vm612, %v607, 0
        %v620 = vsel %vm612, %v608, 0
        %v623 = vsel %vm612, %v609, 0
        %v626 = vsel %vm612, %v610, 0
        %v629 = vsel %vm612, %v611, 0
        %vm631 = vcmask 1041408
        %v633 = vsel %vm631, %v583, 0
        %635 = vmatprep.subr.bf16.mxu0 0
        %636 = vmatpush1.bf16.msra.mxu0 %v633
        %637 = vmatprep.subr.bf16.mxu0 0
        %638 = vmatpush1.bf16.msra.mxu0 0
        %639 = vmatprep.subr.bf16.mxu0 0
        %640 = vmatpush1.bf16.msra.mxu0 0
        %641 = vmatprep.subr.bf16.mxu0 0
        %642 = vmatpush1.bf16.msra.mxu0 0
        %643 = vmatprep.subr.bf16.mxu0 0
        %644 = vmatpush1.bf16.msra.mxu0 0
        %645 = vmatprep.subr.bf16.mxu0 0
        %646 = vmatpush1.bf16.msra.mxu0 0
        %647 = vmatprep.subr.bf16.mxu0 0
        %648 = vmatpush1.bf16.msra.mxu0 0
        %649 = vmatprep.subr.bf16.mxu0 0
        %650 = vmatpush1.bf16.msra.mxu0 0
        %651 = vmatprep.subr.bf16.mxu0 0
        %652 = vmatpush1.bf16.msra.mxu0 0
        %653 = vmatprep.subr.bf16.mxu0 0
        %654 = vmatpush1.bf16.msra.mxu0 0
        %655 = vmatprep.subr.bf16.mxu0 0
        %656 = vmatpush1.bf16.msra.mxu0 0
        %657 = vmatprep.subr.bf16.mxu0 0
        %658 = vmatpush1.bf16.msra.mxu0 0
        %659 = vmatprep.subr.bf16.mxu0 0
        %660 = vmatpush1.bf16.msra.mxu0 0
        %661 = vmatprep.subr.bf16.mxu0 0
        %662 = vmatpush1.bf16.msra.mxu0 0
        %663 = vmatprep.subr.bf16.mxu0 0
        %664 = vmatpush1.bf16.msra.mxu0 0
        %665 = vmatprep.subr.bf16.mxu0 0
        %666 = vmatpush1.bf16.msra.mxu0 0
        %667 = vmatprep.mubr.bf16.mxu0 0
        %668 = vmatmul.mubr.bf16.gmra.mrb[0].mxu0 %v614
        %v669 = vpop.f32.mrb[0].mxu0
        %v670 = vadd.f32 0.0, %v669
        %v671 = vpop.f32.mrb[0].mxu0
        %v672 = vpop.f32.mrb[0].mxu0
        %v673 = vadd.f32 0.0, %v672
        %v674 = vpop.f32.mrb[0].mxu0
        %675 = vmatprep.mubr.bf16.mxu0 0
        %676 = vmatmul.mubr.bf16.gmra.mrb[0].mxu0 %v617
        %v677 = vpop.f32.mrb[0].mxu0
        %v678 = vadd.f32 0.0, %v677
        %v679 = vpop.f32.mrb[0].mxu0
        %v680 = vpop.f32.mrb[0].mxu0
        %v681 = vadd.f32 0.0, %v680
        %v682 = vpop.f32.mrb[0].mxu0
        %683 = vmatprep.mubr.bf16.mxu0 0
        %684 = vmatmul.mubr.bf16.gmra.mrb[0].mxu0 %v620
        %v685 = vpop.f32.mrb[0].mxu0
        %v686 = vadd.f32 0.0, %v685
        %v687 = vpop.f32.mrb[0].mxu0
        %v688 = vpop.f32.mrb[0].mxu0
        %v689 = vadd.f32 0.0, %v688
        %v690 = vpop.f32.mrb[0].mxu0
        %691 = vmatprep.mubr.bf16.mxu0 0
        %692 = vmatmul.mubr.bf16.gmra.mrb[0].mxu0 %v623
        %v693 = vpop.f32.mrb[0].mxu0
        %v694 = vadd.f32 0.0, %v693
        %v695 = vpop.f32.mrb[0].mxu0
        %v696 = vpop.f32.mrb[0].mxu0
        %v697 = vadd.f32 0.0, %v696
        %v698 = vpop.f32.mrb[0].mxu0
        %699 = vmatprep.mubr.bf16.mxu0 0
        %700 = vmatmul.mubr.bf16.gmra.mrb[0].mxu0 %v626
        %v701 = vpop.f32.mrb[0].mxu0
        %v702 = vadd.f32 0.0, %v701
        %v703 = vpop.f32.mrb[0].mxu0
        %v704 = vpop.f32.mrb[0].mxu0
        %v705 = vadd.f32 0.0, %v704
        %v706 = vpop.f32.mrb[0].mxu0
        %707 = vmatprep.mubr.bf16.mxu0 0
        %708 = vmatmul.mubr.bf16.gmra.mrb[0].mxu0 %v629
        %v709 = vpop.f32.mrb[0].mxu0
        %v710 = vadd.f32 0.0, %v709
        %v711 = vpop.f32.mrb[0].mxu0
        %v712 = vpop.f32.mrb[0].mxu0
        %v713 = vpop.f32.mrb[0].mxu0
        %714 = vdwg.mxu0
        %v726 = vunpack.c.l.b16 %v558
        %v727 = vunpack.c.l.b16 %v559
        %v728 = vunpack.c.l.b16 %v560
        %v729 = vunpack.c.l.b16 %v561
        %v730 = vunpack.c.l.b16 %v562
        %v731 = vunpack.c.l.b16 %v563
        %v732 = vunpack.c.l.b16 %v564
        %v733 = vunpack.c.l.b16 %v565
        %v734 = vunpack.c.l.b16 %v566
        %v735 = vunpack.c.l.b16 %v567
        %v736 = vunpack.c.l.b16 %v568
        %v737 = vpack.c.b16 %v727, %v726
        %v738 = vpack.c.b16 %v729, %v728
        %v739 = vpack.c.b16 %v731, %v730
        %v740 = vpack.c.b16 %v733, %v732
        %v741 = vpack.c.b16 %v735, %v734
        %v742 = vpack.c.b16 %v736, %v736
        %v744 = vsel %vm612, %v737, 0
        %v747 = vsel %vm612, %v738, 0
        %v750 = vsel %vm612, %v739, 0
        %v753 = vsel %vm612, %v740, 0
        %v756 = vsel %vm612, %v741, 0
        %v759 = vsel %vm612, %v742, 0
        %v762 = vsel %vm631, %v569, 0
        %764 = vmatprep.subr.bf16.mxu0 0
        %765 = vmatpush1.bf16.msra.mxu0 %v762
        %766 = vmatprep.subr.bf16.mxu0 0
        %767 = vmatpush1.bf16.msra.mxu0 0
        %768 = vmatprep.subr.bf16.mxu0 0
        %769 = vmatpush1.bf16.msra.mxu0 0
        %770 = vmatprep.subr.bf16.mxu0 0
        %771 = vmatpush1.bf16.msra.mxu0 0
        %772 = vmatprep.subr.bf16.mxu0 0
        %773 = vmatpush1.bf16.msra.mxu0 0
        %774 = vmatprep.subr.bf16.mxu0 0
        %775 = vmatpush1.bf16.msra.mxu0 0
        %776 = vmatprep.subr.bf16.mxu0 0
        %777 = vmatpush1.bf16.msra.mxu0 0
        %778 = vmatprep.subr.bf16.mxu0 0
        %779 = vmatpush1.bf16.msra.mxu0 0
        %780 = vmatprep.subr.bf16.mxu0 0
        %781 = vmatpush1.bf16.msra.mxu0 0
        %782 = vmatprep.subr.bf16.mxu0 0
        %783 = vmatpush1.bf16.msra.mxu0 0
        %784 = vmatprep.subr.bf16.mxu0 0
        %785 = vmatpush1.bf16.msra.mxu0 0
        %786 = vmatprep.subr.bf16.mxu0 0
        %787 = vmatpush1.bf16.msra.mxu0 0
        %788 = vmatprep.subr.bf16.mxu0 0
        %789 = vmatpush1.bf16.msra.mxu0 0
        %790 = vmatprep.subr.bf16.mxu0 0
        %791 = vmatpush1.bf16.msra.mxu0 0
        %792 = vmatprep.subr.bf16.mxu0 0
        %793 = vmatpush1.bf16.msra.mxu0 0
        %794 = vmatprep.subr.bf16.mxu0 0
        %795 = vmatpush1.bf16.msra.mxu0 0
        %796 = vmatprep.mubr.bf16.mxu0 0
        %797 = vmatmul.mubr.bf16.gmra.mrb[0].mxu0 %v744
        %v798 = vpop.f32.mrb[0].mxu0
        %v799 = vadd.f32 %v670, %v798
        %v800 = vpop.f32.mrb[0].mxu0
        %v801 = vpop.f32.mrb[0].mxu0
        %v802 = vadd.f32 %v673, %v801
        %v803 = vpop.f32.mrb[0].mxu0
        %804 = vmatprep.mubr.bf16.mxu0 0
        %805 = vmatmul.mubr.bf16.gmra.mrb[0].mxu0 %v747
        %v806 = vpop.f32.mrb[0].mxu0
        %v807 = vadd.f32 %v678, %v806
        %v808 = vpop.f32.mrb[0].mxu0
        %v809 = vpop.f32.mrb[0].mxu0
        %v810 = vadd.f32 %v681, %v809
        %v811 = vpop.f32.mrb[0].mxu0
        %812 = vmatprep.mubr.bf16.mxu0 0
        %813 = vmatmul.mubr.bf16.gmra.mrb[0].mxu0 %v750
        %v814 = vpop.f32.mrb[0].mxu0
        %v815 = vadd.f32 %v686, %v814
        %v816 = vpop.f32.mrb[0].mxu0
        %v817 = vpop.f32.mrb[0].mxu0
        %v818 = vadd.f32 %v689, %v817
        %v819 = vpop.f32.mrb[0].mxu0
        %820 = vmatprep.mubr.bf16.mxu0 0
        %821 = vmatmul.mubr.bf16.gmra.mrb[0].mxu0 %v753
        %v822 = vpop.f32.mrb[0].mxu0
        %v823 = vadd.f32 %v694, %v822
        %v824 = vpop.f32.mrb[0].mxu0
        %v825 = vpop.f32.mrb[0].mxu0
        %v826 = vadd.f32 %v697, %v825
        %v827 = vpop.f32.mrb[0].mxu0
        %828 = vmatprep.mubr.bf16.mxu0 0
        %829 = vmatmul.mubr.bf16.gmra.mrb[0].mxu0 %v756
        %v830 = vpop.f32.mrb[0].mxu0
        %v831 = vadd.f32 %v702, %v830
        %v832 = vpop.f32.mrb[0].mxu0
        %v833 = vpop.f32.mrb[0].mxu0
        %v834 = vadd.f32 %v705, %v833
        %v835 = vpop.f32.mrb[0].mxu0
        %836 = vmatprep.mubr.bf16.mxu0 0
        %837 = vmatmul.mubr.bf16.gmra.mrb[0].mxu0 %v759
        %v838 = vpop.f32.mrb[0].mxu0
        %v839 = vadd.f32 %v710, %v838
        %v840 = vpop.f32.mrb[0].mxu0
        %v841 = vpop.f32.mrb[0].mxu0
        %v842 = vpop.f32.mrb[0].mxu0
        %843 = vdwg.mxu0
        %v844 = vld [vmem:[%s503] sm:$0xf]
        %v845 = vld [vmem:[%s503 + $0x4] sm:$0xf]
        %v846 = vld [vmem:[%s503 + $0x8] sm:$0xf]
        %v847 = vld [vmem:[%s503 + $0xc] sm:$0xf]
        %v848 = vld [vmem:[%s503 + $0x10] sm:$0xf]
        %v849 = vld [vmem:[%s503 + $0x14] sm:$0xf]
        %v850 = vld [vmem:[%s503 + $0x18] sm:$0xf]
        %v851 = vld [vmem:[%s503 + $0x1c] sm:$0xf]
        %v852 = vld [vmem:[%s503 + $0x20] sm:$0xf]
        %v853 = vld [vmem:[%s503 + $0x24] sm:$0xf]
        %v854 = vld [vmem:[%s503 + $0x28] sm:$0xf]
        %v855 = vld [vmem:[%s503 + $0x2c] sm:$0x1]
        %s856 = scalar_lea.vmem %s542, 4
        %v857 = vld [vmem:[%s856] sm:$0x3]
        %v870 = vunpack.c.l.b16 %v844
        %v871 = vunpack.c.l.b16 %v845
        %v872 = vunpack.c.l.b16 %v846
        %v873 = vunpack.c.l.b16 %v847
        %v874 = vunpack.c.l.b16 %v848
        %v875 = vunpack.c.l.b16 %v849
        %v876 = vunpack.c.l.b16 %v850
        %v877 = vunpack.c.l.b16 %v851
        %v878 = vunpack.c.l.b16 %v852
        %v879 = vunpack.c.l.b16 %v853
        %v880 = vunpack.c.l.b16 %v854
        %v881 = vunpack.c.l.b16 %v855
        %v882 = vpack.c.b16 %v871, %v870
        %v883 = vpack.c.b16 %v873, %v872
        %v884 = vpack.c.b16 %v875, %v874
        %v885 = vpack.c.b16 %v877, %v876
        %v886 = vpack.c.b16 %v879, %v878
        %v887 = vpack.c.b16 %v881, %v880
        %vm888 = vsmask.f32 7424
        %v890 = vshrl.u32 %v882, 16
        %v892 = vshll.u32 %v882, 16
        %v894 = vrot.slane %v892, 1
        %v895 = vor.u32 %v890, %v894
        %v897 = vshll.u32 %v883, 16
        %v899 = vrot.slane %v897, 1
        %v900 = vsel %vm888, %v895, %v899
        %v901 = vshrl.u32 %v883, 16
        %v903 = vor.u32 %v901, %v899
        %v905 = vshll.u32 %v884, 16
        %v907 = vrot.slane %v905, 1
        %v908 = vsel %vm888, %v903, %v907
        %v909 = vshrl.u32 %v884, 16
        %v911 = vor.u32 %v909, %v907
        %v913 = vshll.u32 %v885, 16
        %v915 = vrot.slane %v913, 1
        %v916 = vsel %vm888, %v911, %v915
        %v917 = vshrl.u32 %v885, 16
        %v919 = vor.u32 %v917, %v915
        %v921 = vshll.u32 %v886, 16
        %v923 = vrot.slane %v921, 1
        %v924 = vsel %vm888, %v919, %v923
        %v925 = vshrl.u32 %v886, 16
        %v927 = vor.u32 %v925, %v923
        %v929 = vshll.u32 %v887, 16
        %v931 = vrot.slane %v929, 1
        %v932 = vsel %vm888, %v927, %v931
        %v933 = vshrl.u32 %v887, 16
        %v935 = vor.u32 %v933, %v931
        %v937 = vsel %vm612, %v900, 0
        %v940 = vsel %vm612, %v908, 0
        %v943 = vsel %vm612, %v916, 0
        %v946 = vsel %vm612, %v924, 0
        %v949 = vsel %vm612, %v932, 0
        %v952 = vsel %vm612, %v935, 0
        %v955 = vsel %vm631, %v857, 0
        %957 = vmatprep.subr.bf16.mxu0 0
        %958 = vmatpush1.bf16.msra.mxu0 %v955
        %959 = vmatprep.subr.bf16.mxu0 0
        %960 = vmatpush1.bf16.msra.mxu0 0
        %961 = vmatprep.subr.bf16.mxu0 0
        %962 = vmatpush1.bf16.msra.mxu0 0
        %963 = vmatprep.subr.bf16.mxu0 0
        %964 = vmatpush1.bf16.msra.mxu0 0
        %965 = vmatprep.subr.bf16.mxu0 0
        %966 = vmatpush1.bf16.msra.mxu0 0
        %967 = vmatprep.subr.bf16.mxu0 0
        %968 = vmatpush1.bf16.msra.mxu0 0
        %969 = vmatprep.subr.bf16.mxu0 0
        %970 = vmatpush1.bf16.msra.mxu0 0
        %971 = vmatprep.subr.bf16.mxu0 0
        %972 = vmatpush1.bf16.msra.mxu0 0
        %973 = vmatprep.subr.bf16.mxu0 0
        %974 = vmatpush1.bf16.msra.mxu0 0
        %975 = vmatprep.subr.bf16.mxu0 0
        %976 = vmatpush1.bf16.msra.mxu0 0
        %977 = vmatprep.subr.bf16.mxu0 0
        %978 = vmatpush1.bf16.msra.mxu0 0
        %979 = vmatprep.subr.bf16.mxu0 0
        %980 = vmatpush1.bf16.msra.mxu0 0
        %981 = vmatprep.subr.bf16.mxu0 0
        %982 = vmatpush1.bf16.msra.mxu0 0
        %983 = vmatprep.subr.bf16.mxu0 0
        %984 = vmatpush1.bf16.msra.mxu0 0
        %985 = vmatprep.subr.bf16.mxu0 0
        %986 = vmatpush1.bf16.msra.mxu0 0
        %987 = vmatprep.subr.bf16.mxu0 0
        %988 = vmatpush1.bf16.msra.mxu0 0
        %989 = vmatprep.mubr.bf16.mxu0 0
        %990 = vmatmul.mubr.bf16.gmra.mrb[0].mxu0 %v937
        %v991 = vpop.f32.mrb[0].mxu0
        %v992 = vadd.f32 0.0, %v991
        %v993 = vpop.f32.mrb[0].mxu0
        %v994 = vpop.f32.mrb[0].mxu0
        %v995 = vadd.f32 0.0, %v994
        %v996 = vpop.f32.mrb[0].mxu0
        %997 = vmatprep.mubr.bf16.mxu0 0
        %998 = vmatmul.mubr.bf16.gmra.mrb[0].mxu0 %v940
        %v999 = vpop.f32.mrb[0].mxu0
        %v1000 = vadd.f32 0.0, %v999
        %v1001 = vpop.f32.mrb[0].mxu0
        %v1002 = vpop.f32.mrb[0].mxu0
        %v1003 = vadd.f32 0.0, %v1002
        %v1004 = vpop.f32.mrb[0].mxu0
        %1005 = vmatprep.mubr.bf16.mxu0 0
        %1006 = vmatmul.mubr.bf16.gmra.mrb[0].mxu0 %v943
        %v1007 = vpop.f32.mrb[0].mxu0
        %v1008 = vadd.f32 0.0, %v1007
        %v1009 = vpop.f32.mrb[0].mxu0
        %v1010 = vpop.f32.mrb[0].mxu0
        %v1011 = vadd.f32 0.0, %v1010
        %v1012 = vpop.f32.mrb[0].mxu0
        %1013 = vmatprep.mubr.bf16.mxu0 0
        %1014 = vmatmul.mubr.bf16.gmra.mrb[0].mxu0 %v946
        %v1015 = vpop.f32.mrb[0].mxu0
        %v1016 = vadd.f32 0.0, %v1015
        %v1017 = vpop.f32.mrb[0].mxu0
        %v1018 = vpop.f32.mrb[0].mxu0
        %v1019 = vadd.f32 0.0, %v1018
        %v1020 = vpop.f32.mrb[0].mxu0
        %1021 = vmatprep.mubr.bf16.mxu0 0
        %1022 = vmatmul.mubr.bf16.gmra.mrb[0].mxu0 %v949
        %v1023 = vpop.f32.mrb[0].mxu0
        %v1024 = vadd.f32 0.0, %v1023
        %v1025 = vpop.f32.mrb[0].mxu0
        %v1026 = vpop.f32.mrb[0].mxu0
        %v1027 = vadd.f32 0.0, %v1026
        %v1028 = vpop.f32.mrb[0].mxu0
        %1029 = vmatprep.mubr.bf16.mxu0 0
        %1030 = vmatmul.mubr.bf16.gmra.mrb[0].mxu0 %v952
        %v1031 = vpop.f32.mrb[0].mxu0
        %v1032 = vadd.f32 0.0, %v1031
        %v1033 = vpop.f32.mrb[0].mxu0
        %v1034 = vpop.f32.mrb[0].mxu0
        %v1035 = vpop.f32.mrb[0].mxu0
        %1036 = vdwg.mxu0
        %v1037 = vadd.f32 %v799, %v992
        %v1038 = vadd.f32 %v802, %v995
        %v1039 = vadd.f32 %v807, %v1000
        %v1040 = vadd.f32 %v810, %v1003
        %v1041 = vadd.f32 %v815, %v1008
        %v1042 = vadd.f32 %v818, %v1011
        %v1043 = vadd.f32 %v823, %v1016
        %v1044 = vadd.f32 %v826, %v1019
        %v1045 = vadd.f32 %v831, %v1024
        %v1046 = vadd.f32 %v834, %v1027
        %v1047 = vadd.f32 %v839, %v1032
        %v1048 = vld [vmem:[%s570] sm:$0xf]
        %v1049 = vld [vmem:[%s570 + $0x4] sm:$0xf]
        %v1050 = vld [vmem:[%s570 + $0x8] sm:$0xf]
        %v1051 = vld [vmem:[%s570 + $0xc] sm:$0xf]
        %v1052 = vld [vmem:[%s570 + $0x10] sm:$0xf]
        %v1053 = vld [vmem:[%s570 + $0x14] sm:$0xf]
        %v1054 = vld [vmem:[%s570 + $0x18] sm:$0xf]
        %v1055 = vld [vmem:[%s570 + $0x1c] sm:$0xf]
        %v1056 = vld [vmem:[%s570 + $0x20] sm:$0xf]
        %v1057 = vld [vmem:[%s570 + $0x24] sm:$0xf]
        %v1058 = vld [vmem:[%s570 + $0x28] sm:$0xf]
        %v1059 = vld [vmem:[%s570 + $0x2c] sm:$0x1]
        %s1060 = scalar_lea.vmem %s542, 6
        %v1061 = vld [vmem:[%s1060] sm:$0x3]
        %v1074 = vunpack.c.l.b16 %v1048
        %v1075 = vunpack.c.l.b16 %v1049
        %v1076 = vunpack.c.l.b16 %v1050
        %v1077 = vunpack.c.l.b16 %v1051
        %v1078 = vunpack.c.l.b16 %v1052
        %v1079 = vunpack.c.l.b16 %v1053
        %v1080 = vunpack.c.l.b16 %v1054
        %v1081 = vunpack.c.l.b16 %v1055
        %v1082 = vunpack.c.l.b16 %v1056
        %v1083 = vunpack.c.l.b16 %v1057
        %v1084 = vunpack.c.l.b16 %v1058
        %v1085 = vunpack.c.l.b16 %v1059
        %v1086 = vpack.c.b16 %v1075, %v1074
        %v1087 = vpack.c.b16 %v1077, %v1076
        %v1088 = vpack.c.b16 %v1079, %v1078
        %v1089 = vpack.c.b16 %v1081, %v1080
        %v1090 = vpack.c.b16 %v1083, %v1082
        %v1091 = vpack.c.b16 %v1085, %v1084
        %v1093 = vshrl.u32 %v1086, 16
        %v1095 = vshll.u32 %v1086, 16
        %v1097 = vrot.slane %v1095, 1
        %v1098 = vor.u32 %v1093, %v1097
        %v1100 = vshll.u32 %v1087, 16
        %v1102 = vrot.slane %v1100, 1
        %v1103 = vsel %vm888, %v1098, %v1102
        %v1104 = vshrl.u32 %v1087, 16
        %v1106 = vor.u32 %v1104, %v1102
        %v1108 = vshll.u32 %v1088, 16
        %v1110 = vrot.slane %v1108, 1
        %v1111 = vsel %vm888, %v1106, %v1110
        %v1112 = vshrl.u32 %v1088, 16
        %v1114 = vor.u32 %v1112, %v1110
        %v1116 = vshll.u32 %v1089, 16
        %v1118 = vrot.slane %v1116, 1
        %v1119 = vsel %vm888, %v1114, %v1118
        %v1120 = vshrl.u32 %v1089, 16
        %v1122 = vor.u32 %v1120, %v1118
        %v1124 = vshll.u32 %v1090, 16
        %v1126 = vrot.slane %v1124, 1
        %v1127 = vsel %vm888, %v1122, %v1126
        %v1128 = vshrl.u32 %v1090, 16
        %v1130 = vor.u32 %v1128, %v1126
        %v1132 = vshll.u32 %v1091, 16
        %v1134 = vrot.slane %v1132, 1
        %v1135 = vsel %vm888, %v1130, %v1134
        %v1136 = vshrl.u32 %v1091, 16
        %v1138 = vor.u32 %v1136, %v1134
        %v1140 = vsel %vm612, %v1103, 0
        %v1143 = vsel %vm612, %v1111, 0
        %v1146 = vsel %vm612, %v1119, 0
        %v1149 = vsel %vm612, %v1127, 0
        %v1152 = vsel %vm612, %v1135, 0
        %v1155 = vsel %vm612, %v1138, 0
        %v1158 = vsel %vm631, %v1061, 0
        %1160 = vmatprep.subr.bf16.mxu0 0
        %1161 = vmatpush1.bf16.msra.mxu0 %v1158
        %1162 = vmatprep.subr.bf16.mxu0 0
        %1163 = vmatpush1.bf16.msra.mxu0 0
        %1164 = vmatprep.subr.bf16.mxu0 0
        %1165 = vmatpush1.bf16.msra.mxu0 0
        %1166 = vmatprep.subr.bf16.mxu0 0
        %1167 = vmatpush1.bf16.msra.mxu0 0
        %1168 = vmatprep.subr.bf16.mxu0 0
        %1169 = vmatpush1.bf16.msra.mxu0 0
        %1170 = vmatprep.subr.bf16.mxu0 0
        %1171 = vmatpush1.bf16.msra.mxu0 0
        %1172 = vmatprep.subr.bf16.mxu0 0
        %1173 = vmatpush1.bf16.msra.mxu0 0
        %1174 = vmatprep.subr.bf16.mxu0 0
        %1175 = vmatpush1.bf16.msra.mxu0 0
        %1176 = vmatprep.subr.bf16.mxu0 0
        %1177 = vmatpush1.bf16.msra.mxu0 0
        %1178 = vmatprep.subr.bf16.mxu0 0
        %1179 = vmatpush1.bf16.msra.mxu0 0
        %1180 = vmatprep.subr.bf16.mxu0 0
        %1181 = vmatpush1.bf16.msra.mxu0 0
        %1182 = vmatprep.subr.bf16.mxu0 0
        %1183 = vmatpush1.bf16.msra.mxu0 0
        %1184 = vmatprep.subr.bf16.mxu0 0
        %1185 = vmatpush1.bf16.msra.mxu0 0
        %1186 = vmatprep.subr.bf16.mxu0 0
        %1187 = vmatpush1.bf16.msra.mxu0 0
        %1188 = vmatprep.subr.bf16.mxu0 0
        %1189 = vmatpush1.bf16.msra.mxu0 0
        %1190 = vmatprep.subr.bf16.mxu0 0
        %1191 = vmatpush1.bf16.msra.mxu0 0
        %1192 = vmatprep.mubr.bf16.mxu0 0
        %1193 = vmatmul.mubr.bf16.gmra.mrb[0].mxu0 %v1140
        %v1194 = vpop.f32.mrb[0].mxu0
        %v1195 = vadd.f32 0.0, %v1194
        %v1196 = vpop.f32.mrb[0].mxu0
        %v1197 = vpop.f32.mrb[0].mxu0
        %v1198 = vadd.f32 0.0, %v1197
        %v1199 = vpop.f32.mrb[0].mxu0
        %1200 = vmatprep.mubr.bf16.mxu0 0
        %1201 = vmatmul.mubr.bf16.gmra.mrb[0].mxu0 %v1143
        %v1202 = vpop.f32.mrb[0].mxu0
        %v1203 = vadd.f32 0.0, %v1202
        %v1204 = vpop.f32.mrb[0].mxu0
        %v1205 = vpop.f32.mrb[0].mxu0
        %v1206 = vadd.f32 0.0, %v1205
        %v1207 = vpop.f32.mrb[0].mxu0
        %1208 = vmatprep.mubr.bf16.mxu0 0
        %1209 = vmatmul.mubr.bf16.gmra.mrb[0].mxu0 %v1146
        %v1210 = vpop.f32.mrb[0].mxu0
        %v1211 = vadd.f32 0.0, %v1210
        %v1212 = vpop.f32.mrb[0].mxu0
        %v1213 = vpop.f32.mrb[0].mxu0
        %v1214 = vadd.f32 0.0, %v1213
        %v1215 = vpop.f32.mrb[0].mxu0
        %1216 = vmatprep.mubr.bf16.mxu0 0
        %1217 = vmatmul.mubr.bf16.gmra.mrb[0].mxu0 %v1149
        %v1218 = vpop.f32.mrb[0].mxu0
        %v1219 = vadd.f32 0.0, %v1218
        %v1220 = vpop.f32.mrb[0].mxu0
        %v1221 = vpop.f32.mrb[0].mxu0
        %v1222 = vadd.f32 0.0, %v1221
        %v1223 = vpop.f32.mrb[0].mxu0
        %1224 = vmatprep.mubr.bf16.mxu0 0
        %1225 = vmatmul.mubr.bf16.gmra.mrb[0].mxu0 %v1152
        %v1226 = vpop.f32.mrb[0].mxu0
        %v1227 = vadd.f32 0.0, %v1226
        %v1228 = vpop.f32.mrb[0].mxu0
        %v1229 = vpop.f32.mrb[0].mxu0
        %v1230 = vadd.f32 0.0, %v1229
        %v1231 = vpop.f32.mrb[0].mxu0
        %1232 = vmatprep.mubr.bf16.mxu0 0
        %1233 = vmatmul.mubr.bf16.gmra.mrb[0].mxu0 %v1155
        %v1234 = vpop.f32.mrb[0].mxu0
        %v1235 = vadd.f32 0.0, %v1234
        %v1236 = vpop.f32.mrb[0].mxu0
        %v1237 = vpop.f32.mrb[0].mxu0
        %v1238 = vpop.f32.mrb[0].mxu0
        %1239 = vdwg.mxu0
        %v1240 = vadd.f32 %v1037, %v1195
        %v1241 = vadd.f32 %v1038, %v1198
        %v1242 = vadd.f32 %v1039, %v1203
        %v1243 = vadd.f32 %v1040, %v1206
        %v1244 = vadd.f32 %v1041, %v1211
        %v1245 = vadd.f32 %v1042, %v1214
        %v1246 = vadd.f32 %v1043, %v1219
        %v1247 = vadd.f32 %v1044, %v1222
        %v1248 = vadd.f32 %v1045, %v1227
        %v1249 = vadd.f32 %v1046, %v1230
        %v1250 = vadd.f32 %v1047, %v1235
        %v1251 = vld [vmem:[%s503] sm:$0xe]
        %s1252 = scalar_lea.vmem %s542, 8
        %v1253 = vld [vmem:[%s1252] sm:$0x3]
        %v1255 = vunpack.c.l.b16 %v1251
        %v1256 = vpack.c.b16 %v871, %v1255
        %vm1257 = vcmask 1046528
        %v1258 = vrot.slane %v1256, 1
        %v1259 = vrot.slane %v883, 1
        %v1260 = vsel %vm1257, %v1258, %v1259
        %v1261 = vrot.slane %v884, 1
        %v1262 = vsel %vm1257, %v1259, %v1261
        %v1263 = vrot.slane %v885, 1
        %v1264 = vsel %vm1257, %v1261, %v1263
        %v1265 = vrot.slane %v886, 1
        %v1266 = vsel %vm1257, %v1263, %v1265
        %v1267 = vrot.slane %v887, 1
        %v1268 = vsel %vm1257, %v1265, %v1267
        %v1270 = vsel %vm612, %v1260, 0
        %v1273 = vsel %vm612, %v1262, 0
        %v1276 = vsel %vm612, %v1264, 0
        %v1279 = vsel %vm612, %v1266, 0
        %v1282 = vsel %vm612, %v1268, 0
        %v1285 = vsel %vm612, %v1267, 0
        %v1288 = vsel %vm631, %v1253, 0
        %1290 = vmatprep.subr.bf16.mxu0 0
        %1291 = vmatpush1.bf16.msra.mxu0 %v1288
        %1292 = vmatprep.subr.bf16.mxu0 0
        %1293 = vmatpush1.bf16.msra.mxu0 0
        %1294 = vmatprep.subr.bf16.mxu0 0
        %1295 = vmatpush1.bf16.msra.mxu0 0
        %1296 = vmatprep.subr.bf16.mxu0 0
        %1297 = vmatpush1.bf16.msra.mxu0 0
        %1298 = vmatprep.subr.bf16.mxu0 0
        %1299 = vmatpush1.bf16.msra.mxu0 0
        %1300 = vmatprep.subr.bf16.mxu0 0
        %1301 = vmatpush1.bf16.msra.mxu0 0
        %1302 = vmatprep.subr.bf16.mxu0 0
        %1303 = vmatpush1.bf16.msra.mxu0 0
        %1304 = vmatprep.subr.bf16.mxu0 0
        %1305 = vmatpush1.bf16.msra.mxu0 0
        %1306 = vmatprep.subr.bf16.mxu0 0
        %1307 = vmatpush1.bf16.msra.mxu0 0
        %1308 = vmatprep.subr.bf16.mxu0 0
        %1309 = vmatpush1.bf16.msra.mxu0 0
        %1310 = vmatprep.subr.bf16.mxu0 0
        %1311 = vmatpush1.bf16.msra.mxu0 0
        %1312 = vmatprep.subr.bf16.mxu0 0
        %1313 = vmatpush1.bf16.msra.mxu0 0
        %1314 = vmatprep.subr.bf16.mxu0 0
        %1315 = vmatpush1.bf16.msra.mxu0 0
        %1316 = vmatprep.subr.bf16.mxu0 0
        %1317 = vmatpush1.bf16.msra.mxu0 0
        %1318 = vmatprep.subr.bf16.mxu0 0
        %1319 = vmatpush1.bf16.msra.mxu0 0
        %1320 = vmatprep.subr.bf16.mxu0 0
        %1321 = vmatpush1.bf16.msra.mxu0 0
        %1322 = vmatprep.mubr.bf16.mxu0 0
        %1323 = vmatmul.mubr.bf16.gmra.mrb[0].mxu0 %v1270
        %v1324 = vpop.f32.mrb[0].mxu0
        %v1325 = vadd.f32 0.0, %v1324
        %v1326 = vpop.f32.mrb[0].mxu0
        %v1327 = vpop.f32.mrb[0].mxu0
        %v1328 = vadd.f32 0.0, %v1327
        %v1329 = vpop.f32.mrb[0].mxu0
        %1330 = vmatprep.mubr.bf16.mxu0 0
        %1331 = vmatmul.mubr.bf16.gmra.mrb[0].mxu0 %v1273
        %v1332 = vpop.f32.mrb[0].mxu0
        %v1333 = vadd.f32 0.0, %v1332
        %v1334 = vpop.f32.mrb[0].mxu0
        %v1335 = vpop.f32.mrb[0].mxu0
        %v1336 = vadd.f32 0.0, %v1335
        %v1337 = vpop.f32.mrb[0].mxu0
        %1338 = vmatprep.mubr.bf16.mxu0 0
        %1339 = vmatmul.mubr.bf16.gmra.mrb[0].mxu0 %v1276
        %v1340 = vpop.f32.mrb[0].mxu0
        %v1341 = vadd.f32 0.0, %v1340
        %v1342 = vpop.f32.mrb[0].mxu0
        %v1343 = vpop.f32.mrb[0].mxu0
        %v1344 = vadd.f32 0.0, %v1343
        %v1345 = vpop.f32.mrb[0].mxu0
        %1346 = vmatprep.mubr.bf16.mxu0 0
        %1347 = vmatmul.mubr.bf16.gmra.mrb[0].mxu0 %v1279
        %v1348 = vpop.f32.mrb[0].mxu0
        %v1349 = vadd.f32 0.0, %v1348
        %v1350 = vpop.f32.mrb[0].mxu0
        %v1351 = vpop.f32.mrb[0].mxu0
        %v1352 = vadd.f32 0.0, %v1351
        %v1353 = vpop.f32.mrb[0].mxu0
        %1354 = vmatprep.mubr.bf16.mxu0 0
        %1355 = vmatmul.mubr.bf16.gmra.mrb[0].mxu0 %v1282
        %v1356 = vpop.f32.mrb[0].mxu0
        %v1357 = vadd.f32 0.0, %v1356
        %v1358 = vpop.f32.mrb[0].mxu0
        %v1359 = vpop.f32.mrb[0].mxu0
        %v1360 = vadd.f32 0.0, %v1359
        %v1361 = vpop.f32.mrb[0].mxu0
        %1362 = vmatprep.mubr.bf16.mxu0 0
        %1363 = vmatmul.mubr.bf16.gmra.mrb[0].mxu0 %v1285
        %v1364 = vpop.f32.mrb[0].mxu0
        %v1365 = vadd.f32 0.0, %v1364
        %v1366 = vpop.f32.mrb[0].mxu0
        %v1367 = vpop.f32.mrb[0].mxu0
        %v1368 = vpop.f32.mrb[0].mxu0
        %1369 = vdwg.mxu0
        %v1370 = vadd.f32 %v1240, %v1325
        %v1371 = vadd.f32 %v1241, %v1328
        %v1372 = vadd.f32 %v1242, %v1333
        %v1373 = vadd.f32 %v1243, %v1336
        %v1374 = vadd.f32 %v1244, %v1341
        %v1375 = vadd.f32 %v1245, %v1344
        %v1376 = vadd.f32 %v1246, %v1349
        %v1377 = vadd.f32 %v1247, %v1352
        %v1378 = vadd.f32 %v1248, %v1357
        %v1379 = vadd.f32 %v1249, %v1360
        %v1380 = vadd.f32 %v1250, %v1365
        %v1381 = vld [vmem:[%s570] sm:$0xe]
        %s1382 = scalar_lea.vmem %s542, 10
        %v1383 = vld [vmem:[%s1382] sm:$0x3]
        %v1385 = vunpack.c.l.b16 %v1381
        %v1386 = vpack.c.b16 %v1075, %v1385
        %v1387 = vrot.slane %v1386, 1
        %v1388 = vrot.slane %v1087, 1
        %v1389 = vsel %vm1257, %v1387, %v1388
        %v1390 = vrot.slane %v1088, 1
        %v1391 = vsel %vm1257, %v1388, %v1390
        %v1392 = vrot.slane %v1089, 1
        %v1393 = vsel %vm1257, %v1390, %v1392
        %v1394 = vrot.slane %v1090, 1
        %v1395 = vsel %vm1257, %v1392, %v1394
        %v1396 = vrot.slane %v1091, 1
        %v1397 = vsel %vm1257, %v1394, %v1396
        %v1399 = vsel %vm612, %v1389, 0
        %v1402 = vsel %vm612, %v1391, 0
        %v1405 = vsel %vm612, %v1393, 0
        %v1408 = vsel %vm612, %v1395, 0
        %v1411 = vsel %vm612, %v1397, 0
        %v1414 = vsel %vm612, %v1396, 0
        %v1417 = vsel %vm631, %v1383, 0
        %1419 = vmatprep.subr.bf16.mxu0 0
        %1420 = vmatpush1.bf16.msra.mxu0 %v1417
        %1421 = vmatprep.subr.bf16.mxu0 0
        %1422 = vmatpush1.bf16.msra.mxu0 0
        %1423 = vmatprep.subr.bf16.mxu0 0
        %1424 = vmatpush1.bf16.msra.mxu0 0
        %1425 = vmatprep.subr.bf16.mxu0 0
        %1426 = vmatpush1.bf16.msra.mxu0 0
        %1427 = vmatprep.subr.bf16.mxu0 0
        %1428 = vmatpush1.bf16.msra.mxu0 0
        %1429 = vmatprep.subr.bf16.mxu0 0
        %1430 = vmatpush1.bf16.msra.mxu0 0
        %1431 = vmatprep.subr.bf16.mxu0 0
        %1432 = vmatpush1.bf16.msra.mxu0 0
        %1433 = vmatprep.subr.bf16.mxu0 0
        %1434 = vmatpush1.bf16.msra.mxu0 0
        %1435 = vmatprep.subr.bf16.mxu0 0
        %1436 = vmatpush1.bf16.msra.mxu0 0
        %1437 = vmatprep.subr.bf16.mxu0 0
        %1438 = vmatpush1.bf16.msra.mxu0 0
        %1439 = vmatprep.subr.bf16.mxu0 0
        %1440 = vmatpush1.bf16.msra.mxu0 0
        %1441 = vmatprep.subr.bf16.mxu0 0
        %1442 = vmatpush1.bf16.msra.mxu0 0
        %1443 = vmatprep.subr.bf16.mxu0 0
        %1444 = vmatpush1.bf16.msra.mxu0 0
        %1445 = vmatprep.subr.bf16.mxu0 0
        %1446 = vmatpush1.bf16.msra.mxu0 0
        %1447 = vmatprep.subr.bf16.mxu0 0
        %1448 = vmatpush1.bf16.msra.mxu0 0
        %1449 = vmatprep.subr.bf16.mxu0 0
        %1450 = vmatpush1.bf16.msra.mxu0 0
        %1451 = vmatprep.mubr.bf16.mxu0 0
        %1452 = vmatmul.mubr.bf16.gmra.mrb[0].mxu0 %v1399
        %v1453 = vpop.f32.mrb[0].mxu0
        %v1454 = vadd.f32 0.0, %v1453
        %v1455 = vpop.f32.mrb[0].mxu0
        %v1456 = vpop.f32.mrb[0].mxu0
        %v1457 = vadd.f32 0.0, %v1456
        %v1458 = vpop.f32.mrb[0].mxu0
        %1459 = vmatprep.mubr.bf16.mxu0 0
        %1460 = vmatmul.mubr.bf16.gmra.mrb[0].mxu0 %v1402
        %v1461 = vpop.f32.mrb[0].mxu0
        %v1462 = vadd.f32 0.0, %v1461
        %v1463 = vpop.f32.mrb[0].mxu0
        %v1464 = vpop.f32.mrb[0].mxu0
        %v1465 = vadd.f32 0.0, %v1464
        %v1466 = vpop.f32.mrb[0].mxu0
        %1467 = vmatprep.mubr.bf16.mxu0 0
        %1468 = vmatmul.mubr.bf16.gmra.mrb[0].mxu0 %v1405
        %v1469 = vpop.f32.mrb[0].mxu0
        %v1470 = vadd.f32 0.0, %v1469
        %v1471 = vpop.f32.mrb[0].mxu0
        %v1472 = vpop.f32.mrb[0].mxu0
        %v1473 = vadd.f32 0.0, %v1472
        %v1474 = vpop.f32.mrb[0].mxu0
        %1475 = vmatprep.mubr.bf16.mxu0 0
        %1476 = vmatmul.mubr.bf16.gmra.mrb[0].mxu0 %v1408
        %v1477 = vpop.f32.mrb[0].mxu0
        %v1478 = vadd.f32 0.0, %v1477
        %v1479 = vpop.f32.mrb[0].mxu0
        %v1480 = vpop.f32.mrb[0].mxu0
        %v1481 = vadd.f32 0.0, %v1480
        %v1482 = vpop.f32.mrb[0].mxu0
        %1483 = vmatprep.mubr.bf16.mxu0 0
        %1484 = vmatmul.mubr.bf16.gmra.mrb[0].mxu0 %v1411
        %v1485 = vpop.f32.mrb[0].mxu0
        %v1486 = vadd.f32 0.0, %v1485
        %v1487 = vpop.f32.mrb[0].mxu0
        %v1488 = vpop.f32.mrb[0].mxu0
        %v1489 = vadd.f32 0.0, %v1488
        %v1490 = vpop.f32.mrb[0].mxu0
        %1491 = vmatprep.mubr.bf16.mxu0 0
        %1492 = vmatmul.mubr.bf16.gmra.mrb[0].mxu0 %v1414
        %v1493 = vpop.f32.mrb[0].mxu0
        %v1494 = vadd.f32 0.0, %v1493
        %v1495 = vpop.f32.mrb[0].mxu0
        %v1496 = vpop.f32.mrb[0].mxu0
        %v1497 = vpop.f32.mrb[0].mxu0
        %1498 = vdwg.mxu0
        %v1499 = vadd.f32 %v1370, %v1454
        %v1500 = vadd.f32 %v1371, %v1457
        %v1501 = vadd.f32 %v1372, %v1462
        %v1502 = vadd.f32 %v1373, %v1465
        %v1503 = vadd.f32 %v1374, %v1470
        %v1504 = vadd.f32 %v1375, %v1473
        %v1505 = vadd.f32 %v1376, %v1478
        %v1506 = vadd.f32 %v1377, %v1481
        %v1507 = vadd.f32 %v1378, %v1486
        %v1508 = vadd.f32 %v1379, %v1489
        %v1509 = vadd.f32 %v1380, %v1494
        %v1510 = vld [vmem:[%s503 + $0x2c] sm:$0x3]
        %s1511 = scalar_lea.vmem %s542, 12
        %v1512 = vld [vmem:[%s1511] sm:$0x3]
        %v1514 = vunpack.c.l.b16 %v1510
        %v1515 = vpack.c.b16 %v1514, %v880
        %vm1516 = vsmask.f32 6400
        %v1518 = vshrl.u32 %v1256, 16
        %v1520 = vrot.slane %v1518, 1
        %v1521 = vshll.u32 %v1256, 16
        %v1523 = vrot.slane %v1521, 2
        %v1524 = vor.u32 %v1520, %v1523
        %v1525 = vrot.slane %v901, 1
        %v1526 = vrot.slane %v897, 2
        %v1527 = vor.u32 %v1525, %v1526
        %v1528 = vsel %vm1516, %v1524, %v1527
        %v1529 = vrot.slane %v909, 1
        %v1530 = vrot.slane %v905, 2
        %v1531 = vor.u32 %v1529, %v1530
        %v1532 = vsel %vm1516, %v1527, %v1531
        %v1533 = vrot.slane %v917, 1
        %v1534 = vrot.slane %v913, 2
        %v1535 = vor.u32 %v1533, %v1534
        %v1536 = vsel %vm1516, %v1531, %v1535
        %v1537 = vrot.slane %v925, 1
        %v1538 = vrot.slane %v921, 2
        %v1539 = vor.u32 %v1537, %v1538
        %v1540 = vsel %vm1516, %v1535, %v1539
        %v1542 = vshrl.u32 %v1515, 16
        %v1544 = vrot.slane %v1542, 1
        %v1545 = vshll.u32 %v1515, 16
        %v1547 = vrot.slane %v1545, 2
        %v1548 = vor.u32 %v1544, %v1547
        %v1549 = vsel %vm1516, %v1539, %v1548
        %v1551 = vsel %vm612, %v1528, 0
        %v1554 = vsel %vm612, %v1532, 0
        %v1557 = vsel %vm612, %v1536, 0
        %v1560 = vsel %vm612, %v1540, 0
        %v1563 = vsel %vm612, %v1549, 0
        %v1566 = vsel %vm612, %v1548, 0
        %v1569 = vsel %vm631, %v1512, 0
        %1571 = vmatprep.subr.bf16.mxu0 0
        %1572 = vmatpush1.bf16.msra.mxu0 %v1569
        %1573 = vmatprep.subr.bf16.mxu0 0
        %1574 = vmatpush1.bf16.msra.mxu0 0
        %1575 = vmatprep.subr.bf16.mxu0 0
        %1576 = vmatpush1.bf16.msra.mxu0 0
        %1577 = vmatprep.subr.bf16.mxu0 0
        %1578 = vmatpush1.bf16.msra.mxu0 0
        %1579 = vmatprep.subr.bf16.mxu0 0
        %1580 = vmatpush1.bf16.msra.mxu0 0
        %1581 = vmatprep.subr.bf16.mxu0 0
        %1582 = vmatpush1.bf16.msra.mxu0 0
        %1583 = vmatprep.subr.bf16.mxu0 0
        %1584 = vmatpush1.bf16.msra.mxu0 0
        %1585 = vmatprep.subr.bf16.mxu0 0
        %1586 = vmatpush1.bf16.msra.mxu0 0
        %1587 = vmatprep.subr.bf16.mxu0 0
        %1588 = vmatpush1.bf16.msra.mxu0 0
        %1589 = vmatprep.subr.bf16.mxu0 0
        %1590 = vmatpush1.bf16.msra.mxu0 0
        %1591 = vmatprep.subr.bf16.mxu0 0
        %1592 = vmatpush1.bf16.msra.mxu0 0
        %1593 = vmatprep.subr.bf16.mxu0 0
        %1594 = vmatpush1.bf16.msra.mxu0 0
        %1595 = vmatprep.subr.bf16.mxu0 0
        %1596 = vmatpush1.bf16.msra.mxu0 0
        %1597 = vmatprep.subr.bf16.mxu0 0
        %1598 = vmatpush1.bf16.msra.mxu0 0
        %1599 = vmatprep.subr.bf16.mxu0 0
        %1600 = vmatpush1.bf16.msra.mxu0 0
        %1601 = vmatprep.subr.bf16.mxu0 0
        %1602 = vmatpush1.bf16.msra.mxu0 0
        %1603 = vmatprep.mubr.bf16.mxu0 0
        %1604 = vmatmul.mubr.bf16.gmra.mrb[0].mxu0 %v1551
        %v1605 = vpop.f32.mrb[0].mxu0
        %v1606 = vadd.f32 0.0, %v1605
        %v1607 = vpop.f32.mrb[0].mxu0
        %v1608 = vpop.f32.mrb[0].mxu0
        %v1609 = vadd.f32 0.0, %v1608
        %v1610 = vpop.f32.mrb[0].mxu0
        %1611 = vmatprep.mubr.bf16.mxu0 0
        %1612 = vmatmul.mubr.bf16.gmra.mrb[0].mxu0 %v1554
        %v1613 = vpop.f32.mrb[0].mxu0
        %v1614 = vadd.f32 0.0, %v1613
        %v1615 = vpop.f32.mrb[0].mxu0
        %v1616 = vpop.f32.mrb[0].mxu0
        %v1617 = vadd.f32 0.0, %v1616
        %v1618 = vpop.f32.mrb[0].mxu0
        %1619 = vmatprep.mubr.bf16.mxu0 0
        %1620 = vmatmul.mubr.bf16.gmra.mrb[0].mxu0 %v1557
        %v1621 = vpop.f32.mrb[0].mxu0
        %v1622 = vadd.f32 0.0, %v1621
        %v1623 = vpop.f32.mrb[0].mxu0
        %v1624 = vpop.f32.mrb[0].mxu0
        %v1625 = vadd.f32 0.0, %v1624
        %v1626 = vpop.f32.mrb[0].mxu0
        %1627 = vmatprep.mubr.bf16.mxu0 0
        %1628 = vmatmul.mubr.bf16.gmra.mrb[0].mxu0 %v1560
        %v1629 = vpop.f32.mrb[0].mxu0
        %v1630 = vadd.f32 0.0, %v1629
        %v1631 = vpop.f32.mrb[0].mxu0
        %v1632 = vpop.f32.mrb[0].mxu0
        %v1633 = vadd.f32 0.0, %v1632
        %v1634 = vpop.f32.mrb[0].mxu0
        %1635 = vmatprep.mubr.bf16.mxu0 0
        %1636 = vmatmul.mubr.bf16.gmra.mrb[0].mxu0 %v1563
        %v1637 = vpop.f32.mrb[0].mxu0
        %v1638 = vadd.f32 0.0, %v1637
        %v1639 = vpop.f32.mrb[0].mxu0
        %v1640 = vpop.f32.mrb[0].mxu0
        %v1641 = vadd.f32 0.0, %v1640
        %v1642 = vpop.f32.mrb[0].mxu0
        %1643 = vmatprep.mubr.bf16.mxu0 0
        %1644 = vmatmul.mubr.bf16.gmra.mrb[0].mxu0 %v1566
        %v1645 = vpop.f32.mrb[0].mxu0
        %v1646 = vadd.f32 0.0, %v1645
        %v1647 = vpop.f32.mrb[0].mxu0
        %v1648 = vpop.f32.mrb[0].mxu0
        %v1649 = vpop.f32.mrb[0].mxu0
        %1650 = vdwg.mxu0
        %v1651 = vadd.f32 %v1499, %v1606
        %v1652 = vadd.f32 %v1500, %v1609
        %v1653 = vadd.f32 %v1501, %v1614
        %v1654 = vadd.f32 %v1502, %v1617
        %v1655 = vadd.f32 %v1503, %v1622
        %v1656 = vadd.f32 %v1504, %v1625
        %v1657 = vadd.f32 %v1505, %v1630
        %v1658 = vadd.f32 %v1506, %v1633
        %v1659 = vadd.f32 %v1507, %v1638
        %v1660 = vadd.f32 %v1508, %v1641
        %v1661 = vadd.f32 %v1509, %v1646
        %s1662 = scalar_lea.vmem %s503, 128 [#allocation2]
        %v1663 = vld [vmem:[%s1662] sm:$0xf]
        %v1664 = vld [vmem:[%s1662 + $0x4] sm:$0xf]
        %v1665 = vld [vmem:[%s1662 + $0x8] sm:$0xf]
        %v1666 = vld [vmem:[%s1662 + $0xc] sm:$0xf]
        %v1667 = vld [vmem:[%s1662 + $0x10] sm:$0xf]
        %v1668 = vld [vmem:[%s1662 + $0x14] sm:$0xf]
        %v1669 = vld [vmem:[%s1662 + $0x18] sm:$0xf]
        %v1670 = vld [vmem:[%s1662 + $0x1c] sm:$0xf]
        %v1671 = vld [vmem:[%s1662 + $0x20] sm:$0xf]
        %v1672 = vld [vmem:[%s1662 + $0x24] sm:$0xf]
        %v1673 = vld [vmem:[%s1662 + $0x28] sm:$0xf]
        %s1674 = scalar_lea.vmem %s542, 14
        %v1675 = vld [vmem:[%s1674] sm:$0x3]
        %v1687 = vunpack.c.l.b16 %v1663
        %v1688 = vunpack.c.l.b16 %v1664
        %v1689 = vunpack.c.l.b16 %v1665
        %v1690 = vunpack.c.l.b16 %v1666
        %v1691 = vunpack.c.l.b16 %v1667
        %v1692 = vunpack.c.l.b16 %v1668
        %v1693 = vunpack.c.l.b16 %v1669
        %v1694 = vunpack.c.l.b16 %v1670
        %v1695 = vunpack.c.l.b16 %v1671
        %v1696 = vunpack.c.l.b16 %v1672
        %v1697 = vunpack.c.l.b16 %v1673
        %v1698 = vpack.c.b16 %v1688, %v1687
        %v1699 = vpack.c.b16 %v1690, %v1689
        %v1700 = vpack.c.b16 %v1692, %v1691
        %v1701 = vpack.c.b16 %v1694, %v1693
        %v1702 = vpack.c.b16 %v1696, %v1695
        %v1703 = vpack.c.b16 %v1697, %v1697
        %v1705 = vsel %vm612, %v1698, 0
        %v1708 = vsel %vm612, %v1699, 0
        %v1711 = vsel %vm612, %v1700, 0
        %v1714 = vsel %vm612, %v1701, 0
        %v1717 = vsel %vm612, %v1702, 0
        %v1720 = vsel %vm612, %v1703, 0
        %v1723 = vsel %vm631, %v1675, 0
        %1725 = vmatprep.subr.bf16.mxu0 0
        %1726 = vmatpush1.bf16.msra.mxu0 %v1723
        %1727 = vmatprep.subr.bf16.mxu0 0
        %1728 = vmatpush1.bf16.msra.mxu0 0
        %1729 = vmatprep.subr.bf16.mxu0 0
        %1730 = vmatpush1.bf16.msra.mxu0 0
        %1731 = vmatprep.subr.bf16.mxu0 0
        %1732 = vmatpush1.bf16.msra.mxu0 0
        %1733 = vmatprep.subr.bf16.mxu0 0
        %1734 = vmatpush1.bf16.msra.mxu0 0
        %1735 = vmatprep.subr.bf16.mxu0 0
        %1736 = vmatpush1.bf16.msra.mxu0 0
        %1737 = vmatprep.subr.bf16.mxu0 0
        %1738 = vmatpush1.bf16.msra.mxu0 0
        %1739 = vmatprep.subr.bf16.mxu0 0
        %1740 = vmatpush1.bf16.msra.mxu0 0
        %1741 = vmatprep.subr.bf16.mxu0 0
        %1742 = vmatpush1.bf16.msra.mxu0 0
        %1743 = vmatprep.subr.bf16.mxu0 0
        %1744 = vmatpush1.bf16.msra.mxu0 0
        %1745 = vmatprep.subr.bf16.mxu0 0
        %1746 = vmatpush1.bf16.msra.mxu0 0
        %1747 = vmatprep.subr.bf16.mxu0 0
        %1748 = vmatpush1.bf16.msra.mxu0 0
        %1749 = vmatprep.subr.bf16.mxu0 0
        %1750 = vmatpush1.bf16.msra.mxu0 0
        %1751 = vmatprep.subr.bf16.mxu0 0
        %1752 = vmatpush1.bf16.msra.mxu0 0
        %1753 = vmatprep.subr.bf16.mxu0 0
        %1754 = vmatpush1.bf16.msra.mxu0 0
        %1755 = vmatprep.subr.bf16.mxu0 0
        %1756 = vmatpush1.bf16.msra.mxu0 0
        %1757 = vmatprep.mubr.bf16.mxu0 0
        %1758 = vmatmul.mubr.bf16.gmra.mrb[0].mxu0 %v1705
        %v1759 = vpop.f32.mrb[0].mxu0
        %v1760 = vadd.f32 0.0, %v1759
        %v1761 = vpop.f32.mrb[0].mxu0
        %v1762 = vpop.f32.mrb[0].mxu0
        %v1763 = vadd.f32 0.0, %v1762
        %v1764 = vpop.f32.mrb[0].mxu0
        %1765 = vmatprep.mubr.bf16.mxu0 0
        %1766 = vmatmul.mubr.bf16.gmra.mrb[0].mxu0 %v1708
        %v1767 = vpop.f32.mrb[0].mxu0
        %v1768 = vadd.f32 0.0, %v1767
        %v1769 = vpop.f32.mrb[0].mxu0
        %v1770 = vpop.f32.mrb[0].mxu0
        %v1771 = vadd.f32 0.0, %v1770
        %v1772 = vpop.f32.mrb[0].mxu0
        %1773 = vmatprep.mubr.bf16.mxu0 0
        %1774 = vmatmul.mubr.bf16.gmra.mrb[0].mxu0 %v1711
        %v1775 = vpop.f32.mrb[0].mxu0
        %v1776 = vadd.f32 0.0, %v1775
        %v1777 = vpop.f32.mrb[0].mxu0
        %v1778 = vpop.f32.mrb[0].mxu0
        %v1779 = vadd.f32 0.0, %v1778
        %v1780 = vpop.f32.mrb[0].mxu0
        %1781 = vmatprep.mubr.bf16.mxu0 0
        %1782 = vmatmul.mubr.bf16.gmra.mrb[0].mxu0 %v1714
        %v1783 = vpop.f32.mrb[0].mxu0
        %v1784 = vadd.f32 0.0, %v1783
        %v1785 = vpop.f32.mrb[0].mxu0
        %v1786 = vpop.f32.mrb[0].mxu0
        %v1787 = vadd.f32 0.0, %v1786
        %v1788 = vpop.f32.mrb[0].mxu0
        %1789 = vmatprep.mubr.bf16.mxu0 0
        %1790 = vmatmul.mubr.bf16.gmra.mrb[0].mxu0 %v1717
        %v1791 = vpop.f32.mrb[0].mxu0
        %v1792 = vadd.f32 0.0, %v1791
        %v1793 = vpop.f32.mrb[0].mxu0
        %v1794 = vpop.f32.mrb[0].mxu0
        %v1795 = vadd.f32 0.0, %v1794
        %v1796 = vpop.f32.mrb[0].mxu0
        %1797 = vmatprep.mubr.bf16.mxu0 0
        %1798 = vmatmul.mubr.bf16.gmra.mrb[0].mxu0 %v1720
        %v1799 = vpop.f32.mrb[0].mxu0
        %v1800 = vadd.f32 0.0, %v1799
        %v1801 = vpop.f32.mrb[0].mxu0
        %v1802 = vpop.f32.mrb[0].mxu0
        %v1803 = vpop.f32.mrb[0].mxu0
        %1804 = vdwg.mxu0
        %v1805 = vadd.f32 %v1651, %v1760
        %v1806 = vadd.f32 %v1652, %v1763
        %v1807 = vadd.f32 %v1653, %v1768
        %v1808 = vadd.f32 %v1654, %v1771
        %v1809 = vadd.f32 %v1655, %v1776
        %v1810 = vadd.f32 %v1656, %v1779
        %v1811 = vadd.f32 %v1657, %v1784
        %v1812 = vadd.f32 %v1658, %v1787
        %v1813 = vadd.f32 %v1659, %v1792
        %v1814 = vadd.f32 %v1660, %v1795
        %v1815 = vadd.f32 %v1661, %v1800
        %s1816 = scalar_lea.vmem %s503, 192 [#allocation2]
        %v1817 = vld [vmem:[%s1816] sm:$0xf]
        %v1818 = vld [vmem:[%s1816 + $0x4] sm:$0xf]
        %v1819 = vld [vmem:[%s1816 + $0x8] sm:$0xf]
        %v1820 = vld [vmem:[%s1816 + $0xc] sm:$0xf]
        %v1821 = vld [vmem:[%s1816 + $0x10] sm:$0xf]
        %v1822 = vld [vmem:[%s1816 + $0x14] sm:$0xf]
        %v1823 = vld [vmem:[%s1816 + $0x18] sm:$0xf]
        %v1824 = vld [vmem:[%s1816 + $0x1c] sm:$0xf]
        %v1825 = vld [vmem:[%s1816 + $0x20] sm:$0xf]
        %v1826 = vld [vmem:[%s1816 + $0x24] sm:$0xf]
        %v1827 = vld [vmem:[%s1816 + $0x28] sm:$0xf]
        %s1828 = scalar_lea.vmem %s542, 16
        %v1829 = vld [vmem:[%s1828] sm:$0x3]
        %v1841 = vunpack.c.l.b16 %v1817
        %v1842 = vunpack.c.l.b16 %v1818
        %v1843 = vunpack.c.l.b16 %v1819
        %v1844 = vunpack.c.l.b16 %v1820
        %v1845 = vunpack.c.l.b16 %v1821
        %v1846 = vunpack.c.l.b16 %v1822
        %v1847 = vunpack.c.l.b16 %v1823
        %v1848 = vunpack.c.l.b16 %v1824
        %v1849 = vunpack.c.l.b16 %v1825
        %v1850 = vunpack.c.l.b16 %v1826
        %v1851 = vunpack.c.l.b16 %v1827
        %v1852 = vpack.c.b16 %v1842, %v1841
        %v1853 = vpack.c.b16 %v1844, %v1843
        %v1854 = vpack.c.b16 %v1846, %v1845
        %v1855 = vpack.c.b16 %v1848, %v1847
        %v1856 = vpack.c.b16 %v1850, %v1849
        %v1857 = vpack.c.b16 %v1851, %v1851
        %v1859 = vsel %vm612, %v1852, 0
        %v1862 = vsel %vm612, %v1853, 0
        %v1865 = vsel %vm612, %v1854, 0
        %v1868 = vsel %vm612, %v1855, 0
        %v1871 = vsel %vm612, %v1856, 0
        %v1874 = vsel %vm612, %v1857, 0
        %v1877 = vsel %vm631, %v1829, 0
        %1879 = vmatprep.subr.bf16.mxu0 0
        %1880 = vmatpush1.bf16.msra.mxu0 %v1877
        %1881 = vmatprep.subr.bf16.mxu0 0
        %1882 = vmatpush1.bf16.msra.mxu0 0
        %1883 = vmatprep.subr.bf16.mxu0 0
        %1884 = vmatpush1.bf16.msra.mxu0 0
        %1885 = vmatprep.subr.bf16.mxu0 0
        %1886 = vmatpush1.bf16.msra.mxu0 0
        %1887 = vmatprep.subr.bf16.mxu0 0
        %1888 = vmatpush1.bf16.msra.mxu0 0
        %1889 = vmatprep.subr.bf16.mxu0 0
        %1890 = vmatpush1.bf16.msra.mxu0 0
        %1891 = vmatprep.subr.bf16.mxu0 0
        %1892 = vmatpush1.bf16.msra.mxu0 0
        %1893 = vmatprep.subr.bf16.mxu0 0
        %1894 = vmatpush1.bf16.msra.mxu0 0
        %1895 = vmatprep.subr.bf16.mxu0 0
        %1896 = vmatpush1.bf16.msra.mxu0 0
        %1897 = vmatprep.subr.bf16.mxu0 0
        %1898 = vmatpush1.bf16.msra.mxu0 0
        %1899 = vmatprep.subr.bf16.mxu0 0
        %1900 = vmatpush1.bf16.msra.mxu0 0
        %1901 = vmatprep.subr.bf16.mxu0 0
        %1902 = vmatpush1.bf16.msra.mxu0 0
        %1903 = vmatprep.subr.bf16.mxu0 0
        %1904 = vmatpush1.bf16.msra.mxu0 0
        %1905 = vmatprep.subr.bf16.mxu0 0
        %1906 = vmatpush1.bf16.msra.mxu0 0
        %1907 = vmatprep.subr.bf16.mxu0 0
        %1908 = vmatpush1.bf16.msra.mxu0 0
        %1909 = vmatprep.subr.bf16.mxu0 0
        %1910 = vmatpush1.bf16.msra.mxu0 0
        %1911 = vmatprep.mubr.bf16.mxu0 0
        %1912 = vmatmul.mubr.bf16.gmra.mrb[0].mxu0 %v1859
        %v1913 = vpop.f32.mrb[0].mxu0
        %v1914 = vadd.f32 0.0, %v1913
        %v1915 = vpop.f32.mrb[0].mxu0
        %v1916 = vpop.f32.mrb[0].mxu0
        %v1917 = vadd.f32 0.0, %v1916
        %v1918 = vpop.f32.mrb[0].mxu0
        %1919 = vmatprep.mubr.bf16.mxu0 0
        %1920 = vmatmul.mubr.bf16.gmra.mrb[0].mxu0 %v1862
        %v1921 = vpop.f32.mrb[0].mxu0
        %v1922 = vadd.f32 0.0, %v1921
        %v1923 = vpop.f32.mrb[0].mxu0
        %v1924 = vpop.f32.mrb[0].mxu0
        %v1925 = vadd.f32 0.0, %v1924
        %v1926 = vpop.f32.mrb[0].mxu0
        %1927 = vmatprep.mubr.bf16.mxu0 0
        %1928 = vmatmul.mubr.bf16.gmra.mrb[0].mxu0 %v1865
        %v1929 = vpop.f32.mrb[0].mxu0
        %v1930 = vadd.f32 0.0, %v1929
        %v1931 = vpop.f32.mrb[0].mxu0
        %v1932 = vpop.f32.mrb[0].mxu0
        %v1933 = vadd.f32 0.0, %v1932
        %v1934 = vpop.f32.mrb[0].mxu0
        %1935 = vmatprep.mubr.bf16.mxu0 0
        %1936 = vmatmul.mubr.bf16.gmra.mrb[0].mxu0 %v1868
        %v1937 = vpop.f32.mrb[0].mxu0
        %v1938 = vadd.f32 0.0, %v1937
        %v1939 = vpop.f32.mrb[0].mxu0
        %v1940 = vpop.f32.mrb[0].mxu0
        %v1941 = vadd.f32 0.0, %v1940
        %v1942 = vpop.f32.mrb[0].mxu0
        %1943 = vmatprep.mubr.bf16.mxu0 0
        %1944 = vmatmul.mubr.bf16.gmra.mrb[0].mxu0 %v1871
        %v1945 = vpop.f32.mrb[0].mxu0
        %v1946 = vadd.f32 0.0, %v1945
        %v1947 = vpop.f32.mrb[0].mxu0
        %v1948 = vpop.f32.mrb[0].mxu0
        %v1949 = vadd.f32 0.0, %v1948
        %v1950 = vpop.f32.mrb[0].mxu0
        %1951 = vmatprep.mubr.bf16.mxu0 0
        %1952 = vmatmul.mubr.bf16.gmra.mrb[0].mxu0 %v1874
        %v1953 = vpop.f32.mrb[0].mxu0
        %v1954 = vadd.f32 0.0, %v1953
        %v1955 = vpop.f32.mrb[0].mxu0
        %v1956 = vpop.f32.mrb[0].mxu0
        %v1957 = vpop.f32.mrb[0].mxu0
        %1958 = vdwg.mxu0
        %v1959 = vadd.f32 %v1805, %v1914
        %v1960 = vadd.f32 %v1806, %v1917
        %v1961 = vadd.f32 %v1807, %v1922
        %v1962 = vadd.f32 %v1808, %v1925
        %v1963 = vadd.f32 %v1809, %v1930
        %v1964 = vadd.f32 %v1810, %v1933
        %v1965 = vadd.f32 %v1811, %v1938
        %v1966 = vadd.f32 %v1812, %v1941
        %v1967 = vadd.f32 %v1813, %v1946
        %v1968 = vadd.f32 %v1814, %v1949
        %v1969 = vadd.f32 %v1815, %v1954
        %v1970 = vld [vmem:[%s1662] sm:$0xf]
        %v1971 = vld [vmem:[%s1662 + $0x4] sm:$0xf]
        %v1972 = vld [vmem:[%s1662 + $0x8] sm:$0xf]
        %v1973 = vld [vmem:[%s1662 + $0xc] sm:$0xf]
        %v1974 = vld [vmem:[%s1662 + $0x10] sm:$0xf]
        %v1975 = vld [vmem:[%s1662 + $0x14] sm:$0xf]
        %v1976 = vld [vmem:[%s1662 + $0x18] sm:$0xf]
        %v1977 = vld [vmem:[%s1662 + $0x1c] sm:$0xf]
        %v1978 = vld [vmem:[%s1662 + $0x20] sm:$0xf]
        %v1979 = vld [vmem:[%s1662 + $0x24] sm:$0xf]
        %v1980 = vld [vmem:[%s1662 + $0x28] sm:$0xf]
        %v1981 = vld [vmem:[%s1662 + $0x2c] sm:$0x1]
        %s1982 = scalar_lea.vmem %s542, 18
        %v1983 = vld [vmem:[%s1982] sm:$0x3]
        %v1996 = vunpack.c.l.b16 %v1970
        %v1997 = vunpack.c.l.b16 %v1971
        %v1998 = vunpack.c.l.b16 %v1972
        %v1999 = vunpack.c.l.b16 %v1973
        %v2000 = vunpack.c.l.b16 %v1974
        %v2001 = vunpack.c.l.b16 %v1975
        %v2002 = vunpack.c.l.b16 %v1976
        %v2003 = vunpack.c.l.b16 %v1977
        %v2004 = vunpack.c.l.b16 %v1978
        %v2005 = vunpack.c.l.b16 %v1979
        %v2006 = vunpack.c.l.b16 %v1980
        %v2007 = vunpack.c.l.b16 %v1981
        %v2008 = vpack.c.b16 %v1997, %v1996
        %v2009 = vpack.c.b16 %v1999, %v1998
        %v2010 = vpack.c.b16 %v2001, %v2000
        %v2011 = vpack.c.b16 %v2003, %v2002
        %v2012 = vpack.c.b16 %v2005, %v2004
        %v2013 = vpack.c.b16 %v2007, %v2006
        %v2015 = vshrl.u32 %v2008, 16
        %v2017 = vshll.u32 %v2008, 16
        %v2019 = vrot.slane %v2017, 1
        %v2020 = vor.u32 %v2015, %v2019
        %v2022 = vshll.u32 %v2009, 16
        %v2024 = vrot.slane %v2022, 1
        %v2025 = vsel %vm888, %v2020, %v2024
        %v2026 = vshrl.u32 %v2009, 16
        %v2028 = vor.u32 %v2026, %v2024
        %v2030 = vshll.u32 %v2010, 16
        %v2032 = vrot.slane %v2030, 1
        %v2033 = vsel %vm888, %v2028, %v2032
        %v2034 = vshrl.u32 %v2010, 16
        %v2036 = vor.u32 %v2034, %v2032
        %v2038 = vshll.u32 %v2011, 16
        %v2040 = vrot.slane %v2038, 1
        %v2041 = vsel %vm888, %v2036, %v2040
        %v2042 = vshrl.u32 %v2011, 16
        %v2044 = vor.u32 %v2042, %v2040
        %v2046 = vshll.u32 %v2012, 16
        %v2048 = vrot.slane %v2046, 1
        %v2049 = vsel %vm888, %v2044, %v2048
        %v2050 = vshrl.u32 %v2012, 16
        %v2052 = vor.u32 %v2050, %v2048
        %v2054 = vshll.u32 %v2013, 16
        %v2056 = vrot.slane %v2054, 1
        %v2057 = vsel %vm888, %v2052, %v2056
        %v2058 = vshrl.u32 %v2013, 16
        %v2060 = vor.u32 %v2058, %v2056
        %v2062 = vsel %vm612, %v2025, 0
        %v2065 = vsel %vm612, %v2033, 0
        %v2068 = vsel %vm612, %v2041, 0
        %v2071 = vsel %vm612, %v2049, 0
        %v2074 = vsel %vm612, %v2057, 0
        %v2077 = vsel %vm612, %v2060, 0
        %v2080 = vsel %vm631, %v1983, 0
        %2082 = vmatprep.subr.bf16.mxu0 0
        %2083 = vmatpush1.bf16.msra.mxu0 %v2080
        %2084 = vmatprep.subr.bf16.mxu0 0
        %2085 = vmatpush1.bf16.msra.mxu0 0
        %2086 = vmatprep.subr.bf16.mxu0 0
        %2087 = vmatpush1.bf16.msra.mxu0 0
        %2088 = vmatprep.subr.bf16.mxu0 0
        %2089 = vmatpush1.bf16.msra.mxu0 0
        %2090 = vmatprep.subr.bf16.mxu0 0
        %2091 = vmatpush1.bf16.msra.mxu0 0
        %2092 = vmatprep.subr.bf16.mxu0 0
        %2093 = vmatpush1.bf16.msra.mxu0 0
        %2094 = vmatprep.subr.bf16.mxu0 0
        %2095 = vmatpush1.bf16.msra.mxu0 0
        %2096 = vmatprep.subr.bf16.mxu0 0
        %2097 = vmatpush1.bf16.msra.mxu0 0
        %2098 = vmatprep.subr.bf16.mxu0 0
        %2099 = vmatpush1.bf16.msra.mxu0 0
        %2100 = vmatprep.subr.bf16.mxu0 0
        %2101 = vmatpush1.bf16.msra.mxu0 0
        %2102 = vmatprep.subr.bf16.mxu0 0
        %2103 = vmatpush1.bf16.msra.mxu0 0
        %2104 = vmatprep.subr.bf16.mxu0 0
        %2105 = vmatpush1.bf16.msra.mxu0 0
        %2106 = vmatprep.subr.bf16.mxu0 0
        %2107 = vmatpush1.bf16.msra.mxu0 0
        %2108 = vmatprep.subr.bf16.mxu0 0
        %2109 = vmatpush1.bf16.msra.mxu0 0
        %2110 = vmatprep.subr.bf16.mxu0 0
        %2111 = vmatpush1.bf16.msra.mxu0 0
        %2112 = vmatprep.subr.bf16.mxu0 0
        %2113 = vmatpush1.bf16.msra.mxu0 0
        %2114 = vmatprep.mubr.bf16.mxu0 0
        %2115 = vmatmul.mubr.bf16.gmra.mrb[0].mxu0 %v2062
        %v2116 = vpop.f32.mrb[0].mxu0
        %v2117 = vadd.f32 0.0, %v2116
        %v2118 = vpop.f32.mrb[0].mxu0
        %v2119 = vpop.f32.mrb[0].mxu0
        %v2120 = vadd.f32 0.0, %v2119
        %v2121 = vpop.f32.mrb[0].mxu0
        %2122 = vmatprep.mubr.bf16.mxu0 0
        %2123 = vmatmul.mubr.bf16.gmra.mrb[0].mxu0 %v2065
        %v2124 = vpop.f32.mrb[0].mxu0
        %v2125 = vadd.f32 0.0, %v2124
        %v2126 = vpop.f32.mrb[0].mxu0
        %v2127 = vpop.f32.mrb[0].mxu0
        %v2128 = vadd.f32 0.0, %v2127
        %v2129 = vpop.f32.mrb[0].mxu0
        %2130 = vmatprep.mubr.bf16.mxu0 0
        %2131 = vmatmul.mubr.bf16.gmra.mrb[0].mxu0 %v2068
        %v2132 = vpop.f32.mrb[0].mxu0
        %v2133 = vadd.f32 0.0, %v2132
        %v2134 = vpop.f32.mrb[0].mxu0
        %v2135 = vpop.f32.mrb[0].mxu0
        %v2136 = vadd.f32 0.0, %v2135
        %v2137 = vpop.f32.mrb[0].mxu0
        %2138 = vmatprep.mubr.bf16.mxu0 0
        %2139 = vmatmul.mubr.bf16.gmra.mrb[0].mxu0 %v2071
        %v2140 = vpop.f32.mrb[0].mxu0
        %v2141 = vadd.f32 0.0, %v2140
        %v2142 = vpop.f32.mrb[0].mxu0
        %v2143 = vpop.f32.mrb[0].mxu0
        %v2144 = vadd.f32 0.0, %v2143
        %v2145 = vpop.f32.mrb[0].mxu0
        %2146 = vmatprep.mubr.bf16.mxu0 0
        %2147 = vmatmul.mubr.bf16.gmra.mrb[0].mxu0 %v2074
        %v2148 = vpop.f32.mrb[0].mxu0
        %v2149 = vadd.f32 0.0, %v2148
        %v2150 = vpop.f32.mrb[0].mxu0
        %v2151 = vpop.f32.mrb[0].mxu0
        %v2152 = vadd.f32 0.0, %v2151
        %v2153 = vpop.f32.mrb[0].mxu0
        %2154 = vmatprep.mubr.bf16.mxu0 0
        %2155 = vmatmul.mubr.bf16.gmra.mrb[0].mxu0 %v2077
        %v2156 = vpop.f32.mrb[0].mxu0
        %v2157 = vadd.f32 0.0, %v2156
        %v2158 = vpop.f32.mrb[0].mxu0
        %v2159 = vpop.f32.mrb[0].mxu0
        %v2160 = vpop.f32.mrb[0].mxu0
        %2161 = vdwg.mxu0
        %v2162 = vadd.f32 %v1959, %v2117
        %v2163 = vadd.f32 %v1960, %v2120
        %v2164 = vadd.f32 %v1961, %v2125
        %v2165 = vadd.f32 %v1962, %v2128
        %v2166 = vadd.f32 %v1963, %v2133
        %v2167 = vadd.f32 %v1964, %v2136
        %v2168 = vadd.f32 %v1965, %v2141
        %v2169 = vadd.f32 %v1966, %v2144
        %v2170 = vadd.f32 %v1967, %v2149
        %v2171 = vadd.f32 %v1968, %v2152
        %v2172 = vadd.f32 %v1969, %v2157
        %v2173 = vld [vmem:[%s1816] sm:$0xf]
        %v2174 = vld [vmem:[%s1816 + $0x4] sm:$0xf]
        %v2175 = vld [vmem:[%s1816 + $0x8] sm:$0xf]
        %v2176 = vld [vmem:[%s1816 + $0xc] sm:$0xf]
        %v2177 = vld [vmem:[%s1816 + $0x10] sm:$0xf]
        %v2178 = vld [vmem:[%s1816 + $0x14] sm:$0xf]
        %v2179 = vld [vmem:[%s1816 + $0x18] sm:$0xf]
        %v2180 = vld [vmem:[%s1816 + $0x1c] sm:$0xf]
        %v2181 = vld [vmem:[%s1816 + $0x20] sm:$0xf]
        %v2182 = vld [vmem:[%s1816 + $0x24] sm:$0xf]
        %v2183 = vld [vmem:[%s1816 + $0x28] sm:$0xf]
        %v2184 = vld [vmem:[%s1816 + $0x2c] sm:$0x1]
        %s2185 = scalar_lea.vmem %s542, 20
        %v2186 = vld [vmem:[%s2185] sm:$0x3]
        %v2199 = vunpack.c.l.b16 %v2173
        %v2200 = vunpack.c.l.b16 %v2174
        %v2201 = vunpack.c.l.b16 %v2175
        %v2202 = vunpack.c.l.b16 %v2176
        %v2203 = vunpack.c.l.b16 %v2177
        %v2204 = vunpack.c.l.b16 %v2178
        %v2205 = vunpack.c.l.b16 %v2179
        %v2206 = vunpack.c.l.b16 %v2180
        %v2207 = vunpack.c.l.b16 %v2181
        %v2208 = vunpack.c.l.b16 %v2182
        %v2209 = vunpack.c.l.b16 %v2183
        %v2210 = vunpack.c.l.b16 %v2184
        %v2211 = vpack.c.b16 %v2200, %v2199
        %v2212 = vpack.c.b16 %v2202, %v2201
        %v2213 = vpack.c.b16 %v2204, %v2203
        %v2214 = vpack.c.b16 %v2206, %v2205
        %v2215 = vpack.c.b16 %v2208, %v2207
        %v2216 = vpack.c.b16 %v2210, %v2209
        %v2218 = vshrl.u32 %v2211, 16
        %v2220 = vshll.u32 %v2211, 16
        %v2222 = vrot.slane %v2220, 1
        %v2223 = vor.u32 %v2218, %v2222
        %v2225 = vshll.u32 %v2212, 16
        %v2227 = vrot.slane %v2225, 1
        %v2228 = vsel %vm888, %v2223, %v2227
        %v2229 = vshrl.u32 %v2212, 16
        %v2231 = vor.u32 %v2229, %v2227
        %v2233 = vshll.u32 %v2213, 16
        %v2235 = vrot.slane %v2233, 1
        %v2236 = vsel %vm888, %v2231, %v2235
        %v2237 = vshrl.u32 %v2213, 16
        %v2239 = vor.u32 %v2237, %v2235
        %v2241 = vshll.u32 %v2214, 16
        %v2243 = vrot.slane %v2241, 1
        %v2244 = vsel %vm888, %v2239, %v2243
        %v2245 = vshrl.u32 %v2214, 16
        %v2247 = vor.u32 %v2245, %v2243
        %v2249 = vshll.u32 %v2215, 16
        %v2251 = vrot.slane %v2249, 1
        %v2252 = vsel %vm888, %v2247, %v2251
        %v2253 = vshrl.u32 %v2215, 16
        %v2255 = vor.u32 %v2253, %v2251
        %v2257 = vshll.u32 %v2216, 16
        %v2259 = vrot.slane %v2257, 1
        %v2260 = vsel %vm888, %v2255, %v2259
        %v2261 = vshrl.u32 %v2216, 16
        %v2263 = vor.u32 %v2261, %v2259
        %v2265 = vsel %vm612, %v2228, 0
        %v2268 = vsel %vm612, %v2236, 0
        %v2271 = vsel %vm612, %v2244, 0
        %v2274 = vsel %vm612, %v2252, 0
        %v2277 = vsel %vm612, %v2260, 0
        %v2280 = vsel %vm612, %v2263, 0
        %v2283 = vsel %vm631, %v2186, 0
        %2285 = vmatprep.subr.bf16.mxu0 0
        %2286 = vmatpush1.bf16.msra.mxu0 %v2283
        %2287 = vmatprep.subr.bf16.mxu0 0
        %2288 = vmatpush1.bf16.msra.mxu0 0
        %2289 = vmatprep.subr.bf16.mxu0 0
        %2290 = vmatpush1.bf16.msra.mxu0 0
        %2291 = vmatprep.subr.bf16.mxu0 0
        %2292 = vmatpush1.bf16.msra.mxu0 0
        %2293 = vmatprep.subr.bf16.mxu0 0
        %2294 = vmatpush1.bf16.msra.mxu0 0
        %2295 = vmatprep.subr.bf16.mxu0 0
        %2296 = vmatpush1.bf16.msra.mxu0 0
        %2297 = vmatprep.subr.bf16.mxu0 0
        %2298 = vmatpush1.bf16.msra.mxu0 0
        %2299 = vmatprep.subr.bf16.mxu0 0
        %2300 = vmatpush1.bf16.msra.mxu0 0
        %2301 = vmatprep.subr.bf16.mxu0 0
        %2302 = vmatpush1.bf16.msra.mxu0 0
        %2303 = vmatprep.subr.bf16.mxu0 0
        %2304 = vmatpush1.bf16.msra.mxu0 0
        %2305 = vmatprep.subr.bf16.mxu0 0
        %2306 = vmatpush1.bf16.msra.mxu0 0
        %2307 = vmatprep.subr.bf16.mxu0 0
        %2308 = vmatpush1.bf16.msra.mxu0 0
        %2309 = vmatprep.subr.bf16.mxu0 0
        %2310 = vmatpush1.bf16.msra.mxu0 0
        %2311 = vmatprep.subr.bf16.mxu0 0
        %2312 = vmatpush1.bf16.msra.mxu0 0
        %2313 = vmatprep.subr.bf16.mxu0 0
        %2314 = vmatpush1.bf16.msra.mxu0 0
        %2315 = vmatprep.subr.bf16.mxu0 0
        %2316 = vmatpush1.bf16.msra.mxu0 0
        %2317 = vmatprep.mubr.bf16.mxu0 0
        %2318 = vmatmul.mubr.bf16.gmra.mrb[0].mxu0 %v2265
        %v2319 = vpop.f32.mrb[0].mxu0
        %v2320 = vadd.f32 0.0, %v2319
        %v2321 = vpop.f32.mrb[0].mxu0
        %v2322 = vpop.f32.mrb[0].mxu0
        %v2323 = vadd.f32 0.0, %v2322
        %v2324 = vpop.f32.mrb[0].mxu0
        %2325 = vmatprep.mubr.bf16.mxu0 0
        %2326 = vmatmul.mubr.bf16.gmra.mrb[0].mxu0 %v2268
        %v2327 = vpop.f32.mrb[0].mxu0
        %v2328 = vadd.f32 0.0, %v2327
        %v2329 = vpop.f32.mrb[0].mxu0
        %v2330 = vpop.f32.mrb[0].mxu0
        %v2331 = vadd.f32 0.0, %v2330
        %v2332 = vpop.f32.mrb[0].mxu0
        %2333 = vmatprep.mubr.bf16.mxu0 0
        %2334 = vmatmul.mubr.bf16.gmra.mrb[0].mxu0 %v2271
        %v2335 = vpop.f32.mrb[0].mxu0
        %v2336 = vadd.f32 0.0, %v2335
        %v2337 = vpop.f32.mrb[0].mxu0
        %v2338 = vpop.f32.mrb[0].mxu0
        %v2339 = vadd.f32 0.0, %v2338
        %v2340 = vpop.f32.mrb[0].mxu0
        %2341 = vmatprep.mubr.bf16.mxu0 0
        %2342 = vmatmul.mubr.bf16.gmra.mrb[0].mxu0 %v2274
        %v2343 = vpop.f32.mrb[0].mxu0
        %v2344 = vadd.f32 0.0, %v2343
        %v2345 = vpop.f32.mrb[0].mxu0
        %v2346 = vpop.f32.mrb[0].mxu0
        %v2347 = vadd.f32 0.0, %v2346
        %v2348 = vpop.f32.mrb[0].mxu0
        %2349 = vmatprep.mubr.bf16.mxu0 0
        %2350 = vmatmul.mubr.bf16.gmra.mrb[0].mxu0 %v2277
        %v2351 = vpop.f32.mrb[0].mxu0
        %v2352 = vadd.f32 0.0, %v2351
        %v2353 = vpop.f32.mrb[0].mxu0
        %v2354 = vpop.f32.mrb[0].mxu0
        %v2355 = vadd.f32 0.0, %v2354
        %v2356 = vpop.f32.mrb[0].mxu0
        %2357 = vmatprep.mubr.bf16.mxu0 0
        %2358 = vmatmul.mubr.bf16.gmra.mrb[0].mxu0 %v2280
        %v2359 = vpop.f32.mrb[0].mxu0
        %v2360 = vadd.f32 0.0, %v2359
        %v2361 = vpop.f32.mrb[0].mxu0
        %v2362 = vpop.f32.mrb[0].mxu0
        %v2363 = vpop.f32.mrb[0].mxu0
        %2364 = vdwg.mxu0
        %v2365 = vadd.f32 %v2162, %v2320
        %v2366 = vadd.f32 %v2163, %v2323
        %v2367 = vadd.f32 %v2164, %v2328
        %v2368 = vadd.f32 %v2165, %v2331
        %v2369 = vadd.f32 %v2166, %v2336
        %v2370 = vadd.f32 %v2167, %v2339
        %v2371 = vadd.f32 %v2168, %v2344
        %v2372 = vadd.f32 %v2169, %v2347
        %v2373 = vadd.f32 %v2170, %v2352
        %v2374 = vadd.f32 %v2171, %v2355
        %v2375 = vadd.f32 %v2172, %v2360
        %v2376 = vld [vmem:[%s1662] sm:$0xe]
        %s2377 = scalar_lea.vmem %s542, 22
        %v2378 = vld [vmem:[%s2377] sm:$0x3]
        %v2380 = vunpack.c.l.b16 %v2376
        %v2381 = vpack.c.b16 %v1997, %v2380
        %v2382 = vrot.slane %v2381, 1
        %v2383 = vrot.slane %v2009, 1
        %v2384 = vsel %vm1257, %v2382, %v2383
        %v2385 = vrot.slane %v2010, 1
        %v2386 = vsel %vm1257, %v2383, %v2385
        %v2387 = vrot.slane %v2011, 1
        %v2388 = vsel %vm1257, %v2385, %v2387
        %v2389 = vrot.slane %v2012, 1
        %v2390 = vsel %vm1257, %v2387, %v2389
        %v2391 = vrot.slane %v2013, 1
        %v2392 = vsel %vm1257, %v2389, %v2391
        %v2394 = vsel %vm612, %v2384, 0
        %v2397 = vsel %vm612, %v2386, 0
        %v2400 = vsel %vm612, %v2388, 0
        %v2403 = vsel %vm612, %v2390, 0
        %v2406 = vsel %vm612, %v2392, 0
        %v2409 = vsel %vm612, %v2391, 0
        %v2412 = vsel %vm631, %v2378, 0
        %2414 = vmatprep.subr.bf16.mxu0 0
        %2415 = vmatpush1.bf16.msra.mxu0 %v2412
        %2416 = vmatprep.subr.bf16.mxu0 0
        %2417 = vmatpush1.bf16.msra.mxu0 0
        %2418 = vmatprep.subr.bf16.mxu0 0
        %2419 = vmatpush1.bf16.msra.mxu0 0
        %2420 = vmatprep.subr.bf16.mxu0 0
        %2421 = vmatpush1.bf16.msra.mxu0 0
        %2422 = vmatprep.subr.bf16.mxu0 0
        %2423 = vmatpush1.bf16.msra.mxu0 0
        %2424 = vmatprep.subr.bf16.mxu0 0
        %2425 = vmatpush1.bf16.msra.mxu0 0
        %2426 = vmatprep.subr.bf16.mxu0 0
        %2427 = vmatpush1.bf16.msra.mxu0 0
        %2428 = vmatprep.subr.bf16.mxu0 0
        %2429 = vmatpush1.bf16.msra.mxu0 0
        %2430 = vmatprep.subr.bf16.mxu0 0
        %2431 = vmatpush1.bf16.msra.mxu0 0
        %2432 = vmatprep.subr.bf16.mxu0 0
        %2433 = vmatpush1.bf16.msra.mxu0 0
        %2434 = vmatprep.subr.bf16.mxu0 0
        %2435 = vmatpush1.bf16.msra.mxu0 0
        %2436 = vmatprep.subr.bf16.mxu0 0
        %2437 = vmatpush1.bf16.msra.mxu0 0
        %2438 = vmatprep.subr.bf16.mxu0 0
        %2439 = vmatpush1.bf16.msra.mxu0 0
        %2440 = vmatprep.subr.bf16.mxu0 0
        %2441 = vmatpush1.bf16.msra.mxu0 0
        %2442 = vmatprep.subr.bf16.mxu0 0
        %2443 = vmatpush1.bf16.msra.mxu0 0
        %2444 = vmatprep.subr.bf16.mxu0 0
        %2445 = vmatpush1.bf16.msra.mxu0 0
        %2446 = vmatprep.mubr.bf16.mxu0 0
        %2447 = vmatmul.mubr.bf16.gmra.mrb[0].mxu0 %v2394
        %v2448 = vpop.f32.mrb[0].mxu0
        %v2449 = vadd.f32 0.0, %v2448
        %v2450 = vpop.f32.mrb[0].mxu0
        %v2451 = vpop.f32.mrb[0].mxu0
        %v2452 = vadd.f32 0.0, %v2451
        %v2453 = vpop.f32.mrb[0].mxu0
        %2454 = vmatprep.mubr.bf16.mxu0 0
        %2455 = vmatmul.mubr.bf16.gmra.mrb[0].mxu0 %v2397
        %v2456 = vpop.f32.mrb[0].mxu0
        %v2457 = vadd.f32 0.0, %v2456
        %v2458 = vpop.f32.mrb[0].mxu0
        %v2459 = vpop.f32.mrb[0].mxu0
        %v2460 = vadd.f32 0.0, %v2459
        %v2461 = vpop.f32.mrb[0].mxu0
        %2462 = vmatprep.mubr.bf16.mxu0 0
        %2463 = vmatmul.mubr.bf16.gmra.mrb[0].mxu0 %v2400
        %v2464 = vpop.f32.mrb[0].mxu0
        %v2465 = vadd.f32 0.0, %v2464
        %v2466 = vpop.f32.mrb[0].mxu0
        %v2467 = vpop.f32.mrb[0].mxu0
        %v2468 = vadd.f32 0.0, %v2467
        %v2469 = vpop.f32.mrb[0].mxu0
        %2470 = vmatprep.mubr.bf16.mxu0 0
        %2471 = vmatmul.mubr.bf16.gmra.mrb[0].mxu0 %v2403
        %v2472 = vpop.f32.mrb[0].mxu0
        %v2473 = vadd.f32 0.0, %v2472
        %v2474 = vpop.f32.mrb[0].mxu0
        %v2475 = vpop.f32.mrb[0].mxu0
        %v2476 = vadd.f32 0.0, %v2475
        %v2477 = vpop.f32.mrb[0].mxu0
        %2478 = vmatprep.mubr.bf16.mxu0 0
        %2479 = vmatmul.mubr.bf16.gmra.mrb[0].mxu0 %v2406
        %v2480 = vpop.f32.mrb[0].mxu0
        %v2481 = vadd.f32 0.0, %v2480
        %v2482 = vpop.f32.mrb[0].mxu0
        %v2483 = vpop.f32.mrb[0].mxu0
        %v2484 = vadd.f32 0.0, %v2483
        %v2485 = vpop.f32.mrb[0].mxu0
        %2486 = vmatprep.mubr.bf16.mxu0 0
        %2487 = vmatmul.mubr.bf16.gmra.mrb[0].mxu0 %v2409
        %v2488 = vpop.f32.mrb[0].mxu0
        %v2489 = vadd.f32 0.0, %v2488
        %v2490 = vpop.f32.mrb[0].mxu0
        %v2491 = vpop.f32.mrb[0].mxu0
        %v2492 = vpop.f32.mrb[0].mxu0
        %2493 = vdwg.mxu0
        %v2494 = vadd.f32 %v2365, %v2449
        %v2495 = vadd.f32 %v2366, %v2452
        %v2496 = vadd.f32 %v2367, %v2457
        %v2497 = vadd.f32 %v2368, %v2460
        %v2498 = vadd.f32 %v2369, %v2465
        %v2499 = vadd.f32 %v2370, %v2468
        %v2500 = vadd.f32 %v2371, %v2473
        %v2501 = vadd.f32 %v2372, %v2476
        %v2502 = vadd.f32 %v2373, %v2481
        %v2503 = vadd.f32 %v2374, %v2484
        %v2504 = vadd.f32 %v2375, %v2489
        %v2505 = vld [vmem:[%s1816] sm:$0xe]
        %s2506 = scalar_lea.vmem %s542, 24
        %v2507 = vld [vmem:[%s2506] sm:$0x3]
        %v2509 = vunpack.c.l.b16 %v2505
        %v2510 = vpack.c.b16 %v2200, %v2509
        %v2511 = vrot.slane %v2510, 1
        %v2512 = vrot.slane %v2212, 1
        %v2513 = vsel %vm1257, %v2511, %v2512
        %v2514 = vrot.slane %v2213, 1
        %v2515 = vsel %vm1257, %v2512, %v2514
        %v2516 = vrot.slane %v2214, 1
        %v2517 = vsel %vm1257, %v2514, %v2516
        %v2518 = vrot.slane %v2215, 1
        %v2519 = vsel %vm1257, %v2516, %v2518
        %v2520 = vrot.slane %v2216, 1
        %v2521 = vsel %vm1257, %v2518, %v2520
        %v2523 = vsel %vm612, %v2513, 0
        %v2526 = vsel %vm612, %v2515, 0
        %v2529 = vsel %vm612, %v2517, 0
        %v2532 = vsel %vm612, %v2519, 0
        %v2535 = vsel %vm612, %v2521, 0
        %v2538 = vsel %vm612, %v2520, 0
        %v2541 = vsel %vm631, %v2507, 0
        %2543 = vmatprep.subr.bf16.mxu0 0
        %2544 = vmatpush1.bf16.msra.mxu0 %v2541
        %2545 = vmatprep.subr.bf16.mxu0 0
        %2546 = vmatpush1.bf16.msra.mxu0 0
        %2547 = vmatprep.subr.bf16.mxu0 0
        %2548 = vmatpush1.bf16.msra.mxu0 0
        %2549 = vmatprep.subr.bf16.mxu0 0
        %2550 = vmatpush1.bf16.msra.mxu0 0
        %2551 = vmatprep.subr.bf16.mxu0 0
        %2552 = vmatpush1.bf16.msra.mxu0 0
        %2553 = vmatprep.subr.bf16.mxu0 0
        %2554 = vmatpush1.bf16.msra.mxu0 0
        %2555 = vmatprep.subr.bf16.mxu0 0
        %2556 = vmatpush1.bf16.msra.mxu0 0
        %2557 = vmatprep.subr.bf16.mxu0 0
        %2558 = vmatpush1.bf16.msra.mxu0 0
        %2559 = vmatprep.subr.bf16.mxu0 0
        %2560 = vmatpush1.bf16.msra.mxu0 0
        %2561 = vmatprep.subr.bf16.mxu0 0
        %2562 = vmatpush1.bf16.msra.mxu0 0
        %2563 = vmatprep.subr.bf16.mxu0 0
        %2564 = vmatpush1.bf16.msra.mxu0 0
        %2565 = vmatprep.subr.bf16.mxu0 0
        %2566 = vmatpush1.bf16.msra.mxu0 0
        %2567 = vmatprep.subr.bf16.mxu0 0
        %2568 = vmatpush1.bf16.msra.mxu0 0
        %2569 = vmatprep.subr.bf16.mxu0 0
        %2570 = vmatpush1.bf16.msra.mxu0 0
        %2571 = vmatprep.subr.bf16.mxu0 0
        %2572 = vmatpush1.bf16.msra.mxu0 0
        %2573 = vmatprep.subr.bf16.mxu0 0
        %2574 = vmatpush1.bf16.msra.mxu0 0
        %2575 = vmatprep.mubr.bf16.mxu0 0
        %2576 = vmatmul.mubr.bf16.gmra.mrb[0].mxu0 %v2523
        %v2577 = vpop.f32.mrb[0].mxu0
        %v2578 = vadd.f32 0.0, %v2577
        %v2579 = vpop.f32.mrb[0].mxu0
        %v2580 = vpop.f32.mrb[0].mxu0
        %v2581 = vadd.f32 0.0, %v2580
        %v2582 = vpop.f32.mrb[0].mxu0
        %2583 = vmatprep.mubr.bf16.mxu0 0
        %2584 = vmatmul.mubr.bf16.gmra.mrb[0].mxu0 %v2526
        %v2585 = vpop.f32.mrb[0].mxu0
        %v2586 = vadd.f32 0.0, %v2585
        %v2587 = vpop.f32.mrb[0].mxu0
        %v2588 = vpop.f32.mrb[0].mxu0
        %v2589 = vadd.f32 0.0, %v2588
        %v2590 = vpop.f32.mrb[0].mxu0
        %2591 = vmatprep.mubr.bf16.mxu0 0
        %2592 = vmatmul.mubr.bf16.gmra.mrb[0].mxu0 %v2529
        %v2593 = vpop.f32.mrb[0].mxu0
        %v2594 = vadd.f32 0.0, %v2593
        %v2595 = vpop.f32.mrb[0].mxu0
        %v2596 = vpop.f32.mrb[0].mxu0
        %v2597 = vadd.f32 0.0, %v2596
        %v2598 = vpop.f32.mrb[0].mxu0
        %2599 = vmatprep.mubr.bf16.mxu0 0
        %2600 = vmatmul.mubr.bf16.gmra.mrb[0].mxu0 %v2532
        %v2601 = vpop.f32.mrb[0].mxu0
        %v2602 = vadd.f32 0.0, %v2601
        %v2603 = vpop.f32.mrb[0].mxu0
        %v2604 = vpop.f32.mrb[0].mxu0
        %v2605 = vadd.f32 0.0, %v2604
        %v2606 = vpop.f32.mrb[0].mxu0
        %2607 = vmatprep.mubr.bf16.mxu0 0
        %2608 = vmatmul.mubr.bf16.gmra.mrb[0].mxu0 %v2535
        %v2609 = vpop.f32.mrb[0].mxu0
        %v2610 = vadd.f32 0.0, %v2609
        %v2611 = vpop.f32.mrb[0].mxu0
        %v2612 = vpop.f32.mrb[0].mxu0
        %v2613 = vadd.f32 0.0, %v2612
        %v2614 = vpop.f32.mrb[0].mxu0
        %2615 = vmatprep.mubr.bf16.mxu0 0
        %2616 = vmatmul.mubr.bf16.gmra.mrb[0].mxu0 %v2538
        %v2617 = vpop.f32.mrb[0].mxu0
        %v2618 = vadd.f32 0.0, %v2617
        %v2619 = vpop.f32.mrb[0].mxu0
        %v2620 = vpop.f32.mrb[0].mxu0
        %v2621 = vpop.f32.mrb[0].mxu0
        %2622 = vdwg.mxu0
        %v2623 = vadd.f32 %v2494, %v2578
        %v2624 = vadd.f32 %v2495, %v2581
        %v2625 = vadd.f32 %v2496, %v2586
        %v2626 = vadd.f32 %v2497, %v2589
        %v2627 = vadd.f32 %v2498, %v2594
        %v2628 = vadd.f32 %v2499, %v2597
        %v2629 = vadd.f32 %v2500, %v2602
        %v2630 = vadd.f32 %v2501, %v2605
        %v2631 = vadd.f32 %v2502, %v2610
        %v2632 = vadd.f32 %v2503, %v2613
        %v2633 = vadd.f32 %v2504, %v2618
        %v2634 = vld [vmem:[%s1662 + $0x2c] sm:$0x3]
        %s2635 = scalar_lea.vmem %s542, 26
        %v2636 = vld [vmem:[%s2635] sm:$0x3]
        %v2638 = vunpack.c.l.b16 %v2634
        %v2639 = vpack.c.b16 %v2638, %v2006
        %v2641 = vshrl.u32 %v2381, 16
        %v2643 = vrot.slane %v2641, 1
        %v2644 = vshll.u32 %v2381, 16
        %v2646 = vrot.slane %v2644, 2
        %v2647 = vor.u32 %v2643, %v2646
        %v2648 = vrot.slane %v2026, 1
        %v2649 = vrot.slane %v2022, 2
        %v2650 = vor.u32 %v2648, %v2649
        %v2651 = vsel %vm1516, %v2647, %v2650
        %v2652 = vrot.slane %v2034, 1
        %v2653 = vrot.slane %v2030, 2
        %v2654 = vor.u32 %v2652, %v2653
        %v2655 = vsel %vm1516, %v2650, %v2654
        %v2656 = vrot.slane %v2042, 1
        %v2657 = vrot.slane %v2038, 2
        %v2658 = vor.u32 %v2656, %v2657
        %v2659 = vsel %vm1516, %v2654, %v2658
        %v2660 = vrot.slane %v2050, 1
        %v2661 = vrot.slane %v2046, 2
        %v2662 = vor.u32 %v2660, %v2661
        %v2663 = vsel %vm1516, %v2658, %v2662
        %v2665 = vshrl.u32 %v2639, 16
        %v2667 = vrot.slane %v2665, 1
        %v2668 = vshll.u32 %v2639, 16
        %v2670 = vrot.slane %v2668, 2
        %v2671 = vor.u32 %v2667, %v2670
        %v2672 = vsel %vm1516, %v2662, %v2671
        %v2674 = vsel %vm612, %v2651, 0
        %v2677 = vsel %vm612, %v2655, 0
        %v2680 = vsel %vm612, %v2659, 0
        %v2683 = vsel %vm612, %v2663, 0
        %v2686 = vsel %vm612, %v2672, 0
        %v2689 = vsel %vm612, %v2671, 0
        %v2692 = vsel %vm631, %v2636, 0
        %2694 = vmatprep.subr.bf16.mxu0 0
        %2695 = vmatpush1.bf16.msra.mxu0 %v2692
        %2696 = vmatprep.subr.bf16.mxu0 0
        %2697 = vmatpush1.bf16.msra.mxu0 0
        %2698 = vmatprep.subr.bf16.mxu0 0
        %2699 = vmatpush1.bf16.msra.mxu0 0
        %2700 = vmatprep.subr.bf16.mxu0 0
        %2701 = vmatpush1.bf16.msra.mxu0 0
        %2702 = vmatprep.subr.bf16.mxu0 0
        %2703 = vmatpush1.bf16.msra.mxu0 0
        %2704 = vmatprep.subr.bf16.mxu0 0
        %2705 = vmatpush1.bf16.msra.mxu0 0
        %2706 = vmatprep.subr.bf16.mxu0 0
        %2707 = vmatpush1.bf16.msra.mxu0 0
        %2708 = vmatprep.subr.bf16.mxu0 0
        %2709 = vmatpush1.bf16.msra.mxu0 0
        %2710 = vmatprep.subr.bf16.mxu0 0
        %2711 = vmatpush1.bf16.msra.mxu0 0
        %2712 = vmatprep.subr.bf16.mxu0 0
        %2713 = vmatpush1.bf16.msra.mxu0 0
        %2714 = vmatprep.subr.bf16.mxu0 0
        %2715 = vmatpush1.bf16.msra.mxu0 0
        %2716 = vmatprep.subr.bf16.mxu0 0
        %2717 = vmatpush1.bf16.msra.mxu0 0
        %2718 = vmatprep.subr.bf16.mxu0 0
        %2719 = vmatpush1.bf16.msra.mxu0 0
        %2720 = vmatprep.subr.bf16.mxu0 0
        %2721 = vmatpush1.bf16.msra.mxu0 0
        %2722 = vmatprep.subr.bf16.mxu0 0
        %2723 = vmatpush1.bf16.msra.mxu0 0
        %2724 = vmatprep.subr.bf16.mxu0 0
        %2725 = vmatpush1.bf16.msra.mxu0 0
        %2726 = vmatprep.mubr.bf16.mxu0 0
        %2727 = vmatmul.mubr.bf16.gmra.mrb[0].mxu0 %v2674
        %v2728 = vpop.f32.mrb[0].mxu0
        %v2729 = vadd.f32 0.0, %v2728
        %v2730 = vpop.f32.mrb[0].mxu0
        %v2731 = vpop.f32.mrb[0].mxu0
        %v2732 = vadd.f32 0.0, %v2731
        %v2733 = vpop.f32.mrb[0].mxu0
        %2734 = vmatprep.mubr.bf16.mxu0 0
        %2735 = vmatmul.mubr.bf16.gmra.mrb[0].mxu0 %v2677
        %v2736 = vpop.f32.mrb[0].mxu0
        %v2737 = vadd.f32 0.0, %v2736
        %v2738 = vpop.f32.mrb[0].mxu0
        %v2739 = vpop.f32.mrb[0].mxu0
        %v2740 = vadd.f32 0.0, %v2739
        %v2741 = vpop.f32.mrb[0].mxu0
        %2742 = vmatprep.mubr.bf16.mxu0 0
        %2743 = vmatmul.mubr.bf16.gmra.mrb[0].mxu0 %v2680
        %v2744 = vpop.f32.mrb[0].mxu0
        %v2745 = vadd.f32 0.0, %v2744
        %v2746 = vpop.f32.mrb[0].mxu0
        %v2747 = vpop.f32.mrb[0].mxu0
        %v2748 = vadd.f32 0.0, %v2747
        %v2749 = vpop.f32.mrb[0].mxu0
        %2750 = vmatprep.mubr.bf16.mxu0 0
        %2751 = vmatmul.mubr.bf16.gmra.mrb[0].mxu0 %v2683
        %v2752 = vpop.f32.mrb[0].mxu0
        %v2753 = vadd.f32 0.0, %v2752
        %v2754 = vpop.f32.mrb[0].mxu0
        %v2755 = vpop.f32.mrb[0].mxu0
        %v2756 = vadd.f32 0.0, %v2755
        %v2757 = vpop.f32.mrb[0].mxu0
        %2758 = vmatprep.mubr.bf16.mxu0 0
        %2759 = vmatmul.mubr.bf16.gmra.mrb[0].mxu0 %v2686
        %v2760 = vpop.f32.mrb[0].mxu0
        %v2761 = vadd.f32 0.0, %v2760
        %v2762 = vpop.f32.mrb[0].mxu0
        %v2763 = vpop.f32.mrb[0].mxu0
        %v2764 = vadd.f32 0.0, %v2763
        %v2765 = vpop.f32.mrb[0].mxu0
        %2766 = vmatprep.mubr.bf16.mxu0 0
        %2767 = vmatmul.mubr.bf16.gmra.mrb[0].mxu0 %v2689
        %v2768 = vpop.f32.mrb[0].mxu0
        %v2769 = vadd.f32 0.0, %v2768
        %v2770 = vpop.f32.mrb[0].mxu0
        %v2771 = vpop.f32.mrb[0].mxu0
        %v2772 = vpop.f32.mrb[0].mxu0
        %2773 = vdwg.mxu0
        %v2774 = vadd.f32 %v2623, %v2729
        %v2775 = vadd.f32 %v2624, %v2732
        %v2776 = vadd.f32 %v2625, %v2737
        %v2777 = vadd.f32 %v2626, %v2740
        %v2778 = vadd.f32 %v2627, %v2745
        %v2779 = vadd.f32 %v2628, %v2748
        %v2780 = vadd.f32 %v2629, %v2753
        %v2781 = vadd.f32 %v2630, %v2756
        %v2782 = vadd.f32 %v2631, %v2761
        %v2783 = vadd.f32 %v2632, %v2764
        %v2784 = vadd.f32 %v2633, %v2769
        %v2785 = vld [vmem:[%s503 + $0x4] sm:$0xe]
        %v2786 = vld [vmem:[%s503 + $0x8] sm:$0xf]
        %v2787 = vld [vmem:[%s503 + $0xc] sm:$0xf]
        %v2788 = vld [vmem:[%s503 + $0x10] sm:$0xf]
        %v2789 = vld [vmem:[%s503 + $0x14] sm:$0xf]
        %v2790 = vld [vmem:[%s503 + $0x18] sm:$0xf]
        %v2791 = vld [vmem:[%s503 + $0x1c] sm:$0xf]
        %v2792 = vld [vmem:[%s503 + $0x20] sm:$0xf]
        %v2793 = vld [vmem:[%s503 + $0x24] sm:$0xf]
        %v2794 = vld [vmem:[%s503 + $0x28] sm:$0xf]
        %v2795 = vld [vmem:[%s503 + $0x2c] sm:$0xf]
        %v2796 = vld [vmem:[%s503 + $0x30] sm:$0x3]
        %s2797 = scalar_lea.vmem %s542, 28
        %v2798 = vld [vmem:[%s2797] sm:$0x3]
        %v2811 = vunpack.c.l.b16 %v2785
        %v2812 = vunpack.c.l.b16 %v2786
        %v2813 = vunpack.c.l.b16 %v2787
        %v2814 = vunpack.c.l.b16 %v2788
        %v2815 = vunpack.c.l.b16 %v2789
        %v2816 = vunpack.c.l.b16 %v2790
        %v2817 = vunpack.c.l.b16 %v2791
        %v2818 = vunpack.c.l.b16 %v2792
        %v2819 = vunpack.c.l.b16 %v2793
        %v2820 = vunpack.c.l.b16 %v2794
        %v2821 = vunpack.c.l.b16 %v2795
        %v2822 = vunpack.c.l.b16 %v2796
        %v2823 = vpack.c.b16 %v2812, %v2811
        %v2824 = vpack.c.b16 %v2814, %v2813
        %v2825 = vpack.c.b16 %v2816, %v2815
        %v2826 = vpack.c.b16 %v2818, %v2817
        %v2827 = vpack.c.b16 %v2820, %v2819
        %v2828 = vpack.c.b16 %v2822, %v2821
        %v2830 = vshrl.u32 %v2823, 16
        %v2832 = vrot.slane %v2830, 1
        %v2833 = vshll.u32 %v2823, 16
        %v2835 = vrot.slane %v2833, 2
        %v2836 = vor.u32 %v2832, %v2835
        %v2838 = vshrl.u32 %v2824, 16
        %v2840 = vrot.slane %v2838, 1
        %v2841 = vshll.u32 %v2824, 16
        %v2843 = vrot.slane %v2841, 2
        %v2844 = vor.u32 %v2840, %v2843
        %v2845 = vsel %vm1516, %v2836, %v2844
        %v2847 = vshrl.u32 %v2825, 16
        %v2849 = vrot.slane %v2847, 1
        %v2850 = vshll.u32 %v2825, 16
        %v2852 = vrot.slane %v2850, 2
        %v2853 = vor.u32 %v2849, %v2852
        %v2854 = vsel %vm1516, %v2844, %v2853
        %v2856 = vshrl.u32 %v2826, 16
        %v2858 = vrot.slane %v2856, 1
        %v2859 = vshll.u32 %v2826, 16
        %v2861 = vrot.slane %v2859, 2
        %v2862 = vor.u32 %v2858, %v2861
        %v2863 = vsel %vm1516, %v2853, %v2862
        %v2865 = vshrl.u32 %v2827, 16
        %v2867 = vrot.slane %v2865, 1
        %v2868 = vshll.u32 %v2827, 16
        %v2870 = vrot.slane %v2868, 2
        %v2871 = vor.u32 %v2867, %v2870
        %v2872 = vsel %vm1516, %v2862, %v2871
        %v2874 = vshrl.u32 %v2828, 16
        %v2876 = vrot.slane %v2874, 1
        %v2877 = vshll.u32 %v2828, 16
        %v2879 = vrot.slane %v2877, 2
        %v2880 = vor.u32 %v2876, %v2879
        %v2881 = vsel %vm1516, %v2871, %v2880
        %v2883 = vsel %vm612, %v2845, 0
        %v2886 = vsel %vm612, %v2854, 0
        %v2889 = vsel %vm612, %v2863, 0
        %v2892 = vsel %vm612, %v2872, 0
        %v2895 = vsel %vm612, %v2881, 0
        %v2898 = vsel %vm612, %v2880, 0
        %v2901 = vsel %vm631, %v2798, 0
        %2903 = vmatprep.subr.bf16.mxu0 0
        %2904 = vmatpush1.bf16.msra.mxu0 %v2901
        %2905 = vmatprep.subr.bf16.mxu0 0
        %2906 = vmatpush1.bf16.msra.mxu0 0
        %2907 = vmatprep.subr.bf16.mxu0 0
        %2908 = vmatpush1.bf16.msra.mxu0 0
        %2909 = vmatprep.subr.bf16.mxu0 0
        %2910 = vmatpush1.bf16.msra.mxu0 0
        %2911 = vmatprep.subr.bf16.mxu0 0
        %2912 = vmatpush1.bf16.msra.mxu0 0
        %2913 = vmatprep.subr.bf16.mxu0 0
        %2914 = vmatpush1.bf16.msra.mxu0 0
        %2915 = vmatprep.subr.bf16.mxu0 0
        %2916 = vmatpush1.bf16.msra.mxu0 0
        %2917 = vmatprep.subr.bf16.mxu0 0
        %2918 = vmatpush1.bf16.msra.mxu0 0
        %2919 = vmatprep.subr.bf16.mxu0 0
        %2920 = vmatpush1.bf16.msra.mxu0 0
        %2921 = vmatprep.subr.bf16.mxu0 0
        %2922 = vmatpush1.bf16.msra.mxu0 0
        %2923 = vmatprep.subr.bf16.mxu0 0
        %2924 = vmatpush1.bf16.msra.mxu0 0
        %2925 = vmatprep.subr.bf16.mxu0 0
        %2926 = vmatpush1.bf16.msra.mxu0 0
        %2927 = vmatprep.subr.bf16.mxu0 0
        %2928 = vmatpush1.bf16.msra.mxu0 0
        %2929 = vmatprep.subr.bf16.mxu0 0
        %2930 = vmatpush1.bf16.msra.mxu0 0
        %2931 = vmatprep.subr.bf16.mxu0 0
        %2932 = vmatpush1.bf16.msra.mxu0 0
        %2933 = vmatprep.subr.bf16.mxu0 0
        %2934 = vmatpush1.bf16.msra.mxu0 0
        %2935 = vmatprep.mubr.bf16.mxu0 0
        %2936 = vmatmul.mubr.bf16.gmra.mrb[0].mxu0 %v2883
        %v2937 = vpop.f32.mrb[0].mxu0
        %v2938 = vadd.f32 0.0, %v2937
        %v2939 = vpop.f32.mrb[0].mxu0
        %v2940 = vpop.f32.mrb[0].mxu0
        %v2941 = vadd.f32 0.0, %v2940
        %v2942 = vpop.f32.mrb[0].mxu0
        %2943 = vmatprep.mubr.bf16.mxu0 0
        %2944 = vmatmul.mubr.bf16.gmra.mrb[0].mxu0 %v2886
        %v2945 = vpop.f32.mrb[0].mxu0
        %v2946 = vadd.f32 0.0, %v2945
        %v2947 = vpop.f32.mrb[0].mxu0
        %v2948 = vpop.f32.mrb[0].mxu0
        %v2949 = vadd.f32 0.0, %v2948
        %v2950 = vpop.f32.mrb[0].mxu0
        %2951 = vmatprep.mubr.bf16.mxu0 0
        %2952 = vmatmul.mubr.bf16.gmra.mrb[0].mxu0 %v2889
        %v2953 = vpop.f32.mrb[0].mxu0
        %v2954 = vadd.f32 0.0, %v2953
        %v2955 = vpop.f32.mrb[0].mxu0
        %v2956 = vpop.f32.mrb[0].mxu0
        %v2957 = vadd.f32 0.0, %v2956
        %v2958 = vpop.f32.mrb[0].mxu0
        %2959 = vmatprep.mubr.bf16.mxu0 0
        %2960 = vmatmul.mubr.bf16.gmra.mrb[0].mxu0 %v2892
        %v2961 = vpop.f32.mrb[0].mxu0
        %v2962 = vadd.f32 0.0, %v2961
        %v2963 = vpop.f32.mrb[0].mxu0
        %v2964 = vpop.f32.mrb[0].mxu0
        %v2965 = vadd.f32 0.0, %v2964
        %v2966 = vpop.f32.mrb[0].mxu0
        %2967 = vmatprep.mubr.bf16.mxu0 0
        %2968 = vmatmul.mubr.bf16.gmra.mrb[0].mxu0 %v2895
        %v2969 = vpop.f32.mrb[0].mxu0
        %v2970 = vadd.f32 0.0, %v2969
        %v2971 = vpop.f32.mrb[0].mxu0
        %v2972 = vpop.f32.mrb[0].mxu0
        %v2973 = vadd.f32 0.0, %v2972
        %v2974 = vpop.f32.mrb[0].mxu0
        %2975 = vmatprep.mubr.bf16.mxu0 0
        %2976 = vmatmul.mubr.bf16.gmra.mrb[0].mxu0 %v2898
        %v2977 = vpop.f32.mrb[0].mxu0
        %v2978 = vadd.f32 0.0, %v2977
        %v2979 = vpop.f32.mrb[0].mxu0
        %v2980 = vpop.f32.mrb[0].mxu0
        %v2981 = vpop.f32.mrb[0].mxu0
        %2982 = vdwg.mxu0
        %v2983 = vadd.f32 %v2774, %v2938
        %v2984 = vadd.f32 %v2775, %v2941
        %v2985 = vadd.f32 %v2776, %v2946
        %v2986 = vadd.f32 %v2777, %v2949
        %v2987 = vadd.f32 %v2778, %v2954
        %v2988 = vadd.f32 %v2779, %v2957
        %v2989 = vadd.f32 %v2780, %v2962
        %v2990 = vadd.f32 %v2781, %v2965
        %v2991 = vadd.f32 %v2782, %v2970
        %v2992 = vadd.f32 %v2783, %v2973
        %v2993 = vadd.f32 %v2784, %v2978
        %v2994 = vld [vmem:[%s570 + $0x4] sm:$0xe]
        %v2995 = vld [vmem:[%s570 + $0x8] sm:$0xf]
        %v2996 = vld [vmem:[%s570 + $0xc] sm:$0xf]
        %v2997 = vld [vmem:[%s570 + $0x10] sm:$0xf]
        %v2998 = vld [vmem:[%s570 + $0x14] sm:$0xf]
        %v2999 = vld [vmem:[%s570 + $0x18] sm:$0xf]
        %v3000 = vld [vmem:[%s570 + $0x1c] sm:$0xf]
        %v3001 = vld [vmem:[%s570 + $0x20] sm:$0xf]
        %v3002 = vld [vmem:[%s570 + $0x24] sm:$0xf]
        %v3003 = vld [vmem:[%s570 + $0x28] sm:$0xf]
        %v3004 = vld [vmem:[%s570 + $0x2c] sm:$0xf]
        %v3005 = vld [vmem:[%s570 + $0x30] sm:$0x3]
        %s3006 = scalar_lea.vmem %s542, 30
        %v3007 = vld [vmem:[%s3006] sm:$0x3]
        %v3020 = vunpack.c.l.b16 %v2994
        %v3021 = vunpack.c.l.b16 %v2995
        %v3022 = vunpack.c.l.b16 %v2996
        %v3023 = vunpack.c.l.b16 %v2997
        %v3024 = vunpack.c.l.b16 %v2998
        %v3025 = vunpack.c.l.b16 %v2999
        %v3026 = vunpack.c.l.b16 %v3000
        %v3027 = vunpack.c.l.b16 %v3001
        %v3028 = vunpack.c.l.b16 %v3002
        %v3029 = vunpack.c.l.b16 %v3003
        %v3030 = vunpack.c.l.b16 %v3004
        %v3031 = vunpack.c.l.b16 %v3005
        %v3032 = vpack.c.b16 %v3021, %v3020
        %v3033 = vpack.c.b16 %v3023, %v3022
        %v3034 = vpack.c.b16 %v3025, %v3024
        %v3035 = vpack.c.b16 %v3027, %v3026
        %v3036 = vpack.c.b16 %v3029, %v3028
        %v3037 = vpack.c.b16 %v3031, %v3030
        %v3039 = vshrl.u32 %v3032, 16
        %v3041 = vrot.slane %v3039, 1
        %v3042 = vshll.u32 %v3032, 16
        %v3044 = vrot.slane %v3042, 2
        %v3045 = vor.u32 %v3041, %v3044
        %v3047 = vshrl.u32 %v3033, 16
        %v3049 = vrot.slane %v3047, 1
        %v3050 = vshll.u32 %v3033, 16
        %v3052 = vrot.slane %v3050, 2
        %v3053 = vor.u32 %v3049, %v3052
        %v3054 = vsel %vm1516, %v3045, %v3053
        %v3056 = vshrl.u32 %v3034, 16
        %v3058 = vrot.slane %v3056, 1
        %v3059 = vshll.u32 %v3034, 16
        %v3061 = vrot.slane %v3059, 2
        %v3062 = vor.u32 %v3058, %v3061
        %v3063 = vsel %vm1516, %v3053, %v3062
        %v3065 = vshrl.u32 %v3035, 16
        %v3067 = vrot.slane %v3065, 1
        %v3068 = vshll.u32 %v3035, 16
        %v3070 = vrot.slane %v3068, 2
        %v3071 = vor.u32 %v3067, %v3070
        %v3072 = vsel %vm1516, %v3062, %v3071
        %v3074 = vshrl.u32 %v3036, 16
        %v3076 = vrot.slane %v3074, 1
        %v3077 = vshll.u32 %v3036, 16
        %v3079 = vrot.slane %v3077, 2
        %v3080 = vor.u32 %v3076, %v3079
        %v3081 = vsel %vm1516, %v3071, %v3080
        %v3083 = vshrl.u32 %v3037, 16
        %v3085 = vrot.slane %v3083, 1
        %v3086 = vshll.u32 %v3037, 16
        %v3088 = vrot.slane %v3086, 2
        %v3089 = vor.u32 %v3085, %v3088
        %v3090 = vsel %vm1516, %v3080, %v3089
        %v3092 = vsel %vm612, %v3054, 0
        %v3095 = vsel %vm612, %v3063, 0
        %v3098 = vsel %vm612, %v3072, 0
        %v3101 = vsel %vm612, %v3081, 0
        %v3104 = vsel %vm612, %v3090, 0
        %v3107 = vsel %vm612, %v3089, 0
        %v3110 = vsel %vm631, %v3007, 0
        %3112 = vmatprep.subr.bf16.mxu0 0
        %3113 = vmatpush1.bf16.msra.mxu0 %v3110
        %3114 = vmatprep.subr.bf16.mxu0 0
        %3115 = vmatpush1.bf16.msra.mxu0 0
        %3116 = vmatprep.subr.bf16.mxu0 0
        %3117 = vmatpush1.bf16.msra.mxu0 0
        %3118 = vmatprep.subr.bf16.mxu0 0
        %3119 = vmatpush1.bf16.msra.mxu0 0
        %3120 = vmatprep.subr.bf16.mxu0 0
        %3121 = vmatpush1.bf16.msra.mxu0 0
        %3122 = vmatprep.subr.bf16.mxu0 0
        %3123 = vmatpush1.bf16.msra.mxu0 0
        %3124 = vmatprep.subr.bf16.mxu0 0
        %3125 = vmatpush1.bf16.msra.mxu0 0
        %3126 = vmatprep.subr.bf16.mxu0 0
        %3127 = vmatpush1.bf16.msra.mxu0 0
        %3128 = vmatprep.subr.bf16.mxu0 0
        %3129 = vmatpush1.bf16.msra.mxu0 0
        %3130 = vmatprep.subr.bf16.mxu0 0
        %3131 = vmatpush1.bf16.msra.mxu0 0
        %3132 = vmatprep.subr.bf16.mxu0 0
        %3133 = vmatpush1.bf16.msra.mxu0 0
        %3134 = vmatprep.subr.bf16.mxu0 0
        %3135 = vmatpush1.bf16.msra.mxu0 0
        %3136 = vmatprep.subr.bf16.mxu0 0
        %3137 = vmatpush1.bf16.msra.mxu0 0
        %3138 = vmatprep.subr.bf16.mxu0 0
        %3139 = vmatpush1.bf16.msra.mxu0 0
        %3140 = vmatprep.subr.bf16.mxu0 0
        %3141 = vmatpush1.bf16.msra.mxu0 0
        %3142 = vmatprep.subr.bf16.mxu0 0
        %3143 = vmatpush1.bf16.msra.mxu0 0
        %3144 = vmatprep.mubr.bf16.mxu0 0
        %3145 = vmatmul.mubr.bf16.gmra.mrb[0].mxu0 %v3092
        %v3146 = vpop.f32.mrb[0].mxu0
        %v3147 = vadd.f32 0.0, %v3146
        %v3148 = vpop.f32.mrb[0].mxu0
        %v3149 = vpop.f32.mrb[0].mxu0
        %v3150 = vadd.f32 0.0, %v3149
        %v3151 = vpop.f32.mrb[0].mxu0
        %3152 = vmatprep.mubr.bf16.mxu0 0
        %3153 = vmatmul.mubr.bf16.gmra.mrb[0].mxu0 %v3095
        %v3154 = vpop.f32.mrb[0].mxu0
        %v3155 = vadd.f32 0.0, %v3154
        %v3156 = vpop.f32.mrb[0].mxu0
        %v3157 = vpop.f32.mrb[0].mxu0
        %v3158 = vadd.f32 0.0, %v3157
        %v3159 = vpop.f32.mrb[0].mxu0
        %3160 = vmatprep.mubr.bf16.mxu0 0
        %3161 = vmatmul.mubr.bf16.gmra.mrb[0].mxu0 %v3098
        %v3162 = vpop.f32.mrb[0].mxu0
        %v3163 = vadd.f32 0.0, %v3162
        %v3164 = vpop.f32.mrb[0].mxu0
        %v3165 = vpop.f32.mrb[0].mxu0
        %v3166 = vadd.f32 0.0, %v3165
        %v3167 = vpop.f32.mrb[0].mxu0
        %3168 = vmatprep.mubr.bf16.mxu0 0
        %3169 = vmatmul.mubr.bf16.gmra.mrb[0].mxu0 %v3101
        %v3170 = vpop.f32.mrb[0].mxu0
        %v3171 = vadd.f32 0.0, %v3170
        %v3172 = vpop.f32.mrb[0].mxu0
        %v3173 = vpop.f32.mrb[0].mxu0
        %v3174 = vadd.f32 0.0, %v3173
        %v3175 = vpop.f32.mrb[0].mxu0
        %3176 = vmatprep.mubr.bf16.mxu0 0
        %3177 = vmatmul.mubr.bf16.gmra.mrb[0].mxu0 %v3104
        %v3178 = vpop.f32.mrb[0].mxu0
        %v3179 = vadd.f32 0.0, %v3178
        %v3180 = vpop.f32.mrb[0].mxu0
        %v3181 = vpop.f32.mrb[0].mxu0
        %v3182 = vadd.f32 0.0, %v3181
        %v3183 = vpop.f32.mrb[0].mxu0
        %3184 = vmatprep.mubr.bf16.mxu0 0
        %3185 = vmatmul.mubr.bf16.gmra.mrb[0].mxu0 %v3107
        %v3186 = vpop.f32.mrb[0].mxu0
        %v3187 = vadd.f32 0.0, %v3186
        %v3188 = vpop.f32.mrb[0].mxu0
        %v3189 = vpop.f32.mrb[0].mxu0
        %v3190 = vpop.f32.mrb[0].mxu0
        %3191 = vdwg.mxu0
        %v3192 = vadd.f32 %v2983, %v3147
        %v3193 = vadd.f32 %v2984, %v3150
        %v3194 = vadd.f32 %v2985, %v3155
        %v3195 = vadd.f32 %v2986, %v3158
        %v3196 = vadd.f32 %v2987, %v3163
        %v3197 = vadd.f32 %v2988, %v3166
        %v3198 = vadd.f32 %v2989, %v3171
        %v3199 = vadd.f32 %v2990, %v3174
        %v3200 = vadd.f32 %v2991, %v3179
        %v3201 = vadd.f32 %v2992, %v3182
        %v3202 = vadd.f32 %v2993, %v3187
        %v3203 = vld [vmem:[%s503 + $0x4] sm:$0xc]
        %s3204 = scalar_lea.vmem %s542, 32
        %v3205 = vld [vmem:[%s3204] sm:$0x3]
        %v3207 = vunpack.c.l.b16 %v3203
        %v3208 = vpack.c.b16 %v2812, %v3207
        %vm3209 = vcmask 1045504
        %v3210 = vrot.slane %v3208, 2
        %v3211 = vrot.slane %v2824, 2
        %v3212 = vsel %vm3209, %v3210, %v3211
        %v3213 = vrot.slane %v2825, 2
        %v3214 = vsel %vm3209, %v3211, %v3213
        %v3215 = vrot.slane %v2826, 2
        %v3216 = vsel %vm3209, %v3213, %v3215
        %v3217 = vrot.slane %v2827, 2
        %v3218 = vsel %vm3209, %v3215, %v3217
        %v3219 = vrot.slane %v2828, 2
        %v3220 = vsel %vm3209, %v3217, %v3219
        %v3222 = vsel %vm612, %v3212, 0
        %v3225 = vsel %vm612, %v3214, 0
        %v3228 = vsel %vm612, %v3216, 0
        %v3231 = vsel %vm612, %v3218, 0
        %v3234 = vsel %vm612, %v3220, 0
        %v3237 = vsel %vm612, %v3219, 0
        %v3240 = vsel %vm631, %v3205, 0
        %3242 = vmatprep.subr.bf16.mxu0 0
        %3243 = vmatpush1.bf16.msra.mxu0 %v3240
        %3244 = vmatprep.subr.bf16.mxu0 0
        %3245 = vmatpush1.bf16.msra.mxu0 0
        %3246 = vmatprep.subr.bf16.mxu0 0
        %3247 = vmatpush1.bf16.msra.mxu0 0
        %3248 = vmatprep.subr.bf16.mxu0 0
        %3249 = vmatpush1.bf16.msra.mxu0 0
        %3250 = vmatprep.subr.bf16.mxu0 0
        %3251 = vmatpush1.bf16.msra.mxu0 0
        %3252 = vmatprep.subr.bf16.mxu0 0
        %3253 = vmatpush1.bf16.msra.mxu0 0
        %3254 = vmatprep.subr.bf16.mxu0 0
        %3255 = vmatpush1.bf16.msra.mxu0 0
        %3256 = vmatprep.subr.bf16.mxu0 0
        %3257 = vmatpush1.bf16.msra.mxu0 0
        %3258 = vmatprep.subr.bf16.mxu0 0
        %3259 = vmatpush1.bf16.msra.mxu0 0
        %3260 = vmatprep.subr.bf16.mxu0 0
        %3261 = vmatpush1.bf16.msra.mxu0 0
        %3262 = vmatprep.subr.bf16.mxu0 0
        %3263 = vmatpush1.bf16.msra.mxu0 0
        %3264 = vmatprep.subr.bf16.mxu0 0
        %3265 = vmatpush1.bf16.msra.mxu0 0
        %3266 = vmatprep.subr.bf16.mxu0 0
        %3267 = vmatpush1.bf16.msra.mxu0 0
        %3268 = vmatprep.subr.bf16.mxu0 0
        %3269 = vmatpush1.bf16.msra.mxu0 0
        %3270 = vmatprep.subr.bf16.mxu0 0
        %3271 = vmatpush1.bf16.msra.mxu0 0
        %3272 = vmatprep.subr.bf16.mxu0 0
        %3273 = vmatpush1.bf16.msra.mxu0 0
        %3274 = vmatprep.mubr.bf16.mxu0 0
        %3275 = vmatmul.mubr.bf16.gmra.mrb[0].mxu0 %v3222
        %v3276 = vpop.f32.mrb[0].mxu0
        %v3277 = vadd.f32 0.0, %v3276
        %v3278 = vpop.f32.mrb[0].mxu0
        %v3279 = vpop.f32.mrb[0].mxu0
        %v3280 = vadd.f32 0.0, %v3279
        %v3281 = vpop.f32.mrb[0].mxu0
        %3282 = vmatprep.mubr.bf16.mxu0 0
        %3283 = vmatmul.mubr.bf16.gmra.mrb[0].mxu0 %v3225
        %v3284 = vpop.f32.mrb[0].mxu0
        %v3285 = vadd.f32 0.0, %v3284
        %v3286 = vpop.f32.mrb[0].mxu0
        %v3287 = vpop.f32.mrb[0].mxu0
        %v3288 = vadd.f32 0.0, %v3287
        %v3289 = vpop.f32.mrb[0].mxu0
        %3290 = vmatprep.mubr.bf16.mxu0 0
        %3291 = vmatmul.mubr.bf16.gmra.mrb[0].mxu0 %v3228
        %v3292 = vpop.f32.mrb[0].mxu0
        %v3293 = vadd.f32 0.0, %v3292
        %v3294 = vpop.f32.mrb[0].mxu0
        %v3295 = vpop.f32.mrb[0].mxu0
        %v3296 = vadd.f32 0.0, %v3295
        %v3297 = vpop.f32.mrb[0].mxu0
        %3298 = vmatprep.mubr.bf16.mxu0 0
        %3299 = vmatmul.mubr.bf16.gmra.mrb[0].mxu0 %v3231
        %v3300 = vpop.f32.mrb[0].mxu0
        %v3301 = vadd.f32 0.0, %v3300
        %v3302 = vpop.f32.mrb[0].mxu0
        %v3303 = vpop.f32.mrb[0].mxu0
        %v3304 = vadd.f32 0.0, %v3303
        %v3305 = vpop.f32.mrb[0].mxu0
        %3306 = vmatprep.mubr.bf16.mxu0 0
        %3307 = vmatmul.mubr.bf16.gmra.mrb[0].mxu0 %v3234
        %v3308 = vpop.f32.mrb[0].mxu0
        %v3309 = vadd.f32 0.0, %v3308
        %v3310 = vpop.f32.mrb[0].mxu0
        %v3311 = vpop.f32.mrb[0].mxu0
        %v3312 = vadd.f32 0.0, %v3311
        %v3313 = vpop.f32.mrb[0].mxu0
        %3314 = vmatprep.mubr.bf16.mxu0 0
        %3315 = vmatmul.mubr.bf16.gmra.mrb[0].mxu0 %v3237
        %v3316 = vpop.f32.mrb[0].mxu0
        %v3317 = vadd.f32 0.0, %v3316
        %v3318 = vpop.f32.mrb[0].mxu0
        %v3319 = vpop.f32.mrb[0].mxu0
        %v3320 = vpop.f32.mrb[0].mxu0
        %3321 = vdwg.mxu0
        %v3322 = vadd.f32 %v3192, %v3277
        %v3323 = vadd.f32 %v3193, %v3280
        %v3324 = vadd.f32 %v3194, %v3285
        %v3325 = vadd.f32 %v3195, %v3288
        %v3326 = vadd.f32 %v3196, %v3293
        %v3327 = vadd.f32 %v3197, %v3296
        %v3328 = vadd.f32 %v3198, %v3301
        %v3329 = vadd.f32 %v3199, %v3304
        %v3330 = vadd.f32 %v3200, %v3309
        %v3331 = vadd.f32 %v3201, %v3312
        %v3332 = vadd.f32 %v3202, %v3317
        %v3333 = vld [vmem:[%s570 + $0x4] sm:$0xc]
        %s3334 = scalar_lea.vmem %s542, 34
        %v3335 = vld [vmem:[%s3334] sm:$0x3]
        %v3337 = vunpack.c.l.b16 %v3333
        %v3338 = vpack.c.b16 %v3021, %v3337
        %v3339 = vrot.slane %v3338, 2
        %v3340 = vrot.slane %v3033, 2
        %v3341 = vsel %vm3209, %v3339, %v3340
        %v3342 = vrot.slane %v3034, 2
        %v3343 = vsel %vm3209, %v3340, %v3342
        %v3344 = vrot.slane %v3035, 2
        %v3345 = vsel %vm3209, %v3342, %v3344
        %v3346 = vrot.slane %v3036, 2
        %v3347 = vsel %vm3209, %v3344, %v3346
        %v3348 = vrot.slane %v3037, 2
        %v3349 = vsel %vm3209, %v3346, %v3348
        %v3351 = vsel %vm612, %v3341, 0
        %v3354 = vsel %vm612, %v3343, 0
        %v3357 = vsel %vm612, %v3345, 0
        %v3360 = vsel %vm612, %v3347, 0
        %v3363 = vsel %vm612, %v3349, 0
        %v3366 = vsel %vm612, %v3348, 0
        %v3369 = vsel %vm631, %v3335, 0
        %3371 = vmatprep.subr.bf16.mxu0 0
        %3372 = vmatpush1.bf16.msra.mxu0 %v3369
        %3373 = vmatprep.subr.bf16.mxu0 0
        %3374 = vmatpush1.bf16.msra.mxu0 0
        %3375 = vmatprep.subr.bf16.mxu0 0
        %3376 = vmatpush1.bf16.msra.mxu0 0
        %3377 = vmatprep.subr.bf16.mxu0 0
        %3378 = vmatpush1.bf16.msra.mxu0 0
        %3379 = vmatprep.subr.bf16.mxu0 0
        %3380 = vmatpush1.bf16.msra.mxu0 0
        %3381 = vmatprep.subr.bf16.mxu0 0
        %3382 = vmatpush1.bf16.msra.mxu0 0
        %3383 = vmatprep.subr.bf16.mxu0 0
        %3384 = vmatpush1.bf16.msra.mxu0 0
        %3385 = vmatprep.subr.bf16.mxu0 0
        %3386 = vmatpush1.bf16.msra.mxu0 0
        %3387 = vmatprep.subr.bf16.mxu0 0
        %3388 = vmatpush1.bf16.msra.mxu0 0
        %3389 = vmatprep.subr.bf16.mxu0 0
        %3390 = vmatpush1.bf16.msra.mxu0 0
        %3391 = vmatprep.subr.bf16.mxu0 0
        %3392 = vmatpush1.bf16.msra.mxu0 0
        %3393 = vmatprep.subr.bf16.mxu0 0
        %3394 = vmatpush1.bf16.msra.mxu0 0
        %3395 = vmatprep.subr.bf16.mxu0 0
        %3396 = vmatpush1.bf16.msra.mxu0 0
        %3397 = vmatprep.subr.bf16.mxu0 0
        %3398 = vmatpush1.bf16.msra.mxu0 0
        %3399 = vmatprep.subr.bf16.mxu0 0
        %3400 = vmatpush1.bf16.msra.mxu0 0
        %3401 = vmatprep.subr.bf16.mxu0 0
        %3402 = vmatpush1.bf16.msra.mxu0 0
        %3403 = vmatprep.mubr.bf16.mxu0 0
        %3404 = vmatmul.mubr.bf16.gmra.mrb[0].mxu0 %v3351
        %v3405 = vpop.f32.mrb[0].mxu0
        %v3406 = vadd.f32 0.0, %v3405
        %v3407 = vpop.f32.mrb[0].mxu0
        %v3408 = vpop.f32.mrb[0].mxu0
        %v3409 = vadd.f32 0.0, %v3408
        %v3410 = vpop.f32.mrb[0].mxu0
        %3411 = vmatprep.mubr.bf16.mxu0 0
        %3412 = vmatmul.mubr.bf16.gmra.mrb[0].mxu0 %v3354
        %v3413 = vpop.f32.mrb[0].mxu0
        %v3414 = vadd.f32 0.0, %v3413
        %v3415 = vpop.f32.mrb[0].mxu0
        %v3416 = vpop.f32.mrb[0].mxu0
        %v3417 = vadd.f32 0.0, %v3416
        %v3418 = vpop.f32.mrb[0].mxu0
        %3419 = vmatprep.mubr.bf16.mxu0 0
        %3420 = vmatmul.mubr.bf16.gmra.mrb[0].mxu0 %v3357
        %v3421 = vpop.f32.mrb[0].mxu0
        %v3422 = vadd.f32 0.0, %v3421
        %v3423 = vpop.f32.mrb[0].mxu0
        %v3424 = vpop.f32.mrb[0].mxu0
        %v3425 = vadd.f32 0.0, %v3424
        %v3426 = vpop.f32.mrb[0].mxu0
        %3427 = vmatprep.mubr.bf16.mxu0 0
        %3428 = vmatmul.mubr.bf16.gmra.mrb[0].mxu0 %v3360
        %v3429 = vpop.f32.mrb[0].mxu0
        %v3430 = vadd.f32 0.0, %v3429
        %v3431 = vpop.f32.mrb[0].mxu0
        %v3432 = vpop.f32.mrb[0].mxu0
        %v3433 = vadd.f32 0.0, %v3432
        %v3434 = vpop.f32.mrb[0].mxu0
        %3435 = vmatprep.mubr.bf16.mxu0 0
        %3436 = vmatmul.mubr.bf16.gmra.mrb[0].mxu0 %v3363
        %v3437 = vpop.f32.mrb[0].mxu0
        %v3438 = vadd.f32 0.0, %v3437
        %v3439 = vpop.f32.mrb[0].mxu0
        %v3440 = vpop.f32.mrb[0].mxu0
        %v3441 = vadd.f32 0.0, %v3440
        %v3442 = vpop.f32.mrb[0].mxu0
        %3443 = vmatprep.mubr.bf16.mxu0 0
        %3444 = vmatmul.mubr.bf16.gmra.mrb[0].mxu0 %v3366
        %v3445 = vpop.f32.mrb[0].mxu0
        %v3446 = vadd.f32 0.0, %v3445
        %v3447 = vpop.f32.mrb[0].mxu0
        %v3448 = vpop.f32.mrb[0].mxu0
        %v3449 = vpop.f32.mrb[0].mxu0
        %3450 = vdwg.mxu0
        %v3451 = vadd.f32 %v3322, %v3406
        %v3452 = vadd.f32 %v3323, %v3409
        %v3453 = vadd.f32 %v3324, %v3414
        %v3454 = vadd.f32 %v3325, %v3417
        %v3455 = vadd.f32 %v3326, %v3422
        %v3456 = vadd.f32 %v3327, %v3425
        %v3457 = vadd.f32 %v3328, %v3430
        %v3458 = vadd.f32 %v3329, %v3433
        %v3459 = vadd.f32 %v3330, %v3438
        %v3460 = vadd.f32 %v3331, %v3441
        %v3461 = vadd.f32 %v3332, %v3446
        %v3462 = vld [vmem:[%s503 + $0x30] sm:$0x7]
        %s3463 = scalar_lea.vmem %s542, 36
        %v3464 = vld [vmem:[%s3463] sm:$0x3]
        %v3466 = vunpack.c.l.b16 %v3462
        %v3467 = vpack.c.b16 %v3466, %v2821
        %vm3468 = vsmask.f32 5376
        %v3470 = vshrl.u32 %v3208, 16
        %v3472 = vrot.slane %v3470, 2
        %v3473 = vshll.u32 %v3208, 16
        %v3475 = vrot.slane %v3473, 3
        %v3476 = vor.u32 %v3472, %v3475
        %v3477 = vrot.slane %v2838, 2
        %v3478 = vrot.slane %v2841, 3
        %v3479 = vor.u32 %v3477, %v3478
        %v3480 = vsel %vm3468, %v3476, %v3479
        %v3481 = vrot.slane %v2847, 2
        %v3482 = vrot.slane %v2850, 3
        %v3483 = vor.u32 %v3481, %v3482
        %v3484 = vsel %vm3468, %v3479, %v3483
        %v3485 = vrot.slane %v2856, 2
        %v3486 = vrot.slane %v2859, 3
        %v3487 = vor.u32 %v3485, %v3486
        %v3488 = vsel %vm3468, %v3483, %v3487
        %v3489 = vrot.slane %v2865, 2
        %v3490 = vrot.slane %v2868, 3
        %v3491 = vor.u32 %v3489, %v3490
        %v3492 = vsel %vm3468, %v3487, %v3491
        %v3494 = vshrl.u32 %v3467, 16
        %v3496 = vrot.slane %v3494, 2
        %v3497 = vshll.u32 %v3467, 16
        %v3499 = vrot.slane %v3497, 3
        %v3500 = vor.u32 %v3496, %v3499
        %v3501 = vsel %vm3468, %v3491, %v3500
        %v3503 = vsel %vm612, %v3480, 0
        %v3506 = vsel %vm612, %v3484, 0
        %v3509 = vsel %vm612, %v3488, 0
        %v3512 = vsel %vm612, %v3492, 0
        %v3515 = vsel %vm612, %v3501, 0
        %v3518 = vsel %vm612, %v3500, 0
        %v3521 = vsel %vm631, %v3464, 0
        %3523 = vmatprep.subr.bf16.mxu0 0
        %3524 = vmatpush1.bf16.msra.mxu0 %v3521
        %3525 = vmatprep.subr.bf16.mxu0 0
        %3526 = vmatpush1.bf16.msra.mxu0 0
        %3527 = vmatprep.subr.bf16.mxu0 0
        %3528 = vmatpush1.bf16.msra.mxu0 0
        %3529 = vmatprep.subr.bf16.mxu0 0
        %3530 = vmatpush1.bf16.msra.mxu0 0
        %3531 = vmatprep.subr.bf16.mxu0 0
        %3532 = vmatpush1.bf16.msra.mxu0 0
        %3533 = vmatprep.subr.bf16.mxu0 0
        %3534 = vmatpush1.bf16.msra.mxu0 0
        %3535 = vmatprep.subr.bf16.mxu0 0
        %3536 = vmatpush1.bf16.msra.mxu0 0
        %3537 = vmatprep.subr.bf16.mxu0 0
        %3538 = vmatpush1.bf16.msra.mxu0 0
        %3539 = vmatprep.subr.bf16.mxu0 0
        %3540 = vmatpush1.bf16.msra.mxu0 0
        %3541 = vmatprep.subr.bf16.mxu0 0
        %3542 = vmatpush1.bf16.msra.mxu0 0
        %3543 = vmatprep.subr.bf16.mxu0 0
        %3544 = vmatpush1.bf16.msra.mxu0 0
        %3545 = vmatprep.subr.bf16.mxu0 0
        %3546 = vmatpush1.bf16.msra.mxu0 0
        %3547 = vmatprep.subr.bf16.mxu0 0
        %3548 = vmatpush1.bf16.msra.mxu0 0
        %3549 = vmatprep.subr.bf16.mxu0 0
        %3550 = vmatpush1.bf16.msra.mxu0 0
        %3551 = vmatprep.subr.bf16.mxu0 0
        %3552 = vmatpush1.bf16.msra.mxu0 0
        %3553 = vmatprep.subr.bf16.mxu0 0
        %3554 = vmatpush1.bf16.msra.mxu0 0
        %3555 = vmatprep.mubr.bf16.mxu0 0
        %3556 = vmatmul.mubr.bf16.gmra.mrb[0].mxu0 %v3503
        %v3557 = vpop.f32.mrb[0].mxu0
        %v3558 = vadd.f32 0.0, %v3557
        %v3559 = vpop.f32.mrb[0].mxu0
        %v3560 = vpop.f32.mrb[0].mxu0
        %v3561 = vadd.f32 0.0, %v3560
        %v3562 = vpop.f32.mrb[0].mxu0
        %3563 = vmatprep.mubr.bf16.mxu0 0
        %3564 = vmatmul.mubr.bf16.gmra.mrb[0].mxu0 %v3506
        %v3565 = vpop.f32.mrb[0].mxu0
        %v3566 = vadd.f32 0.0, %v3565
        %v3567 = vpop.f32.mrb[0].mxu0
        %v3568 = vpop.f32.mrb[0].mxu0
        %v3569 = vadd.f32 0.0, %v3568
        %v3570 = vpop.f32.mrb[0].mxu0
        %3571 = vmatprep.mubr.bf16.mxu0 0
        %3572 = vmatmul.mubr.bf16.gmra.mrb[0].mxu0 %v3509
        %v3573 = vpop.f32.mrb[0].mxu0
        %v3574 = vadd.f32 0.0, %v3573
        %v3575 = vpop.f32.mrb[0].mxu0
        %v3576 = vpop.f32.mrb[0].mxu0
        %v3577 = vadd.f32 0.0, %v3576
        %v3578 = vpop.f32.mrb[0].mxu0
        %3579 = vmatprep.mubr.bf16.mxu0 0
        %3580 = vmatmul.mubr.bf16.gmra.mrb[0].mxu0 %v3512
        %v3581 = vpop.f32.mrb[0].mxu0
        %v3582 = vadd.f32 0.0, %v3581
        %v3583 = vpop.f32.mrb[0].mxu0
        %v3584 = vpop.f32.mrb[0].mxu0
        %v3585 = vadd.f32 0.0, %v3584
        %v3586 = vpop.f32.mrb[0].mxu0
        %3587 = vmatprep.mubr.bf16.mxu0 0
        %3588 = vmatmul.mubr.bf16.gmra.mrb[0].mxu0 %v3515
        %v3589 = vpop.f32.mrb[0].mxu0
        %v3590 = vadd.f32 0.0, %v3589
        %v3591 = vpop.f32.mrb[0].mxu0
        %v3592 = vpop.f32.mrb[0].mxu0
        %v3593 = vadd.f32 0.0, %v3592
        %v3594 = vpop.f32.mrb[0].mxu0
        %3595 = vmatprep.mubr.bf16.mxu0 0
        %3596 = vmatmul.mubr.bf16.gmra.mrb[0].mxu0 %v3518
        %v3597 = vpop.f32.mrb[0].mxu0
        %v3598 = vadd.f32 0.0, %v3597
        %v3599 = vpop.f32.mrb[0].mxu0
        %v3600 = vpop.f32.mrb[0].mxu0
        %v3601 = vpop.f32.mrb[0].mxu0
        %3602 = vdwg.mxu0
        %v3603 = vadd.f32 %v3451, %v3558
        %v3604 = vadd.f32 %v3452, %v3561
        %v3605 = vadd.f32 %v3453, %v3566
        %v3606 = vadd.f32 %v3454, %v3569
        %v3607 = vadd.f32 %v3455, %v3574
        %v3608 = vadd.f32 %v3456, %v3577
        %v3609 = vadd.f32 %v3457, %v3582
        %v3610 = vadd.f32 %v3458, %v3585
        %v3611 = vadd.f32 %v3459, %v3590
        %v3612 = vadd.f32 %v3460, %v3593
        %v3613 = vadd.f32 %v3461, %v3598
        %v3614 = vld [vmem:[%s570 + $0x30] sm:$0x7]
        %s3615 = scalar_lea.vmem %s542, 38
        %v3616 = vld [vmem:[%s3615] sm:$0x3]
        %v3618 = vunpack.c.l.b16 %v3614
        %v3619 = vpack.c.b16 %v3618, %v3030
        %v3621 = vshrl.u32 %v3338, 16
        %v3623 = vrot.slane %v3621, 2
        %v3624 = vshll.u32 %v3338, 16
        %v3626 = vrot.slane %v3624, 3
        %v3627 = vor.u32 %v3623, %v3626
        %v3628 = vrot.slane %v3047, 2
        %v3629 = vrot.slane %v3050, 3
        %v3630 = vor.u32 %v3628, %v3629
        %v3631 = vsel %vm3468, %v3627, %v3630
        %v3632 = vrot.slane %v3056, 2
        %v3633 = vrot.slane %v3059, 3
        %v3634 = vor.u32 %v3632, %v3633
        %v3635 = vsel %vm3468, %v3630, %v3634
        %v3636 = vrot.slane %v3065, 2
        %v3637 = vrot.slane %v3068, 3
        %v3638 = vor.u32 %v3636, %v3637
        %v3639 = vsel %vm3468, %v3634, %v3638
        %v3640 = vrot.slane %v3074, 2
        %v3641 = vrot.slane %v3077, 3
        %v3642 = vor.u32 %v3640, %v3641
        %v3643 = vsel %vm3468, %v3638, %v3642
        %v3645 = vshrl.u32 %v3619, 16
        %v3647 = vrot.slane %v3645, 2
        %v3648 = vshll.u32 %v3619, 16
        %v3650 = vrot.slane %v3648, 3
        %v3651 = vor.u32 %v3647, %v3650
        %v3652 = vsel %vm3468, %v3642, %v3651
        %v3654 = vsel %vm612, %v3631, 0
        %v3657 = vsel %vm612, %v3635, 0
        %v3660 = vsel %vm612, %v3639, 0
        %v3663 = vsel %vm612, %v3643, 0
        %v3666 = vsel %vm612, %v3652, 0
        %v3669 = vsel %vm612, %v3651, 0
        %v3672 = vsel %vm631, %v3616, 0
        %3674 = vmatprep.subr.bf16.mxu0 0
        %3675 = vmatpush1.bf16.msra.mxu0 %v3672
        %3676 = vmatprep.subr.bf16.mxu0 0
        %3677 = vmatpush1.bf16.msra.mxu0 0
        %3678 = vmatprep.subr.bf16.mxu0 0
        %3679 = vmatpush1.bf16.msra.mxu0 0
        %3680 = vmatprep.subr.bf16.mxu0 0
        %3681 = vmatpush1.bf16.msra.mxu0 0
        %3682 = vmatprep.subr.bf16.mxu0 0
        %3683 = vmatpush1.bf16.msra.mxu0 0
        %3684 = vmatprep.subr.bf16.mxu0 0
        %3685 = vmatpush1.bf16.msra.mxu0 0
        %3686 = vmatprep.subr.bf16.mxu0 0
        %3687 = vmatpush1.bf16.msra.mxu0 0
        %3688 = vmatprep.subr.bf16.mxu0 0
        %3689 = vmatpush1.bf16.msra.mxu0 0
        %3690 = vmatprep.subr.bf16.mxu0 0
        %3691 = vmatpush1.bf16.msra.mxu0 0
        %3692 = vmatprep.subr.bf16.mxu0 0
        %3693 = vmatpush1.bf16.msra.mxu0 0
        %3694 = vmatprep.subr.bf16.mxu0 0
        %3695 = vmatpush1.bf16.msra.mxu0 0
        %3696 = vmatprep.subr.bf16.mxu0 0
        %3697 = vmatpush1.bf16.msra.mxu0 0
        %3698 = vmatprep.subr.bf16.mxu0 0
        %3699 = vmatpush1.bf16.msra.mxu0 0
        %3700 = vmatprep.subr.bf16.mxu0 0
        %3701 = vmatpush1.bf16.msra.mxu0 0
        %3702 = vmatprep.subr.bf16.mxu0 0
        %3703 = vmatpush1.bf16.msra.mxu0 0
        %3704 = vmatprep.subr.bf16.mxu0 0
        %3705 = vmatpush1.bf16.msra.mxu0 0
        %3706 = vmatprep.mubr.bf16.mxu0 0
        %3707 = vmatmul.mubr.bf16.gmra.mrb[0].mxu0 %v3654
        %v3708 = vpop.f32.mrb[0].mxu0
        %v3709 = vadd.f32 0.0, %v3708
        %v3710 = vpop.f32.mrb[0].mxu0
        %v3711 = vpop.f32.mrb[0].mxu0
        %v3712 = vadd.f32 0.0, %v3711
        %v3713 = vpop.f32.mrb[0].mxu0
        %3714 = vmatprep.mubr.bf16.mxu0 0
        %3715 = vmatmul.mubr.bf16.gmra.mrb[0].mxu0 %v3657
        %v3716 = vpop.f32.mrb[0].mxu0
        %v3717 = vadd.f32 0.0, %v3716
        %v3718 = vpop.f32.mrb[0].mxu0
        %v3719 = vpop.f32.mrb[0].mxu0
        %v3720 = vadd.f32 0.0, %v3719
        %v3721 = vpop.f32.mrb[0].mxu0
        %3722 = vmatprep.mubr.bf16.mxu0 0
        %3723 = vmatmul.mubr.bf16.gmra.mrb[0].mxu0 %v3660
        %v3724 = vpop.f32.mrb[0].mxu0
        %v3725 = vadd.f32 0.0, %v3724
        %v3726 = vpop.f32.mrb[0].mxu0
        %v3727 = vpop.f32.mrb[0].mxu0
        %v3728 = vadd.f32 0.0, %v3727
        %v3729 = vpop.f32.mrb[0].mxu0
        %3730 = vmatprep.mubr.bf16.mxu0 0
        %3731 = vmatmul.mubr.bf16.gmra.mrb[0].mxu0 %v3663
        %v3732 = vpop.f32.mrb[0].mxu0
        %v3733 = vadd.f32 0.0, %v3732
        %v3734 = vpop.f32.mrb[0].mxu0
        %v3735 = vpop.f32.mrb[0].mxu0
        %v3736 = vadd.f32 0.0, %v3735
        %v3737 = vpop.f32.mrb[0].mxu0
        %3738 = vmatprep.mubr.bf16.mxu0 0
        %3739 = vmatmul.mubr.bf16.gmra.mrb[0].mxu0 %v3666
        %v3740 = vpop.f32.mrb[0].mxu0
        %v3741 = vadd.f32 0.0, %v3740
        %v3742 = vpop.f32.mrb[0].mxu0
        %v3743 = vpop.f32.mrb[0].mxu0
        %v3744 = vadd.f32 0.0, %v3743
        %v3745 = vpop.f32.mrb[0].mxu0
        %3746 = vmatprep.mubr.bf16.mxu0 0
        %3747 = vmatmul.mubr.bf16.gmra.mrb[0].mxu0 %v3669
        %v3748 = vpop.f32.mrb[0].mxu0
        %v3749 = vadd.f32 0.0, %v3748
        %v3750 = vpop.f32.mrb[0].mxu0
        %v3751 = vpop.f32.mrb[0].mxu0
        %v3752 = vpop.f32.mrb[0].mxu0
        %3753 = vdwg.mxu0
        %v3754 = vadd.f32 %v3603, %v3709
        %v3755 = vadd.f32 %v3604, %v3712
        %v3756 = vadd.f32 %v3605, %v3717
        %v3757 = vadd.f32 %v3606, %v3720
        %v3758 = vadd.f32 %v3607, %v3725
        %v3759 = vadd.f32 %v3608, %v3728
        %v3760 = vadd.f32 %v3609, %v3733
        %v3761 = vadd.f32 %v3610, %v3736
        %v3762 = vadd.f32 %v3611, %v3741
        %v3763 = vadd.f32 %v3612, %v3744
        %v3764 = vadd.f32 %v3613, %v3749
        %v3765 = vld [vmem:[%s503 + $0x4] sm:$0x8]
        %s3766 = scalar_lea.vmem %s542, 40
        %v3767 = vld [vmem:[%s3766] sm:$0x3]
        %v3769 = vunpack.c.l.b16 %v3765
        %v3770 = vpack.c.b16 %v2812, %v3769
        %vm3771 = vcmask 1044480
        %v3772 = vrot.slane %v3770, 3
        %v3773 = vrot.slane %v2824, 3
        %v3774 = vsel %vm3771, %v3772, %v3773
        %v3775 = vrot.slane %v2825, 3
        %v3776 = vsel %vm3771, %v3773, %v3775
        %v3777 = vrot.slane %v2826, 3
        %v3778 = vsel %vm3771, %v3775, %v3777
        %v3779 = vrot.slane %v2827, 3
        %v3780 = vsel %vm3771, %v3777, %v3779
        %v3781 = vrot.slane %v3467, 3
        %v3782 = vsel %vm3771, %v3779, %v3781
        %v3784 = vsel %vm612, %v3774, 0
        %v3787 = vsel %vm612, %v3776, 0
        %v3790 = vsel %vm612, %v3778, 0
        %v3793 = vsel %vm612, %v3780, 0
        %v3796 = vsel %vm612, %v3782, 0
        %v3799 = vsel %vm612, %v3781, 0
        %v3802 = vsel %vm631, %v3767, 0
        %3804 = vmatprep.subr.bf16.mxu0 0
        %3805 = vmatpush1.bf16.msra.mxu0 %v3802
        %3806 = vmatprep.subr.bf16.mxu0 0
        %3807 = vmatpush1.bf16.msra.mxu0 0
        %3808 = vmatprep.subr.bf16.mxu0 0
        %3809 = vmatpush1.bf16.msra.mxu0 0
        %3810 = vmatprep.subr.bf16.mxu0 0
        %3811 = vmatpush1.bf16.msra.mxu0 0
        %3812 = vmatprep.subr.bf16.mxu0 0
        %3813 = vmatpush1.bf16.msra.mxu0 0
        %3814 = vmatprep.subr.bf16.mxu0 0
        %3815 = vmatpush1.bf16.msra.mxu0 0
        %3816 = vmatprep.subr.bf16.mxu0 0
        %3817 = vmatpush1.bf16.msra.mxu0 0
        %3818 = vmatprep.subr.bf16.mxu0 0
        %3819 = vmatpush1.bf16.msra.mxu0 0
        %3820 = vmatprep.subr.bf16.mxu0 0
        %3821 = vmatpush1.bf16.msra.mxu0 0
        %3822 = vmatprep.subr.bf16.mxu0 0
        %3823 = vmatpush1.bf16.msra.mxu0 0
        %3824 = vmatprep.subr.bf16.mxu0 0
        %3825 = vmatpush1.bf16.msra.mxu0 0
        %3826 = vmatprep.subr.bf16.mxu0 0
        %3827 = vmatpush1.bf16.msra.mxu0 0
        %3828 = vmatprep.subr.bf16.mxu0 0
        %3829 = vmatpush1.bf16.msra.mxu0 0
        %3830 = vmatprep.subr.bf16.mxu0 0
        %3831 = vmatpush1.bf16.msra.mxu0 0
        %3832 = vmatprep.subr.bf16.mxu0 0
        %3833 = vmatpush1.bf16.msra.mxu0 0
        %3834 = vmatprep.subr.bf16.mxu0 0
        %3835 = vmatpush1.bf16.msra.mxu0 0
        %3836 = vmatprep.mubr.bf16.mxu0 0
        %3837 = vmatmul.mubr.bf16.gmra.mrb[0].mxu0 %v3784
        %v3838 = vpop.f32.mrb[0].mxu0
        %v3839 = vadd.f32 0.0, %v3838
        %v3840 = vpop.f32.mrb[0].mxu0
        %v3841 = vpop.f32.mrb[0].mxu0
        %v3842 = vadd.f32 0.0, %v3841
        %v3843 = vpop.f32.mrb[0].mxu0
        %3844 = vmatprep.mubr.bf16.mxu0 0
        %3845 = vmatmul.mubr.bf16.gmra.mrb[0].mxu0 %v3787
        %v3846 = vpop.f32.mrb[0].mxu0
        %v3847 = vadd.f32 0.0, %v3846
        %v3848 = vpop.f32.mrb[0].mxu0
        %v3849 = vpop.f32.mrb[0].mxu0
        %v3850 = vadd.f32 0.0, %v3849
        %v3851 = vpop.f32.mrb[0].mxu0
        %3852 = vmatprep.mubr.bf16.mxu0 0
        %3853 = vmatmul.mubr.bf16.gmra.mrb[0].mxu0 %v3790
        %v3854 = vpop.f32.mrb[0].mxu0
        %v3855 = vadd.f32 0.0, %v3854
        %v3856 = vpop.f32.mrb[0].mxu0
        %v3857 = vpop.f32.mrb[0].mxu0
        %v3858 = vadd.f32 0.0, %v3857
        %v3859 = vpop.f32.mrb[0].mxu0
        %3860 = vmatprep.mubr.bf16.mxu0 0
        %3861 = vmatmul.mubr.bf16.gmra.mrb[0].mxu0 %v3793
        %v3862 = vpop.f32.mrb[0].mxu0
        %v3863 = vadd.f32 0.0, %v3862
        %v3864 = vpop.f32.mrb[0].mxu0
        %v3865 = vpop.f32.mrb[0].mxu0
        %v3866 = vadd.f32 0.0, %v3865
        %v3867 = vpop.f32.mrb[0].mxu0
        %3868 = vmatprep.mubr.bf16.mxu0 0
        %3869 = vmatmul.mubr.bf16.gmra.mrb[0].mxu0 %v3796
        %v3870 = vpop.f32.mrb[0].mxu0
        %v3871 = vadd.f32 0.0, %v3870
        %v3872 = vpop.f32.mrb[0].mxu0
        %v3873 = vpop.f32.mrb[0].mxu0
        %v3874 = vadd.f32 0.0, %v3873
        %v3875 = vpop.f32.mrb[0].mxu0
        %3876 = vmatprep.mubr.bf16.mxu0 0
        %3877 = vmatmul.mubr.bf16.gmra.mrb[0].mxu0 %v3799
        %v3878 = vpop.f32.mrb[0].mxu0
        %v3879 = vadd.f32 0.0, %v3878
        %v3880 = vpop.f32.mrb[0].mxu0
        %v3881 = vpop.f32.mrb[0].mxu0
        %v3882 = vpop.f32.mrb[0].mxu0
        %3883 = vdwg.mxu0
        %v3884 = vadd.f32 %v3754, %v3839
        %v3885 = vadd.f32 %v3755, %v3842
        %v3886 = vadd.f32 %v3756, %v3847
        %v3887 = vadd.f32 %v3757, %v3850
        %v3888 = vadd.f32 %v3758, %v3855
        %v3889 = vadd.f32 %v3759, %v3858
        %v3890 = vadd.f32 %v3760, %v3863
        %v3891 = vadd.f32 %v3761, %v3866
        %v3892 = vadd.f32 %v3762, %v3871
        %v3893 = vadd.f32 %v3763, %v3874
        %v3894 = vadd.f32 %v3764, %v3879
        %v3895 = vld [vmem:[%s1662 + $0x4] sm:$0xe]
        %v3896 = vld [vmem:[%s1662 + $0x8] sm:$0xf]
        %v3897 = vld [vmem:[%s1662 + $0xc] sm:$0xf]
        %v3898 = vld [vmem:[%s1662 + $0x10] sm:$0xf]
        %v3899 = vld [vmem:[%s1662 + $0x14] sm:$0xf]
        %v3900 = vld [vmem:[%s1662 + $0x18] sm:$0xf]
        %v3901 = vld [vmem:[%s1662 + $0x1c] sm:$0xf]
        %v3902 = vld [vmem:[%s1662 + $0x20] sm:$0xf]
        %v3903 = vld [vmem:[%s1662 + $0x24] sm:$0xf]
        %v3904 = vld [vmem:[%s1662 + $0x28] sm:$0xf]
        %v3905 = vld [vmem:[%s1662 + $0x2c] sm:$0xf]
        %v3906 = vld [vmem:[%s1662 + $0x30] sm:$0x3]
        %s3907 = scalar_lea.vmem %s542, 42
        %v3908 = vld [vmem:[%s3907] sm:$0x3]
        %v3921 = vunpack.c.l.b16 %v3895
        %v3922 = vunpack.c.l.b16 %v3896
        %v3923 = vunpack.c.l.b16 %v3897
        %v3924 = vunpack.c.l.b16 %v3898
        %v3925 = vunpack.c.l.b16 %v3899
        %v3926 = vunpack.c.l.b16 %v3900
        %v3927 = vunpack.c.l.b16 %v3901
        %v3928 = vunpack.c.l.b16 %v3902
        %v3929 = vunpack.c.l.b16 %v3903
        %v3930 = vunpack.c.l.b16 %v3904
        %v3931 = vunpack.c.l.b16 %v3905
        %v3932 = vunpack.c.l.b16 %v3906
        %v3933 = vpack.c.b16 %v3922, %v3921
        %v3934 = vpack.c.b16 %v3924, %v3923
        %v3935 = vpack.c.b16 %v3926, %v3925
        %v3936 = vpack.c.b16 %v3928, %v3927
        %v3937 = vpack.c.b16 %v3930, %v3929
        %v3938 = vpack.c.b16 %v3932, %v3931
        %v3940 = vshrl.u32 %v3933, 16
        %v3942 = vrot.slane %v3940, 1
        %v3943 = vshll.u32 %v3933, 16
        %v3945 = vrot.slane %v3943, 2
        %v3946 = vor.u32 %v3942, %v3945
        %v3948 = vshrl.u32 %v3934, 16
        %v3950 = vrot.slane %v3948, 1
        %v3951 = vshll.u32 %v3934, 16
        %v3953 = vrot.slane %v3951, 2
        %v3954 = vor.u32 %v3950, %v3953
        %v3955 = vsel %vm1516, %v3946, %v3954
        %v3957 = vshrl.u32 %v3935, 16
        %v3959 = vrot.slane %v3957, 1
        %v3960 = vshll.u32 %v3935, 16
        %v3962 = vrot.slane %v3960, 2
        %v3963 = vor.u32 %v3959, %v3962
        %v3964 = vsel %vm1516, %v3954, %v3963
        %v3966 = vshrl.u32 %v3936, 16
        %v3968 = vrot.slane %v3966, 1
        %v3969 = vshll.u32 %v3936, 16
        %v3971 = vrot.slane %v3969, 2
        %v3972 = vor.u32 %v3968, %v3971
        %v3973 = vsel %vm1516, %v3963, %v3972
        %v3975 = vshrl.u32 %v3937, 16
        %v3977 = vrot.slane %v3975, 1
        %v3978 = vshll.u32 %v3937, 16
        %v3980 = vrot.slane %v3978, 2
        %v3981 = vor.u32 %v3977, %v3980
        %v3982 = vsel %vm1516, %v3972, %v3981
        %v3984 = vshrl.u32 %v3938, 16
        %v3986 = vrot.slane %v3984, 1
        %v3987 = vshll.u32 %v3938, 16
        %v3989 = vrot.slane %v3987, 2
        %v3990 = vor.u32 %v3986, %v3989
        %v3991 = vsel %vm1516, %v3981, %v3990
        %v3993 = vsel %vm612, %v3955, 0
        %v3996 = vsel %vm612, %v3964, 0
        %v3999 = vsel %vm612, %v3973, 0
        %v4002 = vsel %vm612, %v3982, 0
        %v4005 = vsel %vm612, %v3991, 0
        %v4008 = vsel %vm612, %v3990, 0
        %v4011 = vsel %vm631, %v3908, 0
        %4013 = vmatprep.subr.bf16.mxu0 0
        %4014 = vmatpush1.bf16.msra.mxu0 %v4011
        %4015 = vmatprep.subr.bf16.mxu0 0
        %4016 = vmatpush1.bf16.msra.mxu0 0
        %4017 = vmatprep.subr.bf16.mxu0 0
        %4018 = vmatpush1.bf16.msra.mxu0 0
        %4019 = vmatprep.subr.bf16.mxu0 0
        %4020 = vmatpush1.bf16.msra.mxu0 0
        %4021 = vmatprep.subr.bf16.mxu0 0
        %4022 = vmatpush1.bf16.msra.mxu0 0
        %4023 = vmatprep.subr.bf16.mxu0 0
        %4024 = vmatpush1.bf16.msra.mxu0 0
        %4025 = vmatprep.subr.bf16.mxu0 0
        %4026 = vmatpush1.bf16.msra.mxu0 0
        %4027 = vmatprep.subr.bf16.mxu0 0
        %4028 = vmatpush1.bf16.msra.mxu0 0
        %4029 = vmatprep.subr.bf16.mxu0 0
        %4030 = vmatpush1.bf16.msra.mxu0 0
        %4031 = vmatprep.subr.bf16.mxu0 0
        %4032 = vmatpush1.bf16.msra.mxu0 0
        %4033 = vmatprep.subr.bf16.mxu0 0
        %4034 = vmatpush1.bf16.msra.mxu0 0
        %4035 = vmatprep.subr.bf16.mxu0 0
        %4036 = vmatpush1.bf16.msra.mxu0 0
        %4037 = vmatprep.subr.bf16.mxu0 0
        %4038 = vmatpush1.bf16.msra.mxu0 0
        %4039 = vmatprep.subr.bf16.mxu0 0
        %4040 = vmatpush1.bf16.msra.mxu0 0
        %4041 = vmatprep.subr.bf16.mxu0 0
        %4042 = vmatpush1.bf16.msra.mxu0 0
        %4043 = vmatprep.subr.bf16.mxu0 0
        %4044 = vmatpush1.bf16.msra.mxu0 0
        %4045 = vmatprep.mubr.bf16.mxu0 0
        %4046 = vmatmul.mubr.bf16.gmra.mrb[0].mxu0 %v3993
        %v4047 = vpop.f32.mrb[0].mxu0
        %v4048 = vadd.f32 0.0, %v4047
        %v4049 = vpop.f32.mrb[0].mxu0
        %v4050 = vpop.f32.mrb[0].mxu0
        %v4051 = vadd.f32 0.0, %v4050
        %v4052 = vpop.f32.mrb[0].mxu0
        %4053 = vmatprep.mubr.bf16.mxu0 0
        %4054 = vmatmul.mubr.bf16.gmra.mrb[0].mxu0 %v3996
        %v4055 = vpop.f32.mrb[0].mxu0
        %v4056 = vadd.f32 0.0, %v4055
        %v4057 = vpop.f32.mrb[0].mxu0
        %v4058 = vpop.f32.mrb[0].mxu0
        %v4059 = vadd.f32 0.0, %v4058
        %v4060 = vpop.f32.mrb[0].mxu0
        %4061 = vmatprep.mubr.bf16.mxu0 0
        %4062 = vmatmul.mubr.bf16.gmra.mrb[0].mxu0 %v3999
        %v4063 = vpop.f32.mrb[0].mxu0
        %v4064 = vadd.f32 0.0, %v4063
        %v4065 = vpop.f32.mrb[0].mxu0
        %v4066 = vpop.f32.mrb[0].mxu0
        %v4067 = vadd.f32 0.0, %v4066
        %v4068 = vpop.f32.mrb[0].mxu0
        %4069 = vmatprep.mubr.bf16.mxu0 0
        %4070 = vmatmul.mubr.bf16.gmra.mrb[0].mxu0 %v4002
        %v4071 = vpop.f32.mrb[0].mxu0
        %v4072 = vadd.f32 0.0, %v4071
        %v4073 = vpop.f32.mrb[0].mxu0
        %v4074 = vpop.f32.mrb[0].mxu0
        %v4075 = vadd.f32 0.0, %v4074
        %v4076 = vpop.f32.mrb[0].mxu0
        %4077 = vmatprep.mubr.bf16.mxu0 0
        %4078 = vmatmul.mubr.bf16.gmra.mrb[0].mxu0 %v4005
        %v4079 = vpop.f32.mrb[0].mxu0
        %v4080 = vadd.f32 0.0, %v4079
        %v4081 = vpop.f32.mrb[0].mxu0
        %v4082 = vpop.f32.mrb[0].mxu0
        %v4083 = vadd.f32 0.0, %v4082
        %v4084 = vpop.f32.mrb[0].mxu0
        %4085 = vmatprep.mubr.bf16.mxu0 0
        %4086 = vmatmul.mubr.bf16.gmra.mrb[0].mxu0 %v4008
        %v4087 = vpop.f32.mrb[0].mxu0
        %v4088 = vadd.f32 0.0, %v4087
        %v4089 = vpop.f32.mrb[0].mxu0
        %v4090 = vpop.f32.mrb[0].mxu0
        %v4091 = vpop.f32.mrb[0].mxu0
        %4092 = vdwg.mxu0
        %v4093 = vadd.f32 %v3884, %v4048
        %v4094 = vadd.f32 %v3885, %v4051
        %v4095 = vadd.f32 %v3886, %v4056
        %v4096 = vadd.f32 %v3887, %v4059
        %v4097 = vadd.f32 %v3888, %v4064
        %v4098 = vadd.f32 %v3889, %v4067
        %v4099 = vadd.f32 %v3890, %v4072
        %v4100 = vadd.f32 %v3891, %v4075
        %v4101 = vadd.f32 %v3892, %v4080
        %v4102 = vadd.f32 %v3893, %v4083
        %v4103 = vadd.f32 %v3894, %v4088
        %v4104 = vld [vmem:[%s1816 + $0x4] sm:$0xe]
        %v4105 = vld [vmem:[%s1816 + $0x8] sm:$0xf]
        %v4106 = vld [vmem:[%s1816 + $0xc] sm:$0xf]
        %v4107 = vld [vmem:[%s1816 + $0x10] sm:$0xf]
        %v4108 = vld [vmem:[%s1816 + $0x14] sm:$0xf]
        %v4109 = vld [vmem:[%s1816 + $0x18] sm:$0xf]
        %v4110 = vld [vmem:[%s1816 + $0x1c] sm:$0xf]
        %v4111 = vld [vmem:[%s1816 + $0x20] sm:$0xf]
        %v4112 = vld [vmem:[%s1816 + $0x24] sm:$0xf]
        %v4113 = vld [vmem:[%s1816 + $0x28] sm:$0xf]
        %v4114 = vld [vmem:[%s1816 + $0x2c] sm:$0xf]
        %v4115 = vld [vmem:[%s1816 + $0x30] sm:$0x3]
        %s4116 = scalar_lea.vmem %s542, 44
        %v4117 = vld [vmem:[%s4116] sm:$0x3]
        %v4130 = vunpack.c.l.b16 %v4104
        %v4131 = vunpack.c.l.b16 %v4105
        %v4132 = vunpack.c.l.b16 %v4106
        %v4133 = vunpack.c.l.b16 %v4107
        %v4134 = vunpack.c.l.b16 %v4108
        %v4135 = vunpack.c.l.b16 %v4109
        %v4136 = vunpack.c.l.b16 %v4110
        %v4137 = vunpack.c.l.b16 %v4111
        %v4138 = vunpack.c.l.b16 %v4112
        %v4139 = vunpack.c.l.b16 %v4113
        %v4140 = vunpack.c.l.b16 %v4114
        %v4141 = vunpack.c.l.b16 %v4115
        %v4142 = vpack.c.b16 %v4131, %v4130
        %v4143 = vpack.c.b16 %v4133, %v4132
        %v4144 = vpack.c.b16 %v4135, %v4134
        %v4145 = vpack.c.b16 %v4137, %v4136
        %v4146 = vpack.c.b16 %v4139, %v4138
        %v4147 = vpack.c.b16 %v4141, %v4140
        %v4149 = vshrl.u32 %v4142, 16
        %v4151 = vrot.slane %v4149, 1
        %v4152 = vshll.u32 %v4142, 16
        %v4154 = vrot.slane %v4152, 2
        %v4155 = vor.u32 %v4151, %v4154
        %v4157 = vshrl.u32 %v4143, 16
        %v4159 = vrot.slane %v4157, 1
        %v4160 = vshll.u32 %v4143, 16
        %v4162 = vrot.slane %v4160, 2
        %v4163 = vor.u32 %v4159, %v4162
        %v4164 = vsel %vm1516, %v4155, %v4163
        %v4166 = vshrl.u32 %v4144, 16
        %v4168 = vrot.slane %v4166, 1
        %v4169 = vshll.u32 %v4144, 16
        %v4171 = vrot.slane %v4169, 2
        %v4172 = vor.u32 %v4168, %v4171
        %v4173 = vsel %vm1516, %v4163, %v4172
        %v4175 = vshrl.u32 %v4145, 16
        %v4177 = vrot.slane %v4175, 1
        %v4178 = vshll.u32 %v4145, 16
        %v4180 = vrot.slane %v4178, 2
        %v4181 = vor.u32 %v4177, %v4180
        %v4182 = vsel %vm1516, %v4172, %v4181
        %v4184 = vshrl.u32 %v4146, 16
        %v4186 = vrot.slane %v4184, 1
        %v4187 = vshll.u32 %v4146, 16
        %v4189 = vrot.slane %v4187, 2
        %v4190 = vor.u32 %v4186, %v4189
        %v4191 = vsel %vm1516, %v4181, %v4190
        %v4193 = vshrl.u32 %v4147, 16
        %v4195 = vrot.slane %v4193, 1
        %v4196 = vshll.u32 %v4147, 16
        %v4198 = vrot.slane %v4196, 2
        %v4199 = vor.u32 %v4195, %v4198
        %v4200 = vsel %vm1516, %v4190, %v4199
        %v4202 = vsel %vm612, %v4164, 0
        %v4205 = vsel %vm612, %v4173, 0
        %v4208 = vsel %vm612, %v4182, 0
        %v4211 = vsel %vm612, %v4191, 0
        %v4214 = vsel %vm612, %v4200, 0
        %v4217 = vsel %vm612, %v4199, 0
        %v4220 = vsel %vm631, %v4117, 0
        %4222 = vmatprep.subr.bf16.mxu0 0
        %4223 = vmatpush1.bf16.msra.mxu0 %v4220
        %4224 = vmatprep.subr.bf16.mxu0 0
        %4225 = vmatpush1.bf16.msra.mxu0 0
        %4226 = vmatprep.subr.bf16.mxu0 0
        %4227 = vmatpush1.bf16.msra.mxu0 0
        %4228 = vmatprep.subr.bf16.mxu0 0
        %4229 = vmatpush1.bf16.msra.mxu0 0
        %4230 = vmatprep.subr.bf16.mxu0 0
        %4231 = vmatpush1.bf16.msra.mxu0 0
        %4232 = vmatprep.subr.bf16.mxu0 0
        %4233 = vmatpush1.bf16.msra.mxu0 0
        %4234 = vmatprep.subr.bf16.mxu0 0
        %4235 = vmatpush1.bf16.msra.mxu0 0
        %4236 = vmatprep.subr.bf16.mxu0 0
        %4237 = vmatpush1.bf16.msra.mxu0 0
        %4238 = vmatprep.subr.bf16.mxu0 0
        %4239 = vmatpush1.bf16.msra.mxu0 0
        %4240 = vmatprep.subr.bf16.mxu0 0
        %4241 = vmatpush1.bf16.msra.mxu0 0
        %4242 = vmatprep.subr.bf16.mxu0 0
        %4243 = vmatpush1.bf16.msra.mxu0 0
        %4244 = vmatprep.subr.bf16.mxu0 0
        %4245 = vmatpush1.bf16.msra.mxu0 0
        %4246 = vmatprep.subr.bf16.mxu0 0
        %4247 = vmatpush1.bf16.msra.mxu0 0
        %4248 = vmatprep.subr.bf16.mxu0 0
        %4249 = vmatpush1.bf16.msra.mxu0 0
        %4250 = vmatprep.subr.bf16.mxu0 0
        %4251 = vmatpush1.bf16.msra.mxu0 0
        %4252 = vmatprep.subr.bf16.mxu0 0
        %4253 = vmatpush1.bf16.msra.mxu0 0
        %4254 = vmatprep.mubr.bf16.mxu0 0
        %4255 = vmatmul.mubr.bf16.gmra.mrb[0].mxu0 %v4202
        %v4256 = vpop.f32.mrb[0].mxu0
        %v4257 = vadd.f32 0.0, %v4256
        %v4258 = vpop.f32.mrb[0].mxu0
        %v4259 = vpop.f32.mrb[0].mxu0
        %v4260 = vadd.f32 0.0, %v4259
        %v4261 = vpop.f32.mrb[0].mxu0
        %4262 = vmatprep.mubr.bf16.mxu0 0
        %4263 = vmatmul.mubr.bf16.gmra.mrb[0].mxu0 %v4205
        %v4264 = vpop.f32.mrb[0].mxu0
        %v4265 = vadd.f32 0.0, %v4264
        %v4266 = vpop.f32.mrb[0].mxu0
        %v4267 = vpop.f32.mrb[0].mxu0
        %v4268 = vadd.f32 0.0, %v4267
        %v4269 = vpop.f32.mrb[0].mxu0
        %4270 = vmatprep.mubr.bf16.mxu0 0
        %4271 = vmatmul.mubr.bf16.gmra.mrb[0].mxu0 %v4208
        %v4272 = vpop.f32.mrb[0].mxu0
        %v4273 = vadd.f32 0.0, %v4272
        %v4274 = vpop.f32.mrb[0].mxu0
        %v4275 = vpop.f32.mrb[0].mxu0
        %v4276 = vadd.f32 0.0, %v4275
        %v4277 = vpop.f32.mrb[0].mxu0
        %4278 = vmatprep.mubr.bf16.mxu0 0
        %4279 = vmatmul.mubr.bf16.gmra.mrb[0].mxu0 %v4211
        %v4280 = vpop.f32.mrb[0].mxu0
        %v4281 = vadd.f32 0.0, %v4280
        %v4282 = vpop.f32.mrb[0].mxu0
        %v4283 = vpop.f32.mrb[0].mxu0
        %v4284 = vadd.f32 0.0, %v4283
        %v4285 = vpop.f32.mrb[0].mxu0
        %4286 = vmatprep.mubr.bf16.mxu0 0
        %4287 = vmatmul.mubr.bf16.gmra.mrb[0].mxu0 %v4214
        %v4288 = vpop.f32.mrb[0].mxu0
        %v4289 = vadd.f32 0.0, %v4288
        %v4290 = vpop.f32.mrb[0].mxu0
        %v4291 = vpop.f32.mrb[0].mxu0
        %v4292 = vadd.f32 0.0, %v4291
        %v4293 = vpop.f32.mrb[0].mxu0
        %4294 = vmatprep.mubr.bf16.mxu0 0
        %4295 = vmatmul.mubr.bf16.gmra.mrb[0].mxu0 %v4217
        %v4296 = vpop.f32.mrb[0].mxu0
        %v4297 = vadd.f32 0.0, %v4296
        %v4298 = vpop.f32.mrb[0].mxu0
        %v4299 = vpop.f32.mrb[0].mxu0
        %v4300 = vpop.f32.mrb[0].mxu0
        %4301 = vdwg.mxu0
        %v4302 = vadd.f32 %v4093, %v4257
        %v4303 = vadd.f32 %v4094, %v4260
        %v4304 = vadd.f32 %v4095, %v4265
        %v4305 = vadd.f32 %v4096, %v4268
        %v4306 = vadd.f32 %v4097, %v4273
        %v4307 = vadd.f32 %v4098, %v4276
        %v4308 = vadd.f32 %v4099, %v4281
        %v4309 = vadd.f32 %v4100, %v4284
        %v4310 = vadd.f32 %v4101, %v4289
        %v4311 = vadd.f32 %v4102, %v4292
        %v4312 = vadd.f32 %v4103, %v4297
        %v4313 = vld [vmem:[%s1662 + $0x4] sm:$0xc]
        %s4314 = scalar_lea.vmem %s542, 46
        %v4315 = vld [vmem:[%s4314] sm:$0x3]
        %v4317 = vunpack.c.l.b16 %v4313
        %v4318 = vpack.c.b16 %v3922, %v4317
        %v4319 = vrot.slane %v4318, 2
        %v4320 = vrot.slane %v3934, 2
        %v4321 = vsel %vm3209, %v4319, %v4320
        %v4322 = vrot.slane %v3935, 2
        %v4323 = vsel %vm3209, %v4320, %v4322
        %v4324 = vrot.slane %v3936, 2
        %v4325 = vsel %vm3209, %v4322, %v4324
        %v4326 = vrot.slane %v3937, 2
        %v4327 = vsel %vm3209, %v4324, %v4326
        %v4328 = vrot.slane %v3938, 2
        %v4329 = vsel %vm3209, %v4326, %v4328
        %v4331 = vsel %vm612, %v4321, 0
        %v4334 = vsel %vm612, %v4323, 0
        %v4337 = vsel %vm612, %v4325, 0
        %v4340 = vsel %vm612, %v4327, 0
        %v4343 = vsel %vm612, %v4329, 0
        %v4346 = vsel %vm612, %v4328, 0
        %v4349 = vsel %vm631, %v4315, 0
        %4351 = vmatprep.subr.bf16.mxu0 0
        %4352 = vmatpush1.bf16.msra.mxu0 %v4349
        %4353 = vmatprep.subr.bf16.mxu0 0
        %4354 = vmatpush1.bf16.msra.mxu0 0
        %4355 = vmatprep.subr.bf16.mxu0 0
        %4356 = vmatpush1.bf16.msra.mxu0 0
        %4357 = vmatprep.subr.bf16.mxu0 0
        %4358 = vmatpush1.bf16.msra.mxu0 0
        %4359 = vmatprep.subr.bf16.mxu0 0
        %4360 = vmatpush1.bf16.msra.mxu0 0
        %4361 = vmatprep.subr.bf16.mxu0 0
        %4362 = vmatpush1.bf16.msra.mxu0 0
        %4363 = vmatprep.subr.bf16.mxu0 0
        %4364 = vmatpush1.bf16.msra.mxu0 0
        %4365 = vmatprep.subr.bf16.mxu0 0
        %4366 = vmatpush1.bf16.msra.mxu0 0
        %4367 = vmatprep.subr.bf16.mxu0 0
        %4368 = vmatpush1.bf16.msra.mxu0 0
        %4369 = vmatprep.subr.bf16.mxu0 0
        %4370 = vmatpush1.bf16.msra.mxu0 0
        %4371 = vmatprep.subr.bf16.mxu0 0
        %4372 = vmatpush1.bf16.msra.mxu0 0
        %4373 = vmatprep.subr.bf16.mxu0 0
        %4374 = vmatpush1.bf16.msra.mxu0 0
        %4375 = vmatprep.subr.bf16.mxu0 0
        %4376 = vmatpush1.bf16.msra.mxu0 0
        %4377 = vmatprep.subr.bf16.mxu0 0
        %4378 = vmatpush1.bf16.msra.mxu0 0
        %4379 = vmatprep.subr.bf16.mxu0 0
        %4380 = vmatpush1.bf16.msra.mxu0 0
        %4381 = vmatprep.subr.bf16.mxu0 0
        %4382 = vmatpush1.bf16.msra.mxu0 0
        %4383 = vmatprep.mubr.bf16.mxu0 0
        %4384 = vmatmul.mubr.bf16.gmra.mrb[0].mxu0 %v4331
        %v4385 = vpop.f32.mrb[0].mxu0
        %v4386 = vadd.f32 0.0, %v4385
        %v4387 = vpop.f32.mrb[0].mxu0
        %v4388 = vpop.f32.mrb[0].mxu0
        %v4389 = vadd.f32 0.0, %v4388
        %v4390 = vpop.f32.mrb[0].mxu0
        %4391 = vmatprep.mubr.bf16.mxu0 0
        %4392 = vmatmul.mubr.bf16.gmra.mrb[0].mxu0 %v4334
        %v4393 = vpop.f32.mrb[0].mxu0
        %v4394 = vadd.f32 0.0, %v4393
        %v4395 = vpop.f32.mrb[0].mxu0
        %v4396 = vpop.f32.mrb[0].mxu0
        %v4397 = vadd.f32 0.0, %v4396
        %v4398 = vpop.f32.mrb[0].mxu0
        %4399 = vmatprep.mubr.bf16.mxu0 0
        %4400 = vmatmul.mubr.bf16.gmra.mrb[0].mxu0 %v4337
        %v4401 = vpop.f32.mrb[0].mxu0
        %v4402 = vadd.f32 0.0, %v4401
        %v4403 = vpop.f32.mrb[0].mxu0
        %v4404 = vpop.f32.mrb[0].mxu0
        %v4405 = vadd.f32 0.0, %v4404
        %v4406 = vpop.f32.mrb[0].mxu0
        %4407 = vmatprep.mubr.bf16.mxu0 0
        %4408 = vmatmul.mubr.bf16.gmra.mrb[0].mxu0 %v4340
        %v4409 = vpop.f32.mrb[0].mxu0
        %v4410 = vadd.f32 0.0, %v4409
        %v4411 = vpop.f32.mrb[0].mxu0
        %v4412 = vpop.f32.mrb[0].mxu0
        %v4413 = vadd.f32 0.0, %v4412
        %v4414 = vpop.f32.mrb[0].mxu0
        %4415 = vmatprep.mubr.bf16.mxu0 0
        %4416 = vmatmul.mubr.bf16.gmra.mrb[0].mxu0 %v4343
        %v4417 = vpop.f32.mrb[0].mxu0
        %v4418 = vadd.f32 0.0, %v4417
        %v4419 = vpop.f32.mrb[0].mxu0
        %v4420 = vpop.f32.mrb[0].mxu0
        %v4421 = vadd.f32 0.0, %v4420
        %v4422 = vpop.f32.mrb[0].mxu0
        %4423 = vmatprep.mubr.bf16.mxu0 0
        %4424 = vmatmul.mubr.bf16.gmra.mrb[0].mxu0 %v4346
        %v4425 = vpop.f32.mrb[0].mxu0
        %v4426 = vadd.f32 0.0, %v4425
        %v4427 = vpop.f32.mrb[0].mxu0
        %v4428 = vpop.f32.mrb[0].mxu0
        %v4429 = vpop.f32.mrb[0].mxu0
        %4430 = vdwg.mxu0
        %v4431 = vadd.f32 %v4302, %v4386
        %v4432 = vadd.f32 %v4303, %v4389
        %v4433 = vadd.f32 %v4304, %v4394
        %v4434 = vadd.f32 %v4305, %v4397
        %v4435 = vadd.f32 %v4306, %v4402
        %v4436 = vadd.f32 %v4307, %v4405
        %v4437 = vadd.f32 %v4308, %v4410
        %v4438 = vadd.f32 %v4309, %v4413
        %v4439 = vadd.f32 %v4310, %v4418
        %v4440 = vadd.f32 %v4311, %v4421
        %v4441 = vadd.f32 %v4312, %v4426
        %v4442 = vld [vmem:[%s1816 + $0x4] sm:$0xc]
        %s4443 = scalar_lea.vmem %s542, 48
        %v4444 = vld [vmem:[%s4443] sm:$0x3]
        %v4446 = vunpack.c.l.b16 %v4442
        %v4447 = vpack.c.b16 %v4131, %v4446
        %v4448 = vrot.slane %v4447, 2
        %v4449 = vrot.slane %v4143, 2
        %v4450 = vsel %vm3209, %v4448, %v4449
        %v4451 = vrot.slane %v4144, 2
        %v4452 = vsel %vm3209, %v4449, %v4451
        %v4453 = vrot.slane %v4145, 2
        %v4454 = vsel %vm3209, %v4451, %v4453
        %v4455 = vrot.slane %v4146, 2
        %v4456 = vsel %vm3209, %v4453, %v4455
        %v4457 = vrot.slane %v4147, 2
        %v4458 = vsel %vm3209, %v4455, %v4457
        %v4460 = vsel %vm612, %v4450, 0
        %v4463 = vsel %vm612, %v4452, 0
        %v4466 = vsel %vm612, %v4454, 0
        %v4469 = vsel %vm612, %v4456, 0
        %v4472 = vsel %vm612, %v4458, 0
        %v4475 = vsel %vm612, %v4457, 0
        %v4478 = vsel %vm631, %v4444, 0
        %4480 = vmatprep.subr.bf16.mxu0 0
        %4481 = vmatpush1.bf16.msra.mxu0 %v4478
        %4482 = vmatprep.subr.bf16.mxu0 0
        %4483 = vmatpush1.bf16.msra.mxu0 0
        %4484 = vmatprep.subr.bf16.mxu0 0
        %4485 = vmatpush1.bf16.msra.mxu0 0
        %4486 = vmatprep.subr.bf16.mxu0 0
        %4487 = vmatpush1.bf16.msra.mxu0 0
        %4488 = vmatprep.subr.bf16.mxu0 0
        %4489 = vmatpush1.bf16.msra.mxu0 0
        %4490 = vmatprep.subr.bf16.mxu0 0
        %4491 = vmatpush1.bf16.msra.mxu0 0
        %4492 = vmatprep.subr.bf16.mxu0 0
        %4493 = vmatpush1.bf16.msra.mxu0 0
        %4494 = vmatprep.subr.bf16.mxu0 0
        %4495 = vmatpush1.bf16.msra.mxu0 0
        %4496 = vmatprep.subr.bf16.mxu0 0
        %4497 = vmatpush1.bf16.msra.mxu0 0
        %4498 = vmatprep.subr.bf16.mxu0 0
        %4499 = vmatpush1.bf16.msra.mxu0 0
        %4500 = vmatprep.subr.bf16.mxu0 0
        %4501 = vmatpush1.bf16.msra.mxu0 0
        %4502 = vmatprep.subr.bf16.mxu0 0
        %4503 = vmatpush1.bf16.msra.mxu0 0
        %4504 = vmatprep.subr.bf16.mxu0 0
        %4505 = vmatpush1.bf16.msra.mxu0 0
        %4506 = vmatprep.subr.bf16.mxu0 0
        %4507 = vmatpush1.bf16.msra.mxu0 0
        %4508 = vmatprep.subr.bf16.mxu0 0
        %4509 = vmatpush1.bf16.msra.mxu0 0
        %4510 = vmatprep.subr.bf16.mxu0 0
        %4511 = vmatpush1.bf16.msra.mxu0 0
        %4512 = vmatprep.mubr.bf16.mxu0 0
        %4513 = vmatmul.mubr.bf16.gmra.mrb[0].mxu0 %v4460
        %v4514 = vpop.f32.mrb[0].mxu0
        %v4515 = vadd.f32 0.0, %v4514
        %v4516 = vpop.f32.mrb[0].mxu0
        %v4517 = vpop.f32.mrb[0].mxu0
        %v4518 = vadd.f32 0.0, %v4517
        %v4519 = vpop.f32.mrb[0].mxu0
        %4520 = vmatprep.mubr.bf16.mxu0 0
        %4521 = vmatmul.mubr.bf16.gmra.mrb[0].mxu0 %v4463
        %v4522 = vpop.f32.mrb[0].mxu0
        %v4523 = vadd.f32 0.0, %v4522
        %v4524 = vpop.f32.mrb[0].mxu0
        %v4525 = vpop.f32.mrb[0].mxu0
        %v4526 = vadd.f32 0.0, %v4525
        %v4527 = vpop.f32.mrb[0].mxu0
        %4528 = vmatprep.mubr.bf16.mxu0 0
        %4529 = vmatmul.mubr.bf16.gmra.mrb[0].mxu0 %v4466
        %v4530 = vpop.f32.mrb[0].mxu0
        %v4531 = vadd.f32 0.0, %v4530
        %v4532 = vpop.f32.mrb[0].mxu0
        %v4533 = vpop.f32.mrb[0].mxu0
        %v4534 = vadd.f32 0.0, %v4533
        %v4535 = vpop.f32.mrb[0].mxu0
        %4536 = vmatprep.mubr.bf16.mxu0 0
        %4537 = vmatmul.mubr.bf16.gmra.mrb[0].mxu0 %v4469
        %v4538 = vpop.f32.mrb[0].mxu0
        %v4539 = vadd.f32 0.0, %v4538
        %v4540 = vpop.f32.mrb[0].mxu0
        %v4541 = vpop.f32.mrb[0].mxu0
        %v4542 = vadd.f32 0.0, %v4541
        %v4543 = vpop.f32.mrb[0].mxu0
        %4544 = vmatprep.mubr.bf16.mxu0 0
        %4545 = vmatmul.mubr.bf16.gmra.mrb[0].mxu0 %v4472
        %v4546 = vpop.f32.mrb[0].mxu0
        %v4547 = vadd.f32 0.0, %v4546
        %v4548 = vpop.f32.mrb[0].mxu0
        %v4549 = vpop.f32.mrb[0].mxu0
        %v4550 = vadd.f32 0.0, %v4549
        %v4551 = vpop.f32.mrb[0].mxu0
        %4552 = vmatprep.mubr.bf16.mxu0 0
        %4553 = vmatmul.mubr.bf16.gmra.mrb[0].mxu0 %v4475
        %v4554 = vpop.f32.mrb[0].mxu0
        %v4555 = vadd.f32 0.0, %v4554
        %v4556 = vpop.f32.mrb[0].mxu0
        %v4557 = vpop.f32.mrb[0].mxu0
        %v4558 = vpop.f32.mrb[0].mxu0
        %4559 = vdwg.mxu0
        %v4560 = vadd.f32 %v4431, %v4515
        %v4561 = vadd.f32 %v4432, %v4518
        %v4562 = vadd.f32 %v4433, %v4523
        %v4563 = vadd.f32 %v4434, %v4526
        %v4564 = vadd.f32 %v4435, %v4531
        %v4565 = vadd.f32 %v4436, %v4534
        %v4566 = vadd.f32 %v4437, %v4539
        %v4567 = vadd.f32 %v4438, %v4542
        %v4568 = vadd.f32 %v4439, %v4547
        %v4569 = vadd.f32 %v4440, %v4550
        %v4570 = vadd.f32 %v4441, %v4555
        %v4571 = vld [vmem:[%s1662 + $0x30] sm:$0x7]
        %s4572 = scalar_lea.vmem %s542, 50
        %v4573 = vld [vmem:[%s4572] sm:$0x3]
        %v4575 = vunpack.c.l.b16 %v4571
        %v4576 = vpack.c.b16 %v4575, %v3931
        %v4578 = vshrl.u32 %v4318, 16
        %v4580 = vrot.slane %v4578, 2
        %v4581 = vshll.u32 %v4318, 16
        %v4583 = vrot.slane %v4581, 3
        %v4584 = vor.u32 %v4580, %v4583
        %v4585 = vrot.slane %v3948, 2
        %v4586 = vrot.slane %v3951, 3
        %v4587 = vor.u32 %v4585, %v4586
        %v4588 = vsel %vm3468, %v4584, %v4587
        %v4589 = vrot.slane %v3957, 2
        %v4590 = vrot.slane %v3960, 3
        %v4591 = vor.u32 %v4589, %v4590
        %v4592 = vsel %vm3468, %v4587, %v4591
        %v4593 = vrot.slane %v3966, 2
        %v4594 = vrot.slane %v3969, 3
        %v4595 = vor.u32 %v4593, %v4594
        %v4596 = vsel %vm3468, %v4591, %v4595
        %v4597 = vrot.slane %v3975, 2
        %v4598 = vrot.slane %v3978, 3
        %v4599 = vor.u32 %v4597, %v4598
        %v4600 = vsel %vm3468, %v4595, %v4599
        %v4602 = vshrl.u32 %v4576, 16
        %v4604 = vrot.slane %v4602, 2
        %v4605 = vshll.u32 %v4576, 16
        %v4607 = vrot.slane %v4605, 3
        %v4608 = vor.u32 %v4604, %v4607
        %v4609 = vsel %vm3468, %v4599, %v4608
        %v4611 = vsel %vm612, %v4588, 0
        %v4614 = vsel %vm612, %v4592, 0
        %v4617 = vsel %vm612, %v4596, 0
        %v4620 = vsel %vm612, %v4600, 0
        %v4623 = vsel %vm612, %v4609, 0
        %v4626 = vsel %vm612, %v4608, 0
        %v4629 = vsel %vm631, %v4573, 0
        %4631 = vmatprep.subr.bf16.mxu0 0
        %4632 = vmatpush1.bf16.msra.mxu0 %v4629
        %4633 = vmatprep.subr.bf16.mxu0 0
        %4634 = vmatpush1.bf16.msra.mxu0 0
        %4635 = vmatprep.subr.bf16.mxu0 0
        %4636 = vmatpush1.bf16.msra.mxu0 0
        %4637 = vmatprep.subr.bf16.mxu0 0
        %4638 = vmatpush1.bf16.msra.mxu0 0
        %4639 = vmatprep.subr.bf16.mxu0 0
        %4640 = vmatpush1.bf16.msra.mxu0 0
        %4641 = vmatprep.subr.bf16.mxu0 0
        %4642 = vmatpush1.bf16.msra.mxu0 0
        %4643 = vmatprep.subr.bf16.mxu0 0
        %4644 = vmatpush1.bf16.msra.mxu0 0
        %4645 = vmatprep.subr.bf16.mxu0 0
        %4646 = vmatpush1.bf16.msra.mxu0 0
        %4647 = vmatprep.subr.bf16.mxu0 0
        %4648 = vmatpush1.bf16.msra.mxu0 0
        %4649 = vmatprep.subr.bf16.mxu0 0
        %4650 = vmatpush1.bf16.msra.mxu0 0
        %4651 = vmatprep.subr.bf16.mxu0 0
        %4652 = vmatpush1.bf16.msra.mxu0 0
        %4653 = vmatprep.subr.bf16.mxu0 0
        %4654 = vmatpush1.bf16.msra.mxu0 0
        %4655 = vmatprep.subr.bf16.mxu0 0
        %4656 = vmatpush1.bf16.msra.mxu0 0
        %4657 = vmatprep.subr.bf16.mxu0 0
        %4658 = vmatpush1.bf16.msra.mxu0 0
        %4659 = vmatprep.subr.bf16.mxu0 0
        %4660 = vmatpush1.bf16.msra.mxu0 0
        %4661 = vmatprep.subr.bf16.mxu0 0
        %4662 = vmatpush1.bf16.msra.mxu0 0
        %4663 = vmatprep.mubr.bf16.mxu0 0
        %4664 = vmatmul.mubr.bf16.gmra.mrb[0].mxu0 %v4611
        %v4665 = vpop.f32.mrb[0].mxu0
        %v4666 = vadd.f32 0.0, %v4665
        %v4667 = vpop.f32.mrb[0].mxu0
        %v4668 = vpop.f32.mrb[0].mxu0
        %v4669 = vadd.f32 0.0, %v4668
        %v4670 = vpop.f32.mrb[0].mxu0
        %4671 = vmatprep.mubr.bf16.mxu0 0
        %4672 = vmatmul.mubr.bf16.gmra.mrb[0].mxu0 %v4614
        %v4673 = vpop.f32.mrb[0].mxu0
        %v4674 = vadd.f32 0.0, %v4673
        %v4675 = vpop.f32.mrb[0].mxu0
        %v4676 = vpop.f32.mrb[0].mxu0
        %v4677 = vadd.f32 0.0, %v4676
        %v4678 = vpop.f32.mrb[0].mxu0
        %4679 = vmatprep.mubr.bf16.mxu0 0
        %4680 = vmatmul.mubr.bf16.gmra.mrb[0].mxu0 %v4617
        %v4681 = vpop.f32.mrb[0].mxu0
        %v4682 = vadd.f32 0.0, %v4681
        %v4683 = vpop.f32.mrb[0].mxu0
        %v4684 = vpop.f32.mrb[0].mxu0
        %v4685 = vadd.f32 0.0, %v4684
        %v4686 = vpop.f32.mrb[0].mxu0
        %4687 = vmatprep.mubr.bf16.mxu0 0
        %4688 = vmatmul.mubr.bf16.gmra.mrb[0].mxu0 %v4620
        %v4689 = vpop.f32.mrb[0].mxu0
        %v4690 = vadd.f32 0.0, %v4689
        %v4691 = vpop.f32.mrb[0].mxu0
        %v4692 = vpop.f32.mrb[0].mxu0
        %v4693 = vadd.f32 0.0, %v4692
        %v4694 = vpop.f32.mrb[0].mxu0
        %4695 = vmatprep.mubr.bf16.mxu0 0
        %4696 = vmatmul.mubr.bf16.gmra.mrb[0].mxu0 %v4623
        %v4697 = vpop.f32.mrb[0].mxu0
        %v4698 = vadd.f32 0.0, %v4697
        %v4699 = vpop.f32.mrb[0].mxu0
        %v4700 = vpop.f32.mrb[0].mxu0
        %v4701 = vadd.f32 0.0, %v4700
        %v4702 = vpop.f32.mrb[0].mxu0
        %4703 = vmatprep.mubr.bf16.mxu0 0
        %4704 = vmatmul.mubr.bf16.gmra.mrb[0].mxu0 %v4626
        %v4705 = vpop.f32.mrb[0].mxu0
        %v4706 = vadd.f32 0.0, %v4705
        %v4707 = vpop.f32.mrb[0].mxu0
        %v4708 = vpop.f32.mrb[0].mxu0
        %v4709 = vpop.f32.mrb[0].mxu0
        %4710 = vdwg.mxu0
        %v4711 = vadd.f32 %v4560, %v4666
        %v4712 = vadd.f32 %v4561, %v4669
        %v4713 = vadd.f32 %v4562, %v4674
        %v4714 = vadd.f32 %v4563, %v4677
        %v4715 = vadd.f32 %v4564, %v4682
        %v4716 = vadd.f32 %v4565, %v4685
        %v4717 = vadd.f32 %v4566, %v4690
        %v4718 = vadd.f32 %v4567, %v4693
        %v4719 = vadd.f32 %v4568, %v4698
        %v4720 = vadd.f32 %v4569, %v4701
        %v4721 = vadd.f32 %v4570, %v4706
        %v4722 = vld [vmem:[%s1816 + $0x30] sm:$0x7]
        %s4723 = scalar_lea.vmem %s542, 52
        %v4724 = vld [vmem:[%s4723] sm:$0x3]
        %v4726 = vunpack.c.l.b16 %v4722
        %v4727 = vpack.c.b16 %v4726, %v4140
        %v4729 = vshrl.u32 %v4447, 16
        %v4731 = vrot.slane %v4729, 2
        %v4732 = vshll.u32 %v4447, 16
        %v4734 = vrot.slane %v4732, 3
        %v4735 = vor.u32 %v4731, %v4734
        %v4736 = vrot.slane %v4157, 2
        %v4737 = vrot.slane %v4160, 3
        %v4738 = vor.u32 %v4736, %v4737
        %v4739 = vsel %vm3468, %v4735, %v4738
        %v4740 = vrot.slane %v4166, 2
        %v4741 = vrot.slane %v4169, 3
        %v4742 = vor.u32 %v4740, %v4741
        %v4743 = vsel %vm3468, %v4738, %v4742
        %v4744 = vrot.slane %v4175, 2
        %v4745 = vrot.slane %v4178, 3
        %v4746 = vor.u32 %v4744, %v4745
        %v4747 = vsel %vm3468, %v4742, %v4746
        %v4748 = vrot.slane %v4184, 2
        %v4749 = vrot.slane %v4187, 3
        %v4750 = vor.u32 %v4748, %v4749
        %v4751 = vsel %vm3468, %v4746, %v4750
        %v4753 = vshrl.u32 %v4727, 16
        %v4755 = vrot.slane %v4753, 2
        %v4756 = vshll.u32 %v4727, 16
        %v4758 = vrot.slane %v4756, 3
        %v4759 = vor.u32 %v4755, %v4758
        %v4760 = vsel %vm3468, %v4750, %v4759
        %v4762 = vsel %vm612, %v4739, 0
        %v4765 = vsel %vm612, %v4743, 0
        %v4768 = vsel %vm612, %v4747, 0
        %v4771 = vsel %vm612, %v4751, 0
        %v4774 = vsel %vm612, %v4760, 0
        %v4777 = vsel %vm612, %v4759, 0
        %v4780 = vsel %vm631, %v4724, 0
        %4782 = vmatprep.subr.bf16.mxu0 0
        %4783 = vmatpush1.bf16.msra.mxu0 %v4780
        %4784 = vmatprep.subr.bf16.mxu0 0
        %4785 = vmatpush1.bf16.msra.mxu0 0
        %4786 = vmatprep.subr.bf16.mxu0 0
        %4787 = vmatpush1.bf16.msra.mxu0 0
        %4788 = vmatprep.subr.bf16.mxu0 0
        %4789 = vmatpush1.bf16.msra.mxu0 0
        %4790 = vmatprep.subr.bf16.mxu0 0
        %4791 = vmatpush1.bf16.msra.mxu0 0
        %4792 = vmatprep.subr.bf16.mxu0 0
        %4793 = vmatpush1.bf16.msra.mxu0 0
        %4794 = vmatprep.subr.bf16.mxu0 0
        %4795 = vmatpush1.bf16.msra.mxu0 0
        %4796 = vmatprep.subr.bf16.mxu0 0
        %4797 = vmatpush1.bf16.msra.mxu0 0
        %4798 = vmatprep.subr.bf16.mxu0 0
        %4799 = vmatpush1.bf16.msra.mxu0 0
        %4800 = vmatprep.subr.bf16.mxu0 0
        %4801 = vmatpush1.bf16.msra.mxu0 0
        %4802 = vmatprep.subr.bf16.mxu0 0
        %4803 = vmatpush1.bf16.msra.mxu0 0
        %4804 = vmatprep.subr.bf16.mxu0 0
        %4805 = vmatpush1.bf16.msra.mxu0 0
        %4806 = vmatprep.subr.bf16.mxu0 0
        %4807 = vmatpush1.bf16.msra.mxu0 0
        %4808 = vmatprep.subr.bf16.mxu0 0
        %4809 = vmatpush1.bf16.msra.mxu0 0
        %4810 = vmatprep.subr.bf16.mxu0 0
        %4811 = vmatpush1.bf16.msra.mxu0 0
        %4812 = vmatprep.subr.bf16.mxu0 0
        %4813 = vmatpush1.bf16.msra.mxu0 0
        %4814 = vmatprep.mubr.bf16.mxu0 0
        %4815 = vmatmul.mubr.bf16.gmra.mrb[0].mxu0 %v4762
        %v4816 = vpop.f32.mrb[0].mxu0
        %v4817 = vadd.f32 0.0, %v4816
        %v4818 = vpop.f32.mrb[0].mxu0
        %v4819 = vpop.f32.mrb[0].mxu0
        %v4820 = vadd.f32 0.0, %v4819
        %v4821 = vpop.f32.mrb[0].mxu0
        %4822 = vmatprep.mubr.bf16.mxu0 0
        %4823 = vmatmul.mubr.bf16.gmra.mrb[0].mxu0 %v4765
        %v4824 = vpop.f32.mrb[0].mxu0
        %v4825 = vadd.f32 0.0, %v4824
        %v4826 = vpop.f32.mrb[0].mxu0
        %v4827 = vpop.f32.mrb[0].mxu0
        %v4828 = vadd.f32 0.0, %v4827
        %v4829 = vpop.f32.mrb[0].mxu0
        %4830 = vmatprep.mubr.bf16.mxu0 0
        %4831 = vmatmul.mubr.bf16.gmra.mrb[0].mxu0 %v4768
        %v4832 = vpop.f32.mrb[0].mxu0
        %v4833 = vadd.f32 0.0, %v4832
        %v4834 = vpop.f32.mrb[0].mxu0
        %v4835 = vpop.f32.mrb[0].mxu0
        %v4836 = vadd.f32 0.0, %v4835
        %v4837 = vpop.f32.mrb[0].mxu0
        %4838 = vmatprep.mubr.bf16.mxu0 0
        %4839 = vmatmul.mubr.bf16.gmra.mrb[0].mxu0 %v4771
        %v4840 = vpop.f32.mrb[0].mxu0
        %v4841 = vadd.f32 0.0, %v4840
        %v4842 = vpop.f32.mrb[0].mxu0
        %v4843 = vpop.f32.mrb[0].mxu0
        %v4844 = vadd.f32 0.0, %v4843
        %v4845 = vpop.f32.mrb[0].mxu0
        %4846 = vmatprep.mubr.bf16.mxu0 0
        %4847 = vmatmul.mubr.bf16.gmra.mrb[0].mxu0 %v4774
        %v4848 = vpop.f32.mrb[0].mxu0
        %v4849 = vadd.f32 0.0, %v4848
        %v4850 = vpop.f32.mrb[0].mxu0
        %v4851 = vpop.f32.mrb[0].mxu0
        %v4852 = vadd.f32 0.0, %v4851
        %v4853 = vpop.f32.mrb[0].mxu0
        %4854 = vmatprep.mubr.bf16.mxu0 0
        %4855 = vmatmul.mubr.bf16.gmra.mrb[0].mxu0 %v4777
        %v4856 = vpop.f32.mrb[0].mxu0
        %v4857 = vadd.f32 0.0, %v4856
        %v4858 = vpop.f32.mrb[0].mxu0
        %v4859 = vpop.f32.mrb[0].mxu0
        %v4860 = vpop.f32.mrb[0].mxu0
        %4861 = vdwg.mxu0
        %v4862 = vadd.f32 %v4711, %v4817
        %v4863 = vadd.f32 %v4712, %v4820
        %v4864 = vadd.f32 %v4713, %v4825
        %v4865 = vadd.f32 %v4714, %v4828
        %v4866 = vadd.f32 %v4715, %v4833
        %v4867 = vadd.f32 %v4716, %v4836
        %v4868 = vadd.f32 %v4717, %v4841
        %v4869 = vadd.f32 %v4718, %v4844
        %v4870 = vadd.f32 %v4719, %v4849
        %v4871 = vadd.f32 %v4720, %v4852
        %v4872 = vadd.f32 %v4721, %v4857
        %v4873 = vld [vmem:[%s1662 + $0x4] sm:$0x8]
        %s4874 = scalar_lea.vmem %s542, 54
        %v4875 = vld [vmem:[%s4874] sm:$0x3]
        %v4877 = vunpack.c.l.b16 %v4873
        %v4878 = vpack.c.b16 %v3922, %v4877
        %v4879 = vrot.slane %v4878, 3
        %v4880 = vrot.slane %v3934, 3
        %v4881 = vsel %vm3771, %v4879, %v4880
        %v4882 = vrot.slane %v3935, 3
        %v4883 = vsel %vm3771, %v4880, %v4882
        %v4884 = vrot.slane %v3936, 3
        %v4885 = vsel %vm3771, %v4882, %v4884
        %v4886 = vrot.slane %v3937, 3
        %v4887 = vsel %vm3771, %v4884, %v4886
        %v4888 = vrot.slane %v4576, 3
        %v4889 = vsel %vm3771, %v4886, %v4888
        %v4891 = vsel %vm612, %v4881, 0
        %v4894 = vsel %vm612, %v4883, 0
        %v4897 = vsel %vm612, %v4885, 0
        %v4900 = vsel %vm612, %v4887, 0
        %v4903 = vsel %vm612, %v4889, 0
        %v4906 = vsel %vm612, %v4888, 0
        %v4909 = vsel %vm631, %v4875, 0
        %4911 = vmatprep.subr.bf16.mxu0 0
        %4912 = vmatpush1.bf16.msra.mxu0 %v4909
        %4913 = vmatprep.subr.bf16.mxu0 0
        %4914 = vmatpush1.bf16.msra.mxu0 0
        %4915 = vmatprep.subr.bf16.mxu0 0
        %4916 = vmatpush1.bf16.msra.mxu0 0
        %4917 = vmatprep.subr.bf16.mxu0 0
        %4918 = vmatpush1.bf16.msra.mxu0 0
        %4919 = vmatprep.subr.bf16.mxu0 0
        %4920 = vmatpush1.bf16.msra.mxu0 0
        %4921 = vmatprep.subr.bf16.mxu0 0
        %4922 = vmatpush1.bf16.msra.mxu0 0
        %4923 = vmatprep.subr.bf16.mxu0 0
        %4924 = vmatpush1.bf16.msra.mxu0 0
        %4925 = vmatprep.subr.bf16.mxu0 0
        %4926 = vmatpush1.bf16.msra.mxu0 0
        %4927 = vmatprep.subr.bf16.mxu0 0
        %4928 = vmatpush1.bf16.msra.mxu0 0
        %4929 = vmatprep.subr.bf16.mxu0 0
        %4930 = vmatpush1.bf16.msra.mxu0 0
        %4931 = vmatprep.subr.bf16.mxu0 0
        %4932 = vmatpush1.bf16.msra.mxu0 0
        %4933 = vmatprep.subr.bf16.mxu0 0
        %4934 = vmatpush1.bf16.msra.mxu0 0
        %4935 = vmatprep.subr.bf16.mxu0 0
        %4936 = vmatpush1.bf16.msra.mxu0 0
        %4937 = vmatprep.subr.bf16.mxu0 0
        %4938 = vmatpush1.bf16.msra.mxu0 0
        %4939 = vmatprep.subr.bf16.mxu0 0
        %4940 = vmatpush1.bf16.msra.mxu0 0
        %4941 = vmatprep.subr.bf16.mxu0 0
        %4942 = vmatpush1.bf16.msra.mxu0 0
        %4943 = vmatprep.mubr.bf16.mxu0 0
        %4944 = vmatmul.mubr.bf16.gmra.mrb[0].mxu0 %v4891
        %v4945 = vpop.f32.mrb[0].mxu0
        %v4946 = vadd.f32 0.0, %v4945
        %v4947 = vpop.f32.mrb[0].mxu0
        %v4948 = vpop.f32.mrb[0].mxu0
        %v4949 = vadd.f32 0.0, %v4948
        %v4950 = vpop.f32.mrb[0].mxu0
        %4951 = vmatprep.mubr.bf16.mxu0 0
        %4952 = vmatmul.mubr.bf16.gmra.mrb[0].mxu0 %v4894
        %v4953 = vpop.f32.mrb[0].mxu0
        %v4954 = vadd.f32 0.0, %v4953
        %v4955 = vpop.f32.mrb[0].mxu0
        %v4956 = vpop.f32.mrb[0].mxu0
        %v4957 = vadd.f32 0.0, %v4956
        %v4958 = vpop.f32.mrb[0].mxu0
        %4959 = vmatprep.mubr.bf16.mxu0 0
        %4960 = vmatmul.mubr.bf16.gmra.mrb[0].mxu0 %v4897
        %v4961 = vpop.f32.mrb[0].mxu0
        %v4962 = vadd.f32 0.0, %v4961
        %v4963 = vpop.f32.mrb[0].mxu0
        %v4964 = vpop.f32.mrb[0].mxu0
        %v4965 = vadd.f32 0.0, %v4964
        %v4966 = vpop.f32.mrb[0].mxu0
        %4967 = vmatprep.mubr.bf16.mxu0 0
        %4968 = vmatmul.mubr.bf16.gmra.mrb[0].mxu0 %v4900
        %v4969 = vpop.f32.mrb[0].mxu0
        %v4970 = vadd.f32 0.0, %v4969
        %v4971 = vpop.f32.mrb[0].mxu0
        %v4972 = vpop.f32.mrb[0].mxu0
        %v4973 = vadd.f32 0.0, %v4972
        %v4974 = vpop.f32.mrb[0].mxu0
        %4975 = vmatprep.mubr.bf16.mxu0 0
        %4976 = vmatmul.mubr.bf16.gmra.mrb[0].mxu0 %v4903
        %v4977 = vpop.f32.mrb[0].mxu0
        %v4978 = vadd.f32 0.0, %v4977
        %v4979 = vpop.f32.mrb[0].mxu0
        %v4980 = vpop.f32.mrb[0].mxu0
        %v4981 = vadd.f32 0.0, %v4980
        %v4982 = vpop.f32.mrb[0].mxu0
        %4983 = vmatprep.mubr.bf16.mxu0 0
        %4984 = vmatmul.mubr.bf16.gmra.mrb[0].mxu0 %v4906
        %v4985 = vpop.f32.mrb[0].mxu0
        %v4986 = vadd.f32 0.0, %v4985
        %v4987 = vpop.f32.mrb[0].mxu0
        %v4988 = vpop.f32.mrb[0].mxu0
        %v4989 = vpop.f32.mrb[0].mxu0
        %4990 = vdwg.mxu0
        %v4991 = vadd.f32 %v4862, %v4946
        %v4992 = vadd.f32 %v4863, %v4949
        %v4993 = vadd.f32 %v4864, %v4954
        %v4994 = vadd.f32 %v4865, %v4957
        %v4995 = vadd.f32 %v4866, %v4962
        %v4996 = vadd.f32 %v4867, %v4965
        %v4997 = vadd.f32 %v4868, %v4970
        %v4998 = vadd.f32 %v4869, %v4973
        %v4999 = vadd.f32 %v4870, %v4978
        %v5000 = vadd.f32 %v4871, %v4981
        %v5001 = vadd.f32 %v4872, %v4986
        %v5002 = vld [vmem:[%s503 + $0x8] sm:$0x8]
        %v5003 = vld [vmem:[%s503 + $0xc] sm:$0xf]
        %v5004 = vld [vmem:[%s503 + $0x10] sm:$0xf]
        %v5005 = vld [vmem:[%s503 + $0x14] sm:$0xf]
        %v5006 = vld [vmem:[%s503 + $0x18] sm:$0xf]
        %v5007 = vld [vmem:[%s503 + $0x1c] sm:$0xf]
        %v5008 = vld [vmem:[%s503 + $0x20] sm:$0xf]
        %v5009 = vld [vmem:[%s503 + $0x24] sm:$0xf]
        %v5010 = vld [vmem:[%s503 + $0x28] sm:$0xf]
        %v5011 = vld [vmem:[%s503 + $0x2c] sm:$0xf]
        %v5012 = vld [vmem:[%s503 + $0x30] sm:$0xf]
        %v5013 = vld [vmem:[%s503 + $0x34] sm:$0x7]
        %s5014 = scalar_lea.vmem %s542, 56
        %v5015 = vld [vmem:[%s5014] sm:$0x3]
        %v5028 = vunpack.c.l.b16 %v5002
        %v5029 = vunpack.c.l.b16 %v5003
        %v5030 = vunpack.c.l.b16 %v5004
        %v5031 = vunpack.c.l.b16 %v5005
        %v5032 = vunpack.c.l.b16 %v5006
        %v5033 = vunpack.c.l.b16 %v5007
        %v5034 = vunpack.c.l.b16 %v5008
        %v5035 = vunpack.c.l.b16 %v5009
        %v5036 = vunpack.c.l.b16 %v5010
        %v5037 = vunpack.c.l.b16 %v5011
        %v5038 = vunpack.c.l.b16 %v5012
        %v5039 = vunpack.c.l.b16 %v5013
        %v5040 = vpack.c.b16 %v5029, %v5028
        %v5041 = vpack.c.b16 %v5031, %v5030
        %v5042 = vpack.c.b16 %v5033, %v5032
        %v5043 = vpack.c.b16 %v5035, %v5034
        %v5044 = vpack.c.b16 %v5037, %v5036
        %v5045 = vpack.c.b16 %v5039, %v5038
        %v5046 = vrot.slane %v5040, 3
        %v5047 = vrot.slane %v5041, 3
        %v5048 = vsel %vm3771, %v5046, %v5047
        %v5049 = vrot.slane %v5042, 3
        %v5050 = vsel %vm3771, %v5047, %v5049
        %v5051 = vrot.slane %v5043, 3
        %v5052 = vsel %vm3771, %v5049, %v5051
        %v5053 = vrot.slane %v5044, 3
        %v5054 = vsel %vm3771, %v5051, %v5053
        %v5055 = vrot.slane %v5045, 3
        %v5056 = vsel %vm3771, %v5053, %v5055
        %v5058 = vsel %vm612, %v5048, 0
        %v5061 = vsel %vm612, %v5050, 0
        %v5064 = vsel %vm612, %v5052, 0
        %v5067 = vsel %vm612, %v5054, 0
        %v5070 = vsel %vm612, %v5056, 0
        %v5073 = vsel %vm612, %v5055, 0
        %v5076 = vsel %vm631, %v5015, 0
        %5078 = vmatprep.subr.bf16.mxu0 0
        %5079 = vmatpush1.bf16.msra.mxu0 %v5076
        %5080 = vmatprep.subr.bf16.mxu0 0
        %5081 = vmatpush1.bf16.msra.mxu0 0
        %5082 = vmatprep.subr.bf16.mxu0 0
        %5083 = vmatpush1.bf16.msra.mxu0 0
        %5084 = vmatprep.subr.bf16.mxu0 0
        %5085 = vmatpush1.bf16.msra.mxu0 0
        %5086 = vmatprep.subr.bf16.mxu0 0
        %5087 = vmatpush1.bf16.msra.mxu0 0
        %5088 = vmatprep.subr.bf16.mxu0 0
        %5089 = vmatpush1.bf16.msra.mxu0 0
        %5090 = vmatprep.subr.bf16.mxu0 0
        %5091 = vmatpush1.bf16.msra.mxu0 0
        %5092 = vmatprep.subr.bf16.mxu0 0
        %5093 = vmatpush1.bf16.msra.mxu0 0
        %5094 = vmatprep.subr.bf16.mxu0 0
        %5095 = vmatpush1.bf16.msra.mxu0 0
        %5096 = vmatprep.subr.bf16.mxu0 0
        %5097 = vmatpush1.bf16.msra.mxu0 0
        %5098 = vmatprep.subr.bf16.mxu0 0
        %5099 = vmatpush1.bf16.msra.mxu0 0
        %5100 = vmatprep.subr.bf16.mxu0 0
        %5101 = vmatpush1.bf16.msra.mxu0 0
        %5102 = vmatprep.subr.bf16.mxu0 0
        %5103 = vmatpush1.bf16.msra.mxu0 0
        %5104 = vmatprep.subr.bf16.mxu0 0
        %5105 = vmatpush1.bf16.msra.mxu0 0
        %5106 = vmatprep.subr.bf16.mxu0 0
        %5107 = vmatpush1.bf16.msra.mxu0 0
        %5108 = vmatprep.subr.bf16.mxu0 0
        %5109 = vmatpush1.bf16.msra.mxu0 0
        %5110 = vmatprep.mubr.bf16.mxu0 0
        %5111 = vmatmul.mubr.bf16.gmra.mrb[0].mxu0 %v5058
        %v5112 = vpop.f32.mrb[0].mxu0
        %v5113 = vadd.f32 0.0, %v5112
        %v5114 = vpop.f32.mrb[0].mxu0
        %v5115 = vpop.f32.mrb[0].mxu0
        %v5116 = vadd.f32 0.0, %v5115
        %v5117 = vpop.f32.mrb[0].mxu0
        %5118 = vmatprep.mubr.bf16.mxu0 0
        %5119 = vmatmul.mubr.bf16.gmra.mrb[0].mxu0 %v5061
        %v5120 = vpop.f32.mrb[0].mxu0
        %v5121 = vadd.f32 0.0, %v5120
        %v5122 = vpop.f32.mrb[0].mxu0
        %v5123 = vpop.f32.mrb[0].mxu0
        %v5124 = vadd.f32 0.0, %v5123
        %v5125 = vpop.f32.mrb[0].mxu0
        %5126 = vmatprep.mubr.bf16.mxu0 0
        %5127 = vmatmul.mubr.bf16.gmra.mrb[0].mxu0 %v5064
        %v5128 = vpop.f32.mrb[0].mxu0
        %v5129 = vadd.f32 0.0, %v5128
        %v5130 = vpop.f32.mrb[0].mxu0
        %v5131 = vpop.f32.mrb[0].mxu0
        %v5132 = vadd.f32 0.0, %v5131
        %v5133 = vpop.f32.mrb[0].mxu0
        %5134 = vmatprep.mubr.bf16.mxu0 0
        %5135 = vmatmul.mubr.bf16.gmra.mrb[0].mxu0 %v5067
        %v5136 = vpop.f32.mrb[0].mxu0
        %v5137 = vadd.f32 0.0, %v5136
        %v5138 = vpop.f32.mrb[0].mxu0
        %v5139 = vpop.f32.mrb[0].mxu0
        %v5140 = vadd.f32 0.0, %v5139
        %v5141 = vpop.f32.mrb[0].mxu0
        %5142 = vmatprep.mubr.bf16.mxu0 0
        %5143 = vmatmul.mubr.bf16.gmra.mrb[0].mxu0 %v5070
        %v5144 = vpop.f32.mrb[0].mxu0
        %v5145 = vadd.f32 0.0, %v5144
        %v5146 = vpop.f32.mrb[0].mxu0
        %v5147 = vpop.f32.mrb[0].mxu0
        %v5148 = vadd.f32 0.0, %v5147
        %v5149 = vpop.f32.mrb[0].mxu0
        %5150 = vmatprep.mubr.bf16.mxu0 0
        %5151 = vmatmul.mubr.bf16.gmra.mrb[0].mxu0 %v5073
        %v5152 = vpop.f32.mrb[0].mxu0
        %v5153 = vadd.f32 0.0, %v5152
        %v5154 = vpop.f32.mrb[0].mxu0
        %v5155 = vpop.f32.mrb[0].mxu0
        %v5156 = vpop.f32.mrb[0].mxu0
        %5157 = vdwg.mxu0
        %v5158 = vadd.f32 %v4991, %v5113
        %v5159 = vadd.f32 %v4992, %v5116
        %v5160 = vadd.f32 %v4993, %v5121
        %v5161 = vadd.f32 %v4994, %v5124
        %v5162 = vadd.f32 %v4995, %v5129
        %v5163 = vadd.f32 %v4996, %v5132
        %v5164 = vadd.f32 %v4997, %v5137
        %v5165 = vadd.f32 %v4998, %v5140
        %v5166 = vadd.f32 %v4999, %v5145
        %v5167 = vadd.f32 %v5000, %v5148
        %v5168 = vadd.f32 %v5001, %v5153
        %v5169 = vld [vmem:[%s570 + $0x8] sm:$0x8]
        %v5170 = vld [vmem:[%s570 + $0xc] sm:$0xf]
        %v5171 = vld [vmem:[%s570 + $0x10] sm:$0xf]
        %v5172 = vld [vmem:[%s570 + $0x14] sm:$0xf]
        %v5173 = vld [vmem:[%s570 + $0x18] sm:$0xf]
        %v5174 = vld [vmem:[%s570 + $0x1c] sm:$0xf]
        %v5175 = vld [vmem:[%s570 + $0x20] sm:$0xf]
        %v5176 = vld [vmem:[%s570 + $0x24] sm:$0xf]
        %v5177 = vld [vmem:[%s570 + $0x28] sm:$0xf]
        %v5178 = vld [vmem:[%s570 + $0x2c] sm:$0xf]
        %v5179 = vld [vmem:[%s570 + $0x30] sm:$0xf]
        %v5180 = vld [vmem:[%s570 + $0x34] sm:$0x7]
        %s5181 = scalar_lea.vmem %s542, 58
        %v5182 = vld [vmem:[%s5181] sm:$0x3]
        %v5195 = vunpack.c.l.b16 %v5169
        %v5196 = vunpack.c.l.b16 %v5170
        %v5197 = vunpack.c.l.b16 %v5171
        %v5198 = vunpack.c.l.b16 %v5172
        %v5199 = vunpack.c.l.b16 %v5173
        %v5200 = vunpack.c.l.b16 %v5174
        %v5201 = vunpack.c.l.b16 %v5175
        %v5202 = vunpack.c.l.b16 %v5176
        %v5203 = vunpack.c.l.b16 %v5177
        %v5204 = vunpack.c.l.b16 %v5178
        %v5205 = vunpack.c.l.b16 %v5179
        %v5206 = vunpack.c.l.b16 %v5180
        %v5207 = vpack.c.b16 %v5196, %v5195
        %v5208 = vpack.c.b16 %v5198, %v5197
        %v5209 = vpack.c.b16 %v5200, %v5199
        %v5210 = vpack.c.b16 %v5202, %v5201
        %v5211 = vpack.c.b16 %v5204, %v5203
        %v5212 = vpack.c.b16 %v5206, %v5205
        %v5213 = vrot.slane %v5207, 3
        %v5214 = vrot.slane %v5208, 3
        %v5215 = vsel %vm3771, %v5213, %v5214
        %v5216 = vrot.slane %v5209, 3
        %v5217 = vsel %vm3771, %v5214, %v5216
        %v5218 = vrot.slane %v5210, 3
        %v5219 = vsel %vm3771, %v5216, %v5218
        %v5220 = vrot.slane %v5211, 3
        %v5221 = vsel %vm3771, %v5218, %v5220
        %v5222 = vrot.slane %v5212, 3
        %v5223 = vsel %vm3771, %v5220, %v5222
        %v5225 = vsel %vm612, %v5215, 0
        %v5228 = vsel %vm612, %v5217, 0
        %v5231 = vsel %vm612, %v5219, 0
        %v5234 = vsel %vm612, %v5221, 0
        %v5237 = vsel %vm612, %v5223, 0
        %v5240 = vsel %vm612, %v5222, 0
        %v5243 = vsel %vm631, %v5182, 0
        %5245 = vmatprep.subr.bf16.mxu0 0
        %5246 = vmatpush1.bf16.msra.mxu0 %v5243
        %5247 = vmatprep.subr.bf16.mxu0 0
        %5248 = vmatpush1.bf16.msra.mxu0 0
        %5249 = vmatprep.subr.bf16.mxu0 0
        %5250 = vmatpush1.bf16.msra.mxu0 0
        %5251 = vmatprep.subr.bf16.mxu0 0
        %5252 = vmatpush1.bf16.msra.mxu0 0
        %5253 = vmatprep.subr.bf16.mxu0 0
        %5254 = vmatpush1.bf16.msra.mxu0 0
        %5255 = vmatprep.subr.bf16.mxu0 0
        %5256 = vmatpush1.bf16.msra.mxu0 0
        %5257 = vmatprep.subr.bf16.mxu0 0
        %5258 = vmatpush1.bf16.msra.mxu0 0
        %5259 = vmatprep.subr.bf16.mxu0 0
        %5260 = vmatpush1.bf16.msra.mxu0 0
        %5261 = vmatprep.subr.bf16.mxu0 0
        %5262 = vmatpush1.bf16.msra.mxu0 0
        %5263 = vmatprep.subr.bf16.mxu0 0
        %5264 = vmatpush1.bf16.msra.mxu0 0
        %5265 = vmatprep.subr.bf16.mxu0 0
        %5266 = vmatpush1.bf16.msra.mxu0 0
        %5267 = vmatprep.subr.bf16.mxu0 0
        %5268 = vmatpush1.bf16.msra.mxu0 0
        %5269 = vmatprep.subr.bf16.mxu0 0
        %5270 = vmatpush1.bf16.msra.mxu0 0
        %5271 = vmatprep.subr.bf16.mxu0 0
        %5272 = vmatpush1.bf16.msra.mxu0 0
        %5273 = vmatprep.subr.bf16.mxu0 0
        %5274 = vmatpush1.bf16.msra.mxu0 0
        %5275 = vmatprep.subr.bf16.mxu0 0
        %5276 = vmatpush1.bf16.msra.mxu0 0
        %5277 = vmatprep.mubr.bf16.mxu0 0
        %5278 = vmatmul.mubr.bf16.gmra.mrb[0].mxu0 %v5225
        %v5279 = vpop.f32.mrb[0].mxu0
        %v5280 = vadd.f32 0.0, %v5279
        %v5281 = vpop.f32.mrb[0].mxu0
        %v5282 = vpop.f32.mrb[0].mxu0
        %v5283 = vadd.f32 0.0, %v5282
        %v5284 = vpop.f32.mrb[0].mxu0
        %5285 = vmatprep.mubr.bf16.mxu0 0
        %5286 = vmatmul.mubr.bf16.gmra.mrb[0].mxu0 %v5228
        %v5287 = vpop.f32.mrb[0].mxu0
        %v5288 = vadd.f32 0.0, %v5287
        %v5289 = vpop.f32.mrb[0].mxu0
        %v5290 = vpop.f32.mrb[0].mxu0
        %v5291 = vadd.f32 0.0, %v5290
        %v5292 = vpop.f32.mrb[0].mxu0
        %5293 = vmatprep.mubr.bf16.mxu0 0
        %5294 = vmatmul.mubr.bf16.gmra.mrb[0].mxu0 %v5231
        %v5295 = vpop.f32.mrb[0].mxu0
        %v5296 = vadd.f32 0.0, %v5295
        %v5297 = vpop.f32.mrb[0].mxu0
        %v5298 = vpop.f32.mrb[0].mxu0
        %v5299 = vadd.f32 0.0, %v5298
        %v5300 = vpop.f32.mrb[0].mxu0
        %5301 = vmatprep.mubr.bf16.mxu0 0
        %5302 = vmatmul.mubr.bf16.gmra.mrb[0].mxu0 %v5234
        %v5303 = vpop.f32.mrb[0].mxu0
        %v5304 = vadd.f32 0.0, %v5303
        %v5305 = vpop.f32.mrb[0].mxu0
        %v5306 = vpop.f32.mrb[0].mxu0
        %v5307 = vadd.f32 0.0, %v5306
        %v5308 = vpop.f32.mrb[0].mxu0
        %5309 = vmatprep.mubr.bf16.mxu0 0
        %5310 = vmatmul.mubr.bf16.gmra.mrb[0].mxu0 %v5237
        %v5311 = vpop.f32.mrb[0].mxu0
        %v5312 = vadd.f32 0.0, %v5311
        %v5313 = vpop.f32.mrb[0].mxu0
        %v5314 = vpop.f32.mrb[0].mxu0
        %v5315 = vadd.f32 0.0, %v5314
        %v5316 = vpop.f32.mrb[0].mxu0
        %5317 = vmatprep.mubr.bf16.mxu0 0
        %5318 = vmatmul.mubr.bf16.gmra.mrb[0].mxu0 %v5240
        %v5319 = vpop.f32.mrb[0].mxu0
        %v5320 = vadd.f32 0.0, %v5319
        %v5321 = vpop.f32.mrb[0].mxu0
        %v5322 = vpop.f32.mrb[0].mxu0
        %v5323 = vpop.f32.mrb[0].mxu0
        %5324 = vdwg.mxu0
        %v5325 = vadd.f32 %v5158, %v5280
        %v5326 = vadd.f32 %v5159, %v5283
        %v5327 = vadd.f32 %v5160, %v5288
        %v5328 = vadd.f32 %v5161, %v5291
        %v5329 = vadd.f32 %v5162, %v5296
        %v5330 = vadd.f32 %v5163, %v5299
        %v5331 = vadd.f32 %v5164, %v5304
        %v5332 = vadd.f32 %v5165, %v5307
        %v5333 = vadd.f32 %v5166, %v5312
        %v5334 = vadd.f32 %v5167, %v5315
        %v5335 = vadd.f32 %v5168, %v5320
        %v5336 = vld [vmem:[%s503 + $0x34] sm:$0xf]
        %s5337 = scalar_lea.vmem %s542, 60
        %v5338 = vld [vmem:[%s5337] sm:$0x3]
        %v5340 = vunpack.c.l.b16 %v5336
        %v5341 = vpack.c.b16 %v5340, %v5038
        %vm5342 = vsmask.f32 4352
        %v5344 = vshrl.u32 %v5040, 16
        %v5346 = vrot.slane %v5344, 3
        %v5347 = vshll.u32 %v5040, 16
        %v5349 = vrot.slane %v5347, 4
        %v5350 = vor.u32 %v5346, %v5349
        %v5352 = vshrl.u32 %v5041, 16
        %v5354 = vrot.slane %v5352, 3
        %v5355 = vshll.u32 %v5041, 16
        %v5357 = vrot.slane %v5355, 4
        %v5358 = vor.u32 %v5354, %v5357
        %v5359 = vsel %vm5342, %v5350, %v5358
        %v5361 = vshrl.u32 %v5042, 16
        %v5363 = vrot.slane %v5361, 3
        %v5364 = vshll.u32 %v5042, 16
        %v5366 = vrot.slane %v5364, 4
        %v5367 = vor.u32 %v5363, %v5366
        %v5368 = vsel %vm5342, %v5358, %v5367
        %v5370 = vshrl.u32 %v5043, 16
        %v5372 = vrot.slane %v5370, 3
        %v5373 = vshll.u32 %v5043, 16
        %v5375 = vrot.slane %v5373, 4
        %v5376 = vor.u32 %v5372, %v5375
        %v5377 = vsel %vm5342, %v5367, %v5376
        %v5379 = vshrl.u32 %v5044, 16
        %v5381 = vrot.slane %v5379, 3
        %v5382 = vshll.u32 %v5044, 16
        %v5384 = vrot.slane %v5382, 4
        %v5385 = vor.u32 %v5381, %v5384
        %v5386 = vsel %vm5342, %v5376, %v5385
        %v5388 = vshrl.u32 %v5341, 16
        %v5390 = vrot.slane %v5388, 3
        %v5391 = vshll.u32 %v5341, 16
        %v5393 = vrot.slane %v5391, 4
        %v5394 = vor.u32 %v5390, %v5393
        %v5395 = vsel %vm5342, %v5385, %v5394
        %v5397 = vsel %vm612, %v5359, 0
        %v5400 = vsel %vm612, %v5368, 0
        %v5403 = vsel %vm612, %v5377, 0
        %v5406 = vsel %vm612, %v5386, 0
        %v5409 = vsel %vm612, %v5395, 0
        %v5412 = vsel %vm612, %v5394, 0
        %v5415 = vsel %vm631, %v5338, 0
        %5417 = vmatprep.subr.bf16.mxu0 0
        %5418 = vmatpush1.bf16.msra.mxu0 %v5415
        %5419 = vmatprep.subr.bf16.mxu0 0
        %5420 = vmatpush1.bf16.msra.mxu0 0
        %5421 = vmatprep.subr.bf16.mxu0 0
        %5422 = vmatpush1.bf16.msra.mxu0 0
        %5423 = vmatprep.subr.bf16.mxu0 0
        %5424 = vmatpush1.bf16.msra.mxu0 0
        %5425 = vmatprep.subr.bf16.mxu0 0
        %5426 = vmatpush1.bf16.msra.mxu0 0
        %5427 = vmatprep.subr.bf16.mxu0 0
        %5428 = vmatpush1.bf16.msra.mxu0 0
        %5429 = vmatprep.subr.bf16.mxu0 0
        %5430 = vmatpush1.bf16.msra.mxu0 0
        %5431 = vmatprep.subr.bf16.mxu0 0
        %5432 = vmatpush1.bf16.msra.mxu0 0
        %5433 = vmatprep.subr.bf16.mxu0 0
        %5434 = vmatpush1.bf16.msra.mxu0 0
        %5435 = vmatprep.subr.bf16.mxu0 0
        %5436 = vmatpush1.bf16.msra.mxu0 0
        %5437 = vmatprep.subr.bf16.mxu0 0
        %5438 = vmatpush1.bf16.msra.mxu0 0
        %5439 = vmatprep.subr.bf16.mxu0 0
        %5440 = vmatpush1.bf16.msra.mxu0 0
        %5441 = vmatprep.subr.bf16.mxu0 0
        %5442 = vmatpush1.bf16.msra.mxu0 0
        %5443 = vmatprep.subr.bf16.mxu0 0
        %5444 = vmatpush1.bf16.msra.mxu0 0
        %5445 = vmatprep.subr.bf16.mxu0 0
        %5446 = vmatpush1.bf16.msra.mxu0 0
        %5447 = vmatprep.subr.bf16.mxu0 0
        %5448 = vmatpush1.bf16.msra.mxu0 0
        %5449 = vmatprep.mubr.bf16.mxu0 0
        %5450 = vmatmul.mubr.bf16.gmra.mrb[0].mxu0 %v5397
        %v5451 = vpop.f32.mrb[0].mxu0
        %v5452 = vadd.f32 0.0, %v5451
        %v5453 = vpop.f32.mrb[0].mxu0
        %v5454 = vpop.f32.mrb[0].mxu0
        %v5455 = vadd.f32 0.0, %v5454
        %v5456 = vpop.f32.mrb[0].mxu0
        %5457 = vmatprep.mubr.bf16.mxu0 0
        %5458 = vmatmul.mubr.bf16.gmra.mrb[0].mxu0 %v5400
        %v5459 = vpop.f32.mrb[0].mxu0
        %v5460 = vadd.f32 0.0, %v5459
        %v5461 = vpop.f32.mrb[0].mxu0
        %v5462 = vpop.f32.mrb[0].mxu0
        %v5463 = vadd.f32 0.0, %v5462
        %v5464 = vpop.f32.mrb[0].mxu0
        %5465 = vmatprep.mubr.bf16.mxu0 0
        %5466 = vmatmul.mubr.bf16.gmra.mrb[0].mxu0 %v5403
        %v5467 = vpop.f32.mrb[0].mxu0
        %v5468 = vadd.f32 0.0, %v5467
        %v5469 = vpop.f32.mrb[0].mxu0
        %v5470 = vpop.f32.mrb[0].mxu0
        %v5471 = vadd.f32 0.0, %v5470
        %v5472 = vpop.f32.mrb[0].mxu0
        %5473 = vmatprep.mubr.bf16.mxu0 0
        %5474 = vmatmul.mubr.bf16.gmra.mrb[0].mxu0 %v5406
        %v5475 = vpop.f32.mrb[0].mxu0
        %v5476 = vadd.f32 0.0, %v5475
        %v5477 = vpop.f32.mrb[0].mxu0
        %v5478 = vpop.f32.mrb[0].mxu0
        %v5479 = vadd.f32 0.0, %v5478
        %v5480 = vpop.f32.mrb[0].mxu0
        %5481 = vmatprep.mubr.bf16.mxu0 0
        %5482 = vmatmul.mubr.bf16.gmra.mrb[0].mxu0 %v5409
        %v5483 = vpop.f32.mrb[0].mxu0
        %v5484 = vadd.f32 0.0, %v5483
        %v5485 = vpop.f32.mrb[0].mxu0
        %v5486 = vpop.f32.mrb[0].mxu0
        %v5487 = vadd.f32 0.0, %v5486
        %v5488 = vpop.f32.mrb[0].mxu0
        %5489 = vmatprep.mubr.bf16.mxu0 0
        %5490 = vmatmul.mubr.bf16.gmra.mrb[0].mxu0 %v5412
        %v5491 = vpop.f32.mrb[0].mxu0
        %v5492 = vadd.f32 0.0, %v5491
        %v5493 = vpop.f32.mrb[0].mxu0
        %v5494 = vpop.f32.mrb[0].mxu0
        %v5495 = vpop.f32.mrb[0].mxu0
        %5496 = vdwg.mxu0
        %v5497 = vadd.f32 %v5325, %v5452
        %v5498 = vadd.f32 %v5326, %v5455
        %v5499 = vadd.f32 %v5327, %v5460
        %v5500 = vadd.f32 %v5328, %v5463
        %v5501 = vadd.f32 %v5329, %v5468
        %v5502 = vadd.f32 %v5330, %v5471
        %v5503 = vadd.f32 %v5331, %v5476
        %v5504 = vadd.f32 %v5332, %v5479
        %v5505 = vadd.f32 %v5333, %v5484
        %v5506 = vadd.f32 %v5334, %v5487
        %v5507 = vadd.f32 %v5335, %v5492
        %v5508 = vld [vmem:[%s570 + $0x34] sm:$0xf]
        %s5509 = scalar_lea.vmem %s542, 62
        %v5510 = vld [vmem:[%s5509] sm:$0x3]
        %v5512 = vunpack.c.l.b16 %v5508
        %v5513 = vpack.c.b16 %v5512, %v5205
        %v5515 = vshrl.u32 %v5207, 16
        %v5517 = vrot.slane %v5515, 3
        %v5518 = vshll.u32 %v5207, 16
        %v5520 = vrot.slane %v5518, 4
        %v5521 = vor.u32 %v5517, %v5520
        %v5523 = vshrl.u32 %v5208, 16
        %v5525 = vrot.slane %v5523, 3
        %v5526 = vshll.u32 %v5208, 16
        %v5528 = vrot.slane %v5526, 4
        %v5529 = vor.u32 %v5525, %v5528
        %v5530 = vsel %vm5342, %v5521, %v5529
        %v5532 = vshrl.u32 %v5209, 16
        %v5534 = vrot.slane %v5532, 3
        %v5535 = vshll.u32 %v5209, 16
        %v5537 = vrot.slane %v5535, 4
        %v5538 = vor.u32 %v5534, %v5537
        %v5539 = vsel %vm5342, %v5529, %v5538
        %v5541 = vshrl.u32 %v5210, 16
        %v5543 = vrot.slane %v5541, 3
        %v5544 = vshll.u32 %v5210, 16
        %v5546 = vrot.slane %v5544, 4
        %v5547 = vor.u32 %v5543, %v5546
        %v5548 = vsel %vm5342, %v5538, %v5547
        %v5550 = vshrl.u32 %v5211, 16
        %v5552 = vrot.slane %v5550, 3
        %v5553 = vshll.u32 %v5211, 16
        %v5555 = vrot.slane %v5553, 4
        %v5556 = vor.u32 %v5552, %v5555
        %v5557 = vsel %vm5342, %v5547, %v5556
        %v5559 = vshrl.u32 %v5513, 16
        %v5561 = vrot.slane %v5559, 3
        %v5562 = vshll.u32 %v5513, 16
        %v5564 = vrot.slane %v5562, 4
        %v5565 = vor.u32 %v5561, %v5564
        %v5566 = vsel %vm5342, %v5556, %v5565
        %v5568 = vsel %vm612, %v5530, 0
        %v5571 = vsel %vm612, %v5539, 0
        %v5574 = vsel %vm612, %v5548, 0
        %v5577 = vsel %vm612, %v5557, 0
        %v5580 = vsel %vm612, %v5566, 0
        %v5583 = vsel %vm612, %v5565, 0
        %v5586 = vsel %vm631, %v5510, 0
        %5588 = vmatprep.subr.bf16.mxu0 0
        %5589 = vmatpush1.bf16.msra.mxu0 %v5586
        %5590 = vmatprep.subr.bf16.mxu0 0
        %5591 = vmatpush1.bf16.msra.mxu0 0
        %5592 = vmatprep.subr.bf16.mxu0 0
        %5593 = vmatpush1.bf16.msra.mxu0 0
        %5594 = vmatprep.subr.bf16.mxu0 0
        %5595 = vmatpush1.bf16.msra.mxu0 0
        %5596 = vmatprep.subr.bf16.mxu0 0
        %5597 = vmatpush1.bf16.msra.mxu0 0
        %5598 = vmatprep.subr.bf16.mxu0 0
        %5599 = vmatpush1.bf16.msra.mxu0 0
        %5600 = vmatprep.subr.bf16.mxu0 0
        %5601 = vmatpush1.bf16.msra.mxu0 0
        %5602 = vmatprep.subr.bf16.mxu0 0
        %5603 = vmatpush1.bf16.msra.mxu0 0
        %5604 = vmatprep.subr.bf16.mxu0 0
        %5605 = vmatpush1.bf16.msra.mxu0 0
        %5606 = vmatprep.subr.bf16.mxu0 0
        %5607 = vmatpush1.bf16.msra.mxu0 0
        %5608 = vmatprep.subr.bf16.mxu0 0
        %5609 = vmatpush1.bf16.msra.mxu0 0
        %5610 = vmatprep.subr.bf16.mxu0 0
        %5611 = vmatpush1.bf16.msra.mxu0 0
        %5612 = vmatprep.subr.bf16.mxu0 0
        %5613 = vmatpush1.bf16.msra.mxu0 0
        %5614 = vmatprep.subr.bf16.mxu0 0
        %5615 = vmatpush1.bf16.msra.mxu0 0
        %5616 = vmatprep.subr.bf16.mxu0 0
        %5617 = vmatpush1.bf16.msra.mxu0 0
        %5618 = vmatprep.subr.bf16.mxu0 0
        %5619 = vmatpush1.bf16.msra.mxu0 0
        %5620 = vmatprep.mubr.bf16.mxu0 0
        %5621 = vmatmul.mubr.bf16.gmra.mrb[0].mxu0 %v5568
        %v5622 = vpop.f32.mrb[0].mxu0
        %v5623 = vadd.f32 0.0, %v5622
        %v5624 = vpop.f32.mrb[0].mxu0
        %v5625 = vpop.f32.mrb[0].mxu0
        %v5626 = vadd.f32 0.0, %v5625
        %v5627 = vpop.f32.mrb[0].mxu0
        %5628 = vmatprep.mubr.bf16.mxu0 0
        %5629 = vmatmul.mubr.bf16.gmra.mrb[0].mxu0 %v5571
        %v5630 = vpop.f32.mrb[0].mxu0
        %v5631 = vadd.f32 0.0, %v5630
        %v5632 = vpop.f32.mrb[0].mxu0
        %v5633 = vpop.f32.mrb[0].mxu0
        %v5634 = vadd.f32 0.0, %v5633
        %v5635 = vpop.f32.mrb[0].mxu0
        %5636 = vmatprep.mubr.bf16.mxu0 0
        %5637 = vmatmul.mubr.bf16.gmra.mrb[0].mxu0 %v5574
        %v5638 = vpop.f32.mrb[0].mxu0
        %v5639 = vadd.f32 0.0, %v5638
        %v5640 = vpop.f32.mrb[0].mxu0
        %v5641 = vpop.f32.mrb[0].mxu0
        %v5642 = vadd.f32 0.0, %v5641
        %v5643 = vpop.f32.mrb[0].mxu0
        %5644 = vmatprep.mubr.bf16.mxu0 0
        %5645 = vmatmul.mubr.bf16.gmra.mrb[0].mxu0 %v5577
        %v5646 = vpop.f32.mrb[0].mxu0
        %v5647 = vadd.f32 0.0, %v5646
        %v5648 = vpop.f32.mrb[0].mxu0
        %v5649 = vpop.f32.mrb[0].mxu0
        %v5650 = vadd.f32 0.0, %v5649
        %v5651 = vpop.f32.mrb[0].mxu0
        %5652 = vmatprep.mubr.bf16.mxu0 0
        %5653 = vmatmul.mubr.bf16.gmra.mrb[0].mxu0 %v5580
        %v5654 = vpop.f32.mrb[0].mxu0
        %v5655 = vadd.f32 0.0, %v5654
        %v5656 = vpop.f32.mrb[0].mxu0
        %v5657 = vpop.f32.mrb[0].mxu0
        %v5658 = vadd.f32 0.0, %v5657
        %v5659 = vpop.f32.mrb[0].mxu0
        %5660 = vmatprep.mubr.bf16.mxu0 0
        %5661 = vmatmul.mubr.bf16.gmra.mrb[0].mxu0 %v5583
        %v5662 = vpop.f32.mrb[0].mxu0
        %v5663 = vadd.f32 0.0, %v5662
        %v5664 = vpop.f32.mrb[0].mxu0
        %v5665 = vpop.f32.mrb[0].mxu0
        %v5666 = vpop.f32.mrb[0].mxu0
        %5667 = vdwg.mxu0
        %v5668 = vadd.f32 %v5497, %v5623
        %v5669 = vadd.f32 %v5498, %v5626
        %v5670 = vadd.f32 %v5499, %v5631
        %v5671 = vadd.f32 %v5500, %v5634
        %v5672 = vadd.f32 %v5501, %v5639
        %v5673 = vadd.f32 %v5502, %v5642
        %v5674 = vadd.f32 %v5503, %v5647
        %v5675 = vadd.f32 %v5504, %v5650
        %v5676 = vadd.f32 %v5505, %v5655
        %v5677 = vadd.f32 %v5506, %v5658
        %v5678 = vadd.f32 %v5507, %v5663
        %s5679 = scalar_lea.vmem %s542, 64
        %v5680 = vld [vmem:[%s5679] sm:$0x3]
        %v5681 = vpack.c.b16 %v5030, %v5029
        %v5682 = vpack.c.b16 %v5032, %v5031
        %v5683 = vpack.c.b16 %v5034, %v5033
        %v5684 = vpack.c.b16 %v5036, %v5035
        %v5685 = vpack.c.b16 %v5038, %v5037
        %v5686 = vpack.c.b16 %v5340, %v5340
        %v5688 = vsel %vm612, %v5681, 0
        %v5691 = vsel %vm612, %v5682, 0
        %v5694 = vsel %vm612, %v5683, 0
        %v5697 = vsel %vm612, %v5684, 0
        %v5700 = vsel %vm612, %v5685, 0
        %v5703 = vsel %vm612, %v5686, 0
        %v5706 = vsel %vm631, %v5680, 0
        %5708 = vmatprep.subr.bf16.mxu0 0
        %5709 = vmatpush1.bf16.msra.mxu0 %v5706
        %5710 = vmatprep.subr.bf16.mxu0 0
        %5711 = vmatpush1.bf16.msra.mxu0 0
        %5712 = vmatprep.subr.bf16.mxu0 0
        %5713 = vmatpush1.bf16.msra.mxu0 0
        %5714 = vmatprep.subr.bf16.mxu0 0
        %5715 = vmatpush1.bf16.msra.mxu0 0
        %5716 = vmatprep.subr.bf16.mxu0 0
        %5717 = vmatpush1.bf16.msra.mxu0 0
        %5718 = vmatprep.subr.bf16.mxu0 0
        %5719 = vmatpush1.bf16.msra.mxu0 0
        %5720 = vmatprep.subr.bf16.mxu0 0
        %5721 = vmatpush1.bf16.msra.mxu0 0
        %5722 = vmatprep.subr.bf16.mxu0 0
        %5723 = vmatpush1.bf16.msra.mxu0 0
        %5724 = vmatprep.subr.bf16.mxu0 0
        %5725 = vmatpush1.bf16.msra.mxu0 0
        %5726 = vmatprep.subr.bf16.mxu0 0
        %5727 = vmatpush1.bf16.msra.mxu0 0
        %5728 = vmatprep.subr.bf16.mxu0 0
        %5729 = vmatpush1.bf16.msra.mxu0 0
        %5730 = vmatprep.subr.bf16.mxu0 0
        %5731 = vmatpush1.bf16.msra.mxu0 0
        %5732 = vmatprep.subr.bf16.mxu0 0
        %5733 = vmatpush1.bf16.msra.mxu0 0
        %5734 = vmatprep.subr.bf16.mxu0 0
        %5735 = vmatpush1.bf16.msra.mxu0 0
        %5736 = vmatprep.subr.bf16.mxu0 0
        %5737 = vmatpush1.bf16.msra.mxu0 0
        %5738 = vmatprep.subr.bf16.mxu0 0
        %5739 = vmatpush1.bf16.msra.mxu0 0
        %5740 = vmatprep.mubr.bf16.mxu0 0
        %5741 = vmatmul.mubr.bf16.gmra.mrb[0].mxu0 %v5688
        %v5742 = vpop.f32.mrb[0].mxu0
        %v5743 = vadd.f32 0.0, %v5742
        %v5744 = vpop.f32.mrb[0].mxu0
        %v5745 = vpop.f32.mrb[0].mxu0
        %v5746 = vadd.f32 0.0, %v5745
        %v5747 = vpop.f32.mrb[0].mxu0
        %5748 = vmatprep.mubr.bf16.mxu0 0
        %5749 = vmatmul.mubr.bf16.gmra.mrb[0].mxu0 %v5691
        %v5750 = vpop.f32.mrb[0].mxu0
        %v5751 = vadd.f32 0.0, %v5750
        %v5752 = vpop.f32.mrb[0].mxu0
        %v5753 = vpop.f32.mrb[0].mxu0
        %v5754 = vadd.f32 0.0, %v5753
        %v5755 = vpop.f32.mrb[0].mxu0
        %5756 = vmatprep.mubr.bf16.mxu0 0
        %5757 = vmatmul.mubr.bf16.gmra.mrb[0].mxu0 %v5694
        %v5758 = vpop.f32.mrb[0].mxu0
        %v5759 = vadd.f32 0.0, %v5758
        %v5760 = vpop.f32.mrb[0].mxu0
        %v5761 = vpop.f32.mrb[0].mxu0
        %v5762 = vadd.f32 0.0, %v5761
        %v5763 = vpop.f32.mrb[0].mxu0
        %5764 = vmatprep.mubr.bf16.mxu0 0
        %5765 = vmatmul.mubr.bf16.gmra.mrb[0].mxu0 %v5697
        %v5766 = vpop.f32.mrb[0].mxu0
        %v5767 = vadd.f32 0.0, %v5766
        %v5768 = vpop.f32.mrb[0].mxu0
        %v5769 = vpop.f32.mrb[0].mxu0
        %v5770 = vadd.f32 0.0, %v5769
        %v5771 = vpop.f32.mrb[0].mxu0
        %5772 = vmatprep.mubr.bf16.mxu0 0
        %5773 = vmatmul.mubr.bf16.gmra.mrb[0].mxu0 %v5700
        %v5774 = vpop.f32.mrb[0].mxu0
        %v5775 = vadd.f32 0.0, %v5774
        %v5776 = vpop.f32.mrb[0].mxu0
        %v5777 = vpop.f32.mrb[0].mxu0
        %v5778 = vadd.f32 0.0, %v5777
        %v5779 = vpop.f32.mrb[0].mxu0
        %5780 = vmatprep.mubr.bf16.mxu0 0
        %5781 = vmatmul.mubr.bf16.gmra.mrb[0].mxu0 %v5703
        %v5782 = vpop.f32.mrb[0].mxu0
        %v5783 = vadd.f32 0.0, %v5782
        %v5784 = vpop.f32.mrb[0].mxu0
        %v5785 = vpop.f32.mrb[0].mxu0
        %v5786 = vpop.f32.mrb[0].mxu0
        %5787 = vdwg.mxu0
        %v5788 = vadd.f32 %v5668, %v5743
        %v5789 = vadd.f32 %v5669, %v5746
        %v5790 = vadd.f32 %v5670, %v5751
        %v5791 = vadd.f32 %v5671, %v5754
        %v5792 = vadd.f32 %v5672, %v5759
        %v5793 = vadd.f32 %v5673, %v5762
        %v5794 = vadd.f32 %v5674, %v5767
        %v5795 = vadd.f32 %v5675, %v5770
        %v5796 = vadd.f32 %v5676, %v5775
        %v5797 = vadd.f32 %v5677, %v5778
        %v5798 = vadd.f32 %v5678, %v5783
        %s5799 = scalar_lea.vmem %s542, 66
        %v5800 = vld [vmem:[%s5799] sm:$0x3]
        %v5801 = vpack.c.b16 %v5197, %v5196
        %v5802 = vpack.c.b16 %v5199, %v5198
        %v5803 = vpack.c.b16 %v5201, %v5200
        %v5804 = vpack.c.b16 %v5203, %v5202
        %v5805 = vpack.c.b16 %v5205, %v5204
        %v5806 = vpack.c.b16 %v5512, %v5512
        %v5808 = vsel %vm612, %v5801, 0
        %v5811 = vsel %vm612, %v5802, 0
        %v5814 = vsel %vm612, %v5803, 0
        %v5817 = vsel %vm612, %v5804, 0
        %v5820 = vsel %vm612, %v5805, 0
        %v5823 = vsel %vm612, %v5806, 0
        %v5826 = vsel %vm631, %v5800, 0
        %5828 = vmatprep.subr.bf16.mxu0 0
        %5829 = vmatpush1.bf16.msra.mxu0 %v5826
        %5830 = vmatprep.subr.bf16.mxu0 0
        %5831 = vmatpush1.bf16.msra.mxu0 0
        %5832 = vmatprep.subr.bf16.mxu0 0
        %5833 = vmatpush1.bf16.msra.mxu0 0
        %5834 = vmatprep.subr.bf16.mxu0 0
        %5835 = vmatpush1.bf16.msra.mxu0 0
        %5836 = vmatprep.subr.bf16.mxu0 0
        %5837 = vmatpush1.bf16.msra.mxu0 0
        %5838 = vmatprep.subr.bf16.mxu0 0
        %5839 = vmatpush1.bf16.msra.mxu0 0
        %5840 = vmatprep.subr.bf16.mxu0 0
        %5841 = vmatpush1.bf16.msra.mxu0 0
        %5842 = vmatprep.subr.bf16.mxu0 0
        %5843 = vmatpush1.bf16.msra.mxu0 0
        %5844 = vmatprep.subr.bf16.mxu0 0
        %5845 = vmatpush1.bf16.msra.mxu0 0
        %5846 = vmatprep.subr.bf16.mxu0 0
        %5847 = vmatpush1.bf16.msra.mxu0 0
        %5848 = vmatprep.subr.bf16.mxu0 0
        %5849 = vmatpush1.bf16.msra.mxu0 0
        %5850 = vmatprep.subr.bf16.mxu0 0
        %5851 = vmatpush1.bf16.msra.mxu0 0
        %5852 = vmatprep.subr.bf16.mxu0 0
        %5853 = vmatpush1.bf16.msra.mxu0 0
        %5854 = vmatprep.subr.bf16.mxu0 0
        %5855 = vmatpush1.bf16.msra.mxu0 0
        %5856 = vmatprep.subr.bf16.mxu0 0
        %5857 = vmatpush1.bf16.msra.mxu0 0
        %5858 = vmatprep.subr.bf16.mxu0 0
        %5859 = vmatpush1.bf16.msra.mxu0 0
        %5860 = vmatprep.mubr.bf16.mxu0 0
        %5861 = vmatmul.mubr.bf16.gmra.mrb[0].mxu0 %v5808
        %v5862 = vpop.f32.mrb[0].mxu0
        %v5863 = vadd.f32 0.0, %v5862
        %v5864 = vpop.f32.mrb[0].mxu0
        %v5865 = vpop.f32.mrb[0].mxu0
        %v5866 = vadd.f32 0.0, %v5865
        %v5867 = vpop.f32.mrb[0].mxu0
        %5868 = vmatprep.mubr.bf16.mxu0 0
        %5869 = vmatmul.mubr.bf16.gmra.mrb[0].mxu0 %v5811
        %v5870 = vpop.f32.mrb[0].mxu0
        %v5871 = vadd.f32 0.0, %v5870
        %v5872 = vpop.f32.mrb[0].mxu0
        %v5873 = vpop.f32.mrb[0].mxu0
        %v5874 = vadd.f32 0.0, %v5873
        %v5875 = vpop.f32.mrb[0].mxu0
        %5876 = vmatprep.mubr.bf16.mxu0 0
        %5877 = vmatmul.mubr.bf16.gmra.mrb[0].mxu0 %v5814
        %v5878 = vpop.f32.mrb[0].mxu0
        %v5879 = vadd.f32 0.0, %v5878
        %v5880 = vpop.f32.mrb[0].mxu0
        %v5881 = vpop.f32.mrb[0].mxu0
        %v5882 = vadd.f32 0.0, %v5881
        %v5883 = vpop.f32.mrb[0].mxu0
        %5884 = vmatprep.mubr.bf16.mxu0 0
        %5885 = vmatmul.mubr.bf16.gmra.mrb[0].mxu0 %v5817
        %v5886 = vpop.f32.mrb[0].mxu0
        %v5887 = vadd.f32 0.0, %v5886
        %v5888 = vpop.f32.mrb[0].mxu0
        %v5889 = vpop.f32.mrb[0].mxu0
        %v5890 = vadd.f32 0.0, %v5889
        %v5891 = vpop.f32.mrb[0].mxu0
        %5892 = vmatprep.mubr.bf16.mxu0 0
        %5893 = vmatmul.mubr.bf16.gmra.mrb[0].mxu0 %v5820
        %v5894 = vpop.f32.mrb[0].mxu0
        %v5895 = vadd.f32 0.0, %v5894
        %v5896 = vpop.f32.mrb[0].mxu0
        %v5897 = vpop.f32.mrb[0].mxu0
        %v5898 = vadd.f32 0.0, %v5897
        %v5899 = vpop.f32.mrb[0].mxu0
        %5900 = vmatprep.mubr.bf16.mxu0 0
        %5901 = vmatmul.mubr.bf16.gmra.mrb[0].mxu0 %v5823
        %v5902 = vpop.f32.mrb[0].mxu0
        %v5903 = vadd.f32 0.0, %v5902
        %v5904 = vpop.f32.mrb[0].mxu0
        %v5905 = vpop.f32.mrb[0].mxu0
        %v5906 = vpop.f32.mrb[0].mxu0
        %5907 = vdwg.mxu0
        %v5908 = vadd.f32 %v5788, %v5863
        %v5909 = vadd.f32 %v5789, %v5866
        %v5910 = vadd.f32 %v5790, %v5871
        %v5911 = vadd.f32 %v5791, %v5874
        %v5912 = vadd.f32 %v5792, %v5879
        %v5913 = vadd.f32 %v5793, %v5882
        %v5914 = vadd.f32 %v5794, %v5887
        %v5915 = vadd.f32 %v5795, %v5890
        %v5916 = vadd.f32 %v5796, %v5895
        %v5917 = vadd.f32 %v5797, %v5898
        %v5918 = vadd.f32 %v5798, %v5903
        %v5919 = vld [vmem:[%s503 + $0xc] sm:$0xf]
        %v5920 = vld [vmem:[%s503 + $0x10] sm:$0xf]
        %v5921 = vld [vmem:[%s503 + $0x14] sm:$0xf]
        %v5922 = vld [vmem:[%s503 + $0x18] sm:$0xf]
        %v5923 = vld [vmem:[%s503 + $0x1c] sm:$0xf]
        %v5924 = vld [vmem:[%s503 + $0x20] sm:$0xf]
        %v5925 = vld [vmem:[%s503 + $0x24] sm:$0xf]
        %v5926 = vld [vmem:[%s503 + $0x28] sm:$0xf]
        %v5927 = vld [vmem:[%s503 + $0x2c] sm:$0xf]
        %v5928 = vld [vmem:[%s503 + $0x30] sm:$0xf]
        %v5929 = vld [vmem:[%s503 + $0x34] sm:$0xf]
        %v5930 = vld [vmem:[%s503 + $0x38] sm:$0x1]
        %s5931 = scalar_lea.vmem %s542, 68
        %v5932 = vld [vmem:[%s5931] sm:$0x3]
        %v5945 = vunpack.c.l.b16 %v5919
        %v5946 = vunpack.c.l.b16 %v5920
        %v5947 = vunpack.c.l.b16 %v5921
        %v5948 = vunpack.c.l.b16 %v5922
        %v5949 = vunpack.c.l.b16 %v5923
        %v5950 = vunpack.c.l.b16 %v5924
        %v5951 = vunpack.c.l.b16 %v5925
        %v5952 = vunpack.c.l.b16 %v5926
        %v5953 = vunpack.c.l.b16 %v5927
        %v5954 = vunpack.c.l.b16 %v5928
        %v5955 = vunpack.c.l.b16 %v5929
        %v5956 = vunpack.c.l.b16 %v5930
        %v5957 = vpack.c.b16 %v5946, %v5945
        %v5958 = vpack.c.b16 %v5948, %v5947
        %v5959 = vpack.c.b16 %v5950, %v5949
        %v5960 = vpack.c.b16 %v5952, %v5951
        %v5961 = vpack.c.b16 %v5954, %v5953
        %v5962 = vpack.c.b16 %v5956, %v5955
        %v5964 = vshrl.u32 %v5957, 16
        %v5966 = vshll.u32 %v5957, 16
        %v5968 = vrot.slane %v5966, 1
        %v5969 = vor.u32 %v5964, %v5968
        %v5971 = vshll.u32 %v5958, 16
        %v5973 = vrot.slane %v5971, 1
        %v5974 = vsel %vm888, %v5969, %v5973
        %v5975 = vshrl.u32 %v5958, 16
        %v5977 = vor.u32 %v5975, %v5973
        %v5979 = vshll.u32 %v5959, 16
        %v5981 = vrot.slane %v5979, 1
        %v5982 = vsel %vm888, %v5977, %v5981
        %v5983 = vshrl.u32 %v5959, 16
        %v5985 = vor.u32 %v5983, %v5981
        %v5987 = vshll.u32 %v5960, 16
        %v5989 = vrot.slane %v5987, 1
        %v5990 = vsel %vm888, %v5985, %v5989
        %v5991 = vshrl.u32 %v5960, 16
        %v5993 = vor.u32 %v5991, %v5989
        %v5995 = vshll.u32 %v5961, 16
        %v5997 = vrot.slane %v5995, 1
        %v5998 = vsel %vm888, %v5993, %v5997
        %v5999 = vshrl.u32 %v5961, 16
        %v6001 = vor.u32 %v5999, %v5997
        %v6003 = vshll.u32 %v5962, 16
        %v6005 = vrot.slane %v6003, 1
        %v6006 = vsel %vm888, %v6001, %v6005
        %v6007 = vshrl.u32 %v5962, 16
        %v6009 = vor.u32 %v6007, %v6005
        %v6011 = vsel %vm612, %v5974, 0
        %v6014 = vsel %vm612, %v5982, 0
        %v6017 = vsel %vm612, %v5990, 0
        %v6020 = vsel %vm612, %v5998, 0
        %v6023 = vsel %vm612, %v6006, 0
        %v6026 = vsel %vm612, %v6009, 0
        %v6029 = vsel %vm631, %v5932, 0
        %6031 = vmatprep.subr.bf16.mxu0 0
        %6032 = vmatpush1.bf16.msra.mxu0 %v6029
        %6033 = vmatprep.subr.bf16.mxu0 0
        %6034 = vmatpush1.bf16.msra.mxu0 0
        %6035 = vmatprep.subr.bf16.mxu0 0
        %6036 = vmatpush1.bf16.msra.mxu0 0
        %6037 = vmatprep.subr.bf16.mxu0 0
        %6038 = vmatpush1.bf16.msra.mxu0 0
        %6039 = vmatprep.subr.bf16.mxu0 0
        %6040 = vmatpush1.bf16.msra.mxu0 0
        %6041 = vmatprep.subr.bf16.mxu0 0
        %6042 = vmatpush1.bf16.msra.mxu0 0
        %6043 = vmatprep.subr.bf16.mxu0 0
        %6044 = vmatpush1.bf16.msra.mxu0 0
        %6045 = vmatprep.subr.bf16.mxu0 0
        %6046 = vmatpush1.bf16.msra.mxu0 0
        %6047 = vmatprep.subr.bf16.mxu0 0
        %6048 = vmatpush1.bf16.msra.mxu0 0
        %6049 = vmatprep.subr.bf16.mxu0 0
        %6050 = vmatpush1.bf16.msra.mxu0 0
        %6051 = vmatprep.subr.bf16.mxu0 0
        %6052 = vmatpush1.bf16.msra.mxu0 0
        %6053 = vmatprep.subr.bf16.mxu0 0
        %6054 = vmatpush1.bf16.msra.mxu0 0
        %6055 = vmatprep.subr.bf16.mxu0 0
        %6056 = vmatpush1.bf16.msra.mxu0 0
        %6057 = vmatprep.subr.bf16.mxu0 0
        %6058 = vmatpush1.bf16.msra.mxu0 0
        %6059 = vmatprep.subr.bf16.mxu0 0
        %6060 = vmatpush1.bf16.msra.mxu0 0
        %6061 = vmatprep.subr.bf16.mxu0 0
        %6062 = vmatpush1.bf16.msra.mxu0 0
        %6063 = vmatprep.mubr.bf16.mxu0 0
        %6064 = vmatmul.mubr.bf16.gmra.mrb[0].mxu0 %v6011
        %v6065 = vpop.f32.mrb[0].mxu0
        %v6066 = vadd.f32 0.0, %v6065
        %v6067 = vpop.f32.mrb[0].mxu0
        %v6068 = vpop.f32.mrb[0].mxu0
        %v6069 = vadd.f32 0.0, %v6068
        %v6070 = vpop.f32.mrb[0].mxu0
        %6071 = vmatprep.mubr.bf16.mxu0 0
        %6072 = vmatmul.mubr.bf16.gmra.mrb[0].mxu0 %v6014
        %v6073 = vpop.f32.mrb[0].mxu0
        %v6074 = vadd.f32 0.0, %v6073
        %v6075 = vpop.f32.mrb[0].mxu0
        %v6076 = vpop.f32.mrb[0].mxu0
        %v6077 = vadd.f32 0.0, %v6076
        %v6078 = vpop.f32.mrb[0].mxu0
        %6079 = vmatprep.mubr.bf16.mxu0 0
        %6080 = vmatmul.mubr.bf16.gmra.mrb[0].mxu0 %v6017
        %v6081 = vpop.f32.mrb[0].mxu0
        %v6082 = vadd.f32 0.0, %v6081
        %v6083 = vpop.f32.mrb[0].mxu0
        %v6084 = vpop.f32.mrb[0].mxu0
        %v6085 = vadd.f32 0.0, %v6084
        %v6086 = vpop.f32.mrb[0].mxu0
        %6087 = vmatprep.mubr.bf16.mxu0 0
        %6088 = vmatmul.mubr.bf16.gmra.mrb[0].mxu0 %v6020
        %v6089 = vpop.f32.mrb[0].mxu0
        %v6090 = vadd.f32 0.0, %v6089
        %v6091 = vpop.f32.mrb[0].mxu0
        %v6092 = vpop.f32.mrb[0].mxu0
        %v6093 = vadd.f32 0.0, %v6092
        %v6094 = vpop.f32.mrb[0].mxu0
        %6095 = vmatprep.mubr.bf16.mxu0 0
        %6096 = vmatmul.mubr.bf16.gmra.mrb[0].mxu0 %v6023
        %v6097 = vpop.f32.mrb[0].mxu0
        %v6098 = vadd.f32 0.0, %v6097
        %v6099 = vpop.f32.mrb[0].mxu0
        %v6100 = vpop.f32.mrb[0].mxu0
        %v6101 = vadd.f32 0.0, %v6100
        %v6102 = vpop.f32.mrb[0].mxu0
        %6103 = vmatprep.mubr.bf16.mxu0 0
        %6104 = vmatmul.mubr.bf16.gmra.mrb[0].mxu0 %v6026
        %v6105 = vpop.f32.mrb[0].mxu0
        %v6106 = vadd.f32 0.0, %v6105
        %v6107 = vpop.f32.mrb[0].mxu0
        %v6108 = vpop.f32.mrb[0].mxu0
        %v6109 = vpop.f32.mrb[0].mxu0
        %6110 = vdwg.mxu0
        %v6111 = vadd.f32 %v5908, %v6066
        %v6112 = vadd.f32 %v5909, %v6069
        %v6113 = vadd.f32 %v5910, %v6074
        %v6114 = vadd.f32 %v5911, %v6077
        %v6115 = vadd.f32 %v5912, %v6082
        %v6116 = vadd.f32 %v5913, %v6085
        %v6117 = vadd.f32 %v5914, %v6090
        %v6118 = vadd.f32 %v5915, %v6093
        %v6119 = vadd.f32 %v5916, %v6098
        %v6120 = vadd.f32 %v5917, %v6101
        %v6121 = vadd.f32 %v5918, %v6106
        %v6122 = vld [vmem:[%s1662 + $0x8] sm:$0x8]
        %v6123 = vld [vmem:[%s1662 + $0xc] sm:$0xf]
        %v6124 = vld [vmem:[%s1662 + $0x10] sm:$0xf]
        %v6125 = vld [vmem:[%s1662 + $0x14] sm:$0xf]
        %v6126 = vld [vmem:[%s1662 + $0x18] sm:$0xf]
        %v6127 = vld [vmem:[%s1662 + $0x1c] sm:$0xf]
        %v6128 = vld [vmem:[%s1662 + $0x20] sm:$0xf]
        %v6129 = vld [vmem:[%s1662 + $0x24] sm:$0xf]
        %v6130 = vld [vmem:[%s1662 + $0x28] sm:$0xf]
        %v6131 = vld [vmem:[%s1662 + $0x2c] sm:$0xf]
        %v6132 = vld [vmem:[%s1662 + $0x30] sm:$0xf]
        %v6133 = vld [vmem:[%s1662 + $0x34] sm:$0x7]
        %s6134 = scalar_lea.vmem %s542, 70
        %v6135 = vld [vmem:[%s6134] sm:$0x3]
        %v6148 = vunpack.c.l.b16 %v6122
        %v6149 = vunpack.c.l.b16 %v6123
        %v6150 = vunpack.c.l.b16 %v6124
        %v6151 = vunpack.c.l.b16 %v6125
        %v6152 = vunpack.c.l.b16 %v6126
        %v6153 = vunpack.c.l.b16 %v6127
        %v6154 = vunpack.c.l.b16 %v6128
        %v6155 = vunpack.c.l.b16 %v6129
        %v6156 = vunpack.c.l.b16 %v6130
        %v6157 = vunpack.c.l.b16 %v6131
        %v6158 = vunpack.c.l.b16 %v6132
        %v6159 = vunpack.c.l.b16 %v6133
        %v6160 = vpack.c.b16 %v6149, %v6148
        %v6161 = vpack.c.b16 %v6151, %v6150
        %v6162 = vpack.c.b16 %v6153, %v6152
        %v6163 = vpack.c.b16 %v6155, %v6154
        %v6164 = vpack.c.b16 %v6157, %v6156
        %v6165 = vpack.c.b16 %v6159, %v6158
        %v6166 = vrot.slane %v6160, 3
        %v6167 = vrot.slane %v6161, 3
        %v6168 = vsel %vm3771, %v6166, %v6167
        %v6169 = vrot.slane %v6162, 3
        %v6170 = vsel %vm3771, %v6167, %v6169
        %v6171 = vrot.slane %v6163, 3
        %v6172 = vsel %vm3771, %v6169, %v6171
        %v6173 = vrot.slane %v6164, 3
        %v6174 = vsel %vm3771, %v6171, %v6173
        %v6175 = vrot.slane %v6165, 3
        %v6176 = vsel %vm3771, %v6173, %v6175
        %v6178 = vsel %vm612, %v6168, 0
        %v6181 = vsel %vm612, %v6170, 0
        %v6184 = vsel %vm612, %v6172, 0
        %v6187 = vsel %vm612, %v6174, 0
        %v6190 = vsel %vm612, %v6176, 0
        %v6193 = vsel %vm612, %v6175, 0
        %v6196 = vsel %vm631, %v6135, 0
        %6198 = vmatprep.subr.bf16.mxu0 0
        %6199 = vmatpush1.bf16.msra.mxu0 %v6196
        %6200 = vmatprep.subr.bf16.mxu0 0
        %6201 = vmatpush1.bf16.msra.mxu0 0
        %6202 = vmatprep.subr.bf16.mxu0 0
        %6203 = vmatpush1.bf16.msra.mxu0 0
        %6204 = vmatprep.subr.bf16.mxu0 0
        %6205 = vmatpush1.bf16.msra.mxu0 0
        %6206 = vmatprep.subr.bf16.mxu0 0
        %6207 = vmatpush1.bf16.msra.mxu0 0
        %6208 = vmatprep.subr.bf16.mxu0 0
        %6209 = vmatpush1.bf16.msra.mxu0 0
        %6210 = vmatprep.subr.bf16.mxu0 0
        %6211 = vmatpush1.bf16.msra.mxu0 0
        %6212 = vmatprep.subr.bf16.mxu0 0
        %6213 = vmatpush1.bf16.msra.mxu0 0
        %6214 = vmatprep.subr.bf16.mxu0 0
        %6215 = vmatpush1.bf16.msra.mxu0 0
        %6216 = vmatprep.subr.bf16.mxu0 0
        %6217 = vmatpush1.bf16.msra.mxu0 0
        %6218 = vmatprep.subr.bf16.mxu0 0
        %6219 = vmatpush1.bf16.msra.mxu0 0
        %6220 = vmatprep.subr.bf16.mxu0 0
        %6221 = vmatpush1.bf16.msra.mxu0 0
        %6222 = vmatprep.subr.bf16.mxu0 0
        %6223 = vmatpush1.bf16.msra.mxu0 0
        %6224 = vmatprep.subr.bf16.mxu0 0
        %6225 = vmatpush1.bf16.msra.mxu0 0
        %6226 = vmatprep.subr.bf16.mxu0 0
        %6227 = vmatpush1.bf16.msra.mxu0 0
        %6228 = vmatprep.subr.bf16.mxu0 0
        %6229 = vmatpush1.bf16.msra.mxu0 0
        %6230 = vmatprep.mubr.bf16.mxu0 0
        %6231 = vmatmul.mubr.bf16.gmra.mrb[0].mxu0 %v6178
        %v6232 = vpop.f32.mrb[0].mxu0
        %v6233 = vadd.f32 0.0, %v6232
        %v6234 = vpop.f32.mrb[0].mxu0
        %v6235 = vpop.f32.mrb[0].mxu0
        %v6236 = vadd.f32 0.0, %v6235
        %v6237 = vpop.f32.mrb[0].mxu0
        %6238 = vmatprep.mubr.bf16.mxu0 0
        %6239 = vmatmul.mubr.bf16.gmra.mrb[0].mxu0 %v6181
        %v6240 = vpop.f32.mrb[0].mxu0
        %v6241 = vadd.f32 0.0, %v6240
        %v6242 = vpop.f32.mrb[0].mxu0
        %v6243 = vpop.f32.mrb[0].mxu0
        %v6244 = vadd.f32 0.0, %v6243
        %v6245 = vpop.f32.mrb[0].mxu0
        %6246 = vmatprep.mubr.bf16.mxu0 0
        %6247 = vmatmul.mubr.bf16.gmra.mrb[0].mxu0 %v6184
        %v6248 = vpop.f32.mrb[0].mxu0
        %v6249 = vadd.f32 0.0, %v6248
        %v6250 = vpop.f32.mrb[0].mxu0
        %v6251 = vpop.f32.mrb[0].mxu0
        %v6252 = vadd.f32 0.0, %v6251
        %v6253 = vpop.f32.mrb[0].mxu0
        %6254 = vmatprep.mubr.bf16.mxu0 0
        %6255 = vmatmul.mubr.bf16.gmra.mrb[0].mxu0 %v6187
        %v6256 = vpop.f32.mrb[0].mxu0
        %v6257 = vadd.f32 0.0, %v6256
        %v6258 = vpop.f32.mrb[0].mxu0
        %v6259 = vpop.f32.mrb[0].mxu0
        %v6260 = vadd.f32 0.0, %v6259
        %v6261 = vpop.f32.mrb[0].mxu0
        %6262 = vmatprep.mubr.bf16.mxu0 0
        %6263 = vmatmul.mubr.bf16.gmra.mrb[0].mxu0 %v6190
        %v6264 = vpop.f32.mrb[0].mxu0
        %v6265 = vadd.f32 0.0, %v6264
        %v6266 = vpop.f32.mrb[0].mxu0
        %v6267 = vpop.f32.mrb[0].mxu0
        %v6268 = vadd.f32 0.0, %v6267
        %v6269 = vpop.f32.mrb[0].mxu0
        %6270 = vmatprep.mubr.bf16.mxu0 0
        %6271 = vmatmul.mubr.bf16.gmra.mrb[0].mxu0 %v6193
        %v6272 = vpop.f32.mrb[0].mxu0
        %v6273 = vadd.f32 0.0, %v6272
        %v6274 = vpop.f32.mrb[0].mxu0
        %v6275 = vpop.f32.mrb[0].mxu0
        %v6276 = vpop.f32.mrb[0].mxu0
        %6277 = vdwg.mxu0
        %v6278 = vadd.f32 %v6111, %v6233
        %v6279 = vadd.f32 %v6112, %v6236
        %v6280 = vadd.f32 %v6113, %v6241
        %v6281 = vadd.f32 %v6114, %v6244
        %v6282 = vadd.f32 %v6115, %v6249
        %v6283 = vadd.f32 %v6116, %v6252
        %v6284 = vadd.f32 %v6117, %v6257
        %v6285 = vadd.f32 %v6118, %v6260
        %v6286 = vadd.f32 %v6119, %v6265
        %v6287 = vadd.f32 %v6120, %v6268
        %v6288 = vadd.f32 %v6121, %v6273
        %v6289 = vld [vmem:[%s1816 + $0x8] sm:$0x8]
        %v6290 = vld [vmem:[%s1816 + $0xc] sm:$0xf]
        %v6291 = vld [vmem:[%s1816 + $0x10] sm:$0xf]
        %v6292 = vld [vmem:[%s1816 + $0x14] sm:$0xf]
        %v6293 = vld [vmem:[%s1816 + $0x18] sm:$0xf]
        %v6294 = vld [vmem:[%s1816 + $0x1c] sm:$0xf]
        %v6295 = vld [vmem:[%s1816 + $0x20] sm:$0xf]
        %v6296 = vld [vmem:[%s1816 + $0x24] sm:$0xf]
        %v6297 = vld [vmem:[%s1816 + $0x28] sm:$0xf]
        %v6298 = vld [vmem:[%s1816 + $0x2c] sm:$0xf]
        %v6299 = vld [vmem:[%s1816 + $0x30] sm:$0xf]
        %v6300 = vld [vmem:[%s1816 + $0x34] sm:$0x7]
        %s6301 = scalar_lea.vmem %s542, 72
        %v6302 = vld [vmem:[%s6301] sm:$0x3]
        %v6315 = vunpack.c.l.b16 %v6289
        %v6316 = vunpack.c.l.b16 %v6290
        %v6317 = vunpack.c.l.b16 %v6291
        %v6318 = vunpack.c.l.b16 %v6292
        %v6319 = vunpack.c.l.b16 %v6293
        %v6320 = vunpack.c.l.b16 %v6294
        %v6321 = vunpack.c.l.b16 %v6295
        %v6322 = vunpack.c.l.b16 %v6296
        %v6323 = vunpack.c.l.b16 %v6297
        %v6324 = vunpack.c.l.b16 %v6298
        %v6325 = vunpack.c.l.b16 %v6299
        %v6326 = vunpack.c.l.b16 %v6300
        %v6327 = vpack.c.b16 %v6316, %v6315
        %v6328 = vpack.c.b16 %v6318, %v6317
        %v6329 = vpack.c.b16 %v6320, %v6319
        %v6330 = vpack.c.b16 %v6322, %v6321
        %v6331 = vpack.c.b16 %v6324, %v6323
        %v6332 = vpack.c.b16 %v6326, %v6325
        %v6333 = vrot.slane %v6327, 3
        %v6334 = vrot.slane %v6328, 3
        %v6335 = vsel %vm3771, %v6333, %v6334
        %v6336 = vrot.slane %v6329, 3
        %v6337 = vsel %vm3771, %v6334, %v6336
        %v6338 = vrot.slane %v6330, 3
        %v6339 = vsel %vm3771, %v6336, %v6338
        %v6340 = vrot.slane %v6331, 3
        %v6341 = vsel %vm3771, %v6338, %v6340
        %v6342 = vrot.slane %v6332, 3
        %v6343 = vsel %vm3771, %v6340, %v6342
        %v6345 = vsel %vm612, %v6335, 0
        %v6348 = vsel %vm612, %v6337, 0
        %v6351 = vsel %vm612, %v6339, 0
        %v6354 = vsel %vm612, %v6341, 0
        %v6357 = vsel %vm612, %v6343, 0
        %v6360 = vsel %vm612, %v6342, 0
        %v6363 = vsel %vm631, %v6302, 0
        %6365 = vmatprep.subr.bf16.mxu0 0
        %6366 = vmatpush1.bf16.msra.mxu0 %v6363
        %6367 = vmatprep.subr.bf16.mxu0 0
        %6368 = vmatpush1.bf16.msra.mxu0 0
        %6369 = vmatprep.subr.bf16.mxu0 0
        %6370 = vmatpush1.bf16.msra.mxu0 0
        %6371 = vmatprep.subr.bf16.mxu0 0
        %6372 = vmatpush1.bf16.msra.mxu0 0
        %6373 = vmatprep.subr.bf16.mxu0 0
        %6374 = vmatpush1.bf16.msra.mxu0 0
        %6375 = vmatprep.subr.bf16.mxu0 0
        %6376 = vmatpush1.bf16.msra.mxu0 0
        %6377 = vmatprep.subr.bf16.mxu0 0
        %6378 = vmatpush1.bf16.msra.mxu0 0
        %6379 = vmatprep.subr.bf16.mxu0 0
        %6380 = vmatpush1.bf16.msra.mxu0 0
        %6381 = vmatprep.subr.bf16.mxu0 0
        %6382 = vmatpush1.bf16.msra.mxu0 0
        %6383 = vmatprep.subr.bf16.mxu0 0
        %6384 = vmatpush1.bf16.msra.mxu0 0
        %6385 = vmatprep.subr.bf16.mxu0 0
        %6386 = vmatpush1.bf16.msra.mxu0 0
        %6387 = vmatprep.subr.bf16.mxu0 0
        %6388 = vmatpush1.bf16.msra.mxu0 0
        %6389 = vmatprep.subr.bf16.mxu0 0
        %6390 = vmatpush1.bf16.msra.mxu0 0
        %6391 = vmatprep.subr.bf16.mxu0 0
        %6392 = vmatpush1.bf16.msra.mxu0 0
        %6393 = vmatprep.subr.bf16.mxu0 0
        %6394 = vmatpush1.bf16.msra.mxu0 0
        %6395 = vmatprep.subr.bf16.mxu0 0
        %6396 = vmatpush1.bf16.msra.mxu0 0
        %6397 = vmatprep.mubr.bf16.mxu0 0
        %6398 = vmatmul.mubr.bf16.gmra.mrb[0].mxu0 %v6345
        %v6399 = vpop.f32.mrb[0].mxu0
        %v6400 = vadd.f32 0.0, %v6399
        %v6401 = vpop.f32.mrb[0].mxu0
        %v6402 = vpop.f32.mrb[0].mxu0
        %v6403 = vadd.f32 0.0, %v6402
        %v6404 = vpop.f32.mrb[0].mxu0
        %6405 = vmatprep.mubr.bf16.mxu0 0
        %6406 = vmatmul.mubr.bf16.gmra.mrb[0].mxu0 %v6348
        %v6407 = vpop.f32.mrb[0].mxu0
        %v6408 = vadd.f32 0.0, %v6407
        %v6409 = vpop.f32.mrb[0].mxu0
        %v6410 = vpop.f32.mrb[0].mxu0
        %v6411 = vadd.f32 0.0, %v6410
        %v6412 = vpop.f32.mrb[0].mxu0
        %6413 = vmatprep.mubr.bf16.mxu0 0
        %6414 = vmatmul.mubr.bf16.gmra.mrb[0].mxu0 %v6351
        %v6415 = vpop.f32.mrb[0].mxu0
        %v6416 = vadd.f32 0.0, %v6415
        %v6417 = vpop.f32.mrb[0].mxu0
        %v6418 = vpop.f32.mrb[0].mxu0
        %v6419 = vadd.f32 0.0, %v6418
        %v6420 = vpop.f32.mrb[0].mxu0
        %6421 = vmatprep.mubr.bf16.mxu0 0
        %6422 = vmatmul.mubr.bf16.gmra.mrb[0].mxu0 %v6354
        %v6423 = vpop.f32.mrb[0].mxu0
        %v6424 = vadd.f32 0.0, %v6423
        %v6425 = vpop.f32.mrb[0].mxu0
        %v6426 = vpop.f32.mrb[0].mxu0
        %v6427 = vadd.f32 0.0, %v6426
        %v6428 = vpop.f32.mrb[0].mxu0
        %6429 = vmatprep.mubr.bf16.mxu0 0
        %6430 = vmatmul.mubr.bf16.gmra.mrb[0].mxu0 %v6357
        %v6431 = vpop.f32.mrb[0].mxu0
        %v6432 = vadd.f32 0.0, %v6431
        %v6433 = vpop.f32.mrb[0].mxu0
        %v6434 = vpop.f32.mrb[0].mxu0
        %v6435 = vadd.f32 0.0, %v6434
        %v6436 = vpop.f32.mrb[0].mxu0
        %6437 = vmatprep.mubr.bf16.mxu0 0
        %6438 = vmatmul.mubr.bf16.gmra.mrb[0].mxu0 %v6360
        %v6439 = vpop.f32.mrb[0].mxu0
        %v6440 = vadd.f32 0.0, %v6439
        %v6441 = vpop.f32.mrb[0].mxu0
        %v6442 = vpop.f32.mrb[0].mxu0
        %v6443 = vpop.f32.mrb[0].mxu0
        %6444 = vdwg.mxu0
        %v6445 = vadd.f32 %v6278, %v6400
        %v6446 = vadd.f32 %v6279, %v6403
        %v6447 = vadd.f32 %v6280, %v6408
        %v6448 = vadd.f32 %v6281, %v6411
        %v6449 = vadd.f32 %v6282, %v6416
        %v6450 = vadd.f32 %v6283, %v6419
        %v6451 = vadd.f32 %v6284, %v6424
        %v6452 = vadd.f32 %v6285, %v6427
        %v6453 = vadd.f32 %v6286, %v6432
        %v6454 = vadd.f32 %v6287, %v6435
        %v6455 = vadd.f32 %v6288, %v6440
        %v6456 = vld [vmem:[%s1662 + $0x34] sm:$0xf]
        %s6457 = scalar_lea.vmem %s542, 74
        %v6458 = vld [vmem:[%s6457] sm:$0x3]
        %v6460 = vunpack.c.l.b16 %v6456
        %v6461 = vpack.c.b16 %v6460, %v6158
        %v6463 = vshrl.u32 %v6160, 16
        %v6465 = vrot.slane %v6463, 3
        %v6466 = vshll.u32 %v6160, 16
        %v6468 = vrot.slane %v6466, 4
        %v6469 = vor.u32 %v6465, %v6468
        %v6471 = vshrl.u32 %v6161, 16
        %v6473 = vrot.slane %v6471, 3
        %v6474 = vshll.u32 %v6161, 16
        %v6476 = vrot.slane %v6474, 4
        %v6477 = vor.u32 %v6473, %v6476
        %v6478 = vsel %vm5342, %v6469, %v6477
        %v6480 = vshrl.u32 %v6162, 16
        %v6482 = vrot.slane %v6480, 3
        %v6483 = vshll.u32 %v6162, 16
        %v6485 = vrot.slane %v6483, 4
        %v6486 = vor.u32 %v6482, %v6485
        %v6487 = vsel %vm5342, %v6477, %v6486
        %v6489 = vshrl.u32 %v6163, 16
        %v6491 = vrot.slane %v6489, 3
        %v6492 = vshll.u32 %v6163, 16
        %v6494 = vrot.slane %v6492, 4
        %v6495 = vor.u32 %v6491, %v6494
        %v6496 = vsel %vm5342, %v6486, %v6495
        %v6498 = vshrl.u32 %v6164, 16
        %v6500 = vrot.slane %v6498, 3
        %v6501 = vshll.u32 %v6164, 16
        %v6503 = vrot.slane %v6501, 4
        %v6504 = vor.u32 %v6500, %v6503
        %v6505 = vsel %vm5342, %v6495, %v6504
        %v6507 = vshrl.u32 %v6461, 16
        %v6509 = vrot.slane %v6507, 3
        %v6510 = vshll.u32 %v6461, 16
        %v6512 = vrot.slane %v6510, 4
        %v6513 = vor.u32 %v6509, %v6512
        %v6514 = vsel %vm5342, %v6504, %v6513
        %v6516 = vsel %vm612, %v6478, 0
        %v6519 = vsel %vm612, %v6487, 0
        %v6522 = vsel %vm612, %v6496, 0
        %v6525 = vsel %vm612, %v6505, 0
        %v6528 = vsel %vm612, %v6514, 0
        %v6531 = vsel %vm612, %v6513, 0
        %v6534 = vsel %vm631, %v6458, 0
        %6536 = vmatprep.subr.bf16.mxu0 0
        %6537 = vmatpush1.bf16.msra.mxu0 %v6534
        %6538 = vmatprep.subr.bf16.mxu0 0
        %6539 = vmatpush1.bf16.msra.mxu0 0
        %6540 = vmatprep.subr.bf16.mxu0 0
        %6541 = vmatpush1.bf16.msra.mxu0 0
        %6542 = vmatprep.subr.bf16.mxu0 0
        %6543 = vmatpush1.bf16.msra.mxu0 0
        %6544 = vmatprep.subr.bf16.mxu0 0
        %6545 = vmatpush1.bf16.msra.mxu0 0
        %6546 = vmatprep.subr.bf16.mxu0 0
        %6547 = vmatpush1.bf16.msra.mxu0 0
        %6548 = vmatprep.subr.bf16.mxu0 0
        %6549 = vmatpush1.bf16.msra.mxu0 0
        %6550 = vmatprep.subr.bf16.mxu0 0
        %6551 = vmatpush1.bf16.msra.mxu0 0
        %6552 = vmatprep.subr.bf16.mxu0 0
        %6553 = vmatpush1.bf16.msra.mxu0 0
        %6554 = vmatprep.subr.bf16.mxu0 0
        %6555 = vmatpush1.bf16.msra.mxu0 0
        %6556 = vmatprep.subr.bf16.mxu0 0
        %6557 = vmatpush1.bf16.msra.mxu0 0
        %6558 = vmatprep.subr.bf16.mxu0 0
        %6559 = vmatpush1.bf16.msra.mxu0 0
        %6560 = vmatprep.subr.bf16.mxu0 0
        %6561 = vmatpush1.bf16.msra.mxu0 0
        %6562 = vmatprep.subr.bf16.mxu0 0
        %6563 = vmatpush1.bf16.msra.mxu0 0
        %6564 = vmatprep.subr.bf16.mxu0 0
        %6565 = vmatpush1.bf16.msra.mxu0 0
        %6566 = vmatprep.subr.bf16.mxu0 0
        %6567 = vmatpush1.bf16.msra.mxu0 0
        %6568 = vmatprep.mubr.bf16.mxu0 0
        %6569 = vmatmul.mubr.bf16.gmra.mrb[0].mxu0 %v6516
        %v6570 = vpop.f32.mrb[0].mxu0
        %v6571 = vadd.f32 0.0, %v6570
        %v6572 = vpop.f32.mrb[0].mxu0
        %v6573 = vpop.f32.mrb[0].mxu0
        %v6574 = vadd.f32 0.0, %v6573
        %v6575 = vpop.f32.mrb[0].mxu0
        %6576 = vmatprep.mubr.bf16.mxu0 0
        %6577 = vmatmul.mubr.bf16.gmra.mrb[0].mxu0 %v6519
        %v6578 = vpop.f32.mrb[0].mxu0
        %v6579 = vadd.f32 0.0, %v6578
        %v6580 = vpop.f32.mrb[0].mxu0
        %v6581 = vpop.f32.mrb[0].mxu0
        %v6582 = vadd.f32 0.0, %v6581
        %v6583 = vpop.f32.mrb[0].mxu0
        %6584 = vmatprep.mubr.bf16.mxu0 0
        %6585 = vmatmul.mubr.bf16.gmra.mrb[0].mxu0 %v6522
        %v6586 = vpop.f32.mrb[0].mxu0
        %v6587 = vadd.f32 0.0, %v6586
        %v6588 = vpop.f32.mrb[0].mxu0
        %v6589 = vpop.f32.mrb[0].mxu0
        %v6590 = vadd.f32 0.0, %v6589
        %v6591 = vpop.f32.mrb[0].mxu0
        %6592 = vmatprep.mubr.bf16.mxu0 0
        %6593 = vmatmul.mubr.bf16.gmra.mrb[0].mxu0 %v6525
        %v6594 = vpop.f32.mrb[0].mxu0
        %v6595 = vadd.f32 0.0, %v6594
        %v6596 = vpop.f32.mrb[0].mxu0
        %v6597 = vpop.f32.mrb[0].mxu0
        %v6598 = vadd.f32 0.0, %v6597
        %v6599 = vpop.f32.mrb[0].mxu0
        %6600 = vmatprep.mubr.bf16.mxu0 0
        %6601 = vmatmul.mubr.bf16.gmra.mrb[0].mxu0 %v6528
        %v6602 = vpop.f32.mrb[0].mxu0
        %v6603 = vadd.f32 0.0, %v6602
        %v6604 = vpop.f32.mrb[0].mxu0
        %v6605 = vpop.f32.mrb[0].mxu0
        %v6606 = vadd.f32 0.0, %v6605
        %v6607 = vpop.f32.mrb[0].mxu0
        %6608 = vmatprep.mubr.bf16.mxu0 0
        %6609 = vmatmul.mubr.bf16.gmra.mrb[0].mxu0 %v6531
        %v6610 = vpop.f32.mrb[0].mxu0
        %v6611 = vadd.f32 0.0, %v6610
        %v6612 = vpop.f32.mrb[0].mxu0
        %v6613 = vpop.f32.mrb[0].mxu0
        %v6614 = vpop.f32.mrb[0].mxu0
        %6615 = vdwg.mxu0
        %v6616 = vadd.f32 %v6445, %v6571
        %v6617 = vadd.f32 %v6446, %v6574
        %v6618 = vadd.f32 %v6447, %v6579
        %v6619 = vadd.f32 %v6448, %v6582
        %v6620 = vadd.f32 %v6449, %v6587
        %v6621 = vadd.f32 %v6450, %v6590
        %v6622 = vadd.f32 %v6451, %v6595
        %v6623 = vadd.f32 %v6452, %v6598
        %v6624 = vadd.f32 %v6453, %v6603
        %v6625 = vadd.f32 %v6454, %v6606
        %v6626 = vadd.f32 %v6455, %v6611
        %v6627 = vld [vmem:[%s1816 + $0x34] sm:$0xf]
        %s6628 = scalar_lea.vmem %s542, 76
        %v6629 = vld [vmem:[%s6628] sm:$0x3]
        %v6631 = vunpack.c.l.b16 %v6627
        %v6632 = vpack.c.b16 %v6631, %v6325
        %v6634 = vshrl.u32 %v6327, 16
        %v6636 = vrot.slane %v6634, 3
        %v6637 = vshll.u32 %v6327, 16
        %v6639 = vrot.slane %v6637, 4
        %v6640 = vor.u32 %v6636, %v6639
        %v6642 = vshrl.u32 %v6328, 16
        %v6644 = vrot.slane %v6642, 3
        %v6645 = vshll.u32 %v6328, 16
        %v6647 = vrot.slane %v6645, 4
        %v6648 = vor.u32 %v6644, %v6647
        %v6649 = vsel %vm5342, %v6640, %v6648
        %v6651 = vshrl.u32 %v6329, 16
        %v6653 = vrot.slane %v6651, 3
        %v6654 = vshll.u32 %v6329, 16
        %v6656 = vrot.slane %v6654, 4
        %v6657 = vor.u32 %v6653, %v6656
        %v6658 = vsel %vm5342, %v6648, %v6657
        %v6660 = vshrl.u32 %v6330, 16
        %v6662 = vrot.slane %v6660, 3
        %v6663 = vshll.u32 %v6330, 16
        %v6665 = vrot.slane %v6663, 4
        %v6666 = vor.u32 %v6662, %v6665
        %v6667 = vsel %vm5342, %v6657, %v6666
        %v6669 = vshrl.u32 %v6331, 16
        %v6671 = vrot.slane %v6669, 3
        %v6672 = vshll.u32 %v6331, 16
        %v6674 = vrot.slane %v6672, 4
        %v6675 = vor.u32 %v6671, %v6674
        %v6676 = vsel %vm5342, %v6666, %v6675
        %v6678 = vshrl.u32 %v6632, 16
        %v6680 = vrot.slane %v6678, 3
        %v6681 = vshll.u32 %v6632, 16
        %v6683 = vrot.slane %v6681, 4
        %v6684 = vor.u32 %v6680, %v6683
        %v6685 = vsel %vm5342, %v6675, %v6684
        %v6687 = vsel %vm612, %v6649, 0
        %v6690 = vsel %vm612, %v6658, 0
        %v6693 = vsel %vm612, %v6667, 0
        %v6696 = vsel %vm612, %v6676, 0
        %v6699 = vsel %vm612, %v6685, 0
        %v6702 = vsel %vm612, %v6684, 0
        %v6705 = vsel %vm631, %v6629, 0
        %6707 = vmatprep.subr.bf16.mxu0 0
        %6708 = vmatpush1.bf16.msra.mxu0 %v6705
        %6709 = vmatprep.subr.bf16.mxu0 0
        %6710 = vmatpush1.bf16.msra.mxu0 0
        %6711 = vmatprep.subr.bf16.mxu0 0
        %6712 = vmatpush1.bf16.msra.mxu0 0
        %6713 = vmatprep.subr.bf16.mxu0 0
        %6714 = vmatpush1.bf16.msra.mxu0 0
        %6715 = vmatprep.subr.bf16.mxu0 0
        %6716 = vmatpush1.bf16.msra.mxu0 0
        %6717 = vmatprep.subr.bf16.mxu0 0
        %6718 = vmatpush1.bf16.msra.mxu0 0
        %6719 = vmatprep.subr.bf16.mxu0 0
        %6720 = vmatpush1.bf16.msra.mxu0 0
        %6721 = vmatprep.subr.bf16.mxu0 0
        %6722 = vmatpush1.bf16.msra.mxu0 0
        %6723 = vmatprep.subr.bf16.mxu0 0
        %6724 = vmatpush1.bf16.msra.mxu0 0
        %6725 = vmatprep.subr.bf16.mxu0 0
        %6726 = vmatpush1.bf16.msra.mxu0 0
        %6727 = vmatprep.subr.bf16.mxu0 0
        %6728 = vmatpush1.bf16.msra.mxu0 0
        %6729 = vmatprep.subr.bf16.mxu0 0
        %6730 = vmatpush1.bf16.msra.mxu0 0
        %6731 = vmatprep.subr.bf16.mxu0 0
        %6732 = vmatpush1.bf16.msra.mxu0 0
        %6733 = vmatprep.subr.bf16.mxu0 0
        %6734 = vmatpush1.bf16.msra.mxu0 0
        %6735 = vmatprep.subr.bf16.mxu0 0
        %6736 = vmatpush1.bf16.msra.mxu0 0
        %6737 = vmatprep.subr.bf16.mxu0 0
        %6738 = vmatpush1.bf16.msra.mxu0 0
        %6739 = vmatprep.mubr.bf16.mxu0 0
        %6740 = vmatmul.mubr.bf16.gmra.mrb[0].mxu0 %v6687
        %v6741 = vpop.f32.mrb[0].mxu0
        %v6742 = vadd.f32 0.0, %v6741
        %v6743 = vpop.f32.mrb[0].mxu0
        %v6744 = vpop.f32.mrb[0].mxu0
        %v6745 = vadd.f32 0.0, %v6744
        %v6746 = vpop.f32.mrb[0].mxu0
        %6747 = vmatprep.mubr.bf16.mxu0 0
        %6748 = vmatmul.mubr.bf16.gmra.mrb[0].mxu0 %v6690
        %v6749 = vpop.f32.mrb[0].mxu0
        %v6750 = vadd.f32 0.0, %v6749
        %v6751 = vpop.f32.mrb[0].mxu0
        %v6752 = vpop.f32.mrb[0].mxu0
        %v6753 = vadd.f32 0.0, %v6752
        %v6754 = vpop.f32.mrb[0].mxu0
        %6755 = vmatprep.mubr.bf16.mxu0 0
        %6756 = vmatmul.mubr.bf16.gmra.mrb[0].mxu0 %v6693
        %v6757 = vpop.f32.mrb[0].mxu0
        %v6758 = vadd.f32 0.0, %v6757
        %v6759 = vpop.f32.mrb[0].mxu0
        %v6760 = vpop.f32.mrb[0].mxu0
        %v6761 = vadd.f32 0.0, %v6760
        %v6762 = vpop.f32.mrb[0].mxu0
        %6763 = vmatprep.mubr.bf16.mxu0 0
        %6764 = vmatmul.mubr.bf16.gmra.mrb[0].mxu0 %v6696
        %v6765 = vpop.f32.mrb[0].mxu0
        %v6766 = vadd.f32 0.0, %v6765
        %v6767 = vpop.f32.mrb[0].mxu0
        %v6768 = vpop.f32.mrb[0].mxu0
        %v6769 = vadd.f32 0.0, %v6768
        %v6770 = vpop.f32.mrb[0].mxu0
        %6771 = vmatprep.mubr.bf16.mxu0 0
        %6772 = vmatmul.mubr.bf16.gmra.mrb[0].mxu0 %v6699
        %v6773 = vpop.f32.mrb[0].mxu0
        %v6774 = vadd.f32 0.0, %v6773
        %v6775 = vpop.f32.mrb[0].mxu0
        %v6776 = vpop.f32.mrb[0].mxu0
        %v6777 = vadd.f32 0.0, %v6776
        %v6778 = vpop.f32.mrb[0].mxu0
        %6779 = vmatprep.mubr.bf16.mxu0 0
        %6780 = vmatmul.mubr.bf16.gmra.mrb[0].mxu0 %v6702
        %v6781 = vpop.f32.mrb[0].mxu0
        %v6782 = vadd.f32 0.0, %v6781
        %v6783 = vpop.f32.mrb[0].mxu0
        %v6784 = vpop.f32.mrb[0].mxu0
        %v6785 = vpop.f32.mrb[0].mxu0
        %6786 = vdwg.mxu0
        %v6787 = vadd.f32 %v6616, %v6742
        %v6788 = vadd.f32 %v6617, %v6745
        %v6789 = vadd.f32 %v6618, %v6750
        %v6790 = vadd.f32 %v6619, %v6753
        %v6791 = vadd.f32 %v6620, %v6758
        %v6792 = vadd.f32 %v6621, %v6761
        %v6793 = vadd.f32 %v6622, %v6766
        %v6794 = vadd.f32 %v6623, %v6769
        %v6795 = vadd.f32 %v6624, %v6774
        %v6796 = vadd.f32 %v6625, %v6777
        %v6797 = vadd.f32 %v6626, %v6782
        %s6798 = scalar_lea.vmem %s542, 78
        %v6799 = vld [vmem:[%s6798] sm:$0x3]
        %v6800 = vpack.c.b16 %v6150, %v6149
        %v6801 = vpack.c.b16 %v6152, %v6151
        %v6802 = vpack.c.b16 %v6154, %v6153
        %v6803 = vpack.c.b16 %v6156, %v6155
        %v6804 = vpack.c.b16 %v6158, %v6157
        %v6805 = vpack.c.b16 %v6460, %v6460
        %v6807 = vsel %vm612, %v6800, 0
        %v6810 = vsel %vm612, %v6801, 0
        %v6813 = vsel %vm612, %v6802, 0
        %v6816 = vsel %vm612, %v6803, 0
        %v6819 = vsel %vm612, %v6804, 0
        %v6822 = vsel %vm612, %v6805, 0
        %v6825 = vsel %vm631, %v6799, 0
        %6827 = vmatprep.subr.bf16.mxu0 0
        %6828 = vmatpush1.bf16.msra.mxu0 %v6825
        %6829 = vmatprep.subr.bf16.mxu0 0
        %6830 = vmatpush1.bf16.msra.mxu0 0
        %6831 = vmatprep.subr.bf16.mxu0 0
        %6832 = vmatpush1.bf16.msra.mxu0 0
        %6833 = vmatprep.subr.bf16.mxu0 0
        %6834 = vmatpush1.bf16.msra.mxu0 0
        %6835 = vmatprep.subr.bf16.mxu0 0
        %6836 = vmatpush1.bf16.msra.mxu0 0
        %6837 = vmatprep.subr.bf16.mxu0 0
        %6838 = vmatpush1.bf16.msra.mxu0 0
        %6839 = vmatprep.subr.bf16.mxu0 0
        %6840 = vmatpush1.bf16.msra.mxu0 0
        %6841 = vmatprep.subr.bf16.mxu0 0
        %6842 = vmatpush1.bf16.msra.mxu0 0
        %6843 = vmatprep.subr.bf16.mxu0 0
        %6844 = vmatpush1.bf16.msra.mxu0 0
        %6845 = vmatprep.subr.bf16.mxu0 0
        %6846 = vmatpush1.bf16.msra.mxu0 0
        %6847 = vmatprep.subr.bf16.mxu0 0
        %6848 = vmatpush1.bf16.msra.mxu0 0
        %6849 = vmatprep.subr.bf16.mxu0 0
        %6850 = vmatpush1.bf16.msra.mxu0 0
        %6851 = vmatprep.subr.bf16.mxu0 0
        %6852 = vmatpush1.bf16.msra.mxu0 0
        %6853 = vmatprep.subr.bf16.mxu0 0
        %6854 = vmatpush1.bf16.msra.mxu0 0
        %6855 = vmatprep.subr.bf16.mxu0 0
        %6856 = vmatpush1.bf16.msra.mxu0 0
        %6857 = vmatprep.subr.bf16.mxu0 0
        %6858 = vmatpush1.bf16.msra.mxu0 0
        %6859 = vmatprep.mubr.bf16.mxu0 0
        %6860 = vmatmul.mubr.bf16.gmra.mrb[0].mxu0 %v6807
        %v6861 = vpop.f32.mrb[0].mxu0
        %v6862 = vadd.f32 0.0, %v6861
        %v6863 = vpop.f32.mrb[0].mxu0
        %v6864 = vpop.f32.mrb[0].mxu0
        %v6865 = vadd.f32 0.0, %v6864
        %v6866 = vpop.f32.mrb[0].mxu0
        %6867 = vmatprep.mubr.bf16.mxu0 0
        %6868 = vmatmul.mubr.bf16.gmra.mrb[0].mxu0 %v6810
        %v6869 = vpop.f32.mrb[0].mxu0
        %v6870 = vadd.f32 0.0, %v6869
        %v6871 = vpop.f32.mrb[0].mxu0
        %v6872 = vpop.f32.mrb[0].mxu0
        %v6873 = vadd.f32 0.0, %v6872
        %v6874 = vpop.f32.mrb[0].mxu0
        %6875 = vmatprep.mubr.bf16.mxu0 0
        %6876 = vmatmul.mubr.bf16.gmra.mrb[0].mxu0 %v6813
        %v6877 = vpop.f32.mrb[0].mxu0
        %v6878 = vadd.f32 0.0, %v6877
        %v6879 = vpop.f32.mrb[0].mxu0
        %v6880 = vpop.f32.mrb[0].mxu0
        %v6881 = vadd.f32 0.0, %v6880
        %v6882 = vpop.f32.mrb[0].mxu0
        %6883 = vmatprep.mubr.bf16.mxu0 0
        %6884 = vmatmul.mubr.bf16.gmra.mrb[0].mxu0 %v6816
        %v6885 = vpop.f32.mrb[0].mxu0
        %v6886 = vadd.f32 0.0, %v6885
        %v6887 = vpop.f32.mrb[0].mxu0
        %v6888 = vpop.f32.mrb[0].mxu0
        %v6889 = vadd.f32 0.0, %v6888
        %v6890 = vpop.f32.mrb[0].mxu0
        %6891 = vmatprep.mubr.bf16.mxu0 0
        %6892 = vmatmul.mubr.bf16.gmra.mrb[0].mxu0 %v6819
        %v6893 = vpop.f32.mrb[0].mxu0
        %v6894 = vadd.f32 0.0, %v6893
        %v6895 = vpop.f32.mrb[0].mxu0
        %v6896 = vpop.f32.mrb[0].mxu0
        %v6897 = vadd.f32 0.0, %v6896
        %v6898 = vpop.f32.mrb[0].mxu0
        %6899 = vmatprep.mubr.bf16.mxu0 0
        %6900 = vmatmul.mubr.bf16.gmra.mrb[0].mxu0 %v6822
        %v6901 = vpop.f32.mrb[0].mxu0
        %v6902 = vadd.f32 0.0, %v6901
        %v6903 = vpop.f32.mrb[0].mxu0
        %v6904 = vpop.f32.mrb[0].mxu0
        %v6905 = vpop.f32.mrb[0].mxu0
        %6906 = vdwg.mxu0
        %v6907 = vadd.f32 %v6787, %v6862
        %v6908 = vadd.f32 %v6788, %v6865
        %v6909 = vadd.f32 %v6789, %v6870
        %v6910 = vadd.f32 %v6790, %v6873
        %v6911 = vadd.f32 %v6791, %v6878
        %v6912 = vadd.f32 %v6792, %v6881
        %v6913 = vadd.f32 %v6793, %v6886
        %v6914 = vadd.f32 %v6794, %v6889
        %v6915 = vadd.f32 %v6795, %v6894
        %v6916 = vadd.f32 %v6796, %v6897
        %v6917 = vadd.f32 %v6797, %v6902
        %s6918 = scalar_lea.vmem %s542, 80
        %v6919 = vld [vmem:[%s6918] sm:$0x3]
        %v6920 = vpack.c.b16 %v6317, %v6316
        %v6921 = vpack.c.b16 %v6319, %v6318
        %v6922 = vpack.c.b16 %v6321, %v6320
        %v6923 = vpack.c.b16 %v6323, %v6322
        %v6924 = vpack.c.b16 %v6325, %v6324
        %v6925 = vpack.c.b16 %v6631, %v6631
        %v6927 = vsel %vm612, %v6920, 0
        %v6930 = vsel %vm612, %v6921, 0
        %v6933 = vsel %vm612, %v6922, 0
        %v6936 = vsel %vm612, %v6923, 0
        %v6939 = vsel %vm612, %v6924, 0
        %v6942 = vsel %vm612, %v6925, 0
        %v6945 = vsel %vm631, %v6919, 0
        %6947 = vmatprep.subr.bf16.mxu0 0
        %6948 = vmatpush1.bf16.msra.mxu0 %v6945
        %6949 = vmatprep.subr.bf16.mxu0 0
        %6950 = vmatpush1.bf16.msra.mxu0 0
        %6951 = vmatprep.subr.bf16.mxu0 0
        %6952 = vmatpush1.bf16.msra.mxu0 0
        %6953 = vmatprep.subr.bf16.mxu0 0
        %6954 = vmatpush1.bf16.msra.mxu0 0
        %6955 = vmatprep.subr.bf16.mxu0 0
        %6956 = vmatpush1.bf16.msra.mxu0 0
        %6957 = vmatprep.subr.bf16.mxu0 0
        %6958 = vmatpush1.bf16.msra.mxu0 0
        %6959 = vmatprep.subr.bf16.mxu0 0
        %6960 = vmatpush1.bf16.msra.mxu0 0
        %6961 = vmatprep.subr.bf16.mxu0 0
        %6962 = vmatpush1.bf16.msra.mxu0 0
        %6963 = vmatprep.subr.bf16.mxu0 0
        %6964 = vmatpush1.bf16.msra.mxu0 0
        %6965 = vmatprep.subr.bf16.mxu0 0
        %6966 = vmatpush1.bf16.msra.mxu0 0
        %6967 = vmatprep.subr.bf16.mxu0 0
        %6968 = vmatpush1.bf16.msra.mxu0 0
        %6969 = vmatprep.subr.bf16.mxu0 0
        %6970 = vmatpush1.bf16.msra.mxu0 0
        %6971 = vmatprep.subr.bf16.mxu0 0
        %6972 = vmatpush1.bf16.msra.mxu0 0
        %6973 = vmatprep.subr.bf16.mxu0 0
        %6974 = vmatpush1.bf16.msra.mxu0 0
        %6975 = vmatprep.subr.bf16.mxu0 0
        %6976 = vmatpush1.bf16.msra.mxu0 0
        %6977 = vmatprep.subr.bf16.mxu0 0
        %6978 = vmatpush1.bf16.msra.mxu0 0
        %6979 = vmatprep.mubr.bf16.mxu0 0
        %6980 = vmatmul.mubr.bf16.gmra.mrb[0].mxu0 %v6927
        %v6981 = vpop.f32.mrb[0].mxu0
        %v6982 = vadd.f32 0.0, %v6981
        %v6983 = vpop.f32.mrb[0].mxu0
        %v6984 = vpop.f32.mrb[0].mxu0
        %v6985 = vadd.f32 0.0, %v6984
        %v6986 = vpop.f32.mrb[0].mxu0
        %6987 = vmatprep.mubr.bf16.mxu0 0
        %6988 = vmatmul.mubr.bf16.gmra.mrb[0].mxu0 %v6930
        %v6989 = vpop.f32.mrb[0].mxu0
        %v6990 = vadd.f32 0.0, %v6989
        %v6991 = vpop.f32.mrb[0].mxu0
        %v6992 = vpop.f32.mrb[0].mxu0
        %v6993 = vadd.f32 0.0, %v6992
        %v6994 = vpop.f32.mrb[0].mxu0
        %6995 = vmatprep.mubr.bf16.mxu0 0
        %6996 = vmatmul.mubr.bf16.gmra.mrb[0].mxu0 %v6933
        %v6997 = vpop.f32.mrb[0].mxu0
        %v6998 = vadd.f32 0.0, %v6997
        %v6999 = vpop.f32.mrb[0].mxu0
        %v7000 = vpop.f32.mrb[0].mxu0
        %v7001 = vadd.f32 0.0, %v7000
        %v7002 = vpop.f32.mrb[0].mxu0
        %7003 = vmatprep.mubr.bf16.mxu0 0
        %7004 = vmatmul.mubr.bf16.gmra.mrb[0].mxu0 %v6936
        %v7005 = vpop.f32.mrb[0].mxu0
        %v7006 = vadd.f32 0.0, %v7005
        %v7007 = vpop.f32.mrb[0].mxu0
        %v7008 = vpop.f32.mrb[0].mxu0
        %v7009 = vadd.f32 0.0, %v7008
        %v7010 = vpop.f32.mrb[0].mxu0
        %7011 = vmatprep.mubr.bf16.mxu0 0
        %7012 = vmatmul.mubr.bf16.gmra.mrb[0].mxu0 %v6939
        %v7013 = vpop.f32.mrb[0].mxu0
        %v7014 = vadd.f32 0.0, %v7013
        %v7015 = vpop.f32.mrb[0].mxu0
        %v7016 = vpop.f32.mrb[0].mxu0
        %v7017 = vadd.f32 0.0, %v7016
        %v7018 = vpop.f32.mrb[0].mxu0
        %7019 = vmatprep.mubr.bf16.mxu0 0
        %7020 = vmatmul.mubr.bf16.gmra.mrb[0].mxu0 %v6942
        %v7021 = vpop.f32.mrb[0].mxu0
        %v7022 = vadd.f32 0.0, %v7021
        %v7023 = vpop.f32.mrb[0].mxu0
        %v7024 = vpop.f32.mrb[0].mxu0
        %v7025 = vpop.f32.mrb[0].mxu0
        %7026 = vdwg.mxu0
        %v7027 = vadd.f32 %v6907, %v6982
        %v7028 = vadd.f32 %v6908, %v6985
        %v7029 = vadd.f32 %v6909, %v6990
        %v7030 = vadd.f32 %v6910, %v6993
        %v7031 = vadd.f32 %v6911, %v6998
        %v7032 = vadd.f32 %v6912, %v7001
        %v7033 = vadd.f32 %v6913, %v7006
        %v7034 = vadd.f32 %v6914, %v7009
        %v7035 = vadd.f32 %v6915, %v7014
        %v7036 = vadd.f32 %v6916, %v7017
        %v7037 = vadd.f32 %v6917, %v7022
        %v7038 = vld [vmem:[%s1662 + $0xc] sm:$0xf]
        %v7039 = vld [vmem:[%s1662 + $0x10] sm:$0xf]
        %v7040 = vld [vmem:[%s1662 + $0x14] sm:$0xf]
        %v7041 = vld [vmem:[%s1662 + $0x18] sm:$0xf]
        %v7042 = vld [vmem:[%s1662 + $0x1c] sm:$0xf]
        %v7043 = vld [vmem:[%s1662 + $0x20] sm:$0xf]
        %v7044 = vld [vmem:[%s1662 + $0x24] sm:$0xf]
        %v7045 = vld [vmem:[%s1662 + $0x28] sm:$0xf]
        %v7046 = vld [vmem:[%s1662 + $0x2c] sm:$0xf]
        %v7047 = vld [vmem:[%s1662 + $0x30] sm:$0xf]
        %v7048 = vld [vmem:[%s1662 + $0x34] sm:$0xf]
        %v7049 = vld [vmem:[%s1662 + $0x38] sm:$0x1]
        %s7050 = scalar_lea.vmem %s542, 82
        %v7051 = vld [vmem:[%s7050] sm:$0x3]
        %v7064 = vunpack.c.l.b16 %v7038
        %v7065 = vunpack.c.l.b16 %v7039
        %v7066 = vunpack.c.l.b16 %v7040
        %v7067 = vunpack.c.l.b16 %v7041
        %v7068 = vunpack.c.l.b16 %v7042
        %v7069 = vunpack.c.l.b16 %v7043
        %v7070 = vunpack.c.l.b16 %v7044
        %v7071 = vunpack.c.l.b16 %v7045
        %v7072 = vunpack.c.l.b16 %v7046
        %v7073 = vunpack.c.l.b16 %v7047
        %v7074 = vunpack.c.l.b16 %v7048
        %v7075 = vunpack.c.l.b16 %v7049
        %v7076 = vpack.c.b16 %v7065, %v7064
        %v7077 = vpack.c.b16 %v7067, %v7066
        %v7078 = vpack.c.b16 %v7069, %v7068
        %v7079 = vpack.c.b16 %v7071, %v7070
        %v7080 = vpack.c.b16 %v7073, %v7072
        %v7081 = vpack.c.b16 %v7075, %v7074
        %v7083 = vshrl.u32 %v7076, 16
        %v7085 = vshll.u32 %v7076, 16
        %v7087 = vrot.slane %v7085, 1
        %v7088 = vor.u32 %v7083, %v7087
        %v7090 = vshll.u32 %v7077, 16
        %v7092 = vrot.slane %v7090, 1
        %v7093 = vsel %vm888, %v7088, %v7092
        %v7094 = vshrl.u32 %v7077, 16
        %v7096 = vor.u32 %v7094, %v7092
        %v7098 = vshll.u32 %v7078, 16
        %v7100 = vrot.slane %v7098, 1
        %v7101 = vsel %vm888, %v7096, %v7100
        %v7102 = vshrl.u32 %v7078, 16
        %v7104 = vor.u32 %v7102, %v7100
        %v7106 = vshll.u32 %v7079, 16
        %v7108 = vrot.slane %v7106, 1
        %v7109 = vsel %vm888, %v7104, %v7108
        %v7110 = vshrl.u32 %v7079, 16
        %v7112 = vor.u32 %v7110, %v7108
        %v7114 = vshll.u32 %v7080, 16
        %v7116 = vrot.slane %v7114, 1
        %v7117 = vsel %vm888, %v7112, %v7116
        %v7118 = vshrl.u32 %v7080, 16
        %v7120 = vor.u32 %v7118, %v7116
        %v7122 = vshll.u32 %v7081, 16
        %v7124 = vrot.slane %v7122, 1
        %v7125 = vsel %vm888, %v7120, %v7124
        %v7126 = vshrl.u32 %v7081, 16
        %v7128 = vor.u32 %v7126, %v7124
        %v7130 = vsel %vm612, %v7093, 0
        %v7133 = vsel %vm612, %v7101, 0
        %v7136 = vsel %vm612, %v7109, 0
        %v7139 = vsel %vm612, %v7117, 0
        %v7142 = vsel %vm612, %v7125, 0
        %v7145 = vsel %vm612, %v7128, 0
        %v7148 = vsel %vm631, %v7051, 0
        %7150 = vmatprep.subr.bf16.mxu0 0
        %7151 = vmatpush1.bf16.msra.mxu0 %v7148
        %7152 = vmatprep.subr.bf16.mxu0 0
        %7153 = vmatpush1.bf16.msra.mxu0 0
        %7154 = vmatprep.subr.bf16.mxu0 0
        %7155 = vmatpush1.bf16.msra.mxu0 0
        %7156 = vmatprep.subr.bf16.mxu0 0
        %7157 = vmatpush1.bf16.msra.mxu0 0
        %7158 = vmatprep.subr.bf16.mxu0 0
        %7159 = vmatpush1.bf16.msra.mxu0 0
        %7160 = vmatprep.subr.bf16.mxu0 0
        %7161 = vmatpush1.bf16.msra.mxu0 0
        %7162 = vmatprep.subr.bf16.mxu0 0
        %7163 = vmatpush1.bf16.msra.mxu0 0
        %7164 = vmatprep.subr.bf16.mxu0 0
        %7165 = vmatpush1.bf16.msra.mxu0 0
        %7166 = vmatprep.subr.bf16.mxu0 0
        %7167 = vmatpush1.bf16.msra.mxu0 0
        %7168 = vmatprep.subr.bf16.mxu0 0
        %7169 = vmatpush1.bf16.msra.mxu0 0
        %7170 = vmatprep.subr.bf16.mxu0 0
        %7171 = vmatpush1.bf16.msra.mxu0 0
        %7172 = vmatprep.subr.bf16.mxu0 0
        %7173 = vmatpush1.bf16.msra.mxu0 0
        %7174 = vmatprep.subr.bf16.mxu0 0
        %7175 = vmatpush1.bf16.msra.mxu0 0
        %7176 = vmatprep.subr.bf16.mxu0 0
        %7177 = vmatpush1.bf16.msra.mxu0 0
        %7178 = vmatprep.subr.bf16.mxu0 0
        %7179 = vmatpush1.bf16.msra.mxu0 0
        %7180 = vmatprep.subr.bf16.mxu0 0
        %7181 = vmatpush1.bf16.msra.mxu0 0
        %7182 = vmatprep.mubr.bf16.mxu0 0
        %7183 = vmatmul.mubr.bf16.gmra.mrb[0].mxu0 %v7130
        %v7184 = vpop.f32.mrb[0].mxu0
        %v7185 = vadd.f32 0.0, %v7184
        %v7186 = vpop.f32.mrb[0].mxu0
        %v7187 = vpop.f32.mrb[0].mxu0
        %v7188 = vadd.f32 0.0, %v7187
        %v7189 = vpop.f32.mrb[0].mxu0
        %7190 = vmatprep.mubr.bf16.mxu0 0
        %7191 = vmatmul.mubr.bf16.gmra.mrb[0].mxu0 %v7133
        %v7192 = vpop.f32.mrb[0].mxu0
        %v7193 = vadd.f32 0.0, %v7192
        %v7194 = vpop.f32.mrb[0].mxu0
        %v7195 = vpop.f32.mrb[0].mxu0
        %v7196 = vadd.f32 0.0, %v7195
        %v7197 = vpop.f32.mrb[0].mxu0
        %7198 = vmatprep.mubr.bf16.mxu0 0
        %7199 = vmatmul.mubr.bf16.gmra.mrb[0].mxu0 %v7136
        %v7200 = vpop.f32.mrb[0].mxu0
        %v7201 = vadd.f32 0.0, %v7200
        %v7202 = vpop.f32.mrb[0].mxu0
        %v7203 = vpop.f32.mrb[0].mxu0
        %v7204 = vadd.f32 0.0, %v7203
        %v7205 = vpop.f32.mrb[0].mxu0
        %7206 = vmatprep.mubr.bf16.mxu0 0
        %7207 = vmatmul.mubr.bf16.gmra.mrb[0].mxu0 %v7139
        %v7208 = vpop.f32.mrb[0].mxu0
        %v7209 = vadd.f32 0.0, %v7208
        %v7210 = vpop.f32.mrb[0].mxu0
        %v7211 = vpop.f32.mrb[0].mxu0
        %v7212 = vadd.f32 0.0, %v7211
        %v7213 = vpop.f32.mrb[0].mxu0
        %7214 = vmatprep.mubr.bf16.mxu0 0
        %7215 = vmatmul.mubr.bf16.gmra.mrb[0].mxu0 %v7142
        %v7216 = vpop.f32.mrb[0].mxu0
        %v7217 = vadd.f32 0.0, %v7216
        %v7218 = vpop.f32.mrb[0].mxu0
        %v7219 = vpop.f32.mrb[0].mxu0
        %v7220 = vadd.f32 0.0, %v7219
        %v7221 = vpop.f32.mrb[0].mxu0
        %7222 = vmatprep.mubr.bf16.mxu0 0
        %7223 = vmatmul.mubr.bf16.gmra.mrb[0].mxu0 %v7145
        %v7224 = vpop.f32.mrb[0].mxu0
        %v7225 = vadd.f32 0.0, %v7224
        %v7226 = vpop.f32.mrb[0].mxu0
        %v7227 = vpop.f32.mrb[0].mxu0
        %v7228 = vpop.f32.mrb[0].mxu0
        %7229 = vdwg.mxu0
        %v7230 = vadd.f32 %v7027, %v7185
        %v7231 = vadd.f32 %v7028, %v7188
        %v7232 = vadd.f32 %v7029, %v7193
        %v7233 = vadd.f32 %v7030, %v7196
        %v7234 = vadd.f32 %v7031, %v7201
        %v7235 = vadd.f32 %v7032, %v7204
        %v7236 = vadd.f32 %v7033, %v7209
        %v7237 = vadd.f32 %v7034, %v7212
        %v7238 = vadd.f32 %v7035, %v7217
        %v7239 = vadd.f32 %v7036, %v7220
        %v7240 = vadd.f32 %v7037, %v7225
        %v7241 = vld [vmem:[%s503 + $0x10] sm:$0xf]
        %v7242 = vld [vmem:[%s503 + $0x14] sm:$0xf]
        %v7243 = vld [vmem:[%s503 + $0x18] sm:$0xf]
        %v7244 = vld [vmem:[%s503 + $0x1c] sm:$0xf]
        %v7245 = vld [vmem:[%s503 + $0x20] sm:$0xf]
        %v7246 = vld [vmem:[%s503 + $0x24] sm:$0xf]
        %v7247 = vld [vmem:[%s503 + $0x28] sm:$0xf]
        %v7248 = vld [vmem:[%s503 + $0x2c] sm:$0xf]
        %v7249 = vld [vmem:[%s503 + $0x30] sm:$0xf]
        %v7250 = vld [vmem:[%s503 + $0x34] sm:$0xf]
        %v7251 = vld [vmem:[%s503 + $0x38] sm:$0xf]
        %v7252 = vld [vmem:[%s503 + $0x3c] sm:$0x1]
        %s7253 = scalar_lea.vmem %s542, 84
        %v7254 = vld [vmem:[%s7253] sm:$0x3]
        %v7267 = vunpack.c.l.b16 %v7241
        %v7268 = vunpack.c.l.b16 %v7242
        %v7269 = vunpack.c.l.b16 %v7243
        %v7270 = vunpack.c.l.b16 %v7244
        %v7271 = vunpack.c.l.b16 %v7245
        %v7272 = vunpack.c.l.b16 %v7246
        %v7273 = vunpack.c.l.b16 %v7247
        %v7274 = vunpack.c.l.b16 %v7248
        %v7275 = vunpack.c.l.b16 %v7249
        %v7276 = vunpack.c.l.b16 %v7250
        %v7277 = vunpack.c.l.b16 %v7251
        %v7278 = vunpack.c.l.b16 %v7252
        %v7279 = vpack.c.b16 %v7268, %v7267
        %v7280 = vpack.c.b16 %v7270, %v7269
        %v7281 = vpack.c.b16 %v7272, %v7271
        %v7282 = vpack.c.b16 %v7274, %v7273
        %v7283 = vpack.c.b16 %v7276, %v7275
        %v7284 = vpack.c.b16 %v7278, %v7277
        %v7286 = vshrl.u32 %v7279, 16
        %v7288 = vshll.u32 %v7279, 16
        %v7290 = vrot.slane %v7288, 1
        %v7291 = vor.u32 %v7286, %v7290
        %v7293 = vshll.u32 %v7280, 16
        %v7295 = vrot.slane %v7293, 1
        %v7296 = vsel %vm888, %v7291, %v7295
        %v7297 = vshrl.u32 %v7280, 16
        %v7299 = vor.u32 %v7297, %v7295
        %v7301 = vshll.u32 %v7281, 16
        %v7303 = vrot.slane %v7301, 1
        %v7304 = vsel %vm888, %v7299, %v7303
        %v7305 = vshrl.u32 %v7281, 16
        %v7307 = vor.u32 %v7305, %v7303
        %v7309 = vshll.u32 %v7282, 16
        %v7311 = vrot.slane %v7309, 1
        %v7312 = vsel %vm888, %v7307, %v7311
        %v7313 = vshrl.u32 %v7282, 16
        %v7315 = vor.u32 %v7313, %v7311
        %v7317 = vshll.u32 %v7283, 16
        %v7319 = vrot.slane %v7317, 1
        %v7320 = vsel %vm888, %v7315, %v7319
        %v7321 = vshrl.u32 %v7283, 16
        %v7323 = vor.u32 %v7321, %v7319
        %v7325 = vshll.u32 %v7284, 16
        %v7327 = vrot.slane %v7325, 1
        %v7328 = vsel %vm888, %v7323, %v7327
        %v7329 = vshrl.u32 %v7284, 16
        %v7331 = vor.u32 %v7329, %v7327
        %v7333 = vsel %vm612, %v7296, 0
        %v7336 = vsel %vm612, %v7304, 0
        %v7339 = vsel %vm612, %v7312, 0
        %v7342 = vsel %vm612, %v7320, 0
        %v7345 = vsel %vm612, %v7328, 0
        %v7348 = vsel %vm612, %v7331, 0
        %v7351 = vsel %vm631, %v7254, 0
        %7353 = vmatprep.subr.bf16.mxu0 0
        %7354 = vmatpush1.bf16.msra.mxu0 %v7351
        %7355 = vmatprep.subr.bf16.mxu0 0
        %7356 = vmatpush1.bf16.msra.mxu0 0
        %7357 = vmatprep.subr.bf16.mxu0 0
        %7358 = vmatpush1.bf16.msra.mxu0 0
        %7359 = vmatprep.subr.bf16.mxu0 0
        %7360 = vmatpush1.bf16.msra.mxu0 0
        %7361 = vmatprep.subr.bf16.mxu0 0
        %7362 = vmatpush1.bf16.msra.mxu0 0
        %7363 = vmatprep.subr.bf16.mxu0 0
        %7364 = vmatpush1.bf16.msra.mxu0 0
        %7365 = vmatprep.subr.bf16.mxu0 0
        %7366 = vmatpush1.bf16.msra.mxu0 0
        %7367 = vmatprep.subr.bf16.mxu0 0
        %7368 = vmatpush1.bf16.msra.mxu0 0
        %7369 = vmatprep.subr.bf16.mxu0 0
        %7370 = vmatpush1.bf16.msra.mxu0 0
        %7371 = vmatprep.subr.bf16.mxu0 0
        %7372 = vmatpush1.bf16.msra.mxu0 0
        %7373 = vmatprep.subr.bf16.mxu0 0
        %7374 = vmatpush1.bf16.msra.mxu0 0
        %7375 = vmatprep.subr.bf16.mxu0 0
        %7376 = vmatpush1.bf16.msra.mxu0 0
        %7377 = vmatprep.subr.bf16.mxu0 0
        %7378 = vmatpush1.bf16.msra.mxu0 0
        %7379 = vmatprep.subr.bf16.mxu0 0
        %7380 = vmatpush1.bf16.msra.mxu0 0
        %7381 = vmatprep.subr.bf16.mxu0 0
        %7382 = vmatpush1.bf16.msra.mxu0 0
        %7383 = vmatprep.subr.bf16.mxu0 0
        %7384 = vmatpush1.bf16.msra.mxu0 0
        %7385 = vmatprep.mubr.bf16.mxu0 0
        %7386 = vmatmul.mubr.bf16.gmra.mrb[0].mxu0 %v7333
        %v7387 = vpop.f32.mrb[0].mxu0
        %v7388 = vadd.f32 0.0, %v7387
        %v7389 = vpop.f32.mrb[0].mxu0
        %v7390 = vpop.f32.mrb[0].mxu0
        %v7391 = vadd.f32 0.0, %v7390
        %v7392 = vpop.f32.mrb[0].mxu0
        %7393 = vmatprep.mubr.bf16.mxu0 0
        %7394 = vmatmul.mubr.bf16.gmra.mrb[0].mxu0 %v7336
        %v7395 = vpop.f32.mrb[0].mxu0
        %v7396 = vadd.f32 0.0, %v7395
        %v7397 = vpop.f32.mrb[0].mxu0
        %v7398 = vpop.f32.mrb[0].mxu0
        %v7399 = vadd.f32 0.0, %v7398
        %v7400 = vpop.f32.mrb[0].mxu0
        %7401 = vmatprep.mubr.bf16.mxu0 0
        %7402 = vmatmul.mubr.bf16.gmra.mrb[0].mxu0 %v7339
        %v7403 = vpop.f32.mrb[0].mxu0
        %v7404 = vadd.f32 0.0, %v7403
        %v7405 = vpop.f32.mrb[0].mxu0
        %v7406 = vpop.f32.mrb[0].mxu0
        %v7407 = vadd.f32 0.0, %v7406
        %v7408 = vpop.f32.mrb[0].mxu0
        %7409 = vmatprep.mubr.bf16.mxu0 0
        %7410 = vmatmul.mubr.bf16.gmra.mrb[0].mxu0 %v7342
        %v7411 = vpop.f32.mrb[0].mxu0
        %v7412 = vadd.f32 0.0, %v7411
        %v7413 = vpop.f32.mrb[0].mxu0
        %v7414 = vpop.f32.mrb[0].mxu0
        %v7415 = vadd.f32 0.0, %v7414
        %v7416 = vpop.f32.mrb[0].mxu0
        %7417 = vmatprep.mubr.bf16.mxu0 0
        %7418 = vmatmul.mubr.bf16.gmra.mrb[0].mxu0 %v7345
        %v7419 = vpop.f32.mrb[0].mxu0
        %v7420 = vadd.f32 0.0, %v7419
        %v7421 = vpop.f32.mrb[0].mxu0
        %v7422 = vpop.f32.mrb[0].mxu0
        %v7423 = vadd.f32 0.0, %v7422
        %v7424 = vpop.f32.mrb[0].mxu0
        %7425 = vmatprep.mubr.bf16.mxu0 0
        %7426 = vmatmul.mubr.bf16.gmra.mrb[0].mxu0 %v7348
        %v7427 = vpop.f32.mrb[0].mxu0
        %v7428 = vadd.f32 0.0, %v7427
        %v7429 = vpop.f32.mrb[0].mxu0
        %v7430 = vpop.f32.mrb[0].mxu0
        %v7431 = vpop.f32.mrb[0].mxu0
        %7432 = vdwg.mxu0
        %v7433 = vadd.f32 %v7230, %v7388
        %v7434 = vadd.f32 %v7231, %v7391
        %v7435 = vadd.f32 %v7232, %v7396
        %v7436 = vadd.f32 %v7233, %v7399
        %v7437 = vadd.f32 %v7234, %v7404
        %v7438 = vadd.f32 %v7235, %v7407
        %v7439 = vadd.f32 %v7236, %v7412
        %v7440 = vadd.f32 %v7237, %v7415
        %v7441 = vadd.f32 %v7238, %v7420
        %v7442 = vadd.f32 %v7239, %v7423
        %v7443 = vadd.f32 %v7240, %v7428
        %v7444 = vld [vmem:[%s570 + $0x10] sm:$0xf]
        %v7445 = vld [vmem:[%s570 + $0x14] sm:$0xf]
        %v7446 = vld [vmem:[%s570 + $0x18] sm:$0xf]
        %v7447 = vld [vmem:[%s570 + $0x1c] sm:$0xf]
        %v7448 = vld [vmem:[%s570 + $0x20] sm:$0xf]
        %v7449 = vld [vmem:[%s570 + $0x24] sm:$0xf]
        %v7450 = vld [vmem:[%s570 + $0x28] sm:$0xf]
        %v7451 = vld [vmem:[%s570 + $0x2c] sm:$0xf]
        %v7452 = vld [vmem:[%s570 + $0x30] sm:$0xf]
        %v7453 = vld [vmem:[%s570 + $0x34] sm:$0xf]
        %v7454 = vld [vmem:[%s570 + $0x38] sm:$0xf]
        %v7455 = vld [vmem:[%s570 + $0x3c] sm:$0x1]
        %s7456 = scalar_lea.vmem %s542, 86
        %v7457 = vld [vmem:[%s7456] sm:$0x3]
        %v7470 = vunpack.c.l.b16 %v7444
        %v7471 = vunpack.c.l.b16 %v7445
        %v7472 = vunpack.c.l.b16 %v7446
        %v7473 = vunpack.c.l.b16 %v7447
        %v7474 = vunpack.c.l.b16 %v7448
        %v7475 = vunpack.c.l.b16 %v7449
        %v7476 = vunpack.c.l.b16 %v7450
        %v7477 = vunpack.c.l.b16 %v7451
        %v7478 = vunpack.c.l.b16 %v7452
        %v7479 = vunpack.c.l.b16 %v7453
        %v7480 = vunpack.c.l.b16 %v7454
        %v7481 = vunpack.c.l.b16 %v7455
        %v7482 = vpack.c.b16 %v7471, %v7470
        %v7483 = vpack.c.b16 %v7473, %v7472
        %v7484 = vpack.c.b16 %v7475, %v7474
        %v7485 = vpack.c.b16 %v7477, %v7476
        %v7486 = vpack.c.b16 %v7479, %v7478
        %v7487 = vpack.c.b16 %v7481, %v7480
        %v7489 = vshrl.u32 %v7482, 16
        %v7491 = vshll.u32 %v7482, 16
        %v7493 = vrot.slane %v7491, 1
        %v7494 = vor.u32 %v7489, %v7493
        %v7496 = vshll.u32 %v7483, 16
        %v7498 = vrot.slane %v7496, 1
        %v7499 = vsel %vm888, %v7494, %v7498
        %v7500 = vshrl.u32 %v7483, 16
        %v7502 = vor.u32 %v7500, %v7498
        %v7504 = vshll.u32 %v7484, 16
        %v7506 = vrot.slane %v7504, 1
        %v7507 = vsel %vm888, %v7502, %v7506
        %v7508 = vshrl.u32 %v7484, 16
        %v7510 = vor.u32 %v7508, %v7506
        %v7512 = vshll.u32 %v7485, 16
        %v7514 = vrot.slane %v7512, 1
        %v7515 = vsel %vm888, %v7510, %v7514
        %v7516 = vshrl.u32 %v7485, 16
        %v7518 = vor.u32 %v7516, %v7514
        %v7520 = vshll.u32 %v7486, 16
        %v7522 = vrot.slane %v7520, 1
        %v7523 = vsel %vm888, %v7518, %v7522
        %v7524 = vshrl.u32 %v7486, 16
        %v7526 = vor.u32 %v7524, %v7522
        %v7528 = vshll.u32 %v7487, 16
        %v7530 = vrot.slane %v7528, 1
        %v7531 = vsel %vm888, %v7526, %v7530
        %v7532 = vshrl.u32 %v7487, 16
        %v7534 = vor.u32 %v7532, %v7530
        %v7536 = vsel %vm612, %v7499, 0
        %v7539 = vsel %vm612, %v7507, 0
        %v7542 = vsel %vm612, %v7515, 0
        %v7545 = vsel %vm612, %v7523, 0
        %v7548 = vsel %vm612, %v7531, 0
        %v7551 = vsel %vm612, %v7534, 0
        %v7554 = vsel %vm631, %v7457, 0
        %7556 = vmatprep.subr.bf16.mxu0 0
        %7557 = vmatpush1.bf16.msra.mxu0 %v7554
        %7558 = vmatprep.subr.bf16.mxu0 0
        %7559 = vmatpush1.bf16.msra.mxu0 0
        %7560 = vmatprep.subr.bf16.mxu0 0
        %7561 = vmatpush1.bf16.msra.mxu0 0
        %7562 = vmatprep.subr.bf16.mxu0 0
        %7563 = vmatpush1.bf16.msra.mxu0 0
        %7564 = vmatprep.subr.bf16.mxu0 0
        %7565 = vmatpush1.bf16.msra.mxu0 0
        %7566 = vmatprep.subr.bf16.mxu0 0
        %7567 = vmatpush1.bf16.msra.mxu0 0
        %7568 = vmatprep.subr.bf16.mxu0 0
        %7569 = vmatpush1.bf16.msra.mxu0 0
        %7570 = vmatprep.subr.bf16.mxu0 0
        %7571 = vmatpush1.bf16.msra.mxu0 0
        %7572 = vmatprep.subr.bf16.mxu0 0
        %7573 = vmatpush1.bf16.msra.mxu0 0
        %7574 = vmatprep.subr.bf16.mxu0 0
        %7575 = vmatpush1.bf16.msra.mxu0 0
        %7576 = vmatprep.subr.bf16.mxu0 0
        %7577 = vmatpush1.bf16.msra.mxu0 0
        %7578 = vmatprep.subr.bf16.mxu0 0
        %7579 = vmatpush1.bf16.msra.mxu0 0
        %7580 = vmatprep.subr.bf16.mxu0 0
        %7581 = vmatpush1.bf16.msra.mxu0 0
        %7582 = vmatprep.subr.bf16.mxu0 0
        %7583 = vmatpush1.bf16.msra.mxu0 0
        %7584 = vmatprep.subr.bf16.mxu0 0
        %7585 = vmatpush1.bf16.msra.mxu0 0
        %7586 = vmatprep.subr.bf16.mxu0 0
        %7587 = vmatpush1.bf16.msra.mxu0 0
        %7588 = vmatprep.mubr.bf16.mxu0 0
        %7589 = vmatmul.mubr.bf16.gmra.mrb[0].mxu0 %v7536
        %v7590 = vpop.f32.mrb[0].mxu0
        %v7591 = vadd.f32 0.0, %v7590
        %v7592 = vpop.f32.mrb[0].mxu0
        %v7593 = vpop.f32.mrb[0].mxu0
        %v7594 = vadd.f32 0.0, %v7593
        %v7595 = vpop.f32.mrb[0].mxu0
        %7596 = vmatprep.mubr.bf16.mxu0 0
        %7597 = vmatmul.mubr.bf16.gmra.mrb[0].mxu0 %v7539
        %v7598 = vpop.f32.mrb[0].mxu0
        %v7599 = vadd.f32 0.0, %v7598
        %v7600 = vpop.f32.mrb[0].mxu0
        %v7601 = vpop.f32.mrb[0].mxu0
        %v7602 = vadd.f32 0.0, %v7601
        %v7603 = vpop.f32.mrb[0].mxu0
        %7604 = vmatprep.mubr.bf16.mxu0 0
        %7605 = vmatmul.mubr.bf16.gmra.mrb[0].mxu0 %v7542
        %v7606 = vpop.f32.mrb[0].mxu0
        %v7607 = vadd.f32 0.0, %v7606
        %v7608 = vpop.f32.mrb[0].mxu0
        %v7609 = vpop.f32.mrb[0].mxu0
        %v7610 = vadd.f32 0.0, %v7609
        %v7611 = vpop.f32.mrb[0].mxu0
        %7612 = vmatprep.mubr.bf16.mxu0 0
        %7613 = vmatmul.mubr.bf16.gmra.mrb[0].mxu0 %v7545
        %v7614 = vpop.f32.mrb[0].mxu0
        %v7615 = vadd.f32 0.0, %v7614
        %v7616 = vpop.f32.mrb[0].mxu0
        %v7617 = vpop.f32.mrb[0].mxu0
        %v7618 = vadd.f32 0.0, %v7617
        %v7619 = vpop.f32.mrb[0].mxu0
        %7620 = vmatprep.mubr.bf16.mxu0 0
        %7621 = vmatmul.mubr.bf16.gmra.mrb[0].mxu0 %v7548
        %v7622 = vpop.f32.mrb[0].mxu0
        %v7623 = vadd.f32 0.0, %v7622
        %v7624 = vpop.f32.mrb[0].mxu0
        %v7625 = vpop.f32.mrb[0].mxu0
        %v7626 = vadd.f32 0.0, %v7625
        %v7627 = vpop.f32.mrb[0].mxu0
        %7628 = vmatprep.mubr.bf16.mxu0 0
        %7629 = vmatmul.mubr.bf16.gmra.mrb[0].mxu0 %v7551
        %v7630 = vpop.f32.mrb[0].mxu0
        %v7631 = vadd.f32 0.0, %v7630
        %v7632 = vpop.f32.mrb[0].mxu0
        %v7633 = vpop.f32.mrb[0].mxu0
        %v7634 = vpop.f32.mrb[0].mxu0
        %7635 = vdwg.mxu0
        %v7636 = vadd.f32 %v7433, %v7591
        %v7637 = vadd.f32 %v7434, %v7594
        %v7638 = vadd.f32 %v7435, %v7599
        %v7639 = vadd.f32 %v7436, %v7602
        %v7640 = vadd.f32 %v7437, %v7607
        %v7641 = vadd.f32 %v7438, %v7610
        %v7642 = vadd.f32 %v7439, %v7615
        %v7643 = vadd.f32 %v7440, %v7618
        %v7644 = vadd.f32 %v7441, %v7623
        %v7645 = vadd.f32 %v7442, %v7626
        %v7646 = vadd.f32 %v7443, %v7631
        %v7647 = vld [vmem:[%s503 + $0x10] sm:$0xe]
        %s7648 = scalar_lea.vmem %s542, 88
        %v7649 = vld [vmem:[%s7648] sm:$0x3]
        %v7651 = vunpack.c.l.b16 %v7647
        %v7652 = vpack.c.b16 %v7268, %v7651
        %v7653 = vrot.slane %v7652, 1
        %v7654 = vrot.slane %v7280, 1
        %v7655 = vsel %vm1257, %v7653, %v7654
        %v7656 = vrot.slane %v7281, 1
        %v7657 = vsel %vm1257, %v7654, %v7656
        %v7658 = vrot.slane %v7282, 1
        %v7659 = vsel %vm1257, %v7656, %v7658
        %v7660 = vrot.slane %v7283, 1
        %v7661 = vsel %vm1257, %v7658, %v7660
        %v7662 = vrot.slane %v7284, 1
        %v7663 = vsel %vm1257, %v7660, %v7662
        %v7665 = vsel %vm612, %v7655, 0
        %v7668 = vsel %vm612, %v7657, 0
        %v7671 = vsel %vm612, %v7659, 0
        %v7674 = vsel %vm612, %v7661, 0
        %v7677 = vsel %vm612, %v7663, 0
        %v7680 = vsel %vm612, %v7662, 0
        %v7683 = vsel %vm631, %v7649, 0
        %7685 = vmatprep.subr.bf16.mxu0 0
        %7686 = vmatpush1.bf16.msra.mxu0 %v7683
        %7687 = vmatprep.subr.bf16.mxu0 0
        %7688 = vmatpush1.bf16.msra.mxu0 0
        %7689 = vmatprep.subr.bf16.mxu0 0
        %7690 = vmatpush1.bf16.msra.mxu0 0
        %7691 = vmatprep.subr.bf16.mxu0 0
        %7692 = vmatpush1.bf16.msra.mxu0 0
        %7693 = vmatprep.subr.bf16.mxu0 0
        %7694 = vmatpush1.bf16.msra.mxu0 0
        %7695 = vmatprep.subr.bf16.mxu0 0
        %7696 = vmatpush1.bf16.msra.mxu0 0
        %7697 = vmatprep.subr.bf16.mxu0 0
        %7698 = vmatpush1.bf16.msra.mxu0 0
        %7699 = vmatprep.subr.bf16.mxu0 0
        %7700 = vmatpush1.bf16.msra.mxu0 0
        %7701 = vmatprep.subr.bf16.mxu0 0
        %7702 = vmatpush1.bf16.msra.mxu0 0
        %7703 = vmatprep.subr.bf16.mxu0 0
        %7704 = vmatpush1.bf16.msra.mxu0 0
        %7705 = vmatprep.subr.bf16.mxu0 0
        %7706 = vmatpush1.bf16.msra.mxu0 0
        %7707 = vmatprep.subr.bf16.mxu0 0
        %7708 = vmatpush1.bf16.msra.mxu0 0
        %7709 = vmatprep.subr.bf16.mxu0 0
        %7710 = vmatpush1.bf16.msra.mxu0 0
        %7711 = vmatprep.subr.bf16.mxu0 0
        %7712 = vmatpush1.bf16.msra.mxu0 0
        %7713 = vmatprep.subr.bf16.mxu0 0
        %7714 = vmatpush1.bf16.msra.mxu0 0
        %7715 = vmatprep.subr.bf16.mxu0 0
        %7716 = vmatpush1.bf16.msra.mxu0 0
        %7717 = vmatprep.mubr.bf16.mxu0 0
        %7718 = vmatmul.mubr.bf16.gmra.mrb[0].mxu0 %v7665
        %v7719 = vpop.f32.mrb[0].mxu0
        %v7720 = vadd.f32 0.0, %v7719
        %v7721 = vpop.f32.mrb[0].mxu0
        %v7722 = vpop.f32.mrb[0].mxu0
        %v7723 = vadd.f32 0.0, %v7722
        %v7724 = vpop.f32.mrb[0].mxu0
        %7725 = vmatprep.mubr.bf16.mxu0 0
        %7726 = vmatmul.mubr.bf16.gmra.mrb[0].mxu0 %v7668
        %v7727 = vpop.f32.mrb[0].mxu0
        %v7728 = vadd.f32 0.0, %v7727
        %v7729 = vpop.f32.mrb[0].mxu0
        %v7730 = vpop.f32.mrb[0].mxu0
        %v7731 = vadd.f32 0.0, %v7730
        %v7732 = vpop.f32.mrb[0].mxu0
        %7733 = vmatprep.mubr.bf16.mxu0 0
        %7734 = vmatmul.mubr.bf16.gmra.mrb[0].mxu0 %v7671
        %v7735 = vpop.f32.mrb[0].mxu0
        %v7736 = vadd.f32 0.0, %v7735
        %v7737 = vpop.f32.mrb[0].mxu0
        %v7738 = vpop.f32.mrb[0].mxu0
        %v7739 = vadd.f32 0.0, %v7738
        %v7740 = vpop.f32.mrb[0].mxu0
        %7741 = vmatprep.mubr.bf16.mxu0 0
        %7742 = vmatmul.mubr.bf16.gmra.mrb[0].mxu0 %v7674
        %v7743 = vpop.f32.mrb[0].mxu0
        %v7744 = vadd.f32 0.0, %v7743
        %v7745 = vpop.f32.mrb[0].mxu0
        %v7746 = vpop.f32.mrb[0].mxu0
        %v7747 = vadd.f32 0.0, %v7746
        %v7748 = vpop.f32.mrb[0].mxu0
        %7749 = vmatprep.mubr.bf16.mxu0 0
        %7750 = vmatmul.mubr.bf16.gmra.mrb[0].mxu0 %v7677
        %v7751 = vpop.f32.mrb[0].mxu0
        %v7752 = vadd.f32 0.0, %v7751
        %v7753 = vpop.f32.mrb[0].mxu0
        %v7754 = vpop.f32.mrb[0].mxu0
        %v7755 = vadd.f32 0.0, %v7754
        %v7756 = vpop.f32.mrb[0].mxu0
        %7757 = vmatprep.mubr.bf16.mxu0 0
        %7758 = vmatmul.mubr.bf16.gmra.mrb[0].mxu0 %v7680
        %v7759 = vpop.f32.mrb[0].mxu0
        %v7760 = vadd.f32 0.0, %v7759
        %v7761 = vpop.f32.mrb[0].mxu0
        %v7762 = vpop.f32.mrb[0].mxu0
        %v7763 = vpop.f32.mrb[0].mxu0
        %7764 = vdwg.mxu0
        %v7765 = vadd.f32 %v7636, %v7720
        %v7766 = vadd.f32 %v7637, %v7723
        %v7767 = vadd.f32 %v7638, %v7728
        %v7768 = vadd.f32 %v7639, %v7731
        %v7769 = vadd.f32 %v7640, %v7736
        %v7770 = vadd.f32 %v7641, %v7739
        %v7771 = vadd.f32 %v7642, %v7744
        %v7772 = vadd.f32 %v7643, %v7747
        %v7773 = vadd.f32 %v7644, %v7752
        %v7774 = vadd.f32 %v7645, %v7755
        %v7775 = vadd.f32 %v7646, %v7760
        %v7776 = vld [vmem:[%s570 + $0x10] sm:$0xe]
        %s7777 = scalar_lea.vmem %s542, 90
        %v7778 = vld [vmem:[%s7777] sm:$0x3]
        %v7780 = vunpack.c.l.b16 %v7776
        %v7781 = vpack.c.b16 %v7471, %v7780
        %v7782 = vrot.slane %v7781, 1
        %v7783 = vrot.slane %v7483, 1
        %v7784 = vsel %vm1257, %v7782, %v7783
        %v7785 = vrot.slane %v7484, 1
        %v7786 = vsel %vm1257, %v7783, %v7785
        %v7787 = vrot.slane %v7485, 1
        %v7788 = vsel %vm1257, %v7785, %v7787
        %v7789 = vrot.slane %v7486, 1
        %v7790 = vsel %vm1257, %v7787, %v7789
        %v7791 = vrot.slane %v7487, 1
        %v7792 = vsel %vm1257, %v7789, %v7791
        %v7794 = vsel %vm612, %v7784, 0
        %v7797 = vsel %vm612, %v7786, 0
        %v7800 = vsel %vm612, %v7788, 0
        %v7803 = vsel %vm612, %v7790, 0
        %v7806 = vsel %vm612, %v7792, 0
        %v7809 = vsel %vm612, %v7791, 0
        %v7812 = vsel %vm631, %v7778, 0
        %7814 = vmatprep.subr.bf16.mxu0 0
        %7815 = vmatpush1.bf16.msra.mxu0 %v7812
        %7816 = vmatprep.subr.bf16.mxu0 0
        %7817 = vmatpush1.bf16.msra.mxu0 0
        %7818 = vmatprep.subr.bf16.mxu0 0
        %7819 = vmatpush1.bf16.msra.mxu0 0
        %7820 = vmatprep.subr.bf16.mxu0 0
        %7821 = vmatpush1.bf16.msra.mxu0 0
        %7822 = vmatprep.subr.bf16.mxu0 0
        %7823 = vmatpush1.bf16.msra.mxu0 0
        %7824 = vmatprep.subr.bf16.mxu0 0
        %7825 = vmatpush1.bf16.msra.mxu0 0
        %7826 = vmatprep.subr.bf16.mxu0 0
        %7827 = vmatpush1.bf16.msra.mxu0 0
        %7828 = vmatprep.subr.bf16.mxu0 0
        %7829 = vmatpush1.bf16.msra.mxu0 0
        %7830 = vmatprep.subr.bf16.mxu0 0
        %7831 = vmatpush1.bf16.msra.mxu0 0
        %7832 = vmatprep.subr.bf16.mxu0 0
        %7833 = vmatpush1.bf16.msra.mxu0 0
        %7834 = vmatprep.subr.bf16.mxu0 0
        %7835 = vmatpush1.bf16.msra.mxu0 0
        %7836 = vmatprep.subr.bf16.mxu0 0
        %7837 = vmatpush1.bf16.msra.mxu0 0
        %7838 = vmatprep.subr.bf16.mxu0 0
        %7839 = vmatpush1.bf16.msra.mxu0 0
        %7840 = vmatprep.subr.bf16.mxu0 0
        %7841 = vmatpush1.bf16.msra.mxu0 0
        %7842 = vmatprep.subr.bf16.mxu0 0
        %7843 = vmatpush1.bf16.msra.mxu0 0
        %7844 = vmatprep.subr.bf16.mxu0 0
        %7845 = vmatpush1.bf16.msra.mxu0 0
        %7846 = vmatprep.mubr.bf16.mxu0 0
        %7847 = vmatmul.mubr.bf16.gmra.mrb[0].mxu0 %v7794
        %v7848 = vpop.f32.mrb[0].mxu0
        %v7849 = vadd.f32 0.0, %v7848
        %v7850 = vpop.f32.mrb[0].mxu0
        %v7851 = vpop.f32.mrb[0].mxu0
        %v7852 = vadd.f32 0.0, %v7851
        %v7853 = vpop.f32.mrb[0].mxu0
        %7854 = vmatprep.mubr.bf16.mxu0 0
        %7855 = vmatmul.mubr.bf16.gmra.mrb[0].mxu0 %v7797
        %v7856 = vpop.f32.mrb[0].mxu0
        %v7857 = vadd.f32 0.0, %v7856
        %v7858 = vpop.f32.mrb[0].mxu0
        %v7859 = vpop.f32.mrb[0].mxu0
        %v7860 = vadd.f32 0.0, %v7859
        %v7861 = vpop.f32.mrb[0].mxu0
        %7862 = vmatprep.mubr.bf16.mxu0 0
        %7863 = vmatmul.mubr.bf16.gmra.mrb[0].mxu0 %v7800
        %v7864 = vpop.f32.mrb[0].mxu0
        %v7865 = vadd.f32 0.0, %v7864
        %v7866 = vpop.f32.mrb[0].mxu0
        %v7867 = vpop.f32.mrb[0].mxu0
        %v7868 = vadd.f32 0.0, %v7867
        %v7869 = vpop.f32.mrb[0].mxu0
        %7870 = vmatprep.mubr.bf16.mxu0 0
        %7871 = vmatmul.mubr.bf16.gmra.mrb[0].mxu0 %v7803
        %v7872 = vpop.f32.mrb[0].mxu0
        %v7873 = vadd.f32 0.0, %v7872
        %v7874 = vpop.f32.mrb[0].mxu0
        %v7875 = vpop.f32.mrb[0].mxu0
        %v7876 = vadd.f32 0.0, %v7875
        %v7877 = vpop.f32.mrb[0].mxu0
        %7878 = vmatprep.mubr.bf16.mxu0 0
        %7879 = vmatmul.mubr.bf16.gmra.mrb[0].mxu0 %v7806
        %v7880 = vpop.f32.mrb[0].mxu0
        %v7881 = vadd.f32 0.0, %v7880
        %v7882 = vpop.f32.mrb[0].mxu0
        %v7883 = vpop.f32.mrb[0].mxu0
        %v7884 = vadd.f32 0.0, %v7883
        %v7885 = vpop.f32.mrb[0].mxu0
        %7886 = vmatprep.mubr.bf16.mxu0 0
        %7887 = vmatmul.mubr.bf16.gmra.mrb[0].mxu0 %v7809
        %v7888 = vpop.f32.mrb[0].mxu0
        %v7889 = vadd.f32 0.0, %v7888
        %v7890 = vpop.f32.mrb[0].mxu0
        %v7891 = vpop.f32.mrb[0].mxu0
        %v7892 = vpop.f32.mrb[0].mxu0
        %7893 = vdwg.mxu0
        %v7894 = vadd.f32 %v7765, %v7849
        %v7895 = vadd.f32 %v7766, %v7852
        %v7896 = vadd.f32 %v7767, %v7857
        %v7897 = vadd.f32 %v7768, %v7860
        %v7898 = vadd.f32 %v7769, %v7865
        %v7899 = vadd.f32 %v7770, %v7868
        %v7900 = vadd.f32 %v7771, %v7873
        %v7901 = vadd.f32 %v7772, %v7876
        %v7902 = vadd.f32 %v7773, %v7881
        %v7903 = vadd.f32 %v7774, %v7884
        %v7904 = vadd.f32 %v7775, %v7889
        %v7905 = vld [vmem:[%s503 + $0x3c] sm:$0x3]
        %s7906 = scalar_lea.vmem %s542, 92
        %v7907 = vld [vmem:[%s7906] sm:$0x3]
        %v7909 = vunpack.c.l.b16 %v7905
        %v7910 = vpack.c.b16 %v7909, %v7277
        %v7912 = vshrl.u32 %v7652, 16
        %v7914 = vrot.slane %v7912, 1
        %v7915 = vshll.u32 %v7652, 16
        %v7917 = vrot.slane %v7915, 2
        %v7918 = vor.u32 %v7914, %v7917
        %v7919 = vrot.slane %v7297, 1
        %v7920 = vrot.slane %v7293, 2
        %v7921 = vor.u32 %v7919, %v7920
        %v7922 = vsel %vm1516, %v7918, %v7921
        %v7923 = vrot.slane %v7305, 1
        %v7924 = vrot.slane %v7301, 2
        %v7925 = vor.u32 %v7923, %v7924
        %v7926 = vsel %vm1516, %v7921, %v7925
        %v7927 = vrot.slane %v7313, 1
        %v7928 = vrot.slane %v7309, 2
        %v7929 = vor.u32 %v7927, %v7928
        %v7930 = vsel %vm1516, %v7925, %v7929
        %v7931 = vrot.slane %v7321, 1
        %v7932 = vrot.slane %v7317, 2
        %v7933 = vor.u32 %v7931, %v7932
        %v7934 = vsel %vm1516, %v7929, %v7933
        %v7936 = vshrl.u32 %v7910, 16
        %v7938 = vrot.slane %v7936, 1
        %v7939 = vshll.u32 %v7910, 16
        %v7941 = vrot.slane %v7939, 2
        %v7942 = vor.u32 %v7938, %v7941
        %v7943 = vsel %vm1516, %v7933, %v7942
        %v7945 = vsel %vm612, %v7922, 0
        %v7948 = vsel %vm612, %v7926, 0
        %v7951 = vsel %vm612, %v7930, 0
        %v7954 = vsel %vm612, %v7934, 0
        %v7957 = vsel %vm612, %v7943, 0
        %v7960 = vsel %vm612, %v7942, 0
        %v7963 = vsel %vm631, %v7907, 0
        %7965 = vmatprep.subr.bf16.mxu0 0
        %7966 = vmatpush1.bf16.msra.mxu0 %v7963
        %7967 = vmatprep.subr.bf16.mxu0 0
        %7968 = vmatpush1.bf16.msra.mxu0 0
        %7969 = vmatprep.subr.bf16.mxu0 0
        %7970 = vmatpush1.bf16.msra.mxu0 0
        %7971 = vmatprep.subr.bf16.mxu0 0
        %7972 = vmatpush1.bf16.msra.mxu0 0
        %7973 = vmatprep.subr.bf16.mxu0 0
        %7974 = vmatpush1.bf16.msra.mxu0 0
        %7975 = vmatprep.subr.bf16.mxu0 0
        %7976 = vmatpush1.bf16.msra.mxu0 0
        %7977 = vmatprep.subr.bf16.mxu0 0
        %7978 = vmatpush1.bf16.msra.mxu0 0
        %7979 = vmatprep.subr.bf16.mxu0 0
        %7980 = vmatpush1.bf16.msra.mxu0 0
        %7981 = vmatprep.subr.bf16.mxu0 0
        %7982 = vmatpush1.bf16.msra.mxu0 0
        %7983 = vmatprep.subr.bf16.mxu0 0
        %7984 = vmatpush1.bf16.msra.mxu0 0
        %7985 = vmatprep.subr.bf16.mxu0 0
        %7986 = vmatpush1.bf16.msra.mxu0 0
        %7987 = vmatprep.subr.bf16.mxu0 0
        %7988 = vmatpush1.bf16.msra.mxu0 0
        %7989 = vmatprep.subr.bf16.mxu0 0
        %7990 = vmatpush1.bf16.msra.mxu0 0
        %7991 = vmatprep.subr.bf16.mxu0 0
        %7992 = vmatpush1.bf16.msra.mxu0 0
        %7993 = vmatprep.subr.bf16.mxu0 0
        %7994 = vmatpush1.bf16.msra.mxu0 0
        %7995 = vmatprep.subr.bf16.mxu0 0
        %7996 = vmatpush1.bf16.msra.mxu0 0
        %7997 = vmatprep.mubr.bf16.mxu0 0
        %7998 = vmatmul.mubr.bf16.gmra.mrb[0].mxu0 %v7945
        %v7999 = vpop.f32.mrb[0].mxu0
        %v8000 = vadd.f32 0.0, %v7999
        %v8001 = vpop.f32.mrb[0].mxu0
        %v8002 = vpop.f32.mrb[0].mxu0
        %v8003 = vadd.f32 0.0, %v8002
        %v8004 = vpop.f32.mrb[0].mxu0
        %8005 = vmatprep.mubr.bf16.mxu0 0
        %8006 = vmatmul.mubr.bf16.gmra.mrb[0].mxu0 %v7948
        %v8007 = vpop.f32.mrb[0].mxu0
        %v8008 = vadd.f32 0.0, %v8007
        %v8009 = vpop.f32.mrb[0].mxu0
        %v8010 = vpop.f32.mrb[0].mxu0
        %v8011 = vadd.f32 0.0, %v8010
        %v8012 = vpop.f32.mrb[0].mxu0
        %8013 = vmatprep.mubr.bf16.mxu0 0
        %8014 = vmatmul.mubr.bf16.gmra.mrb[0].mxu0 %v7951
        %v8015 = vpop.f32.mrb[0].mxu0
        %v8016 = vadd.f32 0.0, %v8015
        %v8017 = vpop.f32.mrb[0].mxu0
        %v8018 = vpop.f32.mrb[0].mxu0
        %v8019 = vadd.f32 0.0, %v8018
        %v8020 = vpop.f32.mrb[0].mxu0
        %8021 = vmatprep.mubr.bf16.mxu0 0
        %8022 = vmatmul.mubr.bf16.gmra.mrb[0].mxu0 %v7954
        %v8023 = vpop.f32.mrb[0].mxu0
        %v8024 = vadd.f32 0.0, %v8023
        %v8025 = vpop.f32.mrb[0].mxu0
        %v8026 = vpop.f32.mrb[0].mxu0
        %v8027 = vadd.f32 0.0, %v8026
        %v8028 = vpop.f32.mrb[0].mxu0
        %8029 = vmatprep.mubr.bf16.mxu0 0
        %8030 = vmatmul.mubr.bf16.gmra.mrb[0].mxu0 %v7957
        %v8031 = vpop.f32.mrb[0].mxu0
        %v8032 = vadd.f32 0.0, %v8031
        %v8033 = vpop.f32.mrb[0].mxu0
        %v8034 = vpop.f32.mrb[0].mxu0
        %v8035 = vadd.f32 0.0, %v8034
        %v8036 = vpop.f32.mrb[0].mxu0
        %8037 = vmatprep.mubr.bf16.mxu0 0
        %8038 = vmatmul.mubr.bf16.gmra.mrb[0].mxu0 %v7960
        %v8039 = vpop.f32.mrb[0].mxu0
        %v8040 = vadd.f32 0.0, %v8039
        %v8041 = vpop.f32.mrb[0].mxu0
        %v8042 = vpop.f32.mrb[0].mxu0
        %v8043 = vpop.f32.mrb[0].mxu0
        %8044 = vdwg.mxu0
        %v8045 = vadd.f32 %v7894, %v8000
        %v8046 = vadd.f32 %v7895, %v8003
        %v8047 = vadd.f32 %v7896, %v8008
        %v8048 = vadd.f32 %v7897, %v8011
        %v8049 = vadd.f32 %v7898, %v8016
        %v8050 = vadd.f32 %v7899, %v8019
        %v8051 = vadd.f32 %v7900, %v8024
        %v8052 = vadd.f32 %v7901, %v8027
        %v8053 = vadd.f32 %v7902, %v8032
        %v8054 = vadd.f32 %v7903, %v8035
        %v8055 = vadd.f32 %v7904, %v8040
        %v8056 = vld [vmem:[%s570 + $0x3c] sm:$0x3]
        %s8057 = scalar_lea.vmem %s542, 94
        %v8058 = vld [vmem:[%s8057] sm:$0x3]
        %v8060 = vunpack.c.l.b16 %v8056
        %v8061 = vpack.c.b16 %v8060, %v7480
        %v8063 = vshrl.u32 %v7781, 16
        %v8065 = vrot.slane %v8063, 1
        %v8066 = vshll.u32 %v7781, 16
        %v8068 = vrot.slane %v8066, 2
        %v8069 = vor.u32 %v8065, %v8068
        %v8070 = vrot.slane %v7500, 1
        %v8071 = vrot.slane %v7496, 2
        %v8072 = vor.u32 %v8070, %v8071
        %v8073 = vsel %vm1516, %v8069, %v8072
        %v8074 = vrot.slane %v7508, 1
        %v8075 = vrot.slane %v7504, 2
        %v8076 = vor.u32 %v8074, %v8075
        %v8077 = vsel %vm1516, %v8072, %v8076
        %v8078 = vrot.slane %v7516, 1
        %v8079 = vrot.slane %v7512, 2
        %v8080 = vor.u32 %v8078, %v8079
        %v8081 = vsel %vm1516, %v8076, %v8080
        %v8082 = vrot.slane %v7524, 1
        %v8083 = vrot.slane %v7520, 2
        %v8084 = vor.u32 %v8082, %v8083
        %v8085 = vsel %vm1516, %v8080, %v8084
        %v8087 = vshrl.u32 %v8061, 16
        %v8089 = vrot.slane %v8087, 1
        %v8090 = vshll.u32 %v8061, 16
        %v8092 = vrot.slane %v8090, 2
        %v8093 = vor.u32 %v8089, %v8092
        %v8094 = vsel %vm1516, %v8084, %v8093
        %v8096 = vsel %vm612, %v8073, 0
        %v8099 = vsel %vm612, %v8077, 0
        %v8102 = vsel %vm612, %v8081, 0
        %v8105 = vsel %vm612, %v8085, 0
        %v8108 = vsel %vm612, %v8094, 0
        %v8111 = vsel %vm612, %v8093, 0
        %v8114 = vsel %vm631, %v8058, 0
        %8116 = vmatprep.subr.bf16.mxu0 0
        %8117 = vmatpush1.bf16.msra.mxu0 %v8114
        %8118 = vmatprep.subr.bf16.mxu0 0
        %8119 = vmatpush1.bf16.msra.mxu0 0
        %8120 = vmatprep.subr.bf16.mxu0 0
        %8121 = vmatpush1.bf16.msra.mxu0 0
        %8122 = vmatprep.subr.bf16.mxu0 0
        %8123 = vmatpush1.bf16.msra.mxu0 0
        %8124 = vmatprep.subr.bf16.mxu0 0
        %8125 = vmatpush1.bf16.msra.mxu0 0
        %8126 = vmatprep.subr.bf16.mxu0 0
        %8127 = vmatpush1.bf16.msra.mxu0 0
        %8128 = vmatprep.subr.bf16.mxu0 0
        %8129 = vmatpush1.bf16.msra.mxu0 0
        %8130 = vmatprep.subr.bf16.mxu0 0
        %8131 = vmatpush1.bf16.msra.mxu0 0
        %8132 = vmatprep.subr.bf16.mxu0 0
        %8133 = vmatpush1.bf16.msra.mxu0 0
        %8134 = vmatprep.subr.bf16.mxu0 0
        %8135 = vmatpush1.bf16.msra.mxu0 0
        %8136 = vmatprep.subr.bf16.mxu0 0
        %8137 = vmatpush1.bf16.msra.mxu0 0
        %8138 = vmatprep.subr.bf16.mxu0 0
        %8139 = vmatpush1.bf16.msra.mxu0 0
        %8140 = vmatprep.subr.bf16.mxu0 0
        %8141 = vmatpush1.bf16.msra.mxu0 0
        %8142 = vmatprep.subr.bf16.mxu0 0
        %8143 = vmatpush1.bf16.msra.mxu0 0
        %8144 = vmatprep.subr.bf16.mxu0 0
        %8145 = vmatpush1.bf16.msra.mxu0 0
        %8146 = vmatprep.subr.bf16.mxu0 0
        %8147 = vmatpush1.bf16.msra.mxu0 0
        %8148 = vmatprep.mubr.bf16.mxu0 0
        %8149 = vmatmul.mubr.bf16.gmra.mrb[0].mxu0 %v8096
        %v8150 = vpop.f32.mrb[0].mxu0
        %v8151 = vadd.f32 0.0, %v8150
        %v8152 = vpop.f32.mrb[0].mxu0
        %v8153 = vpop.f32.mrb[0].mxu0
        %v8154 = vadd.f32 0.0, %v8153
        %v8155 = vpop.f32.mrb[0].mxu0
        %8156 = vmatprep.mubr.bf16.mxu0 0
        %8157 = vmatmul.mubr.bf16.gmra.mrb[0].mxu0 %v8099
        %v8158 = vpop.f32.mrb[0].mxu0
        %v8159 = vadd.f32 0.0, %v8158
        %v8160 = vpop.f32.mrb[0].mxu0
        %v8161 = vpop.f32.mrb[0].mxu0
        %v8162 = vadd.f32 0.0, %v8161
        %v8163 = vpop.f32.mrb[0].mxu0
        %8164 = vmatprep.mubr.bf16.mxu0 0
        %8165 = vmatmul.mubr.bf16.gmra.mrb[0].mxu0 %v8102
        %v8166 = vpop.f32.mrb[0].mxu0
        %v8167 = vadd.f32 0.0, %v8166
        %v8168 = vpop.f32.mrb[0].mxu0
        %v8169 = vpop.f32.mrb[0].mxu0
        %v8170 = vadd.f32 0.0, %v8169
        %v8171 = vpop.f32.mrb[0].mxu0
        %8172 = vmatprep.mubr.bf16.mxu0 0
        %8173 = vmatmul.mubr.bf16.gmra.mrb[0].mxu0 %v8105
        %v8174 = vpop.f32.mrb[0].mxu0
        %v8175 = vadd.f32 0.0, %v8174
        %v8176 = vpop.f32.mrb[0].mxu0
        %v8177 = vpop.f32.mrb[0].mxu0
        %v8178 = vadd.f32 0.0, %v8177
        %v8179 = vpop.f32.mrb[0].mxu0
        %8180 = vmatprep.mubr.bf16.mxu0 0
        %8181 = vmatmul.mubr.bf16.gmra.mrb[0].mxu0 %v8108
        %v8182 = vpop.f32.mrb[0].mxu0
        %v8183 = vadd.f32 0.0, %v8182
        %v8184 = vpop.f32.mrb[0].mxu0
        %v8185 = vpop.f32.mrb[0].mxu0
        %v8186 = vadd.f32 0.0, %v8185
        %v8187 = vpop.f32.mrb[0].mxu0
        %8188 = vmatprep.mubr.bf16.mxu0 0
        %8189 = vmatmul.mubr.bf16.gmra.mrb[0].mxu0 %v8111
        %v8190 = vpop.f32.mrb[0].mxu0
        %v8191 = vadd.f32 0.0, %v8190
        %v8192 = vpop.f32.mrb[0].mxu0
        %v8193 = vpop.f32.mrb[0].mxu0
        %v8194 = vpop.f32.mrb[0].mxu0
        %8195 = vdwg.mxu0
        %v8196 = vadd.f32 %v8045, %v8151
        %v8197 = vadd.f32 %v8046, %v8154
        %v8198 = vadd.f32 %v8047, %v8159
        %v8199 = vadd.f32 %v8048, %v8162
        %v8200 = vadd.f32 %v8049, %v8167
        %v8201 = vadd.f32 %v8050, %v8170
        %v8202 = vadd.f32 %v8051, %v8175
        %v8203 = vadd.f32 %v8052, %v8178
        %v8204 = vadd.f32 %v8053, %v8183
        %v8205 = vadd.f32 %v8054, %v8186
        %v8206 = vadd.f32 %v8055, %v8191
        %v8207 = vld [vmem:[%s503 + $0x10] sm:$0xc]
        %s8208 = scalar_lea.vmem %s542, 96
        %v8209 = vld [vmem:[%s8208] sm:$0x3]
        %v8211 = vunpack.c.l.b16 %v8207
        %v8212 = vpack.c.b16 %v7268, %v8211
        %v8213 = vrot.slane %v8212, 2
        %v8214 = vrot.slane %v7280, 2
        %v8215 = vsel %vm3209, %v8213, %v8214
        %v8216 = vrot.slane %v7281, 2
        %v8217 = vsel %vm3209, %v8214, %v8216
        %v8218 = vrot.slane %v7282, 2
        %v8219 = vsel %vm3209, %v8216, %v8218
        %v8220 = vrot.slane %v7283, 2
        %v8221 = vsel %vm3209, %v8218, %v8220
        %v8222 = vrot.slane %v7910, 2
        %v8223 = vsel %vm3209, %v8220, %v8222
        %v8225 = vsel %vm612, %v8215, 0
        %v8228 = vsel %vm612, %v8217, 0
        %v8231 = vsel %vm612, %v8219, 0
        %v8234 = vsel %vm612, %v8221, 0
        %v8237 = vsel %vm612, %v8223, 0
        %v8240 = vsel %vm612, %v8222, 0
        %v8243 = vsel %vm631, %v8209, 0
        %8245 = vmatprep.subr.bf16.mxu0 0
        %8246 = vmatpush1.bf16.msra.mxu0 %v8243
        %8247 = vmatprep.subr.bf16.mxu0 0
        %8248 = vmatpush1.bf16.msra.mxu0 0
        %8249 = vmatprep.subr.bf16.mxu0 0
        %8250 = vmatpush1.bf16.msra.mxu0 0
        %8251 = vmatprep.subr.bf16.mxu0 0
        %8252 = vmatpush1.bf16.msra.mxu0 0
        %8253 = vmatprep.subr.bf16.mxu0 0
        %8254 = vmatpush1.bf16.msra.mxu0 0
        %8255 = vmatprep.subr.bf16.mxu0 0
        %8256 = vmatpush1.bf16.msra.mxu0 0
        %8257 = vmatprep.subr.bf16.mxu0 0
        %8258 = vmatpush1.bf16.msra.mxu0 0
        %8259 = vmatprep.subr.bf16.mxu0 0
        %8260 = vmatpush1.bf16.msra.mxu0 0
        %8261 = vmatprep.subr.bf16.mxu0 0
        %8262 = vmatpush1.bf16.msra.mxu0 0
        %8263 = vmatprep.subr.bf16.mxu0 0
        %8264 = vmatpush1.bf16.msra.mxu0 0
        %8265 = vmatprep.subr.bf16.mxu0 0
        %8266 = vmatpush1.bf16.msra.mxu0 0
        %8267 = vmatprep.subr.bf16.mxu0 0
        %8268 = vmatpush1.bf16.msra.mxu0 0
        %8269 = vmatprep.subr.bf16.mxu0 0
        %8270 = vmatpush1.bf16.msra.mxu0 0
        %8271 = vmatprep.subr.bf16.mxu0 0
        %8272 = vmatpush1.bf16.msra.mxu0 0
        %8273 = vmatprep.subr.bf16.mxu0 0
        %8274 = vmatpush1.bf16.msra.mxu0 0
        %8275 = vmatprep.subr.bf16.mxu0 0
        %8276 = vmatpush1.bf16.msra.mxu0 0
        %8277 = vmatprep.mubr.bf16.mxu0 0
        %8278 = vmatmul.mubr.bf16.gmra.mrb[0].mxu0 %v8225
        %v8279 = vpop.f32.mrb[0].mxu0
        %v8280 = vadd.f32 0.0, %v8279
        %v8281 = vpop.f32.mrb[0].mxu0
        %v8282 = vpop.f32.mrb[0].mxu0
        %v8283 = vadd.f32 0.0, %v8282
        %v8284 = vpop.f32.mrb[0].mxu0
        %8285 = vmatprep.mubr.bf16.mxu0 0
        %8286 = vmatmul.mubr.bf16.gmra.mrb[0].mxu0 %v8228
        %v8287 = vpop.f32.mrb[0].mxu0
        %v8288 = vadd.f32 0.0, %v8287
        %v8289 = vpop.f32.mrb[0].mxu0
        %v8290 = vpop.f32.mrb[0].mxu0
        %v8291 = vadd.f32 0.0, %v8290
        %v8292 = vpop.f32.mrb[0].mxu0
        %8293 = vmatprep.mubr.bf16.mxu0 0
        %8294 = vmatmul.mubr.bf16.gmra.mrb[0].mxu0 %v8231
        %v8295 = vpop.f32.mrb[0].mxu0
        %v8296 = vadd.f32 0.0, %v8295
        %v8297 = vpop.f32.mrb[0].mxu0
        %v8298 = vpop.f32.mrb[0].mxu0
        %v8299 = vadd.f32 0.0, %v8298
        %v8300 = vpop.f32.mrb[0].mxu0
        %8301 = vmatprep.mubr.bf16.mxu0 0
        %8302 = vmatmul.mubr.bf16.gmra.mrb[0].mxu0 %v8234
        %v8303 = vpop.f32.mrb[0].mxu0
        %v8304 = vadd.f32 0.0, %v8303
        %v8305 = vpop.f32.mrb[0].mxu0
        %v8306 = vpop.f32.mrb[0].mxu0
        %v8307 = vadd.f32 0.0, %v8306
        %v8308 = vpop.f32.mrb[0].mxu0
        %8309 = vmatprep.mubr.bf16.mxu0 0
        %8310 = vmatmul.mubr.bf16.gmra.mrb[0].mxu0 %v8237
        %v8311 = vpop.f32.mrb[0].mxu0
        %v8312 = vadd.f32 0.0, %v8311
        %v8313 = vpop.f32.mrb[0].mxu0
        %v8314 = vpop.f32.mrb[0].mxu0
        %v8315 = vadd.f32 0.0, %v8314
        %v8316 = vpop.f32.mrb[0].mxu0
        %8317 = vmatprep.mubr.bf16.mxu0 0
        %8318 = vmatmul.mubr.bf16.gmra.mrb[0].mxu0 %v8240
        %v8319 = vpop.f32.mrb[0].mxu0
        %v8320 = vadd.f32 0.0, %v8319
        %v8321 = vpop.f32.mrb[0].mxu0
        %v8322 = vpop.f32.mrb[0].mxu0
        %v8323 = vpop.f32.mrb[0].mxu0
        %8324 = vdwg.mxu0
        %v8325 = vadd.f32 %v8196, %v8280
        %v8326 = vadd.f32 %v8197, %v8283
        %v8327 = vadd.f32 %v8198, %v8288
        %v8328 = vadd.f32 %v8199, %v8291
        %v8329 = vadd.f32 %v8200, %v8296
        %v8330 = vadd.f32 %v8201, %v8299
        %v8331 = vadd.f32 %v8202, %v8304
        %v8332 = vadd.f32 %v8203, %v8307
        %v8333 = vadd.f32 %v8204, %v8312
        %v8334 = vadd.f32 %v8205, %v8315
        %v8335 = vadd.f32 %v8206, %v8320
        %v8336 = vld [vmem:[%s545] sm:$0x1]
        %v8338 = vlaneseq
        %v8339 = vshrl.u32 %v8338, 7
        %v8340 = vsub.s32 0, %v8339
        %v8341 = vrot.slane %v8336, %v8340
        %v8343 = vmul.f32 %v8325, %v8341
        %v8344 = vmul.f32 %v8326, %v8341
        %v8345 = vmul.f32 %v8327, %v8341
        %v8346 = vmul.f32 %v8328, %v8341
        %v8347 = vmul.f32 %v8329, %v8341
        %v8348 = vmul.f32 %v8330, %v8341
        %v8349 = vmul.f32 %v8331, %v8341
        %v8350 = vmul.f32 %v8332, %v8341
        %v8351 = vmul.f32 %v8333, %v8341
        %v8352 = vmul.f32 %v8334, %v8341
        %v8353 = vmul.f32 %v8335, %v8341
        %v8354 = vld [vmem:[%s548] sm:$0x1]
        %v8356 = vlaneseq
        %v8357 = vshrl.u32 %v8356, 7
        %v8358 = vsub.s32 0, %v8357
        %v8359 = vrot.slane %v8354, %v8358
        %v8361 = vadd.f32 %v8343, %v8359
        %v8362 = vadd.f32 %v8344, %v8359
        %v8363 = vadd.f32 %v8345, %v8359
        %v8364 = vadd.f32 %v8346, %v8359
        %v8365 = vadd.f32 %v8347, %v8359
        %v8366 = vadd.f32 %v8348, %v8359
        %v8367 = vadd.f32 %v8349, %v8359
        %v8368 = vadd.f32 %v8350, %v8359
        %v8369 = vadd.f32 %v8351, %v8359
        %v8370 = vadd.f32 %v8352, %v8359
        %v8371 = vadd.f32 %v8353, %v8359
        %v8372 = vmax.f32 %v8361, 0.0
        %v8373 = vmax.f32 %v8362, 0.0
        %v8374 = vmax.f32 %v8363, 0.0
        %v8375 = vmax.f32 %v8364, 0.0
        %v8376 = vmax.f32 %v8365, 0.0
        %v8377 = vmax.f32 %v8366, 0.0
        %v8378 = vmax.f32 %v8367, 0.0
        %v8379 = vmax.f32 %v8368, 0.0
        %v8380 = vmax.f32 %v8369, 0.0
        %v8381 = vmax.f32 %v8370, 0.0
        %v8382 = vmax.f32 %v8371, 0.0
        %v8383 = vpack.c.bf16 %v8373, %v8372
        %v8384 = vpack.c.bf16 %v8375, %v8374
        %v8385 = vpack.c.bf16 %v8377, %v8376
        %v8386 = vpack.c.bf16 %v8379, %v8378
        %v8387 = vpack.c.bf16 %v8381, %v8380
        %v8388 = vpack.c.bf16 %v8382, %v8382
        %v8395 = vunpack.c.l.b16 %v8383
        %v8396 = vunpack.c.h.b16 %v8383
        %v8397 = vunpack.c.l.b16 %v8384
        %v8398 = vunpack.c.h.b16 %v8384
        %v8399 = vunpack.c.l.b16 %v8385
        %v8400 = vunpack.c.h.b16 %v8385
        %v8401 = vunpack.c.l.b16 %v8386
        %v8402 = vunpack.c.h.b16 %v8386
        %v8403 = vunpack.c.l.b16 %v8387
        %v8404 = vunpack.c.h.b16 %v8387
        %v8405 = vunpack.c.l.b16 %v8388
        %v8406 = vpack.c.b16 %v8395, %v8395
        %v8407 = vpack.c.b16 %v8396, %v8396
        %v8408 = vpack.c.b16 %v8397, %v8397
        %v8409 = vpack.c.b16 %v8398, %v8398
        %v8410 = vpack.c.b16 %v8399, %v8399
        %v8411 = vpack.c.b16 %v8400, %v8400
        %v8412 = vpack.c.b16 %v8401, %v8401
        %v8413 = vpack.c.b16 %v8402, %v8402
        %v8414 = vpack.c.b16 %v8403, %v8403
        %v8415 = vpack.c.b16 %v8404, %v8404
        %v8416 = vpack.c.b16 %v8405, %v8405
        %vm8428 = vcmask 519168
        %8429 = vst.msk [vmem:[%s556] sm:$0xf] %vm8428, %v8406
        %8430 = vst.msk [vmem:[%s556 + $0x4] sm:$0xf] %vm8428, %v8407
        %8431 = vst.msk [vmem:[%s556 + $0x8] sm:$0xf] %vm8428, %v8408
        %8432 = vst.msk [vmem:[%s556 + $0xc] sm:$0xf] %vm8428, %v8409
        %8433 = vst.msk [vmem:[%s556 + $0x10] sm:$0xf] %vm8428, %v8410
        %8434 = vst.msk [vmem:[%s556 + $0x14] sm:$0xf] %vm8428, %v8411
        %8435 = vst.msk [vmem:[%s556 + $0x18] sm:$0xf] %vm8428, %v8412
        %8436 = vst.msk [vmem:[%s556 + $0x1c] sm:$0xf] %vm8428, %v8413
        %8437 = vst.msk [vmem:[%s556 + $0x20] sm:$0xf] %vm8428, %v8414
        %8438 = vst.msk [vmem:[%s556 + $0x24] sm:$0xf] %vm8428, %v8415
        %8439 = vst.msk [vmem:[%s556 + $0x28] sm:$0xf] %vm8428, %v8416
        %p8440 = scmp.lt.s32.totalorder %s20, 1
        %s8441 = scalar_select %p8440, %s20, 1
        %p8442 = scmp.lt.s32.totalorder %s19, 0
        %s8443 = scalar_select %p8442, %s19, 0
        %s8444 = smul.addr %s8441, 11
        %s8445 = sadd.s32 %s8443, %s8444
        %s8446 = smul.addr %s8445, 4
        %s8447 = scalar_lea.vmem %s4, %s8446
        // Predicated region
        $region78: #{tpu_custom_call.1} parent=72 // pred_check
          %p8448 = pneg %p151
        $region79: #{tpu_custom_call.1} parent=72 // pred_check_branch
          %8450 = sbr.rel (%p8448) target = $region81
        $region80: #{tpu_custom_call.1} parent=72 // pred_region
          _
        $region81: #{tpu_custom_call.1} parent=72 // pred_fallthru
          _
      $region73: #{tpu_custom_call.1} parent=5 // pred_fallthru
        _
      %p8451 = scmp.le.s32.totalorder 2, %s10
      // Predicated region
      $region82: #{tpu_custom_call.1} parent=5 // pred_check
        %p8452 = pneg %p8451
      $region83: #{tpu_custom_call.1} parent=5 // pred_check_branch
        %8454 = sbr.rel (%p8452) target = $region85
      $region84: #{tpu_custom_call.1} parent=5 // pred_region
        %s8455 = ssub.s32 %s10, 2
        // Predicated region
        $region86: #{tpu_custom_call.1} parent=84 // pred_check
          %p8456 = pneg %p157
        $region87: #{tpu_custom_call.1} parent=84 // pred_check_branch
          %8458 = sbr.rel (%p8456) target = $region89
        $region88: #{tpu_custom_call.1} parent=84 // pred_region
          %p8459 = scmp.lt.s32.totalorder %s22, 1
          %s8460 = scalar_select %p8459, %s22, 1
          %p8461 = scmp.lt.s32.totalorder %s21, 0
          %s8462 = scalar_select %p8461, %s21, 0
          %s8463 = smul.addr %s8460, 11
          %s8464 = sadd.s32 %s8462, %s8463
          %s8465 = smul.addr %s8464, 4
          %s8466 = scalar_lea.vmem %s4, %s8465
        $region89: #{tpu_custom_call.1} parent=84 // pred_fallthru
          _
      $region85: #{tpu_custom_call.1} parent=5 // pred_fallthru
        _
    $region6: #{tpu_custom_call.1} parent=1 // loop_footer
      %s14 = sadd.s32 1, %s10
    $region7: #{tpu_custom_call.1} parent=1 // loop_footer_branch
      %9 = sbr.rel target = $region3
    $region8: #{tpu_custom_call.1} parent=1 // loop_exit
      _

</llo_original>
